<compile_context>
chip_gen: v7x
topology: tpu7x:2x2x1
jax: 0.10.0
libtpu: 0.0.40
codegen_flags: <defaults>
</compile_context>

<pallas_src>
import functools

import jax
import jax.numpy as jnp
from jax.experimental import pallas as pl
from jax.experimental.pallas import tpu as pltpu


# ----------------------------------------------------------------------------
# Generation-dependent budgets / tiling constants
# ----------------------------------------------------------------------------
def _tpu_vmem_capacity_bytes():
    try:
        return int(pltpu.get_tpu_info().vmem_capacity_bytes)
    except Exception:
        return 64 * 1024 * 1024          # conservative (v7x-sized) fallback


_VMEM_CAP = _tpu_vmem_capacity_bytes()
_BIG_VMEM = _VMEM_CAP >= 100 * 1024 * 1024          # v5e / v6e (128 MiB)

_VMEM_LIMIT_BYTES = (96 if _BIG_VMEM else 48) * 1024 * 1024
_LN_TARGET_ROWS = 2048 if _BIG_VMEM else 1024
_MLP_TARGET_ROWS = 1024 if _BIG_VMEM else 256
_ATTN_TARGET_ROWS = 1024 if _BIG_VMEM else 512       # spatial attention G*L rows
_T_ATTN_TARGET_ROWS = 2048 if _BIG_VMEM else 1024    # temporal attention Gn*T rows
_PATCH_TARGET_ROWS = 1024 if _BIG_VMEM else 512


def _cparams(n_grid_dims):
    return pltpu.CompilerParams(
        dimension_semantics=("parallel",) * n_grid_dims,
        vmem_limit_bytes=_VMEM_LIMIT_BYTES,
    )


def _round_up(x, m):
    return (x + m - 1) // m * m


def _row_tile(M, target):
    # Row tile for 2-D (rows, D) blocks: multiple of 8 (or the full dim), and
    # split into >=2 grid steps when possible so v7x's 2 TCs both get work.
    TM = min(M, target)
    if TM == M:
        half = _round_up(pl.cdiv(M, 2), 8)
        if half < M:
            TM = half
    return TM


def _seq_tile(Bseq, L, target_rows):
    # Leading (sequence) tile for (G, L, D) attention blocks; no (8,128)
    # constraint on the leading dim, but keep >=2 grid steps when possible.
    G = max(1, min(Bseq, max(1, target_rows // max(L, 1))))
    if pl.cdiv(Bseq, G) < 2 and Bseq >= 2:
        G = pl.cdiv(Bseq, 2)
    return G


def _resident(shape, n_grid_dims):
    # Grid-invariant operand (weights): constant index_map, single-buffered.
    zeros = (0,) * len(shape)
    return pl.BlockSpec(shape, lambda *_: zeros, pipeline_mode=pl.Buffered(1))


# ----------------------------------------------------------------------------
# Pallas kernels
# ----------------------------------------------------------------------------
def _patch_embed_kernel(a_ref, w_ref, o_ref):
    # a: (TM, C*P*P) f32, w: (C*P*P, width) bf16 (pre-transposed) -> (TM, width)
    o_ref[...] = jnp.dot(
        a_ref[...].astype(jnp.bfloat16), w_ref[...],
        preferred_element_type=jnp.float32,
    ).astype(o_ref.dtype)


def _layernorm_kernel(x_ref, g_ref, b_ref, o_ref):
    # fp32 LayerNorm over the last dim (fp16-safe LayerNorm subclass semantics)
    x = x_ref[...].astype(jnp.float32)
    mean = jnp.mean(x, axis=-1, keepdims=True)
    var = jnp.mean(jnp.square(x - mean), axis=-1, keepdims=True)
    y = (x - mean) * jax.lax.rsqrt(var + 1e-5)
    y = y * g_ref[...].astype(jnp.float32) + b_ref[...].astype(jnp.float32)
    o_ref[...] = y.astype(o_ref.dtype)


def _mha_ln(x, ln_g, ln_b, wqkv, bqkv, wo, bo, ctx_scr, n_head):
    """x: (G, L, D) f32 value.  Returns x + MHA(LayerNorm(x)), f32."""
    G, L, D = x.shape
    hd = D // n_head
    M = G * L

    # Fused fp32 LayerNorm.
    mean = jnp.mean(x, axis=-1, keepdims=True)
    var = jnp.mean(jnp.square(x - mean), axis=-1, keepdims=True)
    xn = (x - mean) * jax.lax.rsqrt(var + 1e-5)
    xn = xn * ln_g + ln_b

    # One fused QKV projection: (M, D) @ (D, 3D), bf16 MXU inputs, f32 acc.
    # Bias add + bf16 cast in one pass (no long-lived f32 copy of qkv).
    qkv = (jnp.dot(xn.reshape(M, D).astype(jnp.bfloat16), wqkv,
                   preferred_element_type=jnp.float32)
           + bqkv).astype(jnp.bfloat16)                         # (M, 3D)

    scale = 1.0 / float(hd) ** 0.5
    # Per-head scores/context: only the tiny (G, L, L) score/prob tensors live
    # per iteration; each head's context is written into a lane-aligned (M, D)
    # scratch so the output projection below is ONE full-K MXU matmul.
    # TODO(synk): a fully (G*H)-batched einsum needs a rank-4 relayout in-kernel;
    # kept as per-head G-batched matmuls (static slices) for robust Mosaic lowering.
    for h in range(n_head):
        q = qkv[:, h * hd:(h + 1) * hd].reshape(G, L, hd)
        k = qkv[:, D + h * hd:D + (h + 1) * hd].reshape(G, L, hd)
        v = qkv[:, 2 * D + h * hd:2 * D + (h + 1) * hd].reshape(G, L, hd)
        s = jnp.einsum('bqd,bkd->bqk', q, k,
                       preferred_element_type=jnp.float32) * scale
        s = s - jnp.max(s, axis=-1, keepdims=True)
        p = jnp.exp(s)
        p = p * pl.reciprocal(jnp.sum(p, axis=-1, keepdims=True), approx=True)
        ctx = jnp.einsum('bqk,bkd->bqd', p.astype(jnp.bfloat16), v,
                         preferred_element_type=jnp.float32)
        ctx_scr[:, h * hd:(h + 1) * hd] = ctx.reshape(M, hd)

    # Single output projection over the full contraction depth D.
    out = jnp.dot(ctx_scr[...].astype(jnp.bfloat16), wo,
                  preferred_element_type=jnp.float32) + bo       # (M, D)
    return x + out.reshape(G, L, D)


def _attn_block_kernel(x_ref, g_ref, b_ref, wqkv_ref, bqkv_ref, wo_ref, bo_ref,
                       o_ref, ctx_scr, *, n_head):
    # x_ref: (G, L, D).  Computes  x + MHA(LayerNorm(x))  for G sequences.
    y = _mha_ln(x_ref[...].astype(jnp.float32),
                g_ref[...].astype(jnp.float32),
                b_ref[...].astype(jnp.float32),
                wqkv_ref[...], bqkv_ref[...].astype(jnp.float32),
                wo_ref[...], bo_ref[...].astype(jnp.float32),
                ctx_scr, n_head)
    o_ref[...] = y.astype(o_ref.dtype)


def _t_attn_block_kernel(x_ref, g_ref, b_ref, wqkv_ref, bqkv_ref, wo_ref,
                         bo_ref, o_ref, xt_scr, ctx_scr, *, n_head):
    # x_ref: (1, T, Gn, D) block of the (B, T, N, D) activation.  Temporal
    # attention runs over T for each of the Gn tokens; the (T, Gn) <-> (Gn, T)
    # swap is done in VMEM with T small static slab copies (no HBM transpose).
    T = x_ref.shape[1]
    for t in range(T):
        xt_scr[:, t, :] = x_ref[0, t]                      # (Gn, D)
    y = _mha_ln(xt_scr[...].astype(jnp.float32),
                g_ref[...].astype(jnp.float32),
                b_ref[...].astype(jnp.float32),
                wqkv_ref[...], bqkv_ref[...].astype(jnp.float32),
                wo_ref[...], bo_ref[...].astype(jnp.float32),
                ctx_scr, n_head)                           # (Gn, T, D)
    for t in range(T):
        o_ref[0, t] = y[:, t, :].astype(o_ref.dtype)


def _mlp_block_kernel(x_ref, g_ref, b_ref, w1_ref, b1_ref, w2_ref, b2_ref,
                      o_ref):
    # x_ref: (TM, D).  Computes  x + MLP(LayerNorm(x))  with QuickGELU.
    x = x_ref[...].astype(jnp.float32)
    mean = jnp.mean(x, axis=-1, keepdims=True)
    var = jnp.mean(jnp.square(x - mean), axis=-1, keepdims=True)
    xn = (x - mean) * jax.lax.rsqrt(var + 1e-5)
    xn = xn * g_ref[...].astype(jnp.float32) + b_ref[...].astype(jnp.float32)
    h = jnp.dot(xn.astype(jnp.bfloat16), w1_ref[...],
                preferred_element_type=jnp.float32) + b1_ref[...].astype(jnp.float32)
    h = h * jax.nn.sigmoid(1.702 * h)                      # QuickGELU in f32
    out = jnp.dot(h.astype(jnp.bfloat16), w2_ref[...],
                  preferred_element_type=jnp.float32) + b2_ref[...].astype(jnp.float32)
    o_ref[...] = (x + out).astype(o_ref.dtype)


# ----------------------------------------------------------------------------
# Wrappers around pallas_call
# ----------------------------------------------------------------------------
def patch_embed(patches, w_t):
    # patches: (M, C*P*P) f32, w_t: (C*P*P, width) bf16 (pre-transposed)
    M, K = patches.shape
    D = w_t.shape[1]
    TM = _row_tile(M, _PATCH_TARGET_ROWS)
    return pl.pallas_call(
        _patch_embed_kernel,
        out_shape=jax.ShapeDtypeStruct((M, D), patches.dtype),
        grid=(pl.cdiv(M, TM),),
        in_specs=[pl.BlockSpec((TM, K), lambda i: (i, 0)),
                  _resident((K, D), 1)],
        out_specs=pl.BlockSpec((TM, D), lambda i: (i, 0)),
        compiler_params=_cparams(1),
    )(patches, w_t)


def layernorm(x, gamma, beta):
    shape = x.shape
    D = shape[-1]
    x2 = x.reshape(-1, D)
    M = x2.shape[0]
    TM = _row_tile(M, _LN_TARGET_ROWS)
    out = pl.pallas_call(
        _layernorm_kernel,
        out_shape=jax.ShapeDtypeStruct((M, D), x.dtype),
        grid=(pl.cdiv(M, TM),),
        in_specs=[pl.BlockSpec((TM, D), lambda i: (i, 0)),
                  pl.BlockSpec((1, D), lambda i: (0, 0)),
                  pl.BlockSpec((1, D), lambda i: (0, 0))],
        out_specs=pl.BlockSpec((TM, D), lambda i: (i, 0)),
        compiler_params=_cparams(1),
    )(x2, gamma.reshape(1, D), beta.reshape(1, D))
    return out.reshape(shape)


def attention_block(x, ln_g, ln_b, wqkv, bqkv, wo, bo, n_head, target_rows):
    # x: (Bseq, L, D); returns x + MHA(LN(x))  (LN + residual fused in-kernel)
    Bseq, L, D = x.shape
    G = _seq_tile(Bseq, L, target_rows)
    kernel = functools.partial(_attn_block_kernel, n_head=n_head)
    return pl.pallas_call(
        kernel,
        out_shape=jax.ShapeDtypeStruct((Bseq, L, D), x.dtype),
        grid=(pl.cdiv(Bseq, G),),
        in_specs=[
            pl.BlockSpec((G, L, D), lambda i: (i, 0, 0)),   # x (residual in)
            pl.BlockSpec((1, 1, D), lambda i: (0, 0, 0)),   # LN gamma
            pl.BlockSpec((1, 1, D), lambda i: (0, 0, 0)),   # LN beta
            _resident((D, 3 * D), 1),                       # fused QKV weight
            pl.BlockSpec((1, 3 * D), lambda i: (0, 0)),     # fused QKV bias
            _resident((D, D), 1),                           # out-proj weight
            pl.BlockSpec((1, D), lambda i: (0, 0)),         # out-proj bias
        ],
        out_specs=pl.BlockSpec((G, L, D), lambda i: (i, 0, 0)),
        scratch_shapes=[pltpu.VMEM((G * L, D), jnp.float32)],
        compiler_params=_cparams(1),
    )(x, ln_g, ln_b, wqkv, bqkv, wo, bo)


def temporal_attention_block(x4, ln_g, ln_b, wqkv, bqkv, wo, bo, n_head,
                             target_rows):
    # x4: (B, T, N, D); temporal attention over T per (b, n) token, with the
    # layout swap done in VMEM inside the kernel (no HBM transpose round trip).
    B, T, N, D = x4.shape
    rows = max(1, target_rows // max(T, 1))
    if rows >= N:
        Gn = N
    else:
        Gn = max(8, (rows // 8) * 8)
        if Gn >= N:
            Gn = N
    if B * pl.cdiv(N, Gn) < 2:                   # keep >=2 steps for megacore
        half = _round_up(pl.cdiv(N, 2), 8)
        if half < N:
            Gn = half
    grid = (B, pl.cdiv(N, Gn))
    kernel = functools.partial(_t_attn_block_kernel, n_head=n_head)
    return pl.pallas_call(
        kernel,
        out_shape=jax.ShapeDtypeStruct((B, T, N, D), x4.dtype),
        grid=grid,
        in_specs=[
            pl.BlockSpec((1, T, Gn, D), lambda b, n: (b, 0, n, 0)),
            pl.BlockSpec((1, 1, D), lambda b, n: (0, 0, 0)),
            pl.BlockSpec((1, 1, D), lambda b, n: (0, 0, 0)),
            _resident((D, 3 * D), 2),
            pl.BlockSpec((1, 3 * D), lambda b, n: (0, 0)),
            _resident((D, D), 2),
            pl.BlockSpec((1, D), lambda b, n: (0, 0)),
        ],
        out_specs=pl.BlockSpec((1, T, Gn, D), lambda b, n: (b, 0, n, 0)),
        scratch_shapes=[pltpu.VMEM((Gn, T, D), x4.dtype),
                        pltpu.VMEM((Gn * T, D), jnp.float32)],
        compiler_params=_cparams(2),
    )(x4, ln_g, ln_b, wqkv, bqkv, wo, bo)


def mlp_block(x, ln_g, ln_b, w1, b1, w2, b2):
    # x: (..., D); returns x + MLP(LN(x)).  Weights already (in, out) bf16.
    shape = x.shape
    D = shape[-1]
    H = w1.shape[1]
    x2 = x.reshape(-1, D)
    M = x2.shape[0]
    TM = _row_tile(M, _MLP_TARGET_ROWS)
    out = pl.pallas_call(
        _mlp_block_kernel,
        out_shape=jax.ShapeDtypeStruct((M, D), x.dtype),
        grid=(pl.cdiv(M, TM),),
        in_specs=[
            pl.BlockSpec((TM, D), lambda i: (i, 0)),
            pl.BlockSpec((1, D), lambda i: (0, 0)),          # LN gamma
            pl.BlockSpec((1, D), lambda i: (0, 0)),          # LN beta
            _resident((D, H), 1),                            # w1 (resident)
            pl.BlockSpec((1, H), lambda i: (0, 0)),
            _resident((H, D), 1),                            # w2 (resident)
            pl.BlockSpec((1, D), lambda i: (0, 0)),
        ],
        out_specs=pl.BlockSpec((TM, D), lambda i: (i, 0)),
        compiler_params=_cparams(1),
    )(x2, ln_g, ln_b, w1, b1, w2, b2)
    return out.reshape(shape)


# ----------------------------------------------------------------------------
# Parameter construction (PyTorch layouts) + one-time fast-layout preparation
# ----------------------------------------------------------------------------
def make_params(key, *, width, patch_size, input_resolution, layers, num_frames):
    D = width
    Np = (input_resolution // patch_size) ** 2
    scale = width ** (-0.5)

    def nrm(k, shape, std=0.02):
        return std * jax.random.normal(k, shape, dtype=jnp.float32)

    keys = jax.random.split(key, 4 + layers)
    params = {
        "conv1_w": nrm(keys[0], (width, 3, patch_size, patch_size), std=0.05),
        "class_embedding": scale * jax.random.normal(keys[1], (width,), jnp.float32),
        "positional_embedding": scale * jax.random.normal(keys[2], (Np + 1, width),
                                                          jnp.float32),
        "ln_pre_g": jnp.ones((D,), jnp.float32),
        "ln_pre_b": jnp.zeros((D,), jnp.float32),
        "ln_post_g": jnp.ones((D,), jnp.float32),
        "ln_post_b": jnp.zeros((D,), jnp.float32),
        "blocks": [],
    }
    for li in range(layers):
        bkeys = jax.random.split(keys[4 + li], 10)
        blk = {
            "t_norm_g": jnp.ones((D,), jnp.float32),
            "t_norm_b": jnp.zeros((D,), jnp.float32),
            "t_wq": nrm(bkeys[0], (D, D)), "t_wk": nrm(bkeys[1], (D, D)),
            "t_wv": nrm(bkeys[2], (D, D)),
            "t_bq": jnp.zeros((D,), jnp.float32),
            "t_bk": jnp.zeros((D,), jnp.float32),
            "t_bv": jnp.zeros((D,), jnp.float32),
            "t_wo": nrm(bkeys[3], (D, D)), "t_bo": jnp.zeros((D,), jnp.float32),
            "ln1_g": jnp.ones((D,), jnp.float32),
            "ln1_b": jnp.zeros((D,), jnp.float32),
            "wq": nrm(bkeys[4], (D, D)), "wk": nrm(bkeys[5], (D, D)),
            "wv": nrm(bkeys[6], (D, D)),
            "bq": jnp.zeros((D,), jnp.float32),
            "bk": jnp.zeros((D,), jnp.float32),
            "bv": jnp.zeros((D,), jnp.float32),
            "wo": nrm(bkeys[7], (D, D)), "bo": jnp.zeros((D,), jnp.float32),
            "ln2_g": jnp.ones((D,), jnp.float32),
            "ln2_b": jnp.zeros((D,), jnp.float32),
            "w1": nrm(bkeys[8], (4 * D, D)), "b1": jnp.zeros((4 * D,), jnp.float32),
            "w2": nrm(bkeys[9], (D, 4 * D)), "b2": jnp.zeros((D,), jnp.float32),
        }
        params["blocks"].append(blk)
    return params


def prepare_params(params):
    """One-time conversion to kernel-ready layouts: fused QKV, (in,out) bf16
    weights, pre-broadcast biases / LN params.  Call OUTSIDE the jitted fwd."""
    D = params["conv1_w"].shape[0]
    bf = jnp.bfloat16

    def attn_pack(wq, wk, wv, bq, bk, bv, wo, bo):
        return {
            "wqkv": jnp.concatenate([wq, wk, wv], axis=0).T.astype(bf),  # (D,3D)
            "bqkv": jnp.concatenate([bq, bk, bv], axis=0).reshape(1, 3 * D),
            "wo": wo.T.astype(bf),                                       # (D,D)
            "bo": bo.reshape(1, D),
        }

    fp = {
        "patch_w": params["conv1_w"].reshape(D, -1).T.astype(bf),        # (CPP,D)
        "class_embedding": params["class_embedding"],
        "positional_embedding": params["positional_embedding"],
        "ln_pre_g": params["ln_pre_g"], "ln_pre_b": params["ln_pre_b"],
        "ln_post_g": params["ln_post_g"], "ln_post_b": params["ln_post_b"],
        "blocks": [],
    }
    for blk in params["blocks"]:
        t = attn_pack(blk["t_wq"], blk["t_wk"], blk["t_wv"],
                      blk["t_bq"], blk["t_bk"], blk["t_bv"],
                      blk["t_wo"], blk["t_bo"])
        s = attn_pack(blk["wq"], blk["wk"], blk["wv"],
                      blk["bq"], blk["bk"], blk["bv"],
                      blk["wo"], blk["bo"])
        fp["blocks"].append({
            "t_ln_g": blk["t_norm_g"].reshape(1, 1, D),
            "t_ln_b": blk["t_norm_b"].reshape(1, 1, D),
            "t_wqkv": t["wqkv"], "t_bqkv": t["bqkv"],
            "t_wo": t["wo"], "t_bo": t["bo"],
            "ln1_g": blk["ln1_g"].reshape(1, 1, D),
            "ln1_b": blk["ln1_b"].reshape(1, 1, D),
            "wqkv": s["wqkv"], "bqkv": s["bqkv"], "wo": s["wo"], "bo": s["bo"],
            "ln2_g": blk["ln2_g"].reshape(1, D),
            "ln2_b": blk["ln2_b"].reshape(1, D),
            "w1": blk["w1"].T.astype(bf), "b1": blk["b1"].reshape(1, 4 * D),
            "w2": blk["w2"].T.astype(bf), "b2": blk["b2"].reshape(1, D),
        })
    return fp


# ----------------------------------------------------------------------------
# Forward pass (mirrors TimeSformer.forward, eval mode)
# ----------------------------------------------------------------------------
def timesformer_forward(x, fparams, *, patch_size, n_head, num_frames):
    # x: (B, C, T, H, W)
    B, C, T, H, W = x.shape
    assert T == num_frames
    BT = B * T
    P = patch_size
    Hp, Wp = H // P, W // P
    Np = Hp * Wp
    D = fparams["positional_embedding"].shape[1]

    # 'b c t h w -> (b t) c h w'
    xb = x.transpose(0, 2, 1, 3, 4).reshape(BT, C, H, W)

    # Conv2d(kernel=stride=P, no bias) == patch extraction + matmul
    patches = (
        xb.reshape(BT, C, Hp, P, Wp, P)
        .transpose(0, 2, 4, 1, 3, 5)                     # (BT, Hp, Wp, C, P, P)
        .reshape(BT * Np, C * P * P)
    )
    feat = patch_embed(patches, fparams["patch_w"]).reshape(BT, Np, D)

    # prepend class token, add positional embedding
    cls = jnp.broadcast_to(fparams["class_embedding"].reshape(1, 1, D), (BT, 1, D))
    h = jnp.concatenate([cls, feat], axis=1)             # (BT, N, D)
    h = h + fparams["positional_embedding"][None]
    h = layernorm(h, fparams["ln_pre_g"], fparams["ln_pre_b"])

    N = Np + 1
    # Transformer (batch-first equivalent of the seq-first PyTorch code).
    # TODO(synk): DropPath is identity in eval mode; attn_mask is None.
    for blk in fparams["blocks"]:
        # temporal attention over T per (b, n) token; the (BT,N,D)->(B,T,N,D)
        # reshape is metadata-only, the layout swap happens in VMEM in-kernel.
        h4 = temporal_attention_block(
            h.reshape(B, T, N, D), blk["t_ln_g"], blk["t_ln_b"],
            blk["t_wqkv"], blk["t_bqkv"], blk["t_wo"], blk["t_bo"],
            n_head, _T_ATTN_TARGET_ROWS)
        h = h4.reshape(BT, N, D)

        # spatial attention over tokens (fused LN + residual)
        h = attention_block(h, blk["ln1_g"], blk["ln1_b"],
                            blk["wqkv"], blk["bqkv"], blk["wo"], blk["bo"],
                            n_head, _ATTN_TARGET_ROWS)

        # MLP with QuickGELU (fused LN + residual)
        h = mlp_block(h, blk["ln2_g"], blk["ln2_b"],
                      blk["w1"], blk["b1"], blk["w2"], blk["b2"])

    # ln_post only on the class token (only token used downstream)
    cls_tok = layernorm(h[:, 0], fparams["ln_post_g"], fparams["ln_post_b"])
    out = cls_tok.reshape(B, T, D).transpose(0, 2, 1)     # '(b t) m -> b m t'
    return out[:, :, :, None, None]                       # (B, width, T, 1, 1)


# ----------------------------------------------------------------------------
if __name__ == "__main__":
    # Small config consistent with the module:
    input_resolution = 16
    patch_size = 8
    width = 32
    layers = 2
    heads = 4
    num_frames = 2
    B = 2

    key = jax.random.PRNGKey(0)
    pkey, xkey = jax.random.split(key)
    params = make_params(pkey, width=width, patch_size=patch_size,
                         input_resolution=input_resolution, layers=layers,
                         num_frames=num_frames)
    fparams = prepare_params(params)       # one-time weight layout preparation

    x = jax.random.normal(
        xkey, (B, 3, num_frames, input_resolution, input_resolution), jnp.float32
    )

    fwd = jax.jit(functools.partial(
        timesformer_forward, patch_size=patch_size, n_head=heads,
        num_frames=num_frames))
    out = fwd(x, fparams)
    out = jax.block_until_ready(out)
    assert out.shape == (B, width, num_frames, 1, 1), out.shape
    assert bool(jnp.all(jnp.isfinite(out)))
    print("KERNEL_OK")
</pallas_src>

<mosaic_0001>
module attributes {stable_mosaic.version = 11 : i64} {
  func.func @_patch_embed_kernel(%arg0: i32, %arg1: memref<8x192xf32, #tpu.memory_space<vmem>>, %arg2: memref<192x32xbf16, #tpu.memory_space<vmem>>, %arg3: memref<8x32xf32, #tpu.memory_space<vmem>>) attributes {dimension_semantics = [#tpu.dimension_semantics<parallel>], iteration_bounds = array<i64: 2>, scalar_prefetch = 0 : i64, scratch_operands = 0 : i64, tpu.core_type = #tpu.core_type<tc>, window_params = [{transform_indices = @transform_0, window_bounds = array<i64: 8, 192>}, {pipeline_mode = #tpu.pipeline_mode<synchronous>, transform_indices = @transform_1, window_bounds = array<i64: 192, 32>}, {transform_indices = @transform_2, window_bounds = array<i64: 8, 32>}]} {
    %c0 = arith.constant 0 : index
    %c0_0 = arith.constant 0 : index
    %0 = vector.load %arg1[%c0, %c0_0] : memref<8x192xf32, #tpu.memory_space<vmem>>, vector<8x192xf32>
    %1 = arith.truncf %0 : vector<8x192xf32> to vector<8x192xbf16>
    %c0_1 = arith.constant 0 : index
    %c0_2 = arith.constant 0 : index
    %2 = vector.load %arg2[%c0_1, %c0_2] : memref<192x32xbf16, #tpu.memory_space<vmem>>, vector<192x32xbf16>
    %cst = arith.constant dense<0.000000e+00> : vector<8x32xf32>
    %3 = tpu.matmul %1, %2, %cst {dimension_numbers = #tpu.dot_dimension_numbers<[1], [0], [0], [1], [0, 0, 1, 1], [], []>} : vector<8x192xbf16>, vector<192x32xbf16>, vector<8x32xf32> -> vector<8x32xf32>
    %c0_3 = arith.constant 0 : index
    %c0_4 = arith.constant 0 : index
    %4 = vector.load %arg3[%c0_3, %c0_4] : memref<8x32xf32, #tpu.memory_space<vmem>>, vector<8x32xf32>
    tpu.vector_store %arg3[%c0_3, %c0_4], %3 {strides = array<i32>} : memref<8x32xf32, #tpu.memory_space<vmem>>, vector<8x32xf32>,
    return
  }
  func.func @transform_0(%arg0: i32) -> (i32, i32) {
    %c0_i32 = arith.constant 0 : i32
    %c0_i32_0 = arith.constant 0 : i32
    return %arg0, %c0_i32 : i32, i32
  }
  func.func @transform_1(%arg0: i32) -> (i32, i32) {
    %c0_i32 = arith.constant 0 : i32
    %c0_i32_0 = arith.constant 0 : i32
    %c0_i32_1 = arith.constant 0 : i32
    return %c0_i32, %c0_i32_0 : i32, i32
  }
  func.func @transform_2(%arg0: i32) -> (i32, i32) {
    %c0_i32 = arith.constant 0 : i32
    %c0_i32_0 = arith.constant 0 : i32
    return %arg0, %c0_i32 : i32, i32
  }
}

module attributes {stable_mosaic.version = 11 : i64} {
  func.func @_attn_block_kernel(%arg0: i32, %arg1: memref<2x5x32xf32, #tpu.memory_space<vmem>>, %arg2: memref<1x1x32xf32, #tpu.memory_space<vmem>>, %arg3: memref<1x1x32xf32, #tpu.memory_space<vmem>>, %arg4: memref<32x96xbf16, #tpu.memory_space<vmem>>, %arg5: memref<1x96xf32, #tpu.memory_space<vmem>>, %arg6: memref<32x32xbf16, #tpu.memory_space<vmem>>, %arg7: memref<1x32xf32, #tpu.memory_space<vmem>>, %arg8: memref<2x5x32xf32, #tpu.memory_space<vmem>>, %arg9: memref<10x32xf32, #tpu.memory_space<vmem>>) attributes {dimension_semantics = [#tpu.dimension_semantics<parallel>], iteration_bounds = array<i64: 2>, scalar_prefetch = 0 : i64, scratch_operands = 1 : i64, tpu.core_type = #tpu.core_type<tc>, window_params = [{transform_indices = @transform_0, window_bounds = array<i64: 2, 5, 32>}, {pipeline_mode = #tpu.pipeline_mode<synchronous>, transform_indices = @transform_1, window_bounds = array<i64: 1, 1, 32>}, {pipeline_mode = #tpu.pipeline_mode<synchronous>, transform_indices = @transform_2, window_bounds = array<i64: 1, 1, 32>}, {pipeline_mode = #tpu.pipeline_mode<synchronous>, transform_indices = @transform_3, window_bounds = array<i64: 32, 96>}, {pipeline_mode = #tpu.pipeline_mode<synchronous>, transform_indices = @transform_4, window_bounds = array<i64: 1, 96>}, {pipeline_mode = #tpu.pipeline_mode<synchronous>, transform_indices = @transform_5, window_bounds = array<i64: 32, 32>}, {pipeline_mode = #tpu.pipeline_mode<synchronous>, transform_indices = @transform_6, window_bounds = array<i64: 1, 32>}, {transform_indices = @transform_7, window_bounds = array<i64: 2, 5, 32>}]} {
    %c0 = arith.constant 0 : index
    %c0_0 = arith.constant 0 : index
    %c0_1 = arith.constant 0 : index
    %0 = vector.load %arg1[%c0, %c0_0, %c0_1] : memref<2x5x32xf32, #tpu.memory_space<vmem>>, vector<2x5x32xf32>
    %c0_2 = arith.constant 0 : index
    %c0_3 = arith.constant 0 : index
    %c0_4 = arith.constant 0 : index
    %1 = vector.load %arg2[%c0_2, %c0_3, %c0_4] : memref<1x1x32xf32, #tpu.memory_space<vmem>>, vector<1x1x32xf32>
    %c0_5 = arith.constant 0 : index
    %c0_6 = arith.constant 0 : index
    %c0_7 = arith.constant 0 : index
    %2 = vector.load %arg3[%c0_5, %c0_6, %c0_7] : memref<1x1x32xf32, #tpu.memory_space<vmem>>, vector<1x1x32xf32>
    %c0_8 = arith.constant 0 : index
    %c0_9 = arith.constant 0 : index
    %3 = vector.load %arg4[%c0_8, %c0_9] : memref<32x96xbf16, #tpu.memory_space<vmem>>, vector<32x96xbf16>
    %c0_10 = arith.constant 0 : index
    %c0_11 = arith.constant 0 : index
    %4 = vector.load %arg5[%c0_10, %c0_11] : memref<1x96xf32, #tpu.memory_space<vmem>>, vector<1x96xf32>
    %c0_12 = arith.constant 0 : index
    %c0_13 = arith.constant 0 : index
    %5 = vector.load %arg6[%c0_12, %c0_13] : memref<32x32xbf16, #tpu.memory_space<vmem>>, vector<32x32xbf16>
    %c0_14 = arith.constant 0 : index
    %c0_15 = arith.constant 0 : index
    %6 = vector.load %arg7[%c0_14, %c0_15] : memref<1x32xf32, #tpu.memory_space<vmem>>, vector<1x32xf32>
    %cst = arith.constant dense<0.000000e+00> : vector<2x5xf32>
    %7 = vector.multi_reduction <add>, %0, %cst [2] : vector<2x5x32xf32> to vector<2x5xf32>
    %8 = vector.shape_cast %7 : vector<2x5xf32> to vector<2x5x1xf32>
    %cst_16 = arith.constant 3.200000e+01 : f32
    %9 = vector.broadcast %cst_16 : f32 to vector<2x5x1xf32>
    %10 = arith.divf %8, %9 : vector<2x5x1xf32>
    %11 = vector.broadcast %10 : vector<2x5x1xf32> to vector<2x5x32xf32>
    %12 = arith.subf %0, %11 : vector<2x5x32xf32>
    %13 = arith.mulf %12, %12 : vector<2x5x32xf32>
    %cst_17 = arith.constant dense<0.000000e+00> : vector<2x5xf32>
    %14 = vector.multi_reduction <add>, %13, %cst_17 [2] : vector<2x5x32xf32> to vector<2x5xf32>
    %15 = vector.shape_cast %14 : vector<2x5xf32> to vector<2x5x1xf32>
    %cst_18 = arith.constant 3.200000e+01 : f32
    %16 = vector.broadcast %cst_18 : f32 to vector<2x5x1xf32>
    %17 = arith.divf %15, %16 : vector<2x5x1xf32>
    %18 = vector.broadcast %10 : vector<2x5x1xf32> to vector<2x5x32xf32>
    %19 = arith.subf %0, %18 : vector<2x5x32xf32>
    %cst_19 = arith.constant 9.99999974E-6 : f32
    %20 = vector.broadcast %cst_19 : f32 to vector<2x5x1xf32>
    %21 = arith.addf %17, %20 : vector<2x5x1xf32>
    %22 = math.rsqrt %21 : vector<2x5x1xf32>
    %23 = vector.broadcast %22 : vector<2x5x1xf32> to vector<2x5x32xf32>
    %24 = arith.mulf %19, %23 : vector<2x5x32xf32>
    %25 = vector.broadcast %1 : vector<1x1x32xf32> to vector<2x5x32xf32>
    %26 = arith.mulf %24, %25 : vector<2x5x32xf32>
    %27 = vector.broadcast %2 : vector<1x1x32xf32> to vector<2x5x32xf32>
    %28 = arith.addf %26, %27 : vector<2x5x32xf32>
    %29 = vector.shape_cast %28 : vector<2x5x32xf32> to vector<10x32xf32>
    %30 = arith.truncf %29 : vector<10x32xf32> to vector<10x32xbf16>
    %cst_20 = arith.constant dense<0.000000e+00> : vector<10x96xf32>
    %31 = tpu.matmul %30, %3, %cst_20 {dimension_numbers = #tpu.dot_dimension_numbers<[1], [0], [0], [1], [0, 0, 1, 1], [], []>} : vector<10x32xbf16>, vector<32x96xbf16>, vector<10x96xf32> -> vector<10x96xf32>
    %32 = vector.broadcast %4 : vector<1x96xf32> to vector<10x96xf32>
    %33 = arith.addf %31, %32 : vector<10x96xf32>
    %34 = arith.truncf %33 : vector<10x96xf32> to vector<10x96xbf16>
    %35 = vector.extract_strided_slice %34 {offsets = [0, 0], sizes = [10, 8], strides = [1, 1]} : vector<10x96xbf16> to vector<10x8xbf16>
    %36 = vector.shape_cast %35 : vector<10x8xbf16> to vector<2x5x8xbf16>
    %37 = vector.extract_strided_slice %34 {offsets = [0, 32], sizes = [10, 8], strides = [1, 1]} : vector<10x96xbf16> to vector<10x8xbf16>
    %38 = vector.shape_cast %37 : vector<10x8xbf16> to vector<2x5x8xbf16>
    %39 = vector.extract_strided_slice %34 {offsets = [0, 64], sizes = [10, 8], strides = [1, 1]} : vector<10x96xbf16> to vector<10x8xbf16>
    %40 = vector.shape_cast %39 : vector<10x8xbf16> to vector<2x5x8xbf16>
    "tpu.trace_start"() <{level = 10 : i32, message = "bqd,bkd->bqk"}> : () -> ()
    %cst_21 = arith.constant dense<0.000000e+00> : vector<2x5x5xf32>
    %41 = tpu.matmul %36, %38, %cst_21 {dimension_numbers = #tpu.dot_dimension_numbers<[2], [2], [1], [1], [0, 0, 0, 1, 1, 1], [0], [0]>} : vector<2x5x8xbf16>, vector<2x5x8xbf16>, vector<2x5x5xf32> -> vector<2x5x5xf32>
    "tpu.trace_stop"() : () -> ()
    %cst_22 = arith.constant 0.353553385 : f32
    %42 = vector.broadcast %cst_22 : f32 to vector<2x5x5xf32>
    %43 = arith.mulf %41, %42 : vector<2x5x5xf32>
    %cst_23 = arith.constant dense<0xFF800000> : vector<2x5xf32>
    %44 = vector.multi_reduction <maximumf>, %43, %cst_23 [2] : vector<2x5x5xf32> to vector<2x5xf32>
    %45 = vector.shape_cast %44 : vector<2x5xf32> to vector<2x5x1xf32>
    %46 = vector.broadcast %45 : vector<2x5x1xf32> to vector<2x5x5xf32>
    %47 = arith.subf %43, %46 : vector<2x5x5xf32>
    %48 = math.exp %47 : vector<2x5x5xf32>
    %cst_24 = arith.constant dense<0.000000e+00> : vector<2x5xf32>
    %49 = vector.multi_reduction <add>, %48, %cst_24 [2] : vector<2x5x5xf32> to vector<2x5xf32>
    %50 = vector.shape_cast %49 : vector<2x5xf32> to vector<2x5x1xf32>
    %51 = tpu.reciprocal %50 {approx = true} : vector<2x5x1xf32> -> vector<2x5x1xf32>
    %52 = vector.broadcast %51 : vector<2x5x1xf32> to vector<2x5x5xf32>
    %53 = arith.mulf %48, %52 : vector<2x5x5xf32>
    %54 = arith.truncf %53 : vector<2x5x5xf32> to vector<2x5x5xbf16>
    "tpu.trace_start"() <{level = 10 : i32, message = "bqk,bkd->bqd"}> : () -> ()
    %cst_25 = arith.constant dense<0.000000e+00> : vector<2x5x8xf32>
    %55 = tpu.matmul %54, %40, %cst_25 {dimension_numbers = #tpu.dot_dimension_numbers<[2], [1], [1], [2], [0, 0, 0, 1, 1, 2], [0], [0]>} : vector<2x5x5xbf16>, vector<2x5x8xbf16>, vector<2x5x8xf32> -> vector<2x5x8xf32>
    "tpu.trace_stop"() : () -> ()
    %56 = vector.shape_cast %55 : vector<2x5x8xf32> to vector<10x8xf32>
    %c0_26 = arith.constant 0 : index
    %c0_27 = arith.constant 0 : index
    %57 = vector.load %arg9[%c0_26, %c0_27] : memref<10x32xf32, #tpu.memory_space<vmem>>, vector<10x8xf32>
    tpu.vector_store %arg9[%c0_26, %c0_27], %56 {strides = array<i32>} : memref<10x32xf32, #tpu.memory_space<vmem>>, vector<10x8xf32>,
    %58 = vector.extract_strided_slice %34 {offsets = [0, 8], sizes = [10, 8], strides = [1, 1]} : vector<10x96xbf16> to vector<10x8xbf16>
    %59 = vector.shape_cast %58 : vector<10x8xbf16> to vector<2x5x8xbf16>
    %60 = vector.extract_strided_slice %34 {offsets = [0, 40], sizes = [10, 8], strides = [1, 1]} : vector<10x96xbf16> to vector<10x8xbf16>
    %61 = vector.shape_cast %60 : vector<10x8xbf16> to vector<2x5x8xbf16>
    %62 = vector.extract_strided_slice %34 {offsets = [0, 72], sizes = [10, 8], strides = [1, 1]} : vector<10x96xbf16> to vector<10x8xbf16>
    %63 = vector.shape_cast %62 : vector<10x8xbf16> to vector<2x5x8xbf16>
    "tpu.trace_start"() <{level = 10 : i32, message = "bqd,bkd->bqk"}> : () -> ()
    %cst_28 = arith.constant dense<0.000000e+00> : vector<2x5x5xf32>
    %64 = tpu.matmul %59, %61, %cst_28 {dimension_numbers = #tpu.dot_dimension_numbers<[2], [2], [1], [1], [0, 0, 0, 1, 1, 1], [0], [0]>} : vector<2x5x8xbf16>, vector<2x5x8xbf16>, vector<2x5x5xf32> -> vector<2x5x5xf32>
    "tpu.trace_stop"() : () -> ()
    %cst_29 = arith.constant 0.353553385 : f32
    %65 = vector.broadcast %cst_29 : f32 to vector<2x5x5xf32>
    %66 = arith.mulf %64, %65 : vector<2x5x5xf32>
    %cst_30 = arith.constant dense<0xFF800000> : vector<2x5xf32>
    %67 = vector.multi_reduction <maximumf>, %66, %cst_30 [2] : vector<2x5x5xf32> to vector<2x5xf32>
    %68 = vector.shape_cast %67 : vector<2x5xf32> to vector<2x5x1xf32>
    %69 = vector.broadcast %68 : vector<2x5x1xf32> to vector<2x5x5xf32>
    %70 = arith.subf %66, %69 : vector<2x5x5xf32>
    %71 = math.exp %70 : vector<2x5x5xf32>
    %cst_31 = arith.constant dense<0.000000e+00> : vector<2x5xf32>
    %72 = vector.multi_reduction <add>, %71, %cst_31 [2] : vector<2x5x5xf32> to vector<2x5xf32>
    %73 = vector.shape_cast %72 : vector<2x5xf32> to vector<2x5x1xf32>
    %74 = tpu.reciprocal %73 {approx = true} : vector<2x5x1xf32> -> vector<2x5x1xf32>
    %75 = vector.broadcast %74 : vector<2x5x1xf32> to vector<2x5x5xf32>
    %76 = arith.mulf %71, %75 : vector<2x5x5xf32>
    %77 = arith.truncf %76 : vector<2x5x5xf32> to vector<2x5x5xbf16>
    "tpu.trace_start"() <{level = 10 : i32, message = "bqk,bkd->bqd"}> : () -> ()
    %cst_32 = arith.constant dense<0.000000e+00> : vector<2x5x8xf32>
    %78 = tpu.matmul %77, %63, %cst_32 {dimension_numbers = #tpu.dot_dimension_numbers<[2], [1], [1], [2], [0, 0, 0, 1, 1, 2], [0], [0]>} : vector<2x5x5xbf16>, vector<2x5x8xbf16>, vector<2x5x8xf32> -> vector<2x5x8xf32>
    "tpu.trace_stop"() : () -> ()
    %79 = vector.shape_cast %78 : vector<2x5x8xf32> to vector<10x8xf32>
    %c0_33 = arith.constant 0 : index
    %c8 = arith.constant 8 : index
    %80 = vector.load %arg9[%c0_33, %c8] : memref<10x32xf32, #tpu.memory_space<vmem>>, vector<10x8xf32>
    tpu.vector_store %arg9[%c0_33, %c8], %79 {strides = array<i32>} : memref<10x32xf32, #tpu.memory_space<vmem>>, vector<10x8xf32>,
    %81 = vector.extract_strided_slice %34 {offsets = [0, 16], sizes = [10, 8], strides = [1, 1]} : vector<10x96xbf16> to vector<10x8xbf16>
    %82 = vector.shape_cast %81 : vector<10x8xbf16> to vector<2x5x8xbf16>
    %83 = vector.extract_strided_slice %34 {offsets = [0, 48], sizes = [10, 8], strides = [1, 1]} : vector<10x96xbf16> to vector<10x8xbf16>
    %84 = vector.shape_cast %83 : vector<10x8xbf16> to vector<2x5x8xbf16>
    %85 = vector.extract_strided_slice %34 {offsets = [0, 80], sizes = [10, 8], strides = [1, 1]} : vector<10x96xbf16> to vector<10x8xbf16>
    %86 = vector.shape_cast %85 : vector<10x8xbf16> to vector<2x5x8xbf16>
    "tpu.trace_start"() <{level = 10 : i32, message = "bqd,bkd->bqk"}> : () -> ()
    %cst_34 = arith.constant dense<0.000000e+00> : vector<2x5x5xf32>
    %87 = tpu.matmul %82, %84, %cst_34 {dimension_numbers = #tpu.dot_dimension_numbers<[2], [2], [1], [1], [0, 0, 0, 1, 1, 1], [0], [0]>} : vector<2x5x8xbf16>, vector<2x5x8xbf16>, vector<2x5x5xf32> -> vector<2x5x5xf32>
    "tpu.trace_stop"() : () -> ()
    %cst_35 = arith.constant 0.353553385 : f32
    %88 = vector.broadcast %cst_35 : f32 to vector<2x5x5xf32>
    %89 = arith.mulf %87, %88 : vector<2x5x5xf32>
    %cst_36 = arith.constant dense<0xFF800000> : vector<2x5xf32>
    %90 = vector.multi_reduction <maximumf>, %89, %cst_36 [2] : vector<2x5x5xf32> to vector<2x5xf32>
    %91 = vector.shape_cast %90 : vector<2x5xf32> to vector<2x5x1xf32>
    %92 = vector.broadcast %91 : vector<2x5x1xf32> to vector<2x5x5xf32>
    %93 = arith.subf %89, %92 : vector<2x5x5xf32>
    %94 = math.exp %93 : vector<2x5x5xf32>
    %cst_37 = arith.constant dense<0.000000e+00> : vector<2x5xf32>
    %95 = vector.multi_reduction <add>, %94, %cst_37 [2] : vector<2x5x5xf32> to vector<2x5xf32>
    %96 = vector.shape_cast %95 : vector<2x5xf32> to vector<2x5x1xf32>
    %97 = tpu.reciprocal %96 {approx = true} : vector<2x5x1xf32> -> vector<2x5x1xf32>
    %98 = vector.broadcast %97 : vector<2x5x1xf32> to vector<2x5x5xf32>
    %99 = arith.mulf %94, %98 : vector<2x5x5xf32>
    %100 = arith.truncf %99 : vector<2x5x5xf32> to vector<2x5x5xbf16>
    "tpu.trace_start"() <{level = 10 : i32, message = "bqk,bkd->bqd"}> : () -> ()
    %cst_38 = arith.constant dense<0.000000e+00> : vector<2x5x8xf32>
    %101 = tpu.matmul %100, %86, %cst_38 {dimension_numbers = #tpu.dot_dimension_numbers<[2], [1], [1], [2], [0, 0, 0, 1, 1, 2], [0], [0]>} : vector<2x5x5xbf16>, vector<2x5x8xbf16>, vector<2x5x8xf32> -> vector<2x5x8xf32>
    "tpu.trace_stop"() : () -> ()
    %102 = vector.shape_cast %101 : vector<2x5x8xf32> to vector<10x8xf32>
    %c0_39 = arith.constant 0 : index
    %c16 = arith.constant 16 : index
    %103 = vector.load %arg9[%c0_39, %c16] : memref<10x32xf32, #tpu.memory_space<vmem>>, vector<10x8xf32>
    tpu.vector_store %arg9[%c0_39, %c16], %102 {strides = array<i32>} : memref<10x32xf32, #tpu.memory_space<vmem>>, vector<10x8xf32>,
    %104 = vector.extract_strided_slice %34 {offsets = [0, 24], sizes = [10, 8], strides = [1, 1]} : vector<10x96xbf16> to vector<10x8xbf16>
    %105 = vector.shape_cast %104 : vector<10x8xbf16> to vector<2x5x8xbf16>
    %106 = vector.extract_strided_slice %34 {offsets = [0, 56], sizes = [10, 8], strides = [1, 1]} : vector<10x96xbf16> to vector<10x8xbf16>
    %107 = vector.shape_cast %106 : vector<10x8xbf16> to vector<2x5x8xbf16>
    %108 = vector.extract_strided_slice %34 {offsets = [0, 88], sizes = [10, 8], strides = [1, 1]} : vector<10x96xbf16> to vector<10x8xbf16>
    %109 = vector.shape_cast %108 : vector<10x8xbf16> to vector<2x5x8xbf16>
    "tpu.trace_start"() <{level = 10 : i32, message = "bqd,bkd->bqk"}> : () -> ()
    %cst_40 = arith.constant dense<0.000000e+00> : vector<2x5x5xf32>
    %110 = tpu.matmul %105, %107, %cst_40 {dimension_numbers = #tpu.dot_dimension_numbers<[2], [2], [1], [1], [0, 0, 0, 1, 1, 1], [0], [0]>} : vector<2x5x8xbf16>, vector<2x5x8xbf16>, vector<2x5x5xf32> -> vector<2x5x5xf32>
    "tpu.trace_stop"() : () -> ()
    %cst_41 = arith.constant 0.353553385 : f32
    %111 = vector.broadcast %cst_41 : f32 to vector<2x5x5xf32>
    %112 = arith.mulf %110, %111 : vector<2x5x5xf32>
    %cst_42 = arith.constant dense<0xFF800000> : vector<2x5xf32>
    %113 = vector.multi_reduction <maximumf>, %112, %cst_42 [2] : vector<2x5x5xf32> to vector<2x5xf32>
    %114 = vector.shape_cast %113 : vector<2x5xf32> to vector<2x5x1xf32>
    %115 = vector.broadcast %114 : vector<2x5x1xf32> to vector<2x5x5xf32>
    %116 = arith.subf %112, %115 : vector<2x5x5xf32>
    %117 = math.exp %116 : vector<2x5x5xf32>
    %cst_43 = arith.constant dense<0.000000e+00> : vector<2x5xf32>
    %118 = vector.multi_reduction <add>, %117, %cst_43 [2] : vector<2x5x5xf32> to vector<2x5xf32>
    %119 = vector.shape_cast %118 : vector<2x5xf32> to vector<2x5x1xf32>
    %120 = tpu.reciprocal %119 {approx = true} : vector<2x5x1xf32> -> vector<2x5x1xf32>
    %121 = vector.broadcast %120 : vector<2x5x1xf32> to vector<2x5x5xf32>
    %122 = arith.mulf %117, %121 : vector<2x5x5xf32>
    %123 = arith.truncf %122 : vector<2x5x5xf32> to vector<2x5x5xbf16>
    "tpu.trace_start"() <{level = 10 : i32, message = "bqk,bkd->bqd"}> : () -> ()
    %cst_44 = arith.constant dense<0.000000e+00> : vector<2x5x8xf32>
    %124 = tpu.matmul %123, %109, %cst_44 {dimension_numbers = #tpu.dot_dimension_numbers<[2], [1], [1], [2], [0, 0, 0, 1, 1, 2], [0], [0]>} : vector<2x5x5xbf16>, vector<2x5x8xbf16>, vector<2x5x8xf32> -> vector<2x5x8xf32>
    "tpu.trace_stop"() : () -> ()
    %125 = vector.shape_cast %124 : vector<2x5x8xf32> to vector<10x8xf32>
    %c0_45 = arith.constant 0 : index
    %c24 = arith.constant 24 : index
    %126 = vector.load %arg9[%c0_45, %c24] : memref<10x32xf32, #tpu.memory_space<vmem>>, vector<10x8xf32>
    tpu.vector_store %arg9[%c0_45, %c24], %125 {strides = array<i32>} : memref<10x32xf32, #tpu.memory_space<vmem>>, vector<10x8xf32>,
    %c0_46 = arith.constant 0 : index
    %c0_47 = arith.constant 0 : index
    %127 = vector.load %arg9[%c0_46, %c0_47] : memref<10x32xf32, #tpu.memory_space<vmem>>, vector<10x32xf32>
    %128 = arith.truncf %127 : vector<10x32xf32> to vector<10x32xbf16>
    %cst_48 = arith.constant dense<0.000000e+00> : vector<10x32xf32>
    %129 = tpu.matmul %128, %5, %cst_48 {dimension_numbers = #tpu.dot_dimension_numbers<[1], [0], [0], [1], [0, 0, 1, 1], [], []>} : vector<10x32xbf16>, vector<32x32xbf16>, vector<10x32xf32> -> vector<10x32xf32>
    %130 = vector.broadcast %6 : vector<1x32xf32> to vector<10x32xf32>
    %131 = arith.addf %129, %130 : vector<10x32xf32>
    %132 = vector.shape_cast %131 : vector<10x32xf32> to vector<2x5x32xf32>
    %133 = arith.addf %0, %132 : vector<2x5x32xf32>
    %c0_49 = arith.constant 0 : index
    %c0_50 = arith.constant 0 : index
    %c0_51 = arith.constant 0 : index
    %134 = vector.load %arg8[%c0_49, %c0_50, %c0_51] : memref<2x5x32xf32, #tpu.memory_space<vmem>>, vector<2x5x32xf32>
    tpu.vector_store %arg8[%c0_49, %c0_50, %c0_51], %133 {strides = array<i32>} : memref<2x5x32xf32, #tpu.memory_space<vmem>>, vector<2x5x32xf32>,
    return
  }
  func.func @transform_0(%arg0: i32) -> (i32, i32, i32) {
    %c0_i32 = arith.constant 0 : i32
    %c0_i32_0 = arith.constant 0 : i32
    %c0_i32_1 = arith.constant 0 : i32
    return %arg0, %c0_i32, %c0_i32_0 : i32, i32, i32
  }
  func.func @transform_1(%arg0: i32) -> (i32, i32, i32) {
    %c0_i32 = arith.constant 0 : i32
    %c0_i32_0 = arith.constant 0 : i32
    %c0_i32_1 = arith.constant 0 : i32
    %c0_i32_2 = arith.constant 0 : i32
    return %c0_i32, %c0_i32_0, %c0_i32_1 : i32, i32, i32
  }
  func.func @transform_2(%arg0: i32) -> (i32, i32, i32) {
    %c0_i32 = arith.constant 0 : i32
    %c0_i32_0 = arith.constant 0 : i32
    %c0_i32_1 = arith.constant 0 : i32
    %c0_i32_2 = arith.constant 0 : i32
    return %c0_i32, %c0_i32_0, %c0_i32_1 : i32, i32, i32
  }
  func.func @transform_3(%arg0: i32) -> (i32, i32) {
    %c0_i32 = arith.constant 0 : i32
    %c0_i32_0 = arith.constant 0 : i32
    %c0_i32_1 = arith.constant 0 : i32
    return %c0_i32, %c0_i32_0 : i32, i32
  }
  func.func @transform_4(%arg0: i32) -> (i32, i32) {
    %c0_i32 = arith.constant 0 : i32
    %c0_i32_0 = arith.constant 0 : i32
    %c0_i32_1 = arith.constant 0 : i32
    return %c0_i32, %c0_i32_0 : i32, i32
  }
  func.func @transform_5(%arg0: i32) -> (i32, i32) {
    %c0_i32 = arith.constant 0 : i32
    %c0_i32_0 = arith.constant 0 : i32
    %c0_i32_1 = arith.constant 0 : i32
    return %c0_i32, %c0_i32_0 : i32, i32
  }
  func.func @transform_6(%arg0: i32) -> (i32, i32) {
    %c0_i32 = arith.constant 0 : i32
    %c0_i32_0 = arith.constant 0 : i32
    %c0_i32_1 = arith.constant 0 : i32
    return %c0_i32, %c0_i32_0 : i32, i32
  }
  func.func @transform_7(%arg0: i32) -> (i32, i32, i32) {
    %c0_i32 = arith.constant 0 : i32
    %c0_i32_0 = arith.constant 0 : i32
    %c0_i32_1 = arith.constant 0 : i32
    return %arg0, %c0_i32, %c0_i32_0 : i32, i32, i32
  }
}

module attributes {stable_mosaic.version = 11 : i64} {
  func.func @_t_attn_block_kernel(%arg0: i32, %arg1: i32, %arg2: memref<1x2x5x32xf32, #tpu.memory_space<vmem>>, %arg3: memref<1x1x32xf32, #tpu.memory_space<vmem>>, %arg4: memref<1x1x32xf32, #tpu.memory_space<vmem>>, %arg5: memref<32x96xbf16, #tpu.memory_space<vmem>>, %arg6: memref<1x96xf32, #tpu.memory_space<vmem>>, %arg7: memref<32x32xbf16, #tpu.memory_space<vmem>>, %arg8: memref<1x32xf32, #tpu.memory_space<vmem>>, %arg9: memref<1x2x5x32xf32, #tpu.memory_space<vmem>>, %arg10: memref<5x2x32xf32, #tpu.memory_space<vmem>>, %arg11: memref<10x32xf32, #tpu.memory_space<vmem>>) attributes {dimension_semantics = [#tpu.dimension_semantics<parallel>, #tpu.dimension_semantics<parallel>], iteration_bounds = array<i64: 2, 1>, scalar_prefetch = 0 : i64, scratch_operands = 2 : i64, tpu.core_type = #tpu.core_type<tc>, window_params = [{transform_indices = @transform_0, window_bounds = array<i64: 1, 2, 5, 32>}, {pipeline_mode = #tpu.pipeline_mode<synchronous>, transform_indices = @transform_1, window_bounds = array<i64: 1, 1, 32>}, {pipeline_mode = #tpu.pipeline_mode<synchronous>, transform_indices = @transform_2, window_bounds = array<i64: 1, 1, 32>}, {pipeline_mode = #tpu.pipeline_mode<synchronous>, transform_indices = @transform_3, window_bounds = array<i64: 32, 96>}, {pipeline_mode = #tpu.pipeline_mode<synchronous>, transform_indices = @transform_4, window_bounds = array<i64: 1, 96>}, {pipeline_mode = #tpu.pipeline_mode<synchronous>, transform_indices = @transform_5, window_bounds = array<i64: 32, 32>}, {pipeline_mode = #tpu.pipeline_mode<synchronous>, transform_indices = @transform_6, window_bounds = array<i64: 1, 32>}, {transform_indices = @transform_7, window_bounds = array<i64: 1, 2, 5, 32>}]} {
    %c0 = arith.constant 0 : index
    %c0_0 = arith.constant 0 : index
    %c0_1 = arith.constant 0 : index
    %c0_2 = arith.constant 0 : index
    %0 = vector.load %arg2[%c0, %c0_0, %c0_1, %c0_2] : memref<1x2x5x32xf32, #tpu.memory_space<vmem>>, vector<1x1x5x32xf32>
    %1 = vector.shape_cast %0 : vector<1x1x5x32xf32> to vector<5x32xf32>
    %c0_3 = arith.constant 0 : index
    %c0_4 = arith.constant 0 : index
    %c0_5 = arith.constant 0 : index
    %2 = vector.load %arg10[%c0_3, %c0_4, %c0_5] : memref<5x2x32xf32, #tpu.memory_space<vmem>>, vector<5x1x32xf32>
    %3 = vector.shape_cast %2 : vector<5x1x32xf32> to vector<5x32xf32>
    %4 = vector.shape_cast %1 : vector<5x32xf32> to vector<5x1x32xf32>
    tpu.vector_store %arg10[%c0_3, %c0_4, %c0_5], %4 {strides = array<i32>} : memref<5x2x32xf32, #tpu.memory_space<vmem>>, vector<5x1x32xf32>,
    %c0_6 = arith.constant 0 : index
    %c1 = arith.constant 1 : index
    %c0_7 = arith.constant 0 : index
    %c0_8 = arith.constant 0 : index
    %5 = vector.load %arg2[%c0_6, %c1, %c0_7, %c0_8] : memref<1x2x5x32xf32, #tpu.memory_space<vmem>>, vector<1x1x5x32xf32>
    %6 = vector.shape_cast %5 : vector<1x1x5x32xf32> to vector<5x32xf32>
    %c0_9 = arith.constant 0 : index
    %c1_10 = arith.constant 1 : index
    %c0_11 = arith.constant 0 : index
    %7 = vector.load %arg10[%c0_9, %c1_10, %c0_11] : memref<5x2x32xf32, #tpu.memory_space<vmem>>, vector<5x1x32xf32>
    %8 = vector.shape_cast %7 : vector<5x1x32xf32> to vector<5x32xf32>
    %9 = vector.shape_cast %6 : vector<5x32xf32> to vector<5x1x32xf32>
    tpu.vector_store %arg10[%c0_9, %c1_10, %c0_11], %9 {strides = array<i32>} : memref<5x2x32xf32, #tpu.memory_space<vmem>>, vector<5x1x32xf32>,
    %c0_12 = arith.constant 0 : index
    %c0_13 = arith.constant 0 : index
    %c0_14 = arith.constant 0 : index
    %10 = vector.load %arg10[%c0_12, %c0_13, %c0_14] : memref<5x2x32xf32, #tpu.memory_space<vmem>>, vector<5x2x32xf32>
    %c0_15 = arith.constant 0 : index
    %c0_16 = arith.constant 0 : index
    %c0_17 = arith.constant 0 : index
    %11 = vector.load %arg3[%c0_15, %c0_16, %c0_17] : memref<1x1x32xf32, #tpu.memory_space<vmem>>, vector<1x1x32xf32>
    %c0_18 = arith.constant 0 : index
    %c0_19 = arith.constant 0 : index
    %c0_20 = arith.constant 0 : index
    %12 = vector.load %arg4[%c0_18, %c0_19, %c0_20] : memref<1x1x32xf32, #tpu.memory_space<vmem>>, vector<1x1x32xf32>
    %c0_21 = arith.constant 0 : index
    %c0_22 = arith.constant 0 : index
    %13 = vector.load %arg5[%c0_21, %c0_22] : memref<32x96xbf16, #tpu.memory_space<vmem>>, vector<32x96xbf16>
    %c0_23 = arith.constant 0 : index
    %c0_24 = arith.constant 0 : index
    %14 = vector.load %arg6[%c0_23, %c0_24] : memref<1x96xf32, #tpu.memory_space<vmem>>, vector<1x96xf32>
    %c0_25 = arith.constant 0 : index
    %c0_26 = arith.constant 0 : index
    %15 = vector.load %arg7[%c0_25, %c0_26] : memref<32x32xbf16, #tpu.memory_space<vmem>>, vector<32x32xbf16>
    %c0_27 = arith.constant 0 : index
    %c0_28 = arith.constant 0 : index
    %16 = vector.load %arg8[%c0_27, %c0_28] : memref<1x32xf32, #tpu.memory_space<vmem>>, vector<1x32xf32>
    %cst = arith.constant dense<0.000000e+00> : vector<5x2xf32>
    %17 = vector.multi_reduction <add>, %10, %cst [2] : vector<5x2x32xf32> to vector<5x2xf32>
    %18 = vector.shape_cast %17 : vector<5x2xf32> to vector<5x2x1xf32>
    %cst_29 = arith.constant 3.200000e+01 : f32
    %19 = vector.broadcast %cst_29 : f32 to vector<5x2x1xf32>
    %20 = arith.divf %18, %19 : vector<5x2x1xf32>
    %21 = vector.broadcast %20 : vector<5x2x1xf32> to vector<5x2x32xf32>
    %22 = arith.subf %10, %21 : vector<5x2x32xf32>
    %23 = arith.mulf %22, %22 : vector<5x2x32xf32>
    %cst_30 = arith.constant dense<0.000000e+00> : vector<5x2xf32>
    %24 = vector.multi_reduction <add>, %23, %cst_30 [2] : vector<5x2x32xf32> to vector<5x2xf32>
    %25 = vector.shape_cast %24 : vector<5x2xf32> to vector<5x2x1xf32>
    %cst_31 = arith.constant 3.200000e+01 : f32
    %26 = vector.broadcast %cst_31 : f32 to vector<5x2x1xf32>
    %27 = arith.divf %25, %26 : vector<5x2x1xf32>
    %28 = vector.broadcast %20 : vector<5x2x1xf32> to vector<5x2x32xf32>
    %29 = arith.subf %10, %28 : vector<5x2x32xf32>
    %cst_32 = arith.constant 9.99999974E-6 : f32
    %30 = vector.broadcast %cst_32 : f32 to vector<5x2x1xf32>
    %31 = arith.addf %27, %30 : vector<5x2x1xf32>
    %32 = math.rsqrt %31 : vector<5x2x1xf32>
    %33 = vector.broadcast %32 : vector<5x2x1xf32> to vector<5x2x32xf32>
    %34 = arith.mulf %29, %33 : vector<5x2x32xf32>
    %35 = vector.broadcast %11 : vector<1x1x32xf32> to vector<5x2x32xf32>
    %36 = arith.mulf %34, %35 : vector<5x2x32xf32>
    %37 = vector.broadcast %12 : vector<1x1x32xf32> to vector<5x2x32xf32>
    %38 = arith.addf %36, %37 : vector<5x2x32xf32>
    %39 = vector.shape_cast %38 : vector<5x2x32xf32> to vector<10x32xf32>
    %40 = arith.truncf %39 : vector<10x32xf32> to vector<10x32xbf16>
    %cst_33 = arith.constant dense<0.000000e+00> : vector<10x96xf32>
    %41 = tpu.matmul %40, %13, %cst_33 {dimension_numbers = #tpu.dot_dimension_numbers<[1], [0], [0], [1], [0, 0, 1, 1], [], []>} : vector<10x32xbf16>, vector<32x96xbf16>, vector<10x96xf32> -> vector<10x96xf32>
    %42 = vector.broadcast %14 : vector<1x96xf32> to vector<10x96xf32>
    %43 = arith.addf %41, %42 : vector<10x96xf32>
    %44 = arith.truncf %43 : vector<10x96xf32> to vector<10x96xbf16>
    %45 = vector.extract_strided_slice %44 {offsets = [0, 0], sizes = [10, 8], strides = [1, 1]} : vector<10x96xbf16> to vector<10x8xbf16>
    %46 = vector.shape_cast %45 : vector<10x8xbf16> to vector<5x2x8xbf16>
    %47 = vector.extract_strided_slice %44 {offsets = [0, 32], sizes = [10, 8], strides = [1, 1]} : vector<10x96xbf16> to vector<10x8xbf16>
    %48 = vector.shape_cast %47 : vector<10x8xbf16> to vector<5x2x8xbf16>
    %49 = vector.extract_strided_slice %44 {offsets = [0, 64], sizes = [10, 8], strides = [1, 1]} : vector<10x96xbf16> to vector<10x8xbf16>
    %50 = vector.shape_cast %49 : vector<10x8xbf16> to vector<5x2x8xbf16>
    "tpu.trace_start"() <{level = 10 : i32, message = "bqd,bkd->bqk"}> : () -> ()
    %cst_34 = arith.constant dense<0.000000e+00> : vector<5x2x2xf32>
    %51 = tpu.matmul %46, %48, %cst_34 {dimension_numbers = #tpu.dot_dimension_numbers<[2], [2], [1], [1], [0, 0, 0, 1, 1, 1], [0], [0]>} : vector<5x2x8xbf16>, vector<5x2x8xbf16>, vector<5x2x2xf32> -> vector<5x2x2xf32>
    "tpu.trace_stop"() : () -> ()
    %cst_35 = arith.constant 0.353553385 : f32
    %52 = vector.broadcast %cst_35 : f32 to vector<5x2x2xf32>
    %53 = arith.mulf %51, %52 : vector<5x2x2xf32>
    %cst_36 = arith.constant dense<0xFF800000> : vector<5x2xf32>
    %54 = vector.multi_reduction <maximumf>, %53, %cst_36 [2] : vector<5x2x2xf32> to vector<5x2xf32>
    %55 = vector.shape_cast %54 : vector<5x2xf32> to vector<5x2x1xf32>
    %56 = vector.broadcast %55 : vector<5x2x1xf32> to vector<5x2x2xf32>
    %57 = arith.subf %53, %56 : vector<5x2x2xf32>
    %58 = math.exp %57 : vector<5x2x2xf32>
    %cst_37 = arith.constant dense<0.000000e+00> : vector<5x2xf32>
    %59 = vector.multi_reduction <add>, %58, %cst_37 [2] : vector<5x2x2xf32> to vector<5x2xf32>
    %60 = vector.shape_cast %59 : vector<5x2xf32> to vector<5x2x1xf32>
    %61 = tpu.reciprocal %60 {approx = true} : vector<5x2x1xf32> -> vector<5x2x1xf32>
    %62 = vector.broadcast %61 : vector<5x2x1xf32> to vector<5x2x2xf32>
    %63 = arith.mulf %58, %62 : vector<5x2x2xf32>
    %64 = arith.truncf %63 : vector<5x2x2xf32> to vector<5x2x2xbf16>
    "tpu.trace_start"() <{level = 10 : i32, message = "bqk,bkd->bqd"}> : () -> ()
    %cst_38 = arith.constant dense<0.000000e+00> : vector<5x2x8xf32>
    %65 = tpu.matmul %64, %50, %cst_38 {dimension_numbers = #tpu.dot_dimension_numbers<[2], [1], [1], [2], [0, 0, 0, 1, 1, 2], [0], [0]>} : vector<5x2x2xbf16>, vector<5x2x8xbf16>, vector<5x2x8xf32> -> vector<5x2x8xf32>
    "tpu.trace_stop"() : () -> ()
    %66 = vector.shape_cast %65 : vector<5x2x8xf32> to vector<10x8xf32>
    %c0_39 = arith.constant 0 : index
    %c0_40 = arith.constant 0 : index
    %67 = vector.load %arg11[%c0_39, %c0_40] : memref<10x32xf32, #tpu.memory_space<vmem>>, vector<10x8xf32>
    tpu.vector_store %arg11[%c0_39, %c0_40], %66 {strides = array<i32>} : memref<10x32xf32, #tpu.memory_space<vmem>>, vector<10x8xf32>,
    %68 = vector.extract_strided_slice %44 {offsets = [0, 8], sizes = [10, 8], strides = [1, 1]} : vector<10x96xbf16> to vector<10x8xbf16>
    %69 = vector.shape_cast %68 : vector<10x8xbf16> to vector<5x2x8xbf16>
    %70 = vector.extract_strided_slice %44 {offsets = [0, 40], sizes = [10, 8], strides = [1, 1]} : vector<10x96xbf16> to vector<10x8xbf16>
    %71 = vector.shape_cast %70 : vector<10x8xbf16> to vector<5x2x8xbf16>
    %72 = vector.extract_strided_slice %44 {offsets = [0, 72], sizes = [10, 8], strides = [1, 1]} : vector<10x96xbf16> to vector<10x8xbf16>
    %73 = vector.shape_cast %72 : vector<10x8xbf16> to vector<5x2x8xbf16>
    "tpu.trace_start"() <{level = 10 : i32, message = "bqd,bkd->bqk"}> : () -> ()
    %cst_41 = arith.constant dense<0.000000e+00> : vector<5x2x2xf32>
    %74 = tpu.matmul %69, %71, %cst_41 {dimension_numbers = #tpu.dot_dimension_numbers<[2], [2], [1], [1], [0, 0, 0, 1, 1, 1], [0], [0]>} : vector<5x2x8xbf16>, vector<5x2x8xbf16>, vector<5x2x2xf32> -> vector<5x2x2xf32>
    "tpu.trace_stop"() : () -> ()
    %cst_42 = arith.constant 0.353553385 : f32
    %75 = vector.broadcast %cst_42 : f32 to vector<5x2x2xf32>
    %76 = arith.mulf %74, %75 : vector<5x2x2xf32>
    %cst_43 = arith.constant dense<0xFF800000> : vector<5x2xf32>
    %77 = vector.multi_reduction <maximumf>, %76, %cst_43 [2] : vector<5x2x2xf32> to vector<5x2xf32>
    %78 = vector.shape_cast %77 : vector<5x2xf32> to vector<5x2x1xf32>
    %79 = vector.broadcast %78 : vector<5x2x1xf32> to vector<5x2x2xf32>
    %80 = arith.subf %76, %79 : vector<5x2x2xf32>
    %81 = math.exp %80 : vector<5x2x2xf32>
    %cst_44 = arith.constant dense<0.000000e+00> : vector<5x2xf32>
    %82 = vector.multi_reduction <add>, %81, %cst_44 [2] : vector<5x2x2xf32> to vector<5x2xf32>
    %83 = vector.shape_cast %82 : vector<5x2xf32> to vector<5x2x1xf32>
    %84 = tpu.reciprocal %83 {approx = true} : vector<5x2x1xf32> -> vector<5x2x1xf32>
    %85 = vector.broadcast %84 : vector<5x2x1xf32> to vector<5x2x2xf32>
    %86 = arith.mulf %81, %85 : vector<5x2x2xf32>
    %87 = arith.truncf %86 : vector<5x2x2xf32> to vector<5x2x2xbf16>
    "tpu.trace_start"() <{level = 10 : i32, message = "bqk,bkd->bqd"}> : () -> ()
    %cst_45 = arith.constant dense<0.000000e+00> : vector<5x2x8xf32>
    %88 = tpu.matmul %87, %73, %cst_45 {dimension_numbers = #tpu.dot_dimension_numbers<[2], [1], [1], [2], [0, 0, 0, 1, 1, 2], [0], [0]>} : vector<5x2x2xbf16>, vector<5x2x8xbf16>, vector<5x2x8xf32> -> vector<5x2x8xf32>
    "tpu.trace_stop"() : () -> ()
    %89 = vector.shape_cast %88 : vector<5x2x8xf32> to vector<10x8xf32>
    %c0_46 = arith.constant 0 : index
    %c8 = arith.constant 8 : index
    %90 = vector.load %arg11[%c0_46, %c8] : memref<10x32xf32, #tpu.memory_space<vmem>>, vector<10x8xf32>
    tpu.vector_store %arg11[%c0_46, %c8], %89 {strides = array<i32>} : memref<10x32xf32, #tpu.memory_space<vmem>>, vector<10x8xf32>,
    %91 = vector.extract_strided_slice %44 {offsets = [0, 16], sizes = [10, 8], strides = [1, 1]} : vector<10x96xbf16> to vector<10x8xbf16>
    %92 = vector.shape_cast %91 : vector<10x8xbf16> to vector<5x2x8xbf16>
    %93 = vector.extract_strided_slice %44 {offsets = [0, 48], sizes = [10, 8], strides = [1, 1]} : vector<10x96xbf16> to vector<10x8xbf16>
    %94 = vector.shape_cast %93 : vector<10x8xbf16> to vector<5x2x8xbf16>
    %95 = vector.extract_strided_slice %44 {offsets = [0, 80], sizes = [10, 8], strides = [1, 1]} : vector<10x96xbf16> to vector<10x8xbf16>
    %96 = vector.shape_cast %95 : vector<10x8xbf16> to vector<5x2x8xbf16>
    "tpu.trace_start"() <{level = 10 : i32, message = "bqd,bkd->bqk"}> : () -> ()
    %cst_47 = arith.constant dense<0.000000e+00> : vector<5x2x2xf32>
    %97 = tpu.matmul %92, %94, %cst_47 {dimension_numbers = #tpu.dot_dimension_numbers<[2], [2], [1], [1], [0, 0, 0, 1, 1, 1], [0], [0]>} : vector<5x2x8xbf16>, vector<5x2x8xbf16>, vector<5x2x2xf32> -> vector<5x2x2xf32>
    "tpu.trace_stop"() : () -> ()
    %cst_48 = arith.constant 0.353553385 : f32
    %98 = vector.broadcast %cst_48 : f32 to vector<5x2x2xf32>
    %99 = arith.mulf %97, %98 : vector<5x2x2xf32>
    %cst_49 = arith.constant dense<0xFF800000> : vector<5x2xf32>
    %100 = vector.multi_reduction <maximumf>, %99, %cst_49 [2] : vector<5x2x2xf32> to vector<5x2xf32>
    %101 = vector.shape_cast %100 : vector<5x2xf32> to vector<5x2x1xf32>
    %102 = vector.broadcast %101 : vector<5x2x1xf32> to vector<5x2x2xf32>
    %103 = arith.subf %99, %102 : vector<5x2x2xf32>
    %104 = math.exp %103 : vector<5x2x2xf32>
    %cst_50 = arith.constant dense<0.000000e+00> : vector<5x2xf32>
    %105 = vector.multi_reduction <add>, %104, %cst_50 [2] : vector<5x2x2xf32> to vector<5x2xf32>
    %106 = vector.shape_cast %105 : vector<5x2xf32> to vector<5x2x1xf32>
    %107 = tpu.reciprocal %106 {approx = true} : vector<5x2x1xf32> -> vector<5x2x1xf32>
    %108 = vector.broadcast %107 : vector<5x2x1xf32> to vector<5x2x2xf32>
    %109 = arith.mulf %104, %108 : vector<5x2x2xf32>
    %110 = arith.truncf %109 : vector<5x2x2xf32> to vector<5x2x2xbf16>
    "tpu.trace_start"() <{level = 10 : i32, message = "bqk,bkd->bqd"}> : () -> ()
    %cst_51 = arith.constant dense<0.000000e+00> : vector<5x2x8xf32>
    %111 = tpu.matmul %110, %96, %cst_51 {dimension_numbers = #tpu.dot_dimension_numbers<[2], [1], [1], [2], [0, 0, 0, 1, 1, 2], [0], [0]>} : vector<5x2x2xbf16>, vector<5x2x8xbf16>, vector<5x2x8xf32> -> vector<5x2x8xf32>
    "tpu.trace_stop"() : () -> ()
    %112 = vector.shape_cast %111 : vector<5x2x8xf32> to vector<10x8xf32>
    %c0_52 = arith.constant 0 : index
    %c16 = arith.constant 16 : index
    %113 = vector.load %arg11[%c0_52, %c16] : memref<10x32xf32, #tpu.memory_space<vmem>>, vector<10x8xf32>
    tpu.vector_store %arg11[%c0_52, %c16], %112 {strides = array<i32>} : memref<10x32xf32, #tpu.memory_space<vmem>>, vector<10x8xf32>,
    %114 = vector.extract_strided_slice %44 {offsets = [0, 24], sizes = [10, 8], strides = [1, 1]} : vector<10x96xbf16> to vector<10x8xbf16>
    %115 = vector.shape_cast %114 : vector<10x8xbf16> to vector<5x2x8xbf16>
    %116 = vector.extract_strided_slice %44 {offsets = [0, 56], sizes = [10, 8], strides = [1, 1]} : vector<10x96xbf16> to vector<10x8xbf16>
    %117 = vector.shape_cast %116 : vector<10x8xbf16> to vector<5x2x8xbf16>
    %118 = vector.extract_strided_slice %44 {offsets = [0, 88], sizes = [10, 8], strides = [1, 1]} : vector<10x96xbf16> to vector<10x8xbf16>
    %119 = vector.shape_cast %118 : vector<10x8xbf16> to vector<5x2x8xbf16>
    "tpu.trace_start"() <{level = 10 : i32, message = "bqd,bkd->bqk"}> : () -> ()
    %cst_53 = arith.constant dense<0.000000e+00> : vector<5x2x2xf32>
    %120 = tpu.matmul %115, %117, %cst_53 {dimension_numbers = #tpu.dot_dimension_numbers<[2], [2], [1], [1], [0, 0, 0, 1, 1, 1], [0], [0]>} : vector<5x2x8xbf16>, vector<5x2x8xbf16>, vector<5x2x2xf32> -> vector<5x2x2xf32>
    "tpu.trace_stop"() : () -> ()
    %cst_54 = arith.constant 0.353553385 : f32
    %121 = vector.broadcast %cst_54 : f32 to vector<5x2x2xf32>
    %122 = arith.mulf %120, %121 : vector<5x2x2xf32>
    %cst_55 = arith.constant dense<0xFF800000> : vector<5x2xf32>
    %123 = vector.multi_reduction <maximumf>, %122, %cst_55 [2] : vector<5x2x2xf32> to vector<5x2xf32>
    %124 = vector.shape_cast %123 : vector<5x2xf32> to vector<5x2x1xf32>
    %125 = vector.broadcast %124 : vector<5x2x1xf32> to vector<5x2x2xf32>
    %126 = arith.subf %122, %125 : vector<5x2x2xf32>
    %127 = math.exp %126 : vector<5x2x2xf32>
    %cst_56 = arith.constant dense<0.000000e+00> : vector<5x2xf32>
    %128 = vector.multi_reduction <add>, %127, %cst_56 [2] : vector<5x2x2xf32> to vector<5x2xf32>
    %129 = vector.shape_cast %128 : vector<5x2xf32> to vector<5x2x1xf32>
    %130 = tpu.reciprocal %129 {approx = true} : vector<5x2x1xf32> -> vector<5x2x1xf32>
    %131 = vector.broadcast %130 : vector<5x2x1xf32> to vector<5x2x2xf32>
    %132 = arith.mulf %127, %131 : vector<5x2x2xf32>
    %133 = arith.truncf %132 : vector<5x2x2xf32> to vector<5x2x2xbf16>
    "tpu.trace_start"() <{level = 10 : i32, message = "bqk,bkd->bqd"}> : () -> ()
    %cst_57 = arith.constant dense<0.000000e+00> : vector<5x2x8xf32>
    %134 = tpu.matmul %133, %119, %cst_57 {dimension_numbers = #tpu.dot_dimension_numbers<[2], [1], [1], [2], [0, 0, 0, 1, 1, 2], [0], [0]>} : vector<5x2x2xbf16>, vector<5x2x8xbf16>, vector<5x2x8xf32> -> vector<5x2x8xf32>
    "tpu.trace_stop"() : () -> ()
    %135 = vector.shape_cast %134 : vector<5x2x8xf32> to vector<10x8xf32>
    %c0_58 = arith.constant 0 : index
    %c24 = arith.constant 24 : index
    %136 = vector.load %arg11[%c0_58, %c24] : memref<10x32xf32, #tpu.memory_space<vmem>>, vector<10x8xf32>
    tpu.vector_store %arg11[%c0_58, %c24], %135 {strides = array<i32>} : memref<10x32xf32, #tpu.memory_space<vmem>>, vector<10x8xf32>,
    %c0_59 = arith.constant 0 : index
    %c0_60 = arith.constant 0 : index
    %137 = vector.load %arg11[%c0_59, %c0_60] : memref<10x32xf32, #tpu.memory_space<vmem>>, vector<10x32xf32>
    %138 = arith.truncf %137 : vector<10x32xf32> to vector<10x32xbf16>
    %cst_61 = arith.constant dense<0.000000e+00> : vector<10x32xf32>
    %139 = tpu.matmul %138, %15, %cst_61 {dimension_numbers = #tpu.dot_dimension_numbers<[1], [0], [0], [1], [0, 0, 1, 1], [], []>} : vector<10x32xbf16>, vector<32x32xbf16>, vector<10x32xf32> -> vector<10x32xf32>
    %140 = vector.broadcast %16 : vector<1x32xf32> to vector<10x32xf32>
    %141 = arith.addf %139, %140 : vector<10x32xf32>
    %142 = vector.shape_cast %141 : vector<10x32xf32> to vector<5x2x32xf32>
    %143 = arith.addf %10, %142 : vector<5x2x32xf32>
    %144 = vector.extract_strided_slice %143 {offsets = [0, 0, 0], sizes = [5, 1, 32], strides = [1, 1, 1]} : vector<5x2x32xf32> to vector<5x1x32xf32>
    %145 = vector.shape_cast %144 : vector<5x1x32xf32> to vector<5x32xf32>
    %c0_62 = arith.constant 0 : index
    %c0_63 = arith.constant 0 : index
    %c0_64 = arith.constant 0 : index
    %c0_65 = arith.constant 0 : index
    %146 = vector.load %arg9[%c0_62, %c0_63, %c0_64, %c0_65] : memref<1x2x5x32xf32, #tpu.memory_space<vmem>>, vector<1x1x5x32xf32>
    %147 = vector.shape_cast %146 : vector<1x1x5x32xf32> to vector<5x32xf32>
    %148 = vector.shape_cast %145 : vector<5x32xf32> to vector<1x1x5x32xf32>
    tpu.vector_store %arg9[%c0_62, %c0_63, %c0_64, %c0_65], %148 {strides = array<i32>} : memref<1x2x5x32xf32, #tpu.memory_space<vmem>>, vector<1x1x5x32xf32>,
    %149 = vector.extract_strided_slice %143 {offsets = [0, 1, 0], sizes = [5, 1, 32], strides = [1, 1, 1]} : vector<5x2x32xf32> to vector<5x1x32xf32>
    %150 = vector.shape_cast %149 : vector<5x1x32xf32> to vector<5x32xf32>
    %c0_66 = arith.constant 0 : index
    %c1_67 = arith.constant 1 : index
    %c0_68 = arith.constant 0 : index
    %c0_69 = arith.constant 0 : index
    %151 = vector.load %arg9[%c0_66, %c1_67, %c0_68, %c0_69] : memref<1x2x5x32xf32, #tpu.memory_space<vmem>>, vector<1x1x5x32xf32>
    %152 = vector.shape_cast %151 : vector<1x1x5x32xf32> to vector<5x32xf32>
    %153 = vector.shape_cast %150 : vector<5x32xf32> to vector<1x1x5x32xf32>
    tpu.vector_store %arg9[%c0_66, %c1_67, %c0_68, %c0_69], %153 {strides = array<i32>} : memref<1x2x5x32xf32, #tpu.memory_space<vmem>>, vector<1x1x5x32xf32>,
    return
  }
  func.func @transform_0(%arg0: i32, %arg1: i32) -> (i32, i32, i32, i32) {
    %c0_i32 = arith.constant 0 : i32
    %c0_i32_0 = arith.constant 0 : i32
    %c0_i32_1 = arith.constant 0 : i32
    return %arg0, %c0_i32, %arg1, %c0_i32_0 : i32, i32, i32, i32
  }
  func.func @transform_1(%arg0: i32, %arg1: i32) -> (i32, i32, i32) {
    %c0_i32 = arith.constant 0 : i32
    %c0_i32_0 = arith.constant 0 : i32
    %c0_i32_1 = arith.constant 0 : i32
    %c0_i32_2 = arith.constant 0 : i32
    return %c0_i32, %c0_i32_0, %c0_i32_1 : i32, i32, i32
  }
  func.func @transform_2(%arg0: i32, %arg1: i32) -> (i32, i32, i32) {
    %c0_i32 = arith.constant 0 : i32
    %c0_i32_0 = arith.constant 0 : i32
    %c0_i32_1 = arith.constant 0 : i32
    %c0_i32_2 = arith.constant 0 : i32
    return %c0_i32, %c0_i32_0, %c0_i32_1 : i32, i32, i32
  }
  func.func @transform_3(%arg0: i32, %arg1: i32) -> (i32, i32) {
    %c0_i32 = arith.constant 0 : i32
    %c0_i32_0 = arith.constant 0 : i32
    %c0_i32_1 = arith.constant 0 : i32
    return %c0_i32, %c0_i32_0 : i32, i32
  }
  func.func @transform_4(%arg0: i32, %arg1: i32) -> (i32, i32) {
    %c0_i32 = arith.constant 0 : i32
    %c0_i32_0 = arith.constant 0 : i32
    %c0_i32_1 = arith.constant 0 : i32
    return %c0_i32, %c0_i32_0 : i32, i32
  }
  func.func @transform_5(%arg0: i32, %arg1: i32) -> (i32, i32) {
    %c0_i32 = arith.constant 0 : i32
    %c0_i32_0 = arith.constant 0 : i32
    %c0_i32_1 = arith.constant 0 : i32
    return %c0_i32, %c0_i32_0 : i32, i32
  }
  func.func @transform_6(%arg0: i32, %arg1: i32) -> (i32, i32) {
    %c0_i32 = arith.constant 0 : i32
    %c0_i32_0 = arith.constant 0 : i32
    %c0_i32_1 = arith.constant 0 : i32
    return %c0_i32, %c0_i32_0 : i32, i32
  }
  func.func @transform_7(%arg0: i32, %arg1: i32) -> (i32, i32, i32, i32) {
    %c0_i32 = arith.constant 0 : i32
    %c0_i32_0 = arith.constant 0 : i32
    %c0_i32_1 = arith.constant 0 : i32
    return %arg0, %c0_i32, %arg1, %c0_i32_0 : i32, i32, i32, i32
  }
}

module attributes {stable_mosaic.version = 11 : i64} {
  func.func @_layernorm_kernel(%arg0: i32, %arg1: memref<16x32xf32, #tpu.memory_space<vmem>>, %arg2: memref<1x32xf32, #tpu.memory_space<vmem>>, %arg3: memref<1x32xf32, #tpu.memory_space<vmem>>, %arg4: memref<16x32xf32, #tpu.memory_space<vmem>>) attributes {dimension_semantics = [#tpu.dimension_semantics<parallel>], iteration_bounds = array<i64: 2>, scalar_prefetch = 0 : i64, scratch_operands = 0 : i64, tpu.core_type = #tpu.core_type<tc>, window_params = [{transform_indices = @transform_0, window_bounds = array<i64: 16, 32>}, {pipeline_mode = #tpu.pipeline_mode<synchronous>, transform_indices = @transform_1, window_bounds = array<i64: 1, 32>}, {pipeline_mode = #tpu.pipeline_mode<synchronous>, transform_indices = @transform_2, window_bounds = array<i64: 1, 32>}, {transform_indices = @transform_3, window_bounds = array<i64: 16, 32>}]} {
    %c0 = arith.constant 0 : index
    %c0_0 = arith.constant 0 : index
    %0 = vector.load %arg1[%c0, %c0_0] : memref<16x32xf32, #tpu.memory_space<vmem>>, vector<16x32xf32>
    %cst = arith.constant dense<0.000000e+00> : vector<16xf32>
    %1 = vector.multi_reduction <add>, %0, %cst [1] : vector<16x32xf32> to vector<16xf32>
    %2 = vector.shape_cast %1 : vector<16xf32> to vector<16x1xf32>
    %cst_1 = arith.constant 3.200000e+01 : f32
    %3 = vector.broadcast %cst_1 : f32 to vector<16x1xf32>
    %4 = arith.divf %2, %3 : vector<16x1xf32>
    %5 = vector.broadcast %4 : vector<16x1xf32> to vector<16x32xf32>
    %6 = arith.subf %0, %5 : vector<16x32xf32>
    %7 = arith.mulf %6, %6 : vector<16x32xf32>
    %cst_2 = arith.constant dense<0.000000e+00> : vector<16xf32>
    %8 = vector.multi_reduction <add>, %7, %cst_2 [1] : vector<16x32xf32> to vector<16xf32>
    %9 = vector.shape_cast %8 : vector<16xf32> to vector<16x1xf32>
    %cst_3 = arith.constant 3.200000e+01 : f32
    %10 = vector.broadcast %cst_3 : f32 to vector<16x1xf32>
    %11 = arith.divf %9, %10 : vector<16x1xf32>
    %12 = vector.broadcast %4 : vector<16x1xf32> to vector<16x32xf32>
    %13 = arith.subf %0, %12 : vector<16x32xf32>
    %cst_4 = arith.constant 9.99999974E-6 : f32
    %14 = vector.broadcast %cst_4 : f32 to vector<16x1xf32>
    %15 = arith.addf %11, %14 : vector<16x1xf32>
    %16 = math.rsqrt %15 : vector<16x1xf32>
    %17 = vector.broadcast %16 : vector<16x1xf32> to vector<16x32xf32>
    %18 = arith.mulf %13, %17 : vector<16x32xf32>
    %c0_5 = arith.constant 0 : index
    %c0_6 = arith.constant 0 : index
    %19 = vector.load %arg2[%c0_5, %c0_6] : memref<1x32xf32, #tpu.memory_space<vmem>>, vector<1x32xf32>
    %20 = vector.broadcast %19 : vector<1x32xf32> to vector<16x32xf32>
    %21 = arith.mulf %18, %20 : vector<16x32xf32>
    %c0_7 = arith.constant 0 : index
    %c0_8 = arith.constant 0 : index
    %22 = vector.load %arg3[%c0_7, %c0_8] : memref<1x32xf32, #tpu.memory_space<vmem>>, vector<1x32xf32>
    %23 = vector.broadcast %22 : vector<1x32xf32> to vector<16x32xf32>
    %24 = arith.addf %21, %23 : vector<16x32xf32>
    %c0_9 = arith.constant 0 : index
    %c0_10 = arith.constant 0 : index
    %25 = vector.load %arg4[%c0_9, %c0_10] : memref<16x32xf32, #tpu.memory_space<vmem>>, vector<16x32xf32>
    tpu.vector_store %arg4[%c0_9, %c0_10], %24 {strides = array<i32>} : memref<16x32xf32, #tpu.memory_space<vmem>>, vector<16x32xf32>,
    return
  }
  func.func @transform_0(%arg0: i32) -> (i32, i32) {
    %c0_i32 = arith.constant 0 : i32
    %c0_i32_0 = arith.constant 0 : i32
    return %arg0, %c0_i32 : i32, i32
  }
  func.func @transform_1(%arg0: i32) -> (i32, i32) {
    %c0_i32 = arith.constant 0 : i32
    %c0_i32_0 = arith.constant 0 : i32
    %c0_i32_1 = arith.constant 0 : i32
    return %c0_i32, %c0_i32_0 : i32, i32
  }
  func.func @transform_2(%arg0: i32) -> (i32, i32) {
    %c0_i32 = arith.constant 0 : i32
    %c0_i32_0 = arith.constant 0 : i32
    %c0_i32_1 = arith.constant 0 : i32
    return %c0_i32, %c0_i32_0 : i32, i32
  }
  func.func @transform_3(%arg0: i32) -> (i32, i32) {
    %c0_i32 = arith.constant 0 : i32
    %c0_i32_0 = arith.constant 0 : i32
    return %arg0, %c0_i32 : i32, i32
  }
}

module attributes {stable_mosaic.version = 11 : i64} {
  func.func @_mlp_block_kernel(%arg0: i32, %arg1: memref<16x32xf32, #tpu.memory_space<vmem>>, %arg2: memref<1x32xf32, #tpu.memory_space<vmem>>, %arg3: memref<1x32xf32, #tpu.memory_space<vmem>>, %arg4: memref<32x128xbf16, #tpu.memory_space<vmem>>, %arg5: memref<1x128xf32, #tpu.memory_space<vmem>>, %arg6: memref<128x32xbf16, #tpu.memory_space<vmem>>, %arg7: memref<1x32xf32, #tpu.memory_space<vmem>>, %arg8: memref<16x32xf32, #tpu.memory_space<vmem>>) attributes {dimension_semantics = [#tpu.dimension_semantics<parallel>], iteration_bounds = array<i64: 2>, scalar_prefetch = 0 : i64, scratch_operands = 0 : i64, tpu.core_type = #tpu.core_type<tc>, window_params = [{transform_indices = @transform_0, window_bounds = array<i64: 16, 32>}, {pipeline_mode = #tpu.pipeline_mode<synchronous>, transform_indices = @transform_1, window_bounds = array<i64: 1, 32>}, {pipeline_mode = #tpu.pipeline_mode<synchronous>, transform_indices = @transform_2, window_bounds = array<i64: 1, 32>}, {pipeline_mode = #tpu.pipeline_mode<synchronous>, transform_indices = @transform_3, window_bounds = array<i64: 32, 128>}, {pipeline_mode = #tpu.pipeline_mode<synchronous>, transform_indices = @transform_4, window_bounds = array<i64: 1, 128>}, {pipeline_mode = #tpu.pipeline_mode<synchronous>, transform_indices = @transform_5, window_bounds = array<i64: 128, 32>}, {pipeline_mode = #tpu.pipeline_mode<synchronous>, transform_indices = @transform_6, window_bounds = array<i64: 1, 32>}, {transform_indices = @transform_7, window_bounds = array<i64: 16, 32>}]} {
    %c0 = arith.constant 0 : index
    %c0_0 = arith.constant 0 : index
    %0 = vector.load %arg1[%c0, %c0_0] : memref<16x32xf32, #tpu.memory_space<vmem>>, vector<16x32xf32>
    %cst = arith.constant dense<0.000000e+00> : vector<16xf32>
    %1 = vector.multi_reduction <add>, %0, %cst [1] : vector<16x32xf32> to vector<16xf32>
    %2 = vector.shape_cast %1 : vector<16xf32> to vector<16x1xf32>
    %cst_1 = arith.constant 3.200000e+01 : f32
    %3 = vector.broadcast %cst_1 : f32 to vector<16x1xf32>
    %4 = arith.divf %2, %3 : vector<16x1xf32>
    %5 = vector.broadcast %4 : vector<16x1xf32> to vector<16x32xf32>
    %6 = arith.subf %0, %5 : vector<16x32xf32>
    %7 = arith.mulf %6, %6 : vector<16x32xf32>
    %cst_2 = arith.constant dense<0.000000e+00> : vector<16xf32>
    %8 = vector.multi_reduction <add>, %7, %cst_2 [1] : vector<16x32xf32> to vector<16xf32>
    %9 = vector.shape_cast %8 : vector<16xf32> to vector<16x1xf32>
    %cst_3 = arith.constant 3.200000e+01 : f32
    %10 = vector.broadcast %cst_3 : f32 to vector<16x1xf32>
    %11 = arith.divf %9, %10 : vector<16x1xf32>
    %12 = vector.broadcast %4 : vector<16x1xf32> to vector<16x32xf32>
    %13 = arith.subf %0, %12 : vector<16x32xf32>
    %cst_4 = arith.constant 9.99999974E-6 : f32
    %14 = vector.broadcast %cst_4 : f32 to vector<16x1xf32>
    %15 = arith.addf %11, %14 : vector<16x1xf32>
    %16 = math.rsqrt %15 : vector<16x1xf32>
    %17 = vector.broadcast %16 : vector<16x1xf32> to vector<16x32xf32>
    %18 = arith.mulf %13, %17 : vector<16x32xf32>
    %c0_5 = arith.constant 0 : index
    %c0_6 = arith.constant 0 : index
    %19 = vector.load %arg2[%c0_5, %c0_6] : memref<1x32xf32, #tpu.memory_space<vmem>>, vector<1x32xf32>
    %20 = vector.broadcast %19 : vector<1x32xf32> to vector<16x32xf32>
    %21 = arith.mulf %18, %20 : vector<16x32xf32>
    %c0_7 = arith.constant 0 : index
    %c0_8 = arith.constant 0 : index
    %22 = vector.load %arg3[%c0_7, %c0_8] : memref<1x32xf32, #tpu.memory_space<vmem>>, vector<1x32xf32>
    %23 = vector.broadcast %22 : vector<1x32xf32> to vector<16x32xf32>
    %24 = arith.addf %21, %23 : vector<16x32xf32>
    %25 = arith.truncf %24 : vector<16x32xf32> to vector<16x32xbf16>
    %c0_9 = arith.constant 0 : index
    %c0_10 = arith.constant 0 : index
    %26 = vector.load %arg4[%c0_9, %c0_10] : memref<32x128xbf16, #tpu.memory_space<vmem>>, vector<32x128xbf16>
    %cst_11 = arith.constant dense<0.000000e+00> : vector<16x128xf32>
    %27 = tpu.matmul %25, %26, %cst_11 {dimension_numbers = #tpu.dot_dimension_numbers<[1], [0], [0], [1], [0, 0, 1, 1], [], []>} : vector<16x32xbf16>, vector<32x128xbf16>, vector<16x128xf32> -> vector<16x128xf32>
    %c0_12 = arith.constant 0 : index
    %c0_13 = arith.constant 0 : index
    %28 = vector.load %arg5[%c0_12, %c0_13] : memref<1x128xf32, #tpu.memory_space<vmem>>, vector<1x128xf32>
    %29 = vector.broadcast %28 : vector<1x128xf32> to vector<16x128xf32>
    %30 = arith.addf %27, %29 : vector<16x128xf32>
    %cst_14 = arith.constant 1.702000e+00 : f32
    %31 = vector.broadcast %cst_14 : f32 to vector<16x128xf32>
    %32 = arith.mulf %31, %30 : vector<16x128xf32>
    %33 = arith.negf %32 : vector<16x128xf32>
    %34 = math.exp %33 : vector<16x128xf32>
    %cst_15 = arith.constant 1.000000e+00 : f32
    %35 = vector.broadcast %cst_15 : f32 to vector<16x128xf32>
    %36 = arith.addf %35, %34 : vector<16x128xf32>
    %37 = arith.divf %35, %36 : vector<16x128xf32>
    %38 = arith.mulf %30, %37 : vector<16x128xf32>
    %39 = arith.truncf %38 : vector<16x128xf32> to vector<16x128xbf16>
    %c0_16 = arith.constant 0 : index
    %c0_17 = arith.constant 0 : index
    %40 = vector.load %arg6[%c0_16, %c0_17] : memref<128x32xbf16, #tpu.memory_space<vmem>>, vector<128x32xbf16>
    %cst_18 = arith.constant dense<0.000000e+00> : vector<16x32xf32>
    %41 = tpu.matmul %39, %40, %cst_18 {dimension_numbers = #tpu.dot_dimension_numbers<[1], [0], [0], [1], [0, 0, 1, 1], [], []>} : vector<16x128xbf16>, vector<128x32xbf16>, vector<16x32xf32> -> vector<16x32xf32>
    %c0_19 = arith.constant 0 : index
    %c0_20 = arith.constant 0 : index
    %42 = vector.load %arg7[%c0_19, %c0_20] : memref<1x32xf32, #tpu.memory_space<vmem>>, vector<1x32xf32>
    %43 = vector.broadcast %42 : vector<1x32xf32> to vector<16x32xf32>
    %44 = arith.addf %41, %43 : vector<16x32xf32>
    %45 = arith.addf %0, %44 : vector<16x32xf32>
    %c0_21 = arith.constant 0 : index
    %c0_22 = arith.constant 0 : index
    %46 = vector.load %arg8[%c0_21, %c0_22] : memref<16x32xf32, #tpu.memory_space<vmem>>, vector<16x32xf32>
    tpu.vector_store %arg8[%c0_21, %c0_22], %45 {strides = array<i32>} : memref<16x32xf32, #tpu.memory_space<vmem>>, vector<16x32xf32>,
    return
  }
  func.func @transform_0(%arg0: i32) -> (i32, i32) {
    %c0_i32 = arith.constant 0 : i32
    %c0_i32_0 = arith.constant 0 : i32
    return %arg0, %c0_i32 : i32, i32
  }
  func.func @transform_1(%arg0: i32) -> (i32, i32) {
    %c0_i32 = arith.constant 0 : i32
    %c0_i32_0 = arith.constant 0 : i32
    %c0_i32_1 = arith.constant 0 : i32
    return %c0_i32, %c0_i32_0 : i32, i32
  }
  func.func @transform_2(%arg0: i32) -> (i32, i32) {
    %c0_i32 = arith.constant 0 : i32
    %c0_i32_0 = arith.constant 0 : i32
    %c0_i32_1 = arith.constant 0 : i32
    return %c0_i32, %c0_i32_0 : i32, i32
  }
  func.func @transform_3(%arg0: i32) -> (i32, i32) {
    %c0_i32 = arith.constant 0 : i32
    %c0_i32_0 = arith.constant 0 : i32
    %c0_i32_1 = arith.constant 0 : i32
    return %c0_i32, %c0_i32_0 : i32, i32
  }
  func.func @transform_4(%arg0: i32) -> (i32, i32) {
    %c0_i32 = arith.constant 0 : i32
    %c0_i32_0 = arith.constant 0 : i32
    %c0_i32_1 = arith.constant 0 : i32
    return %c0_i32, %c0_i32_0 : i32, i32
  }
  func.func @transform_5(%arg0: i32) -> (i32, i32) {
    %c0_i32 = arith.constant 0 : i32
    %c0_i32_0 = arith.constant 0 : i32
    %c0_i32_1 = arith.constant 0 : i32
    return %c0_i32, %c0_i32_0 : i32, i32
  }
  func.func @transform_6(%arg0: i32) -> (i32, i32) {
    %c0_i32 = arith.constant 0 : i32
    %c0_i32_0 = arith.constant 0 : i32
    %c0_i32_1 = arith.constant 0 : i32
    return %c0_i32, %c0_i32_0 : i32, i32
  }
  func.func @transform_7(%arg0: i32) -> (i32, i32) {
    %c0_i32 = arith.constant 0 : i32
    %c0_i32_0 = arith.constant 0 : i32
    return %arg0, %c0_i32 : i32, i32
  }
}

module attributes {stable_mosaic.version = 11 : i64} {
  func.func @_layernorm_kernel(%arg0: i32, %arg1: memref<4x32xf32, #tpu.memory_space<vmem>>, %arg2: memref<1x32xf32, #tpu.memory_space<vmem>>, %arg3: memref<1x32xf32, #tpu.memory_space<vmem>>, %arg4: memref<4x32xf32, #tpu.memory_space<vmem>>) attributes {dimension_semantics = [#tpu.dimension_semantics<parallel>], iteration_bounds = array<i64: 1>, scalar_prefetch = 0 : i64, scratch_operands = 0 : i64, tpu.core_type = #tpu.core_type<tc>, window_params = [{transform_indices = @transform_0, window_bounds = array<i64: 4, 32>}, {pipeline_mode = #tpu.pipeline_mode<synchronous>, transform_indices = @transform_1, window_bounds = array<i64: 1, 32>}, {pipeline_mode = #tpu.pipeline_mode<synchronous>, transform_indices = @transform_2, window_bounds = array<i64: 1, 32>}, {transform_indices = @transform_3, window_bounds = array<i64: 4, 32>}]} {
    %c0 = arith.constant 0 : index
    %c0_0 = arith.constant 0 : index
    %0 = vector.load %arg1[%c0, %c0_0] : memref<4x32xf32, #tpu.memory_space<vmem>>, vector<4x32xf32>
    %cst = arith.constant dense<0.000000e+00> : vector<4xf32>
    %1 = vector.multi_reduction <add>, %0, %cst [1] : vector<4x32xf32> to vector<4xf32>
    %2 = vector.shape_cast %1 : vector<4xf32> to vector<4x1xf32>
    %cst_1 = arith.constant 3.200000e+01 : f32
    %3 = vector.broadcast %cst_1 : f32 to vector<4x1xf32>
    %4 = arith.divf %2, %3 : vector<4x1xf32>
    %5 = vector.broadcast %4 : vector<4x1xf32> to vector<4x32xf32>
    %6 = arith.subf %0, %5 : vector<4x32xf32>
    %7 = arith.mulf %6, %6 : vector<4x32xf32>
    %cst_2 = arith.constant dense<0.000000e+00> : vector<4xf32>
    %8 = vector.multi_reduction <add>, %7, %cst_2 [1] : vector<4x32xf32> to vector<4xf32>
    %9 = vector.shape_cast %8 : vector<4xf32> to vector<4x1xf32>
    %cst_3 = arith.constant 3.200000e+01 : f32
    %10 = vector.broadcast %cst_3 : f32 to vector<4x1xf32>
    %11 = arith.divf %9, %10 : vector<4x1xf32>
    %12 = vector.broadcast %4 : vector<4x1xf32> to vector<4x32xf32>
    %13 = arith.subf %0, %12 : vector<4x32xf32>
    %cst_4 = arith.constant 9.99999974E-6 : f32
    %14 = vector.broadcast %cst_4 : f32 to vector<4x1xf32>
    %15 = arith.addf %11, %14 : vector<4x1xf32>
    %16 = math.rsqrt %15 : vector<4x1xf32>
    %17 = vector.broadcast %16 : vector<4x1xf32> to vector<4x32xf32>
    %18 = arith.mulf %13, %17 : vector<4x32xf32>
    %c0_5 = arith.constant 0 : index
    %c0_6 = arith.constant 0 : index
    %19 = vector.load %arg2[%c0_5, %c0_6] : memref<1x32xf32, #tpu.memory_space<vmem>>, vector<1x32xf32>
    %20 = vector.broadcast %19 : vector<1x32xf32> to vector<4x32xf32>
    %21 = arith.mulf %18, %20 : vector<4x32xf32>
    %c0_7 = arith.constant 0 : index
    %c0_8 = arith.constant 0 : index
    %22 = vector.load %arg3[%c0_7, %c0_8] : memref<1x32xf32, #tpu.memory_space<vmem>>, vector<1x32xf32>
    %23 = vector.broadcast %22 : vector<1x32xf32> to vector<4x32xf32>
    %24 = arith.addf %21, %23 : vector<4x32xf32>
    %c0_9 = arith.constant 0 : index
    %c0_10 = arith.constant 0 : index
    %25 = vector.load %arg4[%c0_9, %c0_10] : memref<4x32xf32, #tpu.memory_space<vmem>>, vector<4x32xf32>
    tpu.vector_store %arg4[%c0_9, %c0_10], %24 {strides = array<i32>} : memref<4x32xf32, #tpu.memory_space<vmem>>, vector<4x32xf32>,
    return
  }
  func.func @transform_0(%arg0: i32) -> (i32, i32) {
    %c0_i32 = arith.constant 0 : i32
    %c0_i32_0 = arith.constant 0 : i32
    return %arg0, %c0_i32 : i32, i32
  }
  func.func @transform_1(%arg0: i32) -> (i32, i32) {
    %c0_i32 = arith.constant 0 : i32
    %c0_i32_0 = arith.constant 0 : i32
    %c0_i32_1 = arith.constant 0 : i32
    return %c0_i32, %c0_i32_0 : i32, i32
  }
  func.func @transform_2(%arg0: i32) -> (i32, i32) {
    %c0_i32 = arith.constant 0 : i32
    %c0_i32_0 = arith.constant 0 : i32
    %c0_i32_1 = arith.constant 0 : i32
    return %c0_i32, %c0_i32_0 : i32, i32
  }
  func.func @transform_3(%arg0: i32) -> (i32, i32) {
    %c0_i32 = arith.constant 0 : i32
    %c0_i32_0 = arith.constant 0 : i32
    return %arg0, %c0_i32 : i32, i32
  }
}

</mosaic_0001>

<llo_original>
// kernel: timesformer_forward.10
$region0: #{timesformer_forward.10}
  #allocation0 [shape = 'u32[]', space=smem, size = 0x4, offset = 0x4, fixed_abs, tag = 'smem constant byte address 0x4 - core index']
  #allocation1 [shape = 'u32[144,128]{1,0:T(1,128)}', space=vmem, size = 0x12000, scoped, tag = 'internal scratch']
  %s0 = inlined_call_operand.vmem [shape: f32[20,32], index: 0, kind: input, shape index: {}]
  %s1 = inlined_call_operand.vmem [shape: f32[1,32], index: 1, kind: input, shape index: {}]
  %s2 = inlined_call_operand.vmem [shape: f32[1,32], index: 2, kind: input, shape index: {}]
  %s3 = inlined_call_operand.vmem [shape: f32[20,32], index: 3, kind: output, shape index: {}]
  %s4 = sld [smem:[#allocation0]]
  $region93: #{timesformer_forward.10} parent=0
    _
  %s6 = ssub.s32 1, %s4
  %s7 = scalar_select 0, %s6, %s4
  $region1: #{timesformer_forward.10} parent=0
    #allocation2 [shape = 'u8[16384]{0}', space=vmem, size = 0x4000, scoped, tag = 'output window, operand 0']
    loop: start=0, step=1, limit=4
    $region2: #{timesformer_forward.10} parent=1 // loop_pre_header
      _
    $region3: #{timesformer_forward.10} parent=1 // loop_header
      %s9 = sphi 0, %s13
      %p10 = scmp.ge.s32.totalorder %s9, 4
      %s19 = sphi 0, %s21
      %s22 = sphi 0, %s19
      %s23 = sphi 0, %s22
      %s39 = sphi 0, %s23
      %s43 = sphi 0, %s43
      %s45 = sphi 0, %s43
      %s46 = sphi 0, %s45
      %s60 = sphi 0, %s46
      %s64 = sphi 0, %s64
      %s66 = sphi 0, %s64
      %s67 = sphi 0, %s66
      %s81 = sphi 0, %s67
      %s87 = sphi 0, %s89
      %s90 = sphi 0, %s87
      %s91 = sphi 0, %s90
      %s107 = sphi 0, %s91
    $region4: #{timesformer_forward.10} parent=1 // loop_header_branch
      %12 = sbr.rel (%p10) target = $region8
    $region5: #{timesformer_forward.10} parent=1 // loop_body
      %s14 = ssub.s32 %s9, 1
      %s15 = ssub.s32 %s9, 2
      %s16 = sadd.s32 %s9, 1
      %s17 = ssub.s32 %s9, %s16
      %p18 = scmp.eq.s32.totalorder %s17, 0
      %s20 = sadd.s32 %s19, 1
      %s21 = scalar_select %p18, %s19, %s20
      %p24 = pneg %p18
      %p25 = scmp.eq.s32.totalorder %s9, 1
      %p26 = por %p24, %p25
      %p27 = scmp.ne.s32.totalorder %s19, %s22
      %p28 = scmp.eq.s32.totalorder %s9, 0
      %p29 = por %p27, %p28
      %p30 = scmp.ne.s32.totalorder %s19, %s22
      %p31 = scmp.eq.s32.totalorder %s14, 1
      %p32 = por %p30, %p31
      %p33 = scmp.ne.s32.totalorder %s22, %s23
      %p34 = scmp.eq.s32.totalorder %s14, 0
      %p35 = por %p33, %p34
      %p36 = scmp.ne.s32.totalorder %s22, %s23
      %p37 = scmp.eq.s32.totalorder %s15, 1
      %p38 = por %p36, %p37
      %p40 = scmp.ne.s32.totalorder %s23, %s39
      %p41 = scmp.eq.s32.totalorder %s15, 0
      %p42 = por %p40, %p41
      %s44 = sadd.s32 %s43, 1
      %p47 = scmp.eq.s32.totalorder %s9, 1
      %p48 = scmp.ne.s32.totalorder %s43, %s45
      %p49 = scmp.eq.s32.totalorder %s9, 0
      %p50 = por %p48, %p49
      %p51 = scmp.ne.s32.totalorder %s43, %s45
      %p52 = scmp.eq.s32.totalorder %s14, 1
      %p53 = por %p51, %p52
      %p54 = scmp.ne.s32.totalorder %s45, %s46
      %p55 = scmp.eq.s32.totalorder %s14, 0
      %p56 = por %p54, %p55
      %p57 = scmp.ne.s32.totalorder %s45, %s46
      %p58 = scmp.eq.s32.totalorder %s15, 1
      %p59 = por %p57, %p58
      %p61 = scmp.ne.s32.totalorder %s46, %s60
      %p62 = scmp.eq.s32.totalorder %s15, 0
      %p63 = por %p61, %p62
      %s65 = sadd.s32 %s64, 1
      %p68 = scmp.eq.s32.totalorder %s9, 1
      %p69 = scmp.ne.s32.totalorder %s64, %s66
      %p70 = scmp.eq.s32.totalorder %s9, 0
      %p71 = por %p69, %p70
      %p72 = scmp.ne.s32.totalorder %s64, %s66
      %p73 = scmp.eq.s32.totalorder %s14, 1
      %p74 = por %p72, %p73
      %p75 = scmp.ne.s32.totalorder %s66, %s67
      %p76 = scmp.eq.s32.totalorder %s14, 0
      %p77 = por %p75, %p76
      %p78 = scmp.ne.s32.totalorder %s66, %s67
      %p79 = scmp.eq.s32.totalorder %s15, 1
      %p80 = por %p78, %p79
      %p82 = scmp.ne.s32.totalorder %s67, %s81
      %p83 = scmp.eq.s32.totalorder %s15, 0
      %p84 = por %p82, %p83
      %s85 = ssub.s32 %s9, %s16
      %p86 = scmp.eq.s32.totalorder %s85, 0
      %s88 = sadd.s32 %s87, 1
      %s89 = scalar_select %p86, %s87, %s88
      %p92 = pneg %p86
      %p93 = scmp.eq.s32.totalorder %s9, 1
      %p94 = por %p92, %p93
      %p95 = scmp.ne.s32.totalorder %s87, %s90
      %p96 = scmp.eq.s32.totalorder %s9, 0
      %p97 = por %p95, %p96
      %p98 = scmp.ne.s32.totalorder %s87, %s90
      %p99 = scmp.eq.s32.totalorder %s14, 1
      %p100 = por %p98, %p99
      %p101 = scmp.ne.s32.totalorder %s90, %s91
      %p102 = scmp.eq.s32.totalorder %s14, 0
      %p103 = por %p101, %p102
      %p104 = scmp.ne.s32.totalorder %s90, %s91
      %p105 = scmp.eq.s32.totalorder %s15, 1
      %p106 = por %p104, %p105
      %p108 = scmp.ne.s32.totalorder %s91, %s107
      %p109 = scmp.eq.s32.totalorder %s15, 0
      %p110 = por %p108, %p109
      %p111 = scmp.le.s32.totalorder 1, %s9
      %p112 = scmp.lt.s32.totalorder %s9, 3
      %p113 = pnand %p111, %p112
      %p114 = pneg %p113
      // Predicated region
      $region9: #{timesformer_forward.10} parent=5 // pred_check
        _
      $region10: #{timesformer_forward.10} parent=5 // pred_check_branch
        %116 = sbr.rel (%p113) target = $region12
      $region11: #{timesformer_forward.10} parent=5 // pred_region
        %s117 = ssub.s32 %s9, 1
        // Predicated region
        $region13: #{timesformer_forward.10} parent=11 // pred_check
          %p118 = pneg %p56
        $region14: #{timesformer_forward.10} parent=11 // pred_check_branch
          %120 = sbr.rel (%p118) target = $region16
        $region15: #{timesformer_forward.10} parent=11 // pred_region
          _
        $region16: #{timesformer_forward.10} parent=11 // pred_fallthru
          _
        // Predicated region
        $region17: #{timesformer_forward.10} parent=11 // pred_check
          %p121 = pneg %p77
        $region18: #{timesformer_forward.10} parent=11 // pred_check_branch
          %123 = sbr.rel (%p121) target = $region20
        $region19: #{timesformer_forward.10} parent=11 // pred_region
          _
        $region20: #{timesformer_forward.10} parent=11 // pred_fallthru
          _
      $region12: #{timesformer_forward.10} parent=5 // pred_fallthru
        _
      %p124 = scmp.lt.s32.totalorder %s9, 2
      // Predicated region
      $region21: #{timesformer_forward.10} parent=5 // pred_check
        %p125 = pneg %p124
      $region22: #{timesformer_forward.10} parent=5 // pred_check_branch
        %127 = sbr.rel (%p125) target = $region24
      $region23: #{timesformer_forward.10} parent=5 // pred_region
        // Predicated region
        $region25: #{timesformer_forward.10} parent=23 // pred_check
          %p128 = pneg %p29
        $region26: #{timesformer_forward.10} parent=23 // pred_check_branch
          %130 = sbr.rel (%p128) target = $region28
        $region27: #{timesformer_forward.10} parent=23 // pred_region
          %s131 = smul.u32 2, %s9
          %s132 = ssub.s32 3, %s131
          %p133 = scmp.lt.s32.totalorder %s132, 2
          %s134 = scalar_select %p133, %s132, 2
          %s135 = smul.u32 128, %s134
          %p136 = scmp.lt.s32.totalorder %s131, 2
          %s137 = scalar_select %p136, %s131, 2
          %s138 = smul.addr %s137, 8
          %s139 = scalar_lea.vmem %s0, %s138
          %s140 = smul.u32 2, %s9
          %s141 = ssub.s32 3, %s140
          %p142 = scmp.lt.s32.totalorder %s141, 2
          %s143 = scalar_select %p142, %s141, 2
          %s144 = smul.u32 128, %s143
        $region28: #{timesformer_forward.10} parent=23 // pred_fallthru
          _
      $region24: #{timesformer_forward.10} parent=5 // pred_fallthru
        _
      %p145 = scmp.le.s32.totalorder 1, %s9
      %p146 = scmp.lt.s32.totalorder %s9, 3
      %p147 = pnand %p145, %p146
      %p148 = pneg %p147
      // Predicated region
      $region29: #{timesformer_forward.10} parent=5 // pred_check
        _
      $region30: #{timesformer_forward.10} parent=5 // pred_check_branch
        %150 = sbr.rel (%p147) target = $region32
      $region31: #{timesformer_forward.10} parent=5 // pred_region
        %s151 = ssub.s32 %s9, 1
        %s152 = smul.u32 2, %s14
        %s153 = ssub.s32 3, %s152
        %p154 = scmp.lt.s32.totalorder %s153, 2
        %s155 = scalar_select %p154, %s153, 2
        %s156 = smul.u32 128, %s155
        %p157 = scmp.lt.s32.totalorder %s152, 2
        %s158 = scalar_select %p157, %s152, 2
        %s159 = smul.addr %s158, 8
        %s160 = scalar_lea.vmem %s0, %s159
        %p161 = pneg %p35
        %p162 = pneg %p32
        %p163 = pneg %p56
        %p164 = pneg %p53
        %p165 = pneg %p77
        %p166 = pneg %p74
        %p167 = pneg %p103
        %p168 = pneg %p100
        %s169 = sand.u32 %s90, 1
        %s170 = sand.u32 %s90, 1
        %s171 = smul.addr %s170, 16
        %s172 = scalar_lea.vmem [#allocation2], %s171
        %s173 = smul.u32 2, %s14
        %s174 = ssub.s32 3, %s173
        %p175 = scmp.lt.s32.totalorder %s174, 2
        %s176 = scalar_select %p175, %s174, 2
        %s177 = smul.u32 128, %s176
        %p178 = scmp.lt.s32.totalorder %s173, 2
        %s179 = scalar_select %p178, %s173, 2
        %s180 = smul.addr %s179, 8
        %s181 = scalar_lea.vmem %s0, %s180
        %s182 = smul.u32 2, %s14
        %s183 = ssub.s32 3, %s182
        %p184 = scmp.lt.s32.totalorder %s183, 2
        %s185 = scalar_select %p184, %s183, 2
        %s186 = smul.u32 128, %s185
        %s187 = smul.u32 2, %s14
        %s188 = ssub.s32 3, %s187
        %p189 = scmp.lt.s32.totalorder %s188, 2
        %s190 = scalar_select %p189, %s188, 2
        %s191 = smul.u32 128, %s190
        %v192 = vld [vmem:[%s181] sm:$0xff]
        %v193 = vld [vmem:[%s181 + $0x8] sm:$0xff]
        %vm194 = vcmask 261120
        %v195 = vsel %vm194, %v192, 0.0
        %196 = vadd.xlane.f32.xlu0 %v195
        %v197 = vpop.xlane.xlu0 %196
        %v198 = vsel %vm194, %v193, 0.0
        %199 = vadd.xlane.f32.xlu0 %v198
        %v200 = vpop.xlane.xlu0 %199
        %v201 = vrcp.pop 32.0
        %v202 = vmul.f32 %v197, %v201
        %v203 = vmul.f32 %v200, %v201
        %v204 = vsub.f32 %v192, %v202
        %v205 = vsub.f32 %v193, %v203
        %v206 = vmul.f32 %v204, %v204
        %v207 = vmul.f32 %v205, %v205
        %v208 = vsel %vm194, %v206, 0.0
        %209 = vadd.xlane.f32.xlu0 %v208
        %v210 = vpop.xlane.xlu0 %209
        %v211 = vsel %vm194, %v207, 0.0
        %212 = vadd.xlane.f32.xlu0 %v211
        %v213 = vpop.xlane.xlu0 %212
        %v214 = vmul.f32 %v210, %v201
        %v215 = vmul.f32 %v213, %v201
        %v216 = vadd.f32 %v214, 1e-05
        %v217 = vadd.f32 %v215, 1e-05
        %v218 = vrsqrt.pop %v216
        %v219 = vrsqrt.pop %v217
        %v220 = vmul.f32 %v204, %v218
        %v221 = vmul.f32 %v205, %v219
        %v222 = vld [vmem:[%s1] sm:$0x1]
        %v224 = vlaneseq
        %v225 = vshrl.u32 %v224, 7
        %v226 = vsub.s32 0, %v225
        %v227 = vrot.slane %v222, %v226
        %v229 = vmul.f32 %v220, %v227
        %v230 = vmul.f32 %v221, %v227
        %v231 = vld [vmem:[%s2] sm:$0x1]
        %v233 = vlaneseq
        %v234 = vshrl.u32 %v233, 7
        %v235 = vsub.s32 0, %v234
        %v236 = vrot.slane %v231, %v235
        %v238 = vadd.f32 %v229, %v236
        %v239 = vadd.f32 %v230, %v236
        %240 = vst.msk [vmem:[%s172] sm:$0xff] %vm194, %v238
        %241 = vst.msk [vmem:[%s172 + $0x8] sm:$0xff] %vm194, %v239
        %s242 = sand.u32 %s90, 1
        %s243 = sand.u32 %s90, 1
        %s244 = smul.addr %s243, 16
        %s245 = scalar_lea.vmem [#allocation2], %s244
        // Predicated region
        $region33: #{timesformer_forward.10} parent=31 // pred_check
          %p246 = pneg %p100
        $region34: #{timesformer_forward.10} parent=31 // pred_check_branch
          %248 = sbr.rel (%p246) target = $region36
        $region35: #{timesformer_forward.10} parent=31 // pred_region
          %s249 = smul.u32 2, %s14
          %s250 = ssub.s32 3, %s249
          %p251 = scmp.lt.s32.totalorder %s250, 2
          %s252 = scalar_select %p251, %s250, 2
          %s253 = smul.u32 128, %s252
          %p254 = scmp.ne.s32.totalorder 0, %s253
          %s255 = smul.addr %s249, 8
          %s256 = scalar_lea.vmem %s3, %s255
          // Predicated region
          $region37: #{timesformer_forward.10} parent=35 // pred_check
            %p257 = pneg %p254
          $region38: #{timesformer_forward.10} parent=35 // pred_check_branch
            %259 = sbr.rel (%p257) target = $region40
          $region39: #{timesformer_forward.10} parent=35 // pred_region
            // Predicated region
            $region41: #{timesformer_forward.10} parent=39 // pred_check
              _
            $region42: #{timesformer_forward.10} parent=39 // pred_check_branch
              %261 = sbr.rel (0) target = $region44
            $region43: #{timesformer_forward.10} parent=39 // pred_region
              // Predicated region
              $region63: #{timesformer_forward.10} parent=43 // pred_check
                _
              $region64: #{timesformer_forward.10} parent=43 // pred_check_branch
                %312 = sbr.rel (0) target = $region66
              $region65: #{timesformer_forward.10} parent=43 // pred_region
                %s313 = sshrl.u32 %s252, 1
                // While loop
                $region67: #{timesformer_forward.10} parent=65 // loop_pre_header
                  _
                $region68: #{timesformer_forward.10} parent=65 // loop_header
                  %s315 = sphi 0, %s317
                  %p316 = scmp.ge.s32.totalorder %s315, %s313
                  %s320 = sphi 0, %s329
                  %s321 = sphi %s245, %s332
                  %s322 = sphi %s256, %s333
                $region69: #{timesformer_forward.10} parent=65 // loop_header_branch
                  %319 = sbr.rel (%p316) target = $region73
                $region70: #{timesformer_forward.10} parent=65 // loop_body
                  %v323 = vld [vmem:[%s321] sm:$0xff]
                  %324 = vst [vmem:[%s322] sm:$0xff] %v323
                  %v325 = vld [vmem:[%s321 + $0x8] sm:$0xff]
                  %326 = vst [vmem:[%s322 + $0x8] sm:$0xff] %v325
                  %s327 = sadd.s32 1, %s320
                  %p328 = scmp.ge.s32.totalorder %s327, %s313
                  %s329 = scalar_select %p328, 0, %s327
                  %s330 = smul.u32 %s329, 16
                  %s331 = smul.u32 %s329, 16
                  %s332 = scalar_lea.vmem %s245, %s330 [#allocation2]
                  %s333 = scalar_lea.vmem %s256, %s331
                $region71: #{timesformer_forward.10} parent=65 // loop_footer
                  %s317 = sadd.s32 %s315, 1
                $region72: #{timesformer_forward.10} parent=65 // loop_footer_branch
                  %314 = sbr.rel target = $region68
                $region73: #{timesformer_forward.10} parent=65 // loop_exit
                  _
                %s334 = sshrl.u32 %s252, 1
                %s335 = sand.u32 %s252, 1
                %s336 = smul.u32 %s334, 2
                %s337 = smul.u32 8, %s336
                %s338 = scalar_lea.vmem %s245, %s337 [#allocation2]
                %s339 = smul.u32 8, %s336
                %s340 = scalar_lea.vmem %s256, %s339
                // While loop
                $region74: #{timesformer_forward.10} parent=65 // loop_pre_header
                  _
                $region75: #{timesformer_forward.10} parent=65 // loop_header
                  %s342 = sphi 0, %s344
                  %p343 = scmp.ge.s32.totalorder %s342, %s335
                  %s347 = sphi 0, %s354
                  %s348 = sphi %s338, %s357
                  %s349 = sphi %s340, %s358
                $region76: #{timesformer_forward.10} parent=65 // loop_header_branch
                  %346 = sbr.rel (%p343) target = $region80
                $region77: #{timesformer_forward.10} parent=65 // loop_body
                  %v350 = vld [vmem:[%s348] sm:$0xff]
                  %351 = vst [vmem:[%s349] sm:$0xff] %v350
                  %s352 = sadd.s32 1, %s347
                  %p353 = scmp.ge.s32.totalorder %s352, %s335
                  %s354 = scalar_select %p353, 0, %s352
                  %s355 = smul.u32 %s354, 8
                  %s356 = smul.u32 %s354, 8
                  %s357 = scalar_lea.vmem %s338, %s355 [#allocation2]
                  %s358 = scalar_lea.vmem %s340, %s356
                $region78: #{timesformer_forward.10} parent=65 // loop_footer
                  %s344 = sadd.s32 %s342, 1
                $region79: #{timesformer_forward.10} parent=65 // loop_footer_branch
                  %341 = sbr.rel target = $region75
                $region80: #{timesformer_forward.10} parent=65 // loop_exit
                  _
              $region66: #{timesformer_forward.10} parent=43 // pred_fallthru
                _
              // Predicated region
              $region81: #{timesformer_forward.10} parent=43 // pred_check
                _
              $region82: #{timesformer_forward.10} parent=43 // pred_check_branch
                %360 = sbr.rel target = $region84
              $region83: #{timesformer_forward.10} parent=43 // pred_region
                _
              $region84: #{timesformer_forward.10} parent=43 // pred_fallthru
                _
            $region44: #{timesformer_forward.10} parent=39 // pred_fallthru
              _
            // Predicated region
            $region45: #{timesformer_forward.10} parent=39 // pred_check
              _
            $region46: #{timesformer_forward.10} parent=39 // pred_check_branch
              %263 = sbr.rel target = $region48
            $region47: #{timesformer_forward.10} parent=39 // pred_region
              %s265 = sshrl.u32 %s252, 1
              // While loop
              $region49: #{timesformer_forward.10} parent=47 // loop_pre_header
                _
              $region50: #{timesformer_forward.10} parent=47 // loop_header
                %s267 = sphi 0, %s269
                %p268 = scmp.ge.s32.totalorder %s267, %s265
                %s272 = sphi 0, %s281
                %s273 = sphi %s245, %s284
                %s274 = sphi %s256, %s285
              $region51: #{timesformer_forward.10} parent=47 // loop_header_branch
                %271 = sbr.rel (%p268) target = $region55
              $region52: #{timesformer_forward.10} parent=47 // loop_body
                %v275 = vld [vmem:[%s273] sm:$0xff]
                %276 = vst [vmem:[%s274] sm:$0xff] %v275
                %v277 = vld [vmem:[%s273 + $0x8] sm:$0xff]
                %278 = vst [vmem:[%s274 + $0x8] sm:$0xff] %v277
                %s279 = sadd.s32 1, %s272
                %p280 = scmp.ge.s32.totalorder %s279, %s265
                %s281 = scalar_select %p280, 0, %s279
                %s282 = smul.u32 %s281, 16
                %s283 = smul.u32 %s281, 16
                %s284 = scalar_lea.vmem %s245, %s282 [#allocation2]
                %s285 = scalar_lea.vmem %s256, %s283
              $region53: #{timesformer_forward.10} parent=47 // loop_footer
                %s269 = sadd.s32 %s267, 1
              $region54: #{timesformer_forward.10} parent=47 // loop_footer_branch
                %266 = sbr.rel target = $region50
              $region55: #{timesformer_forward.10} parent=47 // loop_exit
                _
              %s286 = sshrl.u32 %s252, 1
              %s287 = sand.u32 %s252, 1
              %s288 = smul.u32 %s286, 2
              %s289 = smul.u32 8, %s288
              %s290 = scalar_lea.vmem %s245, %s289 [#allocation2]
              %s291 = smul.u32 8, %s288
              %s292 = scalar_lea.vmem %s256, %s291
              // While loop
              $region56: #{timesformer_forward.10} parent=47 // loop_pre_header
                _
              $region57: #{timesformer_forward.10} parent=47 // loop_header
                %s294 = sphi 0, %s296
                %p295 = scmp.ge.s32.totalorder %s294, %s287
                %s299 = sphi 0, %s306
                %s300 = sphi %s290, %s309
                %s301 = sphi %s292, %s310
              $region58: #{timesformer_forward.10} parent=47 // loop_header_branch
                %298 = sbr.rel (%p295) target = $region62
              $region59: #{timesformer_forward.10} parent=47 // loop_body
                %v302 = vld [vmem:[%s300] sm:$0xff]
                %303 = vst [vmem:[%s301] sm:$0xff] %v302
                %s304 = sadd.s32 1, %s299
                %p305 = scmp.ge.s32.totalorder %s304, %s287
                %s306 = scalar_select %p305, 0, %s304
                %s307 = smul.u32 %s306, 8
                %s308 = smul.u32 %s306, 8
                %s309 = scalar_lea.vmem %s290, %s307 [#allocation2]
                %s310 = scalar_lea.vmem %s292, %s308
              $region60: #{timesformer_forward.10} parent=47 // loop_footer
                %s296 = sadd.s32 %s294, 1
              $region61: #{timesformer_forward.10} parent=47 // loop_footer_branch
                %293 = sbr.rel target = $region57
              $region62: #{timesformer_forward.10} parent=47 // loop_exit
                _
            $region48: #{timesformer_forward.10} parent=39 // pred_fallthru
              _
          $region40: #{timesformer_forward.10} parent=35 // pred_fallthru
            _
          %361 = vnop
        $region36: #{timesformer_forward.10} parent=31 // pred_fallthru
          _
      $region32: #{timesformer_forward.10} parent=5 // pred_fallthru
        _
      %p362 = scmp.le.s32.totalorder 2, %s9
      // Predicated region
      $region85: #{timesformer_forward.10} parent=5 // pred_check
        %p363 = pneg %p362
      $region86: #{timesformer_forward.10} parent=5 // pred_check_branch
        %365 = sbr.rel (%p363) target = $region88
      $region87: #{timesformer_forward.10} parent=5 // pred_region
        %s366 = ssub.s32 %s9, 2
        // Predicated region
        $region89: #{timesformer_forward.10} parent=87 // pred_check
          %p367 = pneg %p106
        $region90: #{timesformer_forward.10} parent=87 // pred_check_branch
          %369 = sbr.rel (%p367) target = $region92
        $region91: #{timesformer_forward.10} parent=87 // pred_region
          %s370 = sand.u32 %s91, 1
          %s371 = sand.u32 %s91, 1
          %s372 = smul.addr %s371, 16
          %s373 = scalar_lea.vmem [#allocation2], %s372
        $region92: #{timesformer_forward.10} parent=87 // pred_fallthru
          _
      $region88: #{timesformer_forward.10} parent=5 // pred_fallthru
        _
    $region6: #{timesformer_forward.10} parent=1 // loop_footer
      %s13 = sadd.s32 1, %s9
    $region7: #{timesformer_forward.10} parent=1 // loop_footer_branch
      %8 = sbr.rel target = $region3
    $region8: #{timesformer_forward.10} parent=1 // loop_exit
      _

// kernel: timesformer_forward.9
$region0: #{timesformer_forward.9}
  #allocation0 [shape = 'u32[]', space=smem, size = 0x4, offset = 0x4, fixed_abs, tag = 'smem constant byte address 0x4 - core index']
  #allocation1 [shape = 'u32[144,128]{1,0:T(1,128)}', space=vmem, size = 0x12000, scoped, tag = 'internal scratch']
  %s0 = inlined_call_operand.vmem [shape: f32[16,192], index: 0, kind: input, shape index: {}]
  %s1 = inlined_call_operand.vmem [shape: bf16[192,32], index: 1, kind: input, shape index: {}]
  %s2 = inlined_call_operand.vmem [shape: f32[16,32], index: 2, kind: output, shape index: {}]
  %s3 = sld [smem:[#allocation0]]
  $region41: #{timesformer_forward.9} parent=0
    _
  %s5 = ssub.s32 1, %s3
  %s6 = scalar_select 0, %s5, %s3
  loop: start=0, step=1, limit=4
  $region2: #{timesformer_forward.9} parent=0 // loop_pre_header
    _
  $region3: #{timesformer_forward.9} parent=0 // loop_header
    %s8 = sphi 0, %s12
    %p9 = scmp.ge.s32.totalorder %s8, 4
    %s18 = sphi 0, %s20
    %s21 = sphi 0, %s18
    %s22 = sphi 0, %s21
    %s38 = sphi 0, %s22
    %s42 = sphi 0, %s42
    %s44 = sphi 0, %s42
    %s45 = sphi 0, %s44
    %s59 = sphi 0, %s45
    %s65 = sphi 0, %s67
    %s68 = sphi 0, %s65
    %s69 = sphi 0, %s68
    %s85 = sphi 0, %s69
  $region4: #{timesformer_forward.9} parent=0 // loop_header_branch
    %11 = sbr.rel (%p9) target = $region8
  $region5: #{timesformer_forward.9} parent=0 // loop_body
    %s13 = ssub.s32 %s8, 1
    %s14 = ssub.s32 %s8, 2
    %s15 = sadd.s32 %s8, 1
    %s16 = ssub.s32 %s8, %s15
    %p17 = scmp.eq.s32.totalorder %s16, 0
    %s19 = sadd.s32 %s18, 1
    %s20 = scalar_select %p17, %s18, %s19
    %p23 = pneg %p17
    %p24 = scmp.eq.s32.totalorder %s8, 1
    %p25 = por %p23, %p24
    %p26 = scmp.ne.s32.totalorder %s18, %s21
    %p27 = scmp.eq.s32.totalorder %s8, 0
    %p28 = por %p26, %p27
    %p29 = scmp.ne.s32.totalorder %s18, %s21
    %p30 = scmp.eq.s32.totalorder %s13, 1
    %p31 = por %p29, %p30
    %p32 = scmp.ne.s32.totalorder %s21, %s22
    %p33 = scmp.eq.s32.totalorder %s13, 0
    %p34 = por %p32, %p33
    %p35 = scmp.ne.s32.totalorder %s21, %s22
    %p36 = scmp.eq.s32.totalorder %s14, 1
    %p37 = por %p35, %p36
    %p39 = scmp.ne.s32.totalorder %s22, %s38
    %p40 = scmp.eq.s32.totalorder %s14, 0
    %p41 = por %p39, %p40
    %s43 = sadd.s32 %s42, 1
    %p46 = scmp.eq.s32.totalorder %s8, 1
    %p47 = scmp.ne.s32.totalorder %s42, %s44
    %p48 = scmp.eq.s32.totalorder %s8, 0
    %p49 = por %p47, %p48
    %p50 = scmp.ne.s32.totalorder %s42, %s44
    %p51 = scmp.eq.s32.totalorder %s13, 1
    %p52 = por %p50, %p51
    %p53 = scmp.ne.s32.totalorder %s44, %s45
    %p54 = scmp.eq.s32.totalorder %s13, 0
    %p55 = por %p53, %p54
    %p56 = scmp.ne.s32.totalorder %s44, %s45
    %p57 = scmp.eq.s32.totalorder %s14, 1
    %p58 = por %p56, %p57
    %p60 = scmp.ne.s32.totalorder %s45, %s59
    %p61 = scmp.eq.s32.totalorder %s14, 0
    %p62 = por %p60, %p61
    %s63 = ssub.s32 %s8, %s15
    %p64 = scmp.eq.s32.totalorder %s63, 0
    %s66 = sadd.s32 %s65, 1
    %s67 = scalar_select %p64, %s65, %s66
    %p70 = pneg %p64
    %p71 = scmp.eq.s32.totalorder %s8, 1
    %p72 = por %p70, %p71
    %p73 = scmp.ne.s32.totalorder %s65, %s68
    %p74 = scmp.eq.s32.totalorder %s8, 0
    %p75 = por %p73, %p74
    %p76 = scmp.ne.s32.totalorder %s65, %s68
    %p77 = scmp.eq.s32.totalorder %s13, 1
    %p78 = por %p76, %p77
    %p79 = scmp.ne.s32.totalorder %s68, %s69
    %p80 = scmp.eq.s32.totalorder %s13, 0
    %p81 = por %p79, %p80
    %p82 = scmp.ne.s32.totalorder %s68, %s69
    %p83 = scmp.eq.s32.totalorder %s14, 1
    %p84 = por %p82, %p83
    %p86 = scmp.ne.s32.totalorder %s69, %s85
    %p87 = scmp.eq.s32.totalorder %s14, 0
    %p88 = por %p86, %p87
    %p89 = scmp.le.s32.totalorder 1, %s8
    %p90 = scmp.lt.s32.totalorder %s8, 3
    %p91 = pnand %p89, %p90
    %p92 = pneg %p91
    // Predicated region
    $region9: #{timesformer_forward.9} parent=5 // pred_check
      _
    $region10: #{timesformer_forward.9} parent=5 // pred_check_branch
      %94 = sbr.rel (%p91) target = $region12
    $region11: #{timesformer_forward.9} parent=5 // pred_region
      %s95 = ssub.s32 %s8, 1
      // Predicated region
      $region13: #{timesformer_forward.9} parent=11 // pred_check
        %p96 = pneg %p55
      $region14: #{timesformer_forward.9} parent=11 // pred_check_branch
        %98 = sbr.rel (%p96) target = $region16
      $region15: #{timesformer_forward.9} parent=11 // pred_region
        _
      $region16: #{timesformer_forward.9} parent=11 // pred_fallthru
        _
    $region12: #{timesformer_forward.9} parent=5 // pred_fallthru
      _
    %p99 = scmp.lt.s32.totalorder %s8, 2
    // Predicated region
    $region17: #{timesformer_forward.9} parent=5 // pred_check
      %p100 = pneg %p99
    $region18: #{timesformer_forward.9} parent=5 // pred_check_branch
      %102 = sbr.rel (%p100) target = $region20
    $region19: #{timesformer_forward.9} parent=5 // pred_region
      // Predicated region
      $region21: #{timesformer_forward.9} parent=19 // pred_check
        %p103 = pneg %p28
      $region22: #{timesformer_forward.9} parent=19 // pred_check_branch
        %105 = sbr.rel (%p103) target = $region24
      $region23: #{timesformer_forward.9} parent=19 // pred_region
        %p106 = scmp.lt.s32.totalorder %s8, 1
        %s107 = scalar_select %p106, %s8, 1
        %s108 = smul.addr %s107, 2
        %s109 = smul.addr %s108, 8
        %s110 = scalar_lea.vmem %s0, %s109
      $region24: #{timesformer_forward.9} parent=19 // pred_fallthru
        _
    $region20: #{timesformer_forward.9} parent=5 // pred_fallthru
      _
    %p111 = scmp.le.s32.totalorder 1, %s8
    %p112 = scmp.lt.s32.totalorder %s8, 3
    %p113 = pnand %p111, %p112
    %p114 = pneg %p113
    // Predicated region
    $region25: #{timesformer_forward.9} parent=5 // pred_check
      _
    $region26: #{timesformer_forward.9} parent=5 // pred_check_branch
      %116 = sbr.rel (%p113) target = $region28
    $region27: #{timesformer_forward.9} parent=5 // pred_region
      %s117 = ssub.s32 %s8, 1
      %p118 = scmp.lt.s32.totalorder %s13, 1
      %s119 = scalar_select %p118, %s13, 1
      %s120 = smul.addr %s119, 2
      %s121 = smul.addr %s120, 8
      %s122 = scalar_lea.vmem %s0, %s121
      %p123 = pneg %p34
      %p124 = pneg %p31
      %p125 = pneg %p55
      %p126 = pneg %p52
      %p127 = pneg %p81
      %p128 = pneg %p78
      %p129 = scmp.lt.s32.totalorder %s13, 1
      %s130 = scalar_select %p129, %s13, 1
      %s131 = smul.addr %s130, 8
      %s132 = scalar_lea.vmem %s2, %s131
      %p133 = scmp.lt.s32.totalorder %s13, 1
      %s134 = scalar_select %p133, %s13, 1
      %s135 = smul.addr %s134, 2
      %s136 = smul.addr %s135, 8
      %s137 = scalar_lea.vmem %s0, %s136
      %p138 = scmp.lt.s32.totalorder %s13, 1
      %s139 = scalar_select %p138, %s13, 1
      %s140 = smul.addr %s139, 8
      %s141 = scalar_lea.vmem %s2, %s140
      %v143 = vld [vmem:[%s137] sm:$0xff]
      %v144 = vld [vmem:[%s137 + $0x8] sm:$0xff]
      %v145 = vpack.c.bf16 %v143, %v143
      %v146 = vpack.c.bf16 %v144, %v144
      %v147 = vld [vmem:[%s1] sm:$0xf]
      %v148 = vld [vmem:[%s1 + $0x4] sm:$0xf]
      %v149 = vld [vmem:[%s1 + $0x8] sm:$0xf]
      %v150 = vld [vmem:[%s1 + $0xc] sm:$0xf]
      %v151 = vld [vmem:[%s1 + $0x10] sm:$0xf]
      %v152 = vld [vmem:[%s1 + $0x14] sm:$0xf]
      %v153 = vld [vmem:[%s1 + $0x18] sm:$0xf]
      %v154 = vld [vmem:[%s1 + $0x1c] sm:$0xf]
      %v155 = vld [vmem:[%s1 + $0x20] sm:$0xf]
      %v156 = vld [vmem:[%s1 + $0x24] sm:$0xf]
      %v157 = vld [vmem:[%s1 + $0x28] sm:$0xf]
      %v158 = vld [vmem:[%s1 + $0x2c] sm:$0xf]
      %v159 = vld [vmem:[%s1 + $0x30] sm:$0xf]
      %v160 = vld [vmem:[%s1 + $0x34] sm:$0xf]
      %v161 = vld [vmem:[%s1 + $0x38] sm:$0xf]
      %v162 = vld [vmem:[%s1 + $0x3c] sm:$0xf]
      %v163 = vld [vmem:[%s1 + $0x40] sm:$0xf]
      %v164 = vld [vmem:[%s1 + $0x44] sm:$0xf]
      %v165 = vld [vmem:[%s1 + $0x48] sm:$0xf]
      %v166 = vld [vmem:[%s1 + $0x4c] sm:$0xf]
      %v167 = vld [vmem:[%s1 + $0x50] sm:$0xf]
      %v168 = vld [vmem:[%s1 + $0x54] sm:$0xf]
      %v169 = vld [vmem:[%s1 + $0x58] sm:$0xf]
      %v170 = vld [vmem:[%s1 + $0x5c] sm:$0xf]
      %v195 = vunpack.c.l.b16 %v147
      %v196 = vunpack.c.l.b16 %v148
      %v197 = vunpack.c.l.b16 %v149
      %v198 = vunpack.c.l.b16 %v150
      %v199 = vunpack.c.l.b16 %v151
      %v200 = vunpack.c.l.b16 %v152
      %v201 = vunpack.c.l.b16 %v153
      %v202 = vunpack.c.l.b16 %v154
      %v203 = vunpack.c.l.b16 %v155
      %v204 = vunpack.c.l.b16 %v156
      %v205 = vunpack.c.l.b16 %v157
      %v206 = vunpack.c.l.b16 %v158
      %v207 = vunpack.c.l.b16 %v159
      %v208 = vunpack.c.l.b16 %v160
      %v209 = vunpack.c.l.b16 %v161
      %v210 = vunpack.c.l.b16 %v162
      %v211 = vunpack.c.l.b16 %v163
      %v212 = vunpack.c.l.b16 %v164
      %v213 = vunpack.c.l.b16 %v165
      %v214 = vunpack.c.l.b16 %v166
      %v215 = vunpack.c.l.b16 %v167
      %v216 = vunpack.c.l.b16 %v168
      %v217 = vunpack.c.l.b16 %v169
      %v218 = vunpack.c.l.b16 %v170
      %v219 = vpack.c.b16 %v196, %v195
      %v220 = vpack.c.b16 %v198, %v197
      %v221 = vpack.c.b16 %v200, %v199
      %v222 = vpack.c.b16 %v202, %v201
      %v223 = vpack.c.b16 %v204, %v203
      %v224 = vpack.c.b16 %v206, %v205
      %v225 = vpack.c.b16 %v208, %v207
      %v226 = vpack.c.b16 %v210, %v209
      %v227 = vpack.c.b16 %v212, %v211
      %v228 = vpack.c.b16 %v214, %v213
      %v229 = vpack.c.b16 %v216, %v215
      %v230 = vpack.c.b16 %v218, %v217
      %vm243 = vcmask 523264
      %v245 = vsel %vm243, %v146, 0
      %247 = vmatprep.subr.bf16.mxu0 0
      %248 = vmatpush1.bf16.msra.mxu0 %v219
      %249 = vmatprep.subr.bf16.mxu0 0
      %250 = vmatpush1.bf16.msra.mxu0 %v220
      %251 = vmatprep.subr.bf16.mxu0 0
      %252 = vmatpush1.bf16.msra.mxu0 %v221
      %253 = vmatprep.subr.bf16.mxu0 0
      %254 = vmatpush1.bf16.msra.mxu0 %v222
      %255 = vmatprep.subr.bf16.mxu0 0
      %256 = vmatpush1.bf16.msra.mxu0 %v223
      %257 = vmatprep.subr.bf16.mxu0 0
      %258 = vmatpush1.bf16.msra.mxu0 %v224
      %259 = vmatprep.subr.bf16.mxu0 0
      %260 = vmatpush1.bf16.msra.mxu0 %v225
      %261 = vmatprep.subr.bf16.mxu0 0
      %262 = vmatpush1.bf16.msra.mxu0 %v226
      %263 = vmatprep.subr.bf16.mxu0 0
      %264 = vmatpush1.bf16.msra.mxu0 %v227
      %265 = vmatprep.subr.bf16.mxu0 0
      %266 = vmatpush1.bf16.msra.mxu0 %v228
      %267 = vmatprep.subr.bf16.mxu0 0
      %268 = vmatpush1.bf16.msra.mxu0 %v229
      %269 = vmatprep.subr.bf16.mxu0 0
      %270 = vmatpush1.bf16.msra.mxu0 %v230
      %271 = vmatprep.subr.bf16.mxu0 0
      %272 = vmatpush1.bf16.msra.mxu0 0
      %273 = vmatprep.subr.bf16.mxu0 0
      %274 = vmatpush1.bf16.msra.mxu0 0
      %275 = vmatprep.subr.bf16.mxu0 0
      %276 = vmatpush1.bf16.msra.mxu0 0
      %277 = vmatprep.subr.bf16.mxu0 0
      %278 = vmatpush1.bf16.msra.mxu0 0
      %279 = vmatprep.mubr.bf16.mxu0 %v245
      %280 = vmatmul.mubr.bf16.gmra.mrb[0].mxu0 %v145
      %v281 = vpop.f32.mrb[0].mxu0
      %v282 = vadd.f32 0.0, %v281
      %v283 = vpop.f32.mrb[0].mxu0
      %v284 = vpop.f32.mrb[0].mxu0
      %v285 = vpop.f32.mrb[0].mxu0
      %286 = vdwg.mxu0
      %vm287 = vcmask 261120
      %288 = vst.msk [vmem:[%s141] sm:$0xff] %vm287, %v282
      %p289 = scmp.lt.s32.totalorder %s13, 1
      %s290 = scalar_select %p289, %s13, 1
      %s291 = smul.addr %s290, 8
      %s292 = scalar_lea.vmem %s2, %s291
      // Predicated region
      $region29: #{timesformer_forward.9} parent=27 // pred_check
        %p293 = pneg %p78
      $region30: #{timesformer_forward.9} parent=27 // pred_check_branch
        %295 = sbr.rel (%p293) target = $region32
      $region31: #{timesformer_forward.9} parent=27 // pred_region
        _
      $region32: #{timesformer_forward.9} parent=27 // pred_fallthru
        _
    $region28: #{timesformer_forward.9} parent=5 // pred_fallthru
      _
    %p296 = scmp.le.s32.totalorder 2, %s8
    // Predicated region
    $region33: #{timesformer_forward.9} parent=5 // pred_check
      %p297 = pneg %p296
    $region34: #{timesformer_forward.9} parent=5 // pred_check_branch
      %299 = sbr.rel (%p297) target = $region36
    $region35: #{timesformer_forward.9} parent=5 // pred_region
      %s300 = ssub.s32 %s8, 2
      // Predicated region
      $region37: #{timesformer_forward.9} parent=35 // pred_check
        %p301 = pneg %p84
      $region38: #{timesformer_forward.9} parent=35 // pred_check_branch
        %303 = sbr.rel (%p301) target = $region40
      $region39: #{timesformer_forward.9} parent=35 // pred_region
        %p304 = scmp.lt.s32.totalorder %s14, 1
        %s305 = scalar_select %p304, %s14, 1
        %s306 = smul.addr %s305, 8
        %s307 = scalar_lea.vmem %s2, %s306
      $region40: #{timesformer_forward.9} parent=35 // pred_fallthru
        _
    $region36: #{timesformer_forward.9} parent=5 // pred_fallthru
      _
  $region6: #{timesformer_forward.9} parent=0 // loop_footer
    %s12 = sadd.s32 1, %s8
  $region7: #{timesformer_forward.9} parent=0 // loop_footer_branch
    %7 = sbr.rel target = $region3
  $region8: #{timesformer_forward.9} parent=0 // loop_exit
    _

// kernel: timesformer_forward.13
$region0: #{timesformer_forward.13}
  #allocation0 [shape = 'u32[]', space=smem, size = 0x4, offset = 0x4, fixed_abs, tag = 'smem constant byte address 0x4 - core index']
  #allocation1 [shape = 'u32[144,128]{1,0:T(1,128)}', space=vmem, size = 0x12000, scoped, tag = 'internal scratch']
  %s0 = inlined_call_operand.vmem [shape: f32[20,32], index: 0, kind: input, shape index: {}]
  %s1 = inlined_call_operand.vmem [shape: f32[1,32], index: 1, kind: input, shape index: {}]
  %s2 = inlined_call_operand.vmem [shape: f32[1,32], index: 2, kind: input, shape index: {}]
  %s3 = inlined_call_operand.vmem [shape: bf16[32,128], index: 3, kind: input, shape index: {}]
  %s4 = inlined_call_operand.vmem [shape: f32[1,128], index: 4, kind: input, shape index: {}]
  %s5 = inlined_call_operand.vmem [shape: bf16[128,32], index: 5, kind: input, shape index: {}]
  %s6 = inlined_call_operand.vmem [shape: f32[1,32], index: 6, kind: input, shape index: {}]
  %s7 = inlined_call_operand.vmem [shape: f32[20,32], index: 7, kind: output, shape index: {}]
  %s8 = sld [smem:[#allocation0]]
  $region109: #{timesformer_forward.13} parent=0
    _
  %s10 = ssub.s32 1, %s8
  %s11 = scalar_select 0, %s10, %s8
  $region1: #{timesformer_forward.13} parent=0
    #allocation2 [shape = 'u8[16384]{0}', space=vmem, size = 0x4000, scoped, tag = 'output window, operand 0']
    loop: start=0, step=1, limit=4
    $region2: #{timesformer_forward.13} parent=1 // loop_pre_header
      _
    $region3: #{timesformer_forward.13} parent=1 // loop_header
      %s13 = sphi 0, %s17
      %p14 = scmp.ge.s32.totalorder %s13, 4
      %s23 = sphi 0, %s25
      %s26 = sphi 0, %s23
      %s27 = sphi 0, %s26
      %s43 = sphi 0, %s27
      %s47 = sphi 0, %s47
      %s49 = sphi 0, %s47
      %s50 = sphi 0, %s49
      %s64 = sphi 0, %s50
      %s68 = sphi 0, %s68
      %s70 = sphi 0, %s68
      %s71 = sphi 0, %s70
      %s85 = sphi 0, %s71
      %s89 = sphi 0, %s89
      %s91 = sphi 0, %s89
      %s92 = sphi 0, %s91
      %s106 = sphi 0, %s92
      %s110 = sphi 0, %s110
      %s112 = sphi 0, %s110
      %s113 = sphi 0, %s112
      %s127 = sphi 0, %s113
      %s131 = sphi 0, %s131
      %s133 = sphi 0, %s131
      %s134 = sphi 0, %s133
      %s148 = sphi 0, %s134
      %s152 = sphi 0, %s152
      %s154 = sphi 0, %s152
      %s155 = sphi 0, %s154
      %s169 = sphi 0, %s155
      %s175 = sphi 0, %s177
      %s178 = sphi 0, %s175
      %s179 = sphi 0, %s178
      %s195 = sphi 0, %s179
    $region4: #{timesformer_forward.13} parent=1 // loop_header_branch
      %16 = sbr.rel (%p14) target = $region8
    $region5: #{timesformer_forward.13} parent=1 // loop_body
      %s18 = ssub.s32 %s13, 1
      %s19 = ssub.s32 %s13, 2
      %s20 = sadd.s32 %s13, 1
      %s21 = ssub.s32 %s13, %s20
      %p22 = scmp.eq.s32.totalorder %s21, 0
      %s24 = sadd.s32 %s23, 1
      %s25 = scalar_select %p22, %s23, %s24
      %p28 = pneg %p22
      %p29 = scmp.eq.s32.totalorder %s13, 1
      %p30 = por %p28, %p29
      %p31 = scmp.ne.s32.totalorder %s23, %s26
      %p32 = scmp.eq.s32.totalorder %s13, 0
      %p33 = por %p31, %p32
      %p34 = scmp.ne.s32.totalorder %s23, %s26
      %p35 = scmp.eq.s32.totalorder %s18, 1
      %p36 = por %p34, %p35
      %p37 = scmp.ne.s32.totalorder %s26, %s27
      %p38 = scmp.eq.s32.totalorder %s18, 0
      %p39 = por %p37, %p38
      %p40 = scmp.ne.s32.totalorder %s26, %s27
      %p41 = scmp.eq.s32.totalorder %s19, 1
      %p42 = por %p40, %p41
      %p44 = scmp.ne.s32.totalorder %s27, %s43
      %p45 = scmp.eq.s32.totalorder %s19, 0
      %p46 = por %p44, %p45
      %s48 = sadd.s32 %s47, 1
      %p51 = scmp.eq.s32.totalorder %s13, 1
      %p52 = scmp.ne.s32.totalorder %s47, %s49
      %p53 = scmp.eq.s32.totalorder %s13, 0
      %p54 = por %p52, %p53
      %p55 = scmp.ne.s32.totalorder %s47, %s49
      %p56 = scmp.eq.s32.totalorder %s18, 1
      %p57 = por %p55, %p56
      %p58 = scmp.ne.s32.totalorder %s49, %s50
      %p59 = scmp.eq.s32.totalorder %s18, 0
      %p60 = por %p58, %p59
      %p61 = scmp.ne.s32.totalorder %s49, %s50
      %p62 = scmp.eq.s32.totalorder %s19, 1
      %p63 = por %p61, %p62
      %p65 = scmp.ne.s32.totalorder %s50, %s64
      %p66 = scmp.eq.s32.totalorder %s19, 0
      %p67 = por %p65, %p66
      %s69 = sadd.s32 %s68, 1
      %p72 = scmp.eq.s32.totalorder %s13, 1
      %p73 = scmp.ne.s32.totalorder %s68, %s70
      %p74 = scmp.eq.s32.totalorder %s13, 0
      %p75 = por %p73, %p74
      %p76 = scmp.ne.s32.totalorder %s68, %s70
      %p77 = scmp.eq.s32.totalorder %s18, 1
      %p78 = por %p76, %p77
      %p79 = scmp.ne.s32.totalorder %s70, %s71
      %p80 = scmp.eq.s32.totalorder %s18, 0
      %p81 = por %p79, %p80
      %p82 = scmp.ne.s32.totalorder %s70, %s71
      %p83 = scmp.eq.s32.totalorder %s19, 1
      %p84 = por %p82, %p83
      %p86 = scmp.ne.s32.totalorder %s71, %s85
      %p87 = scmp.eq.s32.totalorder %s19, 0
      %p88 = por %p86, %p87
      %s90 = sadd.s32 %s89, 1
      %p93 = scmp.eq.s32.totalorder %s13, 1
      %p94 = scmp.ne.s32.totalorder %s89, %s91
      %p95 = scmp.eq.s32.totalorder %s13, 0
      %p96 = por %p94, %p95
      %p97 = scmp.ne.s32.totalorder %s89, %s91
      %p98 = scmp.eq.s32.totalorder %s18, 1
      %p99 = por %p97, %p98
      %p100 = scmp.ne.s32.totalorder %s91, %s92
      %p101 = scmp.eq.s32.totalorder %s18, 0
      %p102 = por %p100, %p101
      %p103 = scmp.ne.s32.totalorder %s91, %s92
      %p104 = scmp.eq.s32.totalorder %s19, 1
      %p105 = por %p103, %p104
      %p107 = scmp.ne.s32.totalorder %s92, %s106
      %p108 = scmp.eq.s32.totalorder %s19, 0
      %p109 = por %p107, %p108
      %s111 = sadd.s32 %s110, 1
      %p114 = scmp.eq.s32.totalorder %s13, 1
      %p115 = scmp.ne.s32.totalorder %s110, %s112
      %p116 = scmp.eq.s32.totalorder %s13, 0
      %p117 = por %p115, %p116
      %p118 = scmp.ne.s32.totalorder %s110, %s112
      %p119 = scmp.eq.s32.totalorder %s18, 1
      %p120 = por %p118, %p119
      %p121 = scmp.ne.s32.totalorder %s112, %s113
      %p122 = scmp.eq.s32.totalorder %s18, 0
      %p123 = por %p121, %p122
      %p124 = scmp.ne.s32.totalorder %s112, %s113
      %p125 = scmp.eq.s32.totalorder %s19, 1
      %p126 = por %p124, %p125
      %p128 = scmp.ne.s32.totalorder %s113, %s127
      %p129 = scmp.eq.s32.totalorder %s19, 0
      %p130 = por %p128, %p129
      %s132 = sadd.s32 %s131, 1
      %p135 = scmp.eq.s32.totalorder %s13, 1
      %p136 = scmp.ne.s32.totalorder %s131, %s133
      %p137 = scmp.eq.s32.totalorder %s13, 0
      %p138 = por %p136, %p137
      %p139 = scmp.ne.s32.totalorder %s131, %s133
      %p140 = scmp.eq.s32.totalorder %s18, 1
      %p141 = por %p139, %p140
      %p142 = scmp.ne.s32.totalorder %s133, %s134
      %p143 = scmp.eq.s32.totalorder %s18, 0
      %p144 = por %p142, %p143
      %p145 = scmp.ne.s32.totalorder %s133, %s134
      %p146 = scmp.eq.s32.totalorder %s19, 1
      %p147 = por %p145, %p146
      %p149 = scmp.ne.s32.totalorder %s134, %s148
      %p150 = scmp.eq.s32.totalorder %s19, 0
      %p151 = por %p149, %p150
      %s153 = sadd.s32 %s152, 1
      %p156 = scmp.eq.s32.totalorder %s13, 1
      %p157 = scmp.ne.s32.totalorder %s152, %s154
      %p158 = scmp.eq.s32.totalorder %s13, 0
      %p159 = por %p157, %p158
      %p160 = scmp.ne.s32.totalorder %s152, %s154
      %p161 = scmp.eq.s32.totalorder %s18, 1
      %p162 = por %p160, %p161
      %p163 = scmp.ne.s32.totalorder %s154, %s155
      %p164 = scmp.eq.s32.totalorder %s18, 0
      %p165 = por %p163, %p164
      %p166 = scmp.ne.s32.totalorder %s154, %s155
      %p167 = scmp.eq.s32.totalorder %s19, 1
      %p168 = por %p166, %p167
      %p170 = scmp.ne.s32.totalorder %s155, %s169
      %p171 = scmp.eq.s32.totalorder %s19, 0
      %p172 = por %p170, %p171
      %s173 = ssub.s32 %s13, %s20
      %p174 = scmp.eq.s32.totalorder %s173, 0
      %s176 = sadd.s32 %s175, 1
      %s177 = scalar_select %p174, %s175, %s176
      %p180 = pneg %p174
      %p181 = scmp.eq.s32.totalorder %s13, 1
      %p182 = por %p180, %p181
      %p183 = scmp.ne.s32.totalorder %s175, %s178
      %p184 = scmp.eq.s32.totalorder %s13, 0
      %p185 = por %p183, %p184
      %p186 = scmp.ne.s32.totalorder %s175, %s178
      %p187 = scmp.eq.s32.totalorder %s18, 1
      %p188 = por %p186, %p187
      %p189 = scmp.ne.s32.totalorder %s178, %s179
      %p190 = scmp.eq.s32.totalorder %s18, 0
      %p191 = por %p189, %p190
      %p192 = scmp.ne.s32.totalorder %s178, %s179
      %p193 = scmp.eq.s32.totalorder %s19, 1
      %p194 = por %p192, %p193
      %p196 = scmp.ne.s32.totalorder %s179, %s195
      %p197 = scmp.eq.s32.totalorder %s19, 0
      %p198 = por %p196, %p197
      %p199 = scmp.le.s32.totalorder 1, %s13
      %p200 = scmp.lt.s32.totalorder %s13, 3
      %p201 = pnand %p199, %p200
      %p202 = pneg %p201
      // Predicated region
      $region9: #{timesformer_forward.13} parent=5 // pred_check
        _
      $region10: #{timesformer_forward.13} parent=5 // pred_check_branch
        %204 = sbr.rel (%p201) target = $region12
      $region11: #{timesformer_forward.13} parent=5 // pred_region
        %s205 = ssub.s32 %s13, 1
        // Predicated region
        $region13: #{timesformer_forward.13} parent=11 // pred_check
          %p206 = pneg %p60
        $region14: #{timesformer_forward.13} parent=11 // pred_check_branch
          %208 = sbr.rel (%p206) target = $region16
        $region15: #{timesformer_forward.13} parent=11 // pred_region
          _
        $region16: #{timesformer_forward.13} parent=11 // pred_fallthru
          _
        // Predicated region
        $region17: #{timesformer_forward.13} parent=11 // pred_check
          %p209 = pneg %p81
        $region18: #{timesformer_forward.13} parent=11 // pred_check_branch
          %211 = sbr.rel (%p209) target = $region20
        $region19: #{timesformer_forward.13} parent=11 // pred_region
          _
        $region20: #{timesformer_forward.13} parent=11 // pred_fallthru
          _
        // Predicated region
        $region21: #{timesformer_forward.13} parent=11 // pred_check
          %p212 = pneg %p102
        $region22: #{timesformer_forward.13} parent=11 // pred_check_branch
          %214 = sbr.rel (%p212) target = $region24
        $region23: #{timesformer_forward.13} parent=11 // pred_region
          _
        $region24: #{timesformer_forward.13} parent=11 // pred_fallthru
          _
        // Predicated region
        $region25: #{timesformer_forward.13} parent=11 // pred_check
          %p215 = pneg %p123
        $region26: #{timesformer_forward.13} parent=11 // pred_check_branch
          %217 = sbr.rel (%p215) target = $region28
        $region27: #{timesformer_forward.13} parent=11 // pred_region
          _
        $region28: #{timesformer_forward.13} parent=11 // pred_fallthru
          _
        // Predicated region
        $region29: #{timesformer_forward.13} parent=11 // pred_check
          %p218 = pneg %p144
        $region30: #{timesformer_forward.13} parent=11 // pred_check_branch
          %220 = sbr.rel (%p218) target = $region32
        $region31: #{timesformer_forward.13} parent=11 // pred_region
          _
        $region32: #{timesformer_forward.13} parent=11 // pred_fallthru
          _
        // Predicated region
        $region33: #{timesformer_forward.13} parent=11 // pred_check
          %p221 = pneg %p165
        $region34: #{timesformer_forward.13} parent=11 // pred_check_branch
          %223 = sbr.rel (%p221) target = $region36
        $region35: #{timesformer_forward.13} parent=11 // pred_region
          _
        $region36: #{timesformer_forward.13} parent=11 // pred_fallthru
          _
      $region12: #{timesformer_forward.13} parent=5 // pred_fallthru
        _
      %p224 = scmp.lt.s32.totalorder %s13, 2
      // Predicated region
      $region37: #{timesformer_forward.13} parent=5 // pred_check
        %p225 = pneg %p224
      $region38: #{timesformer_forward.13} parent=5 // pred_check_branch
        %227 = sbr.rel (%p225) target = $region40
      $region39: #{timesformer_forward.13} parent=5 // pred_region
        // Predicated region
        $region41: #{timesformer_forward.13} parent=39 // pred_check
          %p228 = pneg %p33
        $region42: #{timesformer_forward.13} parent=39 // pred_check_branch
          %230 = sbr.rel (%p228) target = $region44
        $region43: #{timesformer_forward.13} parent=39 // pred_region
          %s231 = smul.u32 2, %s13
          %s232 = ssub.s32 3, %s231
          %p233 = scmp.lt.s32.totalorder %s232, 2
          %s234 = scalar_select %p233, %s232, 2
          %s235 = smul.u32 128, %s234
          %p236 = scmp.lt.s32.totalorder %s231, 2
          %s237 = scalar_select %p236, %s231, 2
          %s238 = smul.addr %s237, 8
          %s239 = scalar_lea.vmem %s0, %s238
          %s240 = smul.u32 2, %s13
          %s241 = ssub.s32 3, %s240
          %p242 = scmp.lt.s32.totalorder %s241, 2
          %s243 = scalar_select %p242, %s241, 2
          %s244 = smul.u32 128, %s243
        $region44: #{timesformer_forward.13} parent=39 // pred_fallthru
          _
      $region40: #{timesformer_forward.13} parent=5 // pred_fallthru
        _
      %p245 = scmp.le.s32.totalorder 1, %s13
      %p246 = scmp.lt.s32.totalorder %s13, 3
      %p247 = pnand %p245, %p246
      %p248 = pneg %p247
      // Predicated region
      $region45: #{timesformer_forward.13} parent=5 // pred_check
        _
      $region46: #{timesformer_forward.13} parent=5 // pred_check_branch
        %250 = sbr.rel (%p247) target = $region48
      $region47: #{timesformer_forward.13} parent=5 // pred_region
        %s251 = ssub.s32 %s13, 1
        %s252 = smul.u32 2, %s18
        %s253 = ssub.s32 3, %s252
        %p254 = scmp.lt.s32.totalorder %s253, 2
        %s255 = scalar_select %p254, %s253, 2
        %s256 = smul.u32 128, %s255
        %p257 = scmp.lt.s32.totalorder %s252, 2
        %s258 = scalar_select %p257, %s252, 2
        %s259 = smul.addr %s258, 8
        %s260 = scalar_lea.vmem %s0, %s259
        %p261 = pneg %p39
        %p262 = pneg %p36
        %p263 = pneg %p60
        %p264 = pneg %p57
        %p265 = pneg %p81
        %p266 = pneg %p78
        %p267 = pneg %p102
        %p268 = pneg %p99
        %p269 = pneg %p123
        %p270 = pneg %p120
        %p271 = pneg %p144
        %p272 = pneg %p141
        %p273 = pneg %p165
        %p274 = pneg %p162
        %p275 = pneg %p191
        %p276 = pneg %p188
        %s277 = sand.u32 %s178, 1
        %s278 = sand.u32 %s178, 1
        %s279 = smul.addr %s278, 16
        %s280 = scalar_lea.vmem [#allocation2], %s279
        %s281 = smul.u32 2, %s18
        %s282 = ssub.s32 3, %s281
        %p283 = scmp.lt.s32.totalorder %s282, 2
        %s284 = scalar_select %p283, %s282, 2
        %s285 = smul.u32 128, %s284
        %p286 = scmp.lt.s32.totalorder %s281, 2
        %s287 = scalar_select %p286, %s281, 2
        %s288 = smul.addr %s287, 8
        %s289 = scalar_lea.vmem %s0, %s288
        %s290 = smul.u32 2, %s18
        %s291 = ssub.s32 3, %s290
        %p292 = scmp.lt.s32.totalorder %s291, 2
        %s293 = scalar_select %p292, %s291, 2
        %s294 = smul.u32 128, %s293
        %s295 = smul.u32 2, %s18
        %s296 = ssub.s32 3, %s295
        %p297 = scmp.lt.s32.totalorder %s296, 2
        %s298 = scalar_select %p297, %s296, 2
        %s299 = smul.u32 128, %s298
        %v301 = vld [vmem:[%s289] sm:$0xff]
        %v302 = vld [vmem:[%s289 + $0x8] sm:$0xff]
        %vm303 = vcmask 261120
        %v304 = vsel %vm303, %v301, 0.0
        %305 = vadd.xlane.f32.xlu0 %v304
        %v306 = vpop.xlane.xlu0 %305
        %v307 = vsel %vm303, %v302, 0.0
        %308 = vadd.xlane.f32.xlu0 %v307
        %v309 = vpop.xlane.xlu0 %308
        %v310 = vrcp.pop 32.0
        %v311 = vmul.f32 %v306, %v310
        %v312 = vmul.f32 %v309, %v310
        %v313 = vsub.f32 %v301, %v311
        %v314 = vsub.f32 %v302, %v312
        %v315 = vmul.f32 %v313, %v313
        %v316 = vmul.f32 %v314, %v314
        %v317 = vsel %vm303, %v315, 0.0
        %318 = vadd.xlane.f32.xlu0 %v317
        %v319 = vpop.xlane.xlu0 %318
        %v320 = vsel %vm303, %v316, 0.0
        %321 = vadd.xlane.f32.xlu0 %v320
        %v322 = vpop.xlane.xlu0 %321
        %v323 = vmul.f32 %v319, %v310
        %v324 = vmul.f32 %v322, %v310
        %v325 = vadd.f32 %v323, 1e-05
        %v326 = vadd.f32 %v324, 1e-05
        %v327 = vrsqrt.pop %v325
        %v328 = vrsqrt.pop %v326
        %v329 = vmul.f32 %v313, %v327
        %v330 = vmul.f32 %v314, %v328
        %v331 = vld [vmem:[%s1] sm:$0x1]
        %v333 = vlaneseq
        %v334 = vshrl.u32 %v333, 7
        %v335 = vsub.s32 0, %v334
        %v336 = vrot.slane %v331, %v335
        %v338 = vmul.f32 %v329, %v336
        %v339 = vmul.f32 %v330, %v336
        %v340 = vld [vmem:[%s2] sm:$0x1]
        %v342 = vlaneseq
        %v343 = vshrl.u32 %v342, 7
        %v344 = vsub.s32 0, %v343
        %v345 = vrot.slane %v340, %v344
        %v347 = vadd.f32 %v338, %v345
        %v348 = vadd.f32 %v339, %v345
        %v349 = vpack.c.bf16 %v348, %v347
        %v350 = vld [vmem:[%s3] sm:$0xf]
        %v351 = vld [vmem:[%s3 + $0x4] sm:$0xf]
        %v352 = vld [vmem:[%s3 + $0x8] sm:$0xf]
        %v353 = vld [vmem:[%s3 + $0xc] sm:$0xf]
        %v354 = vld [vmem:[%s4] sm:$0x1]
        %v356 = vlaneseq
        %v357 = vshrl.u32 %v356, 7
        %v358 = vsub.s32 0, %v357
        %v359 = vrot.slane %v354, %v358
        %v365 = vunpack.c.l.b16 %v350
        %v366 = vunpack.c.l.b16 %v351
        %v367 = vunpack.c.l.b16 %v352
        %v368 = vunpack.c.l.b16 %v353
        %v369 = vpack.c.b16 %v366, %v365
        %v370 = vpack.c.b16 %v368, %v367
        %v374 = vsel %vm303, %v349, 0
        %376 = vmatprep.subr.bf16.mxu0 0
        %377 = vmatpush1.bf16.msra.mxu0 %v369
        %378 = vmatprep.subr.bf16.mxu0 0
        %379 = vmatpush1.bf16.msra.mxu0 %v370
        %380 = vmatprep.subr.bf16.mxu0 0
        %381 = vmatpush1.bf16.msra.mxu0 0
        %382 = vmatprep.subr.bf16.mxu0 0
        %383 = vmatpush1.bf16.msra.mxu0 0
        %384 = vmatprep.subr.bf16.mxu0 0
        %385 = vmatpush1.bf16.msra.mxu0 0
        %386 = vmatprep.subr.bf16.mxu0 0
        %387 = vmatpush1.bf16.msra.mxu0 0
        %388 = vmatprep.subr.bf16.mxu0 0
        %389 = vmatpush1.bf16.msra.mxu0 0
        %390 = vmatprep.subr.bf16.mxu0 0
        %391 = vmatpush1.bf16.msra.mxu0 0
        %392 = vmatprep.subr.bf16.mxu0 0
        %393 = vmatpush1.bf16.msra.mxu0 0
        %394 = vmatprep.subr.bf16.mxu0 0
        %395 = vmatpush1.bf16.msra.mxu0 0
        %396 = vmatprep.subr.bf16.mxu0 0
        %397 = vmatpush1.bf16.msra.mxu0 0
        %398 = vmatprep.subr.bf16.mxu0 0
        %399 = vmatpush1.bf16.msra.mxu0 0
        %400 = vmatprep.subr.bf16.mxu0 0
        %401 = vmatpush1.bf16.msra.mxu0 0
        %402 = vmatprep.subr.bf16.mxu0 0
        %403 = vmatpush1.bf16.msra.mxu0 0
        %404 = vmatprep.subr.bf16.mxu0 0
        %405 = vmatpush1.bf16.msra.mxu0 0
        %406 = vmatprep.subr.bf16.mxu0 0
        %407 = vmatpush1.bf16.msra.mxu0 0
        %408 = vmatprep.mubr.bf16.mxu0 0
        %409 = vmatmul.mubr.bf16.gmra.mrb[0].mxu0 %v374
        %v410 = vpop.f32.mrb[0].mxu0
        %v411 = vadd.f32 %v359, %v410
        %v412 = vpop.f32.mrb[0].mxu0
        %v413 = vpop.f32.mrb[0].mxu0
        %v414 = vadd.f32 %v359, %v413
        %v415 = vpop.f32.mrb[0].mxu0
        %416 = vdwg.mxu0
        %v417 = vmul.f32 %v411, 1.702
        %v418 = vmul.f32 %v414, 1.702
        %v419 = vxor.u32 %v417, 2147483648
        %v420 = vxor.u32 %v418, 2147483648
        %v421 = vmul.f32 %v419, 1.442695
        %v422 = vpow.pop %v421
        %v423 = vmul.f32 %v420, 1.442695
        %v424 = vpow.pop %v423
        %v425 = vadd.f32 %v422, 1.0
        %v426 = vadd.f32 %v424, 1.0
        %v427 = vrcp.pop %v425
        %v428 = vmul.f32 1.0, %v427
        %v429 = vrcp.pop %v426
        %v430 = vmul.f32 1.0, %v429
        %v431 = vmul.f32 %v411, %v428
        %v432 = vmul.f32 %v414, %v430
        %v433 = vpack.c.bf16 %v432, %v431
        %v434 = vld [vmem:[%s5] sm:$0xf]
        %v435 = vld [vmem:[%s5 + $0x4] sm:$0xf]
        %v436 = vld [vmem:[%s5 + $0x8] sm:$0xf]
        %v437 = vld [vmem:[%s5 + $0xc] sm:$0xf]
        %v438 = vld [vmem:[%s5 + $0x10] sm:$0xf]
        %v439 = vld [vmem:[%s5 + $0x14] sm:$0xf]
        %v440 = vld [vmem:[%s5 + $0x18] sm:$0xf]
        %v441 = vld [vmem:[%s5 + $0x1c] sm:$0xf]
        %v442 = vld [vmem:[%s5 + $0x20] sm:$0xf]
        %v443 = vld [vmem:[%s5 + $0x24] sm:$0xf]
        %v444 = vld [vmem:[%s5 + $0x28] sm:$0xf]
        %v445 = vld [vmem:[%s5 + $0x2c] sm:$0xf]
        %v446 = vld [vmem:[%s5 + $0x30] sm:$0xf]
        %v447 = vld [vmem:[%s5 + $0x34] sm:$0xf]
        %v448 = vld [vmem:[%s5 + $0x38] sm:$0xf]
        %v449 = vld [vmem:[%s5 + $0x3c] sm:$0xf]
        %v450 = vld [vmem:[%s6] sm:$0x1]
        %v452 = vlaneseq
        %v453 = vshrl.u32 %v452, 7
        %v454 = vsub.s32 0, %v453
        %v455 = vrot.slane %v450, %v454
        %v473 = vunpack.c.l.b16 %v434
        %v474 = vunpack.c.l.b16 %v435
        %v475 = vunpack.c.l.b16 %v436
        %v476 = vunpack.c.l.b16 %v437
        %v477 = vunpack.c.l.b16 %v438
        %v478 = vunpack.c.l.b16 %v439
        %v479 = vunpack.c.l.b16 %v440
        %v480 = vunpack.c.l.b16 %v441
        %v481 = vunpack.c.l.b16 %v442
        %v482 = vunpack.c.l.b16 %v443
        %v483 = vunpack.c.l.b16 %v444
        %v484 = vunpack.c.l.b16 %v445
        %v485 = vunpack.c.l.b16 %v446
        %v486 = vunpack.c.l.b16 %v447
        %v487 = vunpack.c.l.b16 %v448
        %v488 = vunpack.c.l.b16 %v449
        %v489 = vpack.c.b16 %v474, %v473
        %v490 = vpack.c.b16 %v476, %v475
        %v491 = vpack.c.b16 %v478, %v477
        %v492 = vpack.c.b16 %v480, %v479
        %v493 = vpack.c.b16 %v482, %v481
        %v494 = vpack.c.b16 %v484, %v483
        %v495 = vpack.c.b16 %v486, %v485
        %v496 = vpack.c.b16 %v488, %v487
        %505 = vmatprep.subr.bf16.mxu0 0
        %506 = vmatpush1.bf16.msra.mxu0 %v489
        %507 = vmatprep.subr.bf16.mxu0 0
        %508 = vmatpush1.bf16.msra.mxu0 %v490
        %509 = vmatprep.subr.bf16.mxu0 0
        %510 = vmatpush1.bf16.msra.mxu0 %v491
        %511 = vmatprep.subr.bf16.mxu0 0
        %512 = vmatpush1.bf16.msra.mxu0 %v492
        %513 = vmatprep.subr.bf16.mxu0 0
        %514 = vmatpush1.bf16.msra.mxu0 %v493
        %515 = vmatprep.subr.bf16.mxu0 0
        %516 = vmatpush1.bf16.msra.mxu0 %v494
        %517 = vmatprep.subr.bf16.mxu0 0
        %518 = vmatpush1.bf16.msra.mxu0 %v495
        %519 = vmatprep.subr.bf16.mxu0 0
        %520 = vmatpush1.bf16.msra.mxu0 %v496
        %521 = vmatprep.subr.bf16.mxu0 0
        %522 = vmatpush1.bf16.msra.mxu0 0
        %523 = vmatprep.subr.bf16.mxu0 0
        %524 = vmatpush1.bf16.msra.mxu0 0
        %525 = vmatprep.subr.bf16.mxu0 0
        %526 = vmatpush1.bf16.msra.mxu0 0
        %527 = vmatprep.subr.bf16.mxu0 0
        %528 = vmatpush1.bf16.msra.mxu0 0
        %529 = vmatprep.subr.bf16.mxu0 0
        %530 = vmatpush1.bf16.msra.mxu0 0
        %531 = vmatprep.subr.bf16.mxu0 0
        %532 = vmatpush1.bf16.msra.mxu0 0
        %533 = vmatprep.subr.bf16.mxu0 0
        %534 = vmatpush1.bf16.msra.mxu0 0
        %535 = vmatprep.subr.bf16.mxu0 0
        %536 = vmatpush1.bf16.msra.mxu0 0
        %537 = vmatprep.mubr.bf16.mxu0 0
        %538 = vmatmul.mubr.bf16.gmra.mrb[0].mxu0 %v433
        %v539 = vpop.f32.mrb[0].mxu0
        %v540 = vadd.f32 %v455, %v539
        %v541 = vpop.f32.mrb[0].mxu0
        %v542 = vpop.f32.mrb[0].mxu0
        %v543 = vadd.f32 %v455, %v542
        %v544 = vpop.f32.mrb[0].mxu0
        %545 = vdwg.mxu0
        %v546 = vadd.f32 %v301, %v540
        %v547 = vadd.f32 %v302, %v543
        %548 = vst.msk [vmem:[%s280] sm:$0xff] %vm303, %v546
        %549 = vst.msk [vmem:[%s280 + $0x8] sm:$0xff] %vm303, %v547
        %s550 = sand.u32 %s178, 1
        %s551 = sand.u32 %s178, 1
        %s552 = smul.addr %s551, 16
        %s553 = scalar_lea.vmem [#allocation2], %s552
        // Predicated region
        $region49: #{timesformer_forward.13} parent=47 // pred_check
          %p554 = pneg %p188
        $region50: #{timesformer_forward.13} parent=47 // pred_check_branch
          %556 = sbr.rel (%p554) target = $region52
        $region51: #{timesformer_forward.13} parent=47 // pred_region
          %s557 = smul.u32 2, %s18
          %s558 = ssub.s32 3, %s557
          %p559 = scmp.lt.s32.totalorder %s558, 2
          %s560 = scalar_select %p559, %s558, 2
          %s561 = smul.u32 128, %s560
          %p562 = scmp.ne.s32.totalorder 0, %s561
          %s563 = smul.addr %s557, 8
          %s564 = scalar_lea.vmem %s7, %s563
          // Predicated region
          $region53: #{timesformer_forward.13} parent=51 // pred_check
            %p565 = pneg %p562
          $region54: #{timesformer_forward.13} parent=51 // pred_check_branch
            %567 = sbr.rel (%p565) target = $region56
          $region55: #{timesformer_forward.13} parent=51 // pred_region
            // Predicated region
            $region57: #{timesformer_forward.13} parent=55 // pred_check
              _
            $region58: #{timesformer_forward.13} parent=55 // pred_check_branch
              %569 = sbr.rel (0) target = $region60
            $region59: #{timesformer_forward.13} parent=55 // pred_region
              // Predicated region
              $region79: #{timesformer_forward.13} parent=59 // pred_check
                _
              $region80: #{timesformer_forward.13} parent=59 // pred_check_branch
                %620 = sbr.rel (0) target = $region82
              $region81: #{timesformer_forward.13} parent=59 // pred_region
                %s621 = sshrl.u32 %s560, 1
                // While loop
                $region83: #{timesformer_forward.13} parent=81 // loop_pre_header
                  _
                $region84: #{timesformer_forward.13} parent=81 // loop_header
                  %s623 = sphi 0, %s625
                  %p624 = scmp.ge.s32.totalorder %s623, %s621
                  %s628 = sphi 0, %s637
                  %s629 = sphi %s553, %s640
                  %s630 = sphi %s564, %s641
                $region85: #{timesformer_forward.13} parent=81 // loop_header_branch
                  %627 = sbr.rel (%p624) target = $region89
                $region86: #{timesformer_forward.13} parent=81 // loop_body
                  %v631 = vld [vmem:[%s629] sm:$0xff]
                  %632 = vst [vmem:[%s630] sm:$0xff] %v631
                  %v633 = vld [vmem:[%s629 + $0x8] sm:$0xff]
                  %634 = vst [vmem:[%s630 + $0x8] sm:$0xff] %v633
                  %s635 = sadd.s32 1, %s628
                  %p636 = scmp.ge.s32.totalorder %s635, %s621
                  %s637 = scalar_select %p636, 0, %s635
                  %s638 = smul.u32 %s637, 16
                  %s639 = smul.u32 %s637, 16
                  %s640 = scalar_lea.vmem %s553, %s638 [#allocation2]
                  %s641 = scalar_lea.vmem %s564, %s639
                $region87: #{timesformer_forward.13} parent=81 // loop_footer
                  %s625 = sadd.s32 %s623, 1
                $region88: #{timesformer_forward.13} parent=81 // loop_footer_branch
                  %622 = sbr.rel target = $region84
                $region89: #{timesformer_forward.13} parent=81 // loop_exit
                  _
                %s642 = sshrl.u32 %s560, 1
                %s643 = sand.u32 %s560, 1
                %s644 = smul.u32 %s642, 2
                %s645 = smul.u32 8, %s644
                %s646 = scalar_lea.vmem %s553, %s645 [#allocation2]
                %s647 = smul.u32 8, %s644
                %s648 = scalar_lea.vmem %s564, %s647
                // While loop
                $region90: #{timesformer_forward.13} parent=81 // loop_pre_header
                  _
                $region91: #{timesformer_forward.13} parent=81 // loop_header
                  %s650 = sphi 0, %s652
                  %p651 = scmp.ge.s32.totalorder %s650, %s643
                  %s655 = sphi 0, %s662
                  %s656 = sphi %s646, %s665
                  %s657 = sphi %s648, %s666
                $region92: #{timesformer_forward.13} parent=81 // loop_header_branch
                  %654 = sbr.rel (%p651) target = $region96
                $region93: #{timesformer_forward.13} parent=81 // loop_body
                  %v658 = vld [vmem:[%s656] sm:$0xff]
                  %659 = vst [vmem:[%s657] sm:$0xff] %v658
                  %s660 = sadd.s32 1, %s655
                  %p661 = scmp.ge.s32.totalorder %s660, %s643
                  %s662 = scalar_select %p661, 0, %s660
                  %s663 = smul.u32 %s662, 8
                  %s664 = smul.u32 %s662, 8
                  %s665 = scalar_lea.vmem %s646, %s663 [#allocation2]
                  %s666 = scalar_lea.vmem %s648, %s664
                $region94: #{timesformer_forward.13} parent=81 // loop_footer
                  %s652 = sadd.s32 %s650, 1
                $region95: #{timesformer_forward.13} parent=81 // loop_footer_branch
                  %649 = sbr.rel target = $region91
                $region96: #{timesformer_forward.13} parent=81 // loop_exit
                  _
              $region82: #{timesformer_forward.13} parent=59 // pred_fallthru
                _
              // Predicated region
              $region97: #{timesformer_forward.13} parent=59 // pred_check
                _
              $region98: #{timesformer_forward.13} parent=59 // pred_check_branch
                %668 = sbr.rel target = $region100
              $region99: #{timesformer_forward.13} parent=59 // pred_region
                _
              $region100: #{timesformer_forward.13} parent=59 // pred_fallthru
                _
            $region60: #{timesformer_forward.13} parent=55 // pred_fallthru
              _
            // Predicated region
            $region61: #{timesformer_forward.13} parent=55 // pred_check
              _
            $region62: #{timesformer_forward.13} parent=55 // pred_check_branch
              %571 = sbr.rel target = $region64
            $region63: #{timesformer_forward.13} parent=55 // pred_region
              %s573 = sshrl.u32 %s560, 1
              // While loop
              $region65: #{timesformer_forward.13} parent=63 // loop_pre_header
                _
              $region66: #{timesformer_forward.13} parent=63 // loop_header
                %s575 = sphi 0, %s577
                %p576 = scmp.ge.s32.totalorder %s575, %s573
                %s580 = sphi 0, %s589
                %s581 = sphi %s553, %s592
                %s582 = sphi %s564, %s593
              $region67: #{timesformer_forward.13} parent=63 // loop_header_branch
                %579 = sbr.rel (%p576) target = $region71
              $region68: #{timesformer_forward.13} parent=63 // loop_body
                %v583 = vld [vmem:[%s581] sm:$0xff]
                %584 = vst [vmem:[%s582] sm:$0xff] %v583
                %v585 = vld [vmem:[%s581 + $0x8] sm:$0xff]
                %586 = vst [vmem:[%s582 + $0x8] sm:$0xff] %v585
                %s587 = sadd.s32 1, %s580
                %p588 = scmp.ge.s32.totalorder %s587, %s573
                %s589 = scalar_select %p588, 0, %s587
                %s590 = smul.u32 %s589, 16
                %s591 = smul.u32 %s589, 16
                %s592 = scalar_lea.vmem %s553, %s590 [#allocation2]
                %s593 = scalar_lea.vmem %s564, %s591
              $region69: #{timesformer_forward.13} parent=63 // loop_footer
                %s577 = sadd.s32 %s575, 1
              $region70: #{timesformer_forward.13} parent=63 // loop_footer_branch
                %574 = sbr.rel target = $region66
              $region71: #{timesformer_forward.13} parent=63 // loop_exit
                _
              %s594 = sshrl.u32 %s560, 1
              %s595 = sand.u32 %s560, 1
              %s596 = smul.u32 %s594, 2
              %s597 = smul.u32 8, %s596
              %s598 = scalar_lea.vmem %s553, %s597 [#allocation2]
              %s599 = smul.u32 8, %s596
              %s600 = scalar_lea.vmem %s564, %s599
              // While loop
              $region72: #{timesformer_forward.13} parent=63 // loop_pre_header
                _
              $region73: #{timesformer_forward.13} parent=63 // loop_header
                %s602 = sphi 0, %s604
                %p603 = scmp.ge.s32.totalorder %s602, %s595
                %s607 = sphi 0, %s614
                %s608 = sphi %s598, %s617
                %s609 = sphi %s600, %s618
              $region74: #{timesformer_forward.13} parent=63 // loop_header_branch
                %606 = sbr.rel (%p603) target = $region78
              $region75: #{timesformer_forward.13} parent=63 // loop_body
                %v610 = vld [vmem:[%s608] sm:$0xff]
                %611 = vst [vmem:[%s609] sm:$0xff] %v610
                %s612 = sadd.s32 1, %s607
                %p613 = scmp.ge.s32.totalorder %s612, %s595
                %s614 = scalar_select %p613, 0, %s612
                %s615 = smul.u32 %s614, 8
                %s616 = smul.u32 %s614, 8
                %s617 = scalar_lea.vmem %s598, %s615 [#allocation2]
                %s618 = scalar_lea.vmem %s600, %s616
              $region76: #{timesformer_forward.13} parent=63 // loop_footer
                %s604 = sadd.s32 %s602, 1
              $region77: #{timesformer_forward.13} parent=63 // loop_footer_branch
                %601 = sbr.rel target = $region73
              $region78: #{timesformer_forward.13} parent=63 // loop_exit
                _
            $region64: #{timesformer_forward.13} parent=55 // pred_fallthru
              _
          $region56: #{timesformer_forward.13} parent=51 // pred_fallthru
            _
          %669 = vnop
        $region52: #{timesformer_forward.13} parent=47 // pred_fallthru
          _
      $region48: #{timesformer_forward.13} parent=5 // pred_fallthru
        _
      %p670 = scmp.le.s32.totalorder 2, %s13
      // Predicated region
      $region101: #{timesformer_forward.13} parent=5 // pred_check
        %p671 = pneg %p670
      $region102: #{timesformer_forward.13} parent=5 // pred_check_branch
        %673 = sbr.rel (%p671) target = $region104
      $region103: #{timesformer_forward.13} parent=5 // pred_region
        %s674 = ssub.s32 %s13, 2
        // Predicated region
        $region105: #{timesformer_forward.13} parent=103 // pred_check
          %p675 = pneg %p194
        $region106: #{timesformer_forward.13} parent=103 // pred_check_branch
          %677 = sbr.rel (%p675) target = $region108
        $region107: #{timesformer_forward.13} parent=103 // pred_region
          %s678 = sand.u32 %s179, 1
          %s679 = sand.u32 %s179, 1
          %s680 = smul.addr %s679, 16
          %s681 = scalar_lea.vmem [#allocation2], %s680
        $region108: #{timesformer_forward.13} parent=103 // pred_fallthru
          _
      $region104: #{timesformer_forward.13} parent=5 // pred_fallthru
        _
    $region6: #{timesformer_forward.13} parent=1 // loop_footer
      %s17 = sadd.s32 1, %s13
    $region7: #{timesformer_forward.13} parent=1 // loop_footer_branch
      %12 = sbr.rel target = $region3
    $region8: #{timesformer_forward.13} parent=1 // loop_exit
      _

// kernel: timesformer_forward.17
$region0: #{timesformer_forward.17}
  #allocation0 [shape = 'u32[]', space=smem, size = 0x4, offset = 0x4, fixed_abs, tag = 'smem constant byte address 0x4 - core index']
  #allocation1 [shape = 'u32[144,128]{1,0:T(1,128)}', space=vmem, size = 0x12000, scoped, tag = 'internal scratch']
  %s0 = inlined_call_operand.vmem [shape: f32[4,32], index: 0, kind: input, shape index: {}]
  %s1 = inlined_call_operand.vmem [shape: f32[1,32], index: 1, kind: input, shape index: {}]
  %s2 = inlined_call_operand.vmem [shape: f32[1,32], index: 2, kind: input, shape index: {}]
  %s3 = inlined_call_operand.hbm [shape: f32[4,32], index: 3, kind: output, shape index: {}]
  %s4 = sld [smem:[#allocation0]]
  $region22: #{timesformer_forward.17} parent=0
    _
  %s6 = ssub.s32 1, %s4
  %s7 = scalar_select 0, %s6, %s4
  $region1: #{timesformer_forward.17} parent=0
    #allocation2 [shape = 'u8[2048]{0}', space=vmem, size = 0x800, scoped, tag = 'output window, operand 0, single buffered']
    #allocation3 [shape = 's32[1]{0}', space=sflag, size = 0x4, scoped, tag = 'scoped memory for timesformer_forward.17']
    %8 = vsyncpa [#allocation3], 0
    // Predicated region
    $region2: #{timesformer_forward.17} parent=1 // pred_check
      _
    $region3: #{timesformer_forward.17} parent=1 // pred_check_branch
      %10 = sbr.rel (0) target = $region5
    $region4: #{timesformer_forward.17} parent=1 // pred_region
      _
    $region5: #{timesformer_forward.17} parent=1 // pred_fallthru
      _
    // Predicated region
    $region6: #{timesformer_forward.17} parent=1 // pred_check
      _
    $region7: #{timesformer_forward.17} parent=1 // pred_check_branch
      %12 = sbr.rel (0) target = $region9
    $region8: #{timesformer_forward.17} parent=1 // pred_region
      _
    $region9: #{timesformer_forward.17} parent=1 // pred_fallthru
      _
    // Predicated region
    $region10: #{timesformer_forward.17} parent=1 // pred_check
      _
    $region11: #{timesformer_forward.17} parent=1 // pred_check_branch
      %14 = sbr.rel (0) target = $region13
    $region12: #{timesformer_forward.17} parent=1 // pred_region
      _
    $region13: #{timesformer_forward.17} parent=1 // pred_fallthru
      _
    %v15 = vld [vmem:[%s0] sm:$0xf]
    %vm16 = vcmask 257024
    %v17 = vsel %vm16, %v15, 0.0
    %18 = vadd.xlane.f32.xlu0 %v17
    %v19 = vpop.xlane.xlu0 %18
    %v20 = vrcp.pop 32.0
    %v21 = vmul.f32 %v19, %v20
    %v22 = vsub.f32 %v15, %v21
    %v23 = vmul.f32 %v22, %v22
    %v24 = vsel %vm16, %v23, 0.0
    %25 = vadd.xlane.f32.xlu0 %v24
    %v26 = vpop.xlane.xlu0 %25
    %v27 = vmul.f32 %v26, %v20
    %v28 = vadd.f32 %v27, 1e-05
    %v29 = vrsqrt.pop %v28
    %v30 = vmul.f32 %v22, %v29
    %v31 = vld [vmem:[%s1] sm:$0x1]
    %v33 = vlaneseq
    %v34 = vshrl.u32 %v33, 7
    %v35 = vsub.s32 0, %v34
    %v36 = vrot.slane %v31, %v35
    %v38 = vmul.f32 %v30, %v36
    %v39 = vld [vmem:[%s2] sm:$0x1]
    %v41 = vlaneseq
    %v42 = vshrl.u32 %v41, 7
    %v43 = vsub.s32 0, %v42
    %v44 = vrot.slane %v39, %v43
    %v46 = vadd.f32 %v38, %v44
    %47 = vst.msk [vmem:[#allocation2] sm:$0xf] %vm16, %v46
    // Predicated region
    $region14: #{timesformer_forward.17} parent=1 // pred_check
      _
    $region15: #{timesformer_forward.17} parent=1 // pred_check_branch
      %49 = sbr.rel (0) target = $region17
    $region16: #{timesformer_forward.17} parent=1 // pred_region
      %s51 = ssub.s32 64, 64
      %52 = vsyncadd [#allocation3], %s51
      %s54 = sshll.u32 [#allocation2], 4
      %s55 = int_to_ptr.vmem [resolvable:$true] %s54
      %57 = dma.vmem_to_hbm [thread:$0]  %s55, 64, %s3, [#allocation3]
    $region17: #{timesformer_forward.17} parent=1 // pred_fallthru
      _
    // Predicated region
    $region18: #{timesformer_forward.17} parent=1 // pred_check
      _
    $region19: #{timesformer_forward.17} parent=1 // pred_check_branch
      %59 = sbr.rel (0) target = $region21
    $region20: #{timesformer_forward.17} parent=1 // pred_region
      %60 = dma.done [#allocation3], 64
    $region21: #{timesformer_forward.17} parent=1 // pred_fallthru
      _
    %61 = vsyncpa [#allocation3], 1

// kernel: timesformer_forward.12
$region0: #{timesformer_forward.12}
  #allocation0 [shape = 'u32[]', space=smem, size = 0x4, offset = 0x4, fixed_abs, tag = 'smem constant byte address 0x4 - core index']
  #allocation1 [shape = 'u32[144,128]{1,0:T(1,128)}', space=vmem, size = 0x12000, scoped, tag = 'internal scratch']
  #allocation2 [shape = 'f32[10,32]{1,0:T(8,128)}', space=vmem, size = 0x2000, scoped, tag = 'scratch operand']
  %s0 = inlined_call_operand.vmem [shape: f32[4,5,32], index: 0, kind: input, shape index: {}]
  %s1 = inlined_call_operand.vmem [shape: f32[1,1,32], index: 1, kind: input, shape index: {}]
  %s2 = inlined_call_operand.vmem [shape: f32[1,1,32], index: 2, kind: input, shape index: {}]
  %s3 = inlined_call_operand.vmem [shape: bf16[32,96], index: 3, kind: input, shape index: {}]
  %s4 = inlined_call_operand.vmem [shape: f32[1,96], index: 4, kind: input, shape index: {}]
  %s5 = inlined_call_operand.vmem [shape: bf16[32,32], index: 5, kind: input, shape index: {}]
  %s6 = inlined_call_operand.vmem [shape: f32[1,32], index: 6, kind: input, shape index: {}]
  %s7 = inlined_call_operand.vmem [shape: f32[4,5,32], index: 7, kind: output, shape index: {}]
  %s8 = sld [smem:[#allocation0]]
  $region61: #{timesformer_forward.12} parent=0
    _
  %s10 = ssub.s32 1, %s8
  %s11 = scalar_select 0, %s10, %s8
  loop: start=0, step=1, limit=4
  $region2: #{timesformer_forward.12} parent=0 // loop_pre_header
    _
  $region3: #{timesformer_forward.12} parent=0 // loop_header
    %s13 = sphi 0, %s17
    %p14 = scmp.ge.s32.totalorder %s13, 4
    %s23 = sphi 0, %s25
    %s26 = sphi 0, %s23
    %s27 = sphi 0, %s26
    %s43 = sphi 0, %s27
    %s47 = sphi 0, %s47
    %s49 = sphi 0, %s47
    %s50 = sphi 0, %s49
    %s64 = sphi 0, %s50
    %s68 = sphi 0, %s68
    %s70 = sphi 0, %s68
    %s71 = sphi 0, %s70
    %s85 = sphi 0, %s71
    %s89 = sphi 0, %s89
    %s91 = sphi 0, %s89
    %s92 = sphi 0, %s91
    %s106 = sphi 0, %s92
    %s110 = sphi 0, %s110
    %s112 = sphi 0, %s110
    %s113 = sphi 0, %s112
    %s127 = sphi 0, %s113
    %s131 = sphi 0, %s131
    %s133 = sphi 0, %s131
    %s134 = sphi 0, %s133
    %s148 = sphi 0, %s134
    %s152 = sphi 0, %s152
    %s154 = sphi 0, %s152
    %s155 = sphi 0, %s154
    %s169 = sphi 0, %s155
    %s175 = sphi 0, %s177
    %s178 = sphi 0, %s175
    %s179 = sphi 0, %s178
    %s195 = sphi 0, %s179
  $region4: #{timesformer_forward.12} parent=0 // loop_header_branch
    %16 = sbr.rel (%p14) target = $region8
  $region5: #{timesformer_forward.12} parent=0 // loop_body
    %s18 = ssub.s32 %s13, 1
    %s19 = ssub.s32 %s13, 2
    %s20 = sadd.s32 %s13, 1
    %s21 = ssub.s32 %s13, %s20
    %p22 = scmp.eq.s32.totalorder %s21, 0
    %s24 = sadd.s32 %s23, 1
    %s25 = scalar_select %p22, %s23, %s24
    %p28 = pneg %p22
    %p29 = scmp.eq.s32.totalorder %s13, 1
    %p30 = por %p28, %p29
    %p31 = scmp.ne.s32.totalorder %s23, %s26
    %p32 = scmp.eq.s32.totalorder %s13, 0
    %p33 = por %p31, %p32
    %p34 = scmp.ne.s32.totalorder %s23, %s26
    %p35 = scmp.eq.s32.totalorder %s18, 1
    %p36 = por %p34, %p35
    %p37 = scmp.ne.s32.totalorder %s26, %s27
    %p38 = scmp.eq.s32.totalorder %s18, 0
    %p39 = por %p37, %p38
    %p40 = scmp.ne.s32.totalorder %s26, %s27
    %p41 = scmp.eq.s32.totalorder %s19, 1
    %p42 = por %p40, %p41
    %p44 = scmp.ne.s32.totalorder %s27, %s43
    %p45 = scmp.eq.s32.totalorder %s19, 0
    %p46 = por %p44, %p45
    %s48 = sadd.s32 %s47, 1
    %p51 = scmp.eq.s32.totalorder %s13, 1
    %p52 = scmp.ne.s32.totalorder %s47, %s49
    %p53 = scmp.eq.s32.totalorder %s13, 0
    %p54 = por %p52, %p53
    %p55 = scmp.ne.s32.totalorder %s47, %s49
    %p56 = scmp.eq.s32.totalorder %s18, 1
    %p57 = por %p55, %p56
    %p58 = scmp.ne.s32.totalorder %s49, %s50
    %p59 = scmp.eq.s32.totalorder %s18, 0
    %p60 = por %p58, %p59
    %p61 = scmp.ne.s32.totalorder %s49, %s50
    %p62 = scmp.eq.s32.totalorder %s19, 1
    %p63 = por %p61, %p62
    %p65 = scmp.ne.s32.totalorder %s50, %s64
    %p66 = scmp.eq.s32.totalorder %s19, 0
    %p67 = por %p65, %p66
    %s69 = sadd.s32 %s68, 1
    %p72 = scmp.eq.s32.totalorder %s13, 1
    %p73 = scmp.ne.s32.totalorder %s68, %s70
    %p74 = scmp.eq.s32.totalorder %s13, 0
    %p75 = por %p73, %p74
    %p76 = scmp.ne.s32.totalorder %s68, %s70
    %p77 = scmp.eq.s32.totalorder %s18, 1
    %p78 = por %p76, %p77
    %p79 = scmp.ne.s32.totalorder %s70, %s71
    %p80 = scmp.eq.s32.totalorder %s18, 0
    %p81 = por %p79, %p80
    %p82 = scmp.ne.s32.totalorder %s70, %s71
    %p83 = scmp.eq.s32.totalorder %s19, 1
    %p84 = por %p82, %p83
    %p86 = scmp.ne.s32.totalorder %s71, %s85
    %p87 = scmp.eq.s32.totalorder %s19, 0
    %p88 = por %p86, %p87
    %s90 = sadd.s32 %s89, 1
    %p93 = scmp.eq.s32.totalorder %s13, 1
    %p94 = scmp.ne.s32.totalorder %s89, %s91
    %p95 = scmp.eq.s32.totalorder %s13, 0
    %p96 = por %p94, %p95
    %p97 = scmp.ne.s32.totalorder %s89, %s91
    %p98 = scmp.eq.s32.totalorder %s18, 1
    %p99 = por %p97, %p98
    %p100 = scmp.ne.s32.totalorder %s91, %s92
    %p101 = scmp.eq.s32.totalorder %s18, 0
    %p102 = por %p100, %p101
    %p103 = scmp.ne.s32.totalorder %s91, %s92
    %p104 = scmp.eq.s32.totalorder %s19, 1
    %p105 = por %p103, %p104
    %p107 = scmp.ne.s32.totalorder %s92, %s106
    %p108 = scmp.eq.s32.totalorder %s19, 0
    %p109 = por %p107, %p108
    %s111 = sadd.s32 %s110, 1
    %p114 = scmp.eq.s32.totalorder %s13, 1
    %p115 = scmp.ne.s32.totalorder %s110, %s112
    %p116 = scmp.eq.s32.totalorder %s13, 0
    %p117 = por %p115, %p116
    %p118 = scmp.ne.s32.totalorder %s110, %s112
    %p119 = scmp.eq.s32.totalorder %s18, 1
    %p120 = por %p118, %p119
    %p121 = scmp.ne.s32.totalorder %s112, %s113
    %p122 = scmp.eq.s32.totalorder %s18, 0
    %p123 = por %p121, %p122
    %p124 = scmp.ne.s32.totalorder %s112, %s113
    %p125 = scmp.eq.s32.totalorder %s19, 1
    %p126 = por %p124, %p125
    %p128 = scmp.ne.s32.totalorder %s113, %s127
    %p129 = scmp.eq.s32.totalorder %s19, 0
    %p130 = por %p128, %p129
    %s132 = sadd.s32 %s131, 1
    %p135 = scmp.eq.s32.totalorder %s13, 1
    %p136 = scmp.ne.s32.totalorder %s131, %s133
    %p137 = scmp.eq.s32.totalorder %s13, 0
    %p138 = por %p136, %p137
    %p139 = scmp.ne.s32.totalorder %s131, %s133
    %p140 = scmp.eq.s32.totalorder %s18, 1
    %p141 = por %p139, %p140
    %p142 = scmp.ne.s32.totalorder %s133, %s134
    %p143 = scmp.eq.s32.totalorder %s18, 0
    %p144 = por %p142, %p143
    %p145 = scmp.ne.s32.totalorder %s133, %s134
    %p146 = scmp.eq.s32.totalorder %s19, 1
    %p147 = por %p145, %p146
    %p149 = scmp.ne.s32.totalorder %s134, %s148
    %p150 = scmp.eq.s32.totalorder %s19, 0
    %p151 = por %p149, %p150
    %s153 = sadd.s32 %s152, 1
    %p156 = scmp.eq.s32.totalorder %s13, 1
    %p157 = scmp.ne.s32.totalorder %s152, %s154
    %p158 = scmp.eq.s32.totalorder %s13, 0
    %p159 = por %p157, %p158
    %p160 = scmp.ne.s32.totalorder %s152, %s154
    %p161 = scmp.eq.s32.totalorder %s18, 1
    %p162 = por %p160, %p161
    %p163 = scmp.ne.s32.totalorder %s154, %s155
    %p164 = scmp.eq.s32.totalorder %s18, 0
    %p165 = por %p163, %p164
    %p166 = scmp.ne.s32.totalorder %s154, %s155
    %p167 = scmp.eq.s32.totalorder %s19, 1
    %p168 = por %p166, %p167
    %p170 = scmp.ne.s32.totalorder %s155, %s169
    %p171 = scmp.eq.s32.totalorder %s19, 0
    %p172 = por %p170, %p171
    %s173 = ssub.s32 %s13, %s20
    %p174 = scmp.eq.s32.totalorder %s173, 0
    %s176 = sadd.s32 %s175, 1
    %s177 = scalar_select %p174, %s175, %s176
    %p180 = pneg %p174
    %p181 = scmp.eq.s32.totalorder %s13, 1
    %p182 = por %p180, %p181
    %p183 = scmp.ne.s32.totalorder %s175, %s178
    %p184 = scmp.eq.s32.totalorder %s13, 0
    %p185 = por %p183, %p184
    %p186 = scmp.ne.s32.totalorder %s175, %s178
    %p187 = scmp.eq.s32.totalorder %s18, 1
    %p188 = por %p186, %p187
    %p189 = scmp.ne.s32.totalorder %s178, %s179
    %p190 = scmp.eq.s32.totalorder %s18, 0
    %p191 = por %p189, %p190
    %p192 = scmp.ne.s32.totalorder %s178, %s179
    %p193 = scmp.eq.s32.totalorder %s19, 1
    %p194 = por %p192, %p193
    %p196 = scmp.ne.s32.totalorder %s179, %s195
    %p197 = scmp.eq.s32.totalorder %s19, 0
    %p198 = por %p196, %p197
    %p199 = scmp.le.s32.totalorder 1, %s13
    %p200 = scmp.lt.s32.totalorder %s13, 3
    %p201 = pnand %p199, %p200
    %p202 = pneg %p201
    // Predicated region
    $region9: #{timesformer_forward.12} parent=5 // pred_check
      _
    $region10: #{timesformer_forward.12} parent=5 // pred_check_branch
      %204 = sbr.rel (%p201) target = $region12
    $region11: #{timesformer_forward.12} parent=5 // pred_region
      %s205 = ssub.s32 %s13, 1
      // Predicated region
      $region13: #{timesformer_forward.12} parent=11 // pred_check
        %p206 = pneg %p60
      $region14: #{timesformer_forward.12} parent=11 // pred_check_branch
        %208 = sbr.rel (%p206) target = $region16
      $region15: #{timesformer_forward.12} parent=11 // pred_region
        _
      $region16: #{timesformer_forward.12} parent=11 // pred_fallthru
        _
      // Predicated region
      $region17: #{timesformer_forward.12} parent=11 // pred_check
        %p209 = pneg %p81
      $region18: #{timesformer_forward.12} parent=11 // pred_check_branch
        %211 = sbr.rel (%p209) target = $region20
      $region19: #{timesformer_forward.12} parent=11 // pred_region
        _
      $region20: #{timesformer_forward.12} parent=11 // pred_fallthru
        _
      // Predicated region
      $region21: #{timesformer_forward.12} parent=11 // pred_check
        %p212 = pneg %p102
      $region22: #{timesformer_forward.12} parent=11 // pred_check_branch
        %214 = sbr.rel (%p212) target = $region24
      $region23: #{timesformer_forward.12} parent=11 // pred_region
        _
      $region24: #{timesformer_forward.12} parent=11 // pred_fallthru
        _
      // Predicated region
      $region25: #{timesformer_forward.12} parent=11 // pred_check
        %p215 = pneg %p123
      $region26: #{timesformer_forward.12} parent=11 // pred_check_branch
        %217 = sbr.rel (%p215) target = $region28
      $region27: #{timesformer_forward.12} parent=11 // pred_region
        _
      $region28: #{timesformer_forward.12} parent=11 // pred_fallthru
        _
      // Predicated region
      $region29: #{timesformer_forward.12} parent=11 // pred_check
        %p218 = pneg %p144
      $region30: #{timesformer_forward.12} parent=11 // pred_check_branch
        %220 = sbr.rel (%p218) target = $region32
      $region31: #{timesformer_forward.12} parent=11 // pred_region
        _
      $region32: #{timesformer_forward.12} parent=11 // pred_fallthru
        _
      // Predicated region
      $region33: #{timesformer_forward.12} parent=11 // pred_check
        %p221 = pneg %p165
      $region34: #{timesformer_forward.12} parent=11 // pred_check_branch
        %223 = sbr.rel (%p221) target = $region36
      $region35: #{timesformer_forward.12} parent=11 // pred_region
        _
      $region36: #{timesformer_forward.12} parent=11 // pred_fallthru
        _
    $region12: #{timesformer_forward.12} parent=5 // pred_fallthru
      _
    %p224 = scmp.lt.s32.totalorder %s13, 2
    // Predicated region
    $region37: #{timesformer_forward.12} parent=5 // pred_check
      %p225 = pneg %p224
    $region38: #{timesformer_forward.12} parent=5 // pred_check_branch
      %227 = sbr.rel (%p225) target = $region40
    $region39: #{timesformer_forward.12} parent=5 // pred_region
      // Predicated region
      $region41: #{timesformer_forward.12} parent=39 // pred_check
        %p228 = pneg %p33
      $region42: #{timesformer_forward.12} parent=39 // pred_check_branch
        %230 = sbr.rel (%p228) target = $region44
      $region43: #{timesformer_forward.12} parent=39 // pred_region
        %s231 = smul.u32 2, %s13
        %p232 = scmp.lt.s32.totalorder %s231, 3
        %s233 = scalar_select %p232, %s231, 3
        %s234 = smul.addr %s233, 8
        %s235 = scalar_lea.vmem %s0, %s234
        %s236 = smul.u32 2, %s13
      $region44: #{timesformer_forward.12} parent=39 // pred_fallthru
        _
    $region40: #{timesformer_forward.12} parent=5 // pred_fallthru
      _
    %p237 = scmp.le.s32.totalorder 1, %s13
    %p238 = scmp.lt.s32.totalorder %s13, 3
    %p239 = pnand %p237, %p238
    %p240 = pneg %p239
    // Predicated region
    $region45: #{timesformer_forward.12} parent=5 // pred_check
      _
    $region46: #{timesformer_forward.12} parent=5 // pred_check_branch
      %242 = sbr.rel (%p239) target = $region48
    $region47: #{timesformer_forward.12} parent=5 // pred_region
      %s243 = ssub.s32 %s13, 1
      %s244 = smul.u32 2, %s18
      %p245 = scmp.lt.s32.totalorder %s244, 3
      %s246 = scalar_select %p245, %s244, 3
      %s247 = smul.addr %s246, 8
      %s248 = scalar_lea.vmem %s0, %s247
      %p249 = pneg %p39
      %p250 = pneg %p36
      %p251 = pneg %p60
      %p252 = pneg %p57
      %p253 = pneg %p81
      %p254 = pneg %p78
      %p255 = pneg %p102
      %p256 = pneg %p99
      %p257 = pneg %p123
      %p258 = pneg %p120
      %p259 = pneg %p144
      %p260 = pneg %p141
      %p261 = pneg %p165
      %p262 = pneg %p162
      %p263 = pneg %p191
      %p264 = pneg %p188
      %s265 = smul.u32 2, %s18
      %p266 = scmp.lt.s32.totalorder %s265, 3
      %s267 = scalar_select %p266, %s265, 3
      %s268 = smul.addr %s267, 8
      %s269 = scalar_lea.vmem %s7, %s268
      %s270 = smul.u32 2, %s18
      %p271 = scmp.lt.s32.totalorder %s270, 3
      %s272 = scalar_select %p271, %s270, 3
      %s273 = smul.addr %s272, 8
      %s274 = scalar_lea.vmem %s0, %s273
      %s275 = smul.u32 2, %s18
      %s276 = smul.u32 2, %s18
      %p277 = scmp.lt.s32.totalorder %s276, 3
      %s278 = scalar_select %p277, %s276, 3
      %s279 = smul.addr %s278, 8
      %s280 = scalar_lea.vmem %s7, %s279
      %s281 = smul.u32 2, %s18
      %v283 = vld [vmem:[%s274] sm:$0x1f]
      %v284 = vld [vmem:[%s274 + $0x8] sm:$0x1f]
      %v285 = vld [vmem:[%s1] sm:$0x1]
      %v286 = vld [vmem:[%s2] sm:$0x1]
      %v287 = vld [vmem:[%s3] sm:$0xf]
      %v288 = vld [vmem:[%s3 + $0x4] sm:$0xf]
      %v289 = vld [vmem:[%s3 + $0x8] sm:$0xf]
      %v290 = vld [vmem:[%s3 + $0xc] sm:$0xf]
      %v291 = vld [vmem:[%s4] sm:$0x1]
      %v292 = vld [vmem:[%s5] sm:$0xf]
      %v293 = vld [vmem:[%s5 + $0x4] sm:$0xf]
      %v294 = vld [vmem:[%s5 + $0x8] sm:$0xf]
      %v295 = vld [vmem:[%s5 + $0xc] sm:$0xf]
      %v296 = vld [vmem:[%s6] sm:$0x1]
      %vm297 = vcmask 258048
      %v298 = vsel %vm297, %v283, 0.0
      %299 = vadd.xlane.f32.xlu0 %v298
      %v300 = vpop.xlane.xlu0 %299
      %v301 = vsel %vm297, %v284, 0.0
      %302 = vadd.xlane.f32.xlu0 %v301
      %v303 = vpop.xlane.xlu0 %302
      %v304 = vrcp.pop 32.0
      %v305 = vmul.f32 %v300, %v304
      %v306 = vmul.f32 %v303, %v304
      %v307 = vsub.f32 %v283, %v305
      %v308 = vsub.f32 %v284, %v306
      %v309 = vmul.f32 %v307, %v307
      %v310 = vmul.f32 %v308, %v308
      %v311 = vsel %vm297, %v309, 0.0
      %312 = vadd.xlane.f32.xlu0 %v311
      %v313 = vpop.xlane.xlu0 %312
      %v314 = vsel %vm297, %v310, 0.0
      %315 = vadd.xlane.f32.xlu0 %v314
      %v316 = vpop.xlane.xlu0 %315
      %v317 = vmul.f32 %v313, %v304
      %v318 = vmul.f32 %v316, %v304
      %v319 = vadd.f32 %v317, 1e-05
      %v320 = vadd.f32 %v318, 1e-05
      %v321 = vrsqrt.pop %v319
      %v322 = vrsqrt.pop %v320
      %v323 = vmul.f32 %v307, %v321
      %v324 = vmul.f32 %v308, %v322
      %v326 = vlaneseq
      %v327 = vshrl.u32 %v326, 7
      %v328 = vsub.s32 0, %v327
      %v329 = vrot.slane %v285, %v328
      %v331 = vmul.f32 %v323, %v329
      %v332 = vmul.f32 %v324, %v329
      %v334 = vlaneseq
      %v335 = vshrl.u32 %v334, 7
      %v336 = vsub.s32 0, %v335
      %v337 = vrot.slane %v286, %v336
      %v339 = vadd.f32 %v331, %v337
      %v340 = vadd.f32 %v332, %v337
      %v343 = vcombine.high %v339, %v339
      %v345 = vunpack.c.l.s4 1966171168
      %v346 = vunpack.c.0.s8 %v345
      %v347 = vlaneseq
      %v348 = vshrl.u32 %v347, 7
      %v349 = vsub.s32 %v346, %v348
      %v350 = vrot.slane %v339, %v349
      %v352 = vunpack.c.l.s4 1966171168
      %v353 = vunpack.c.0.s8 %v352
      %v354 = vlaneseq
      %v355 = vshrl.u32 %v354, 7
      %v356 = vsub.s32 %v353, %v355
      %v357 = vrot.slane %v343, %v356
      %v358 = vcombine.high %v350, %v350
      %v360 = vunpack.c.l.s4 1966171168
      %v361 = vunpack.c.0.s8 %v360
      %v362 = vlaneseq
      %v363 = vshrl.u32 %v362, 7
      %v364 = vsub.s32 %v361, %v363
      %v365 = vrot.slane %v350, %v364
      %v367 = vunpack.c.l.s4 1966171168
      %v368 = vunpack.c.0.s8 %v367
      %v369 = vlaneseq
      %v370 = vshrl.u32 %v369, 7
      %v371 = vsub.s32 %v368, %v370
      %v372 = vrot.slane %v357, %v371
      %v374 = vunpack.c.l.s4 1966171168
      %v375 = vunpack.c.0.s8 %v374
      %v376 = vlaneseq
      %v377 = vshrl.u32 %v376, 7
      %v378 = vsub.s32 %v375, %v377
      %v379 = vrot.slane %v358, %v378
      %v380 = vcombine.high %v365, %v365
      %v381 = vcombine.high %v379, %v379
      %v382 = vcombine.high %v340, %v340
      %v384 = vunpack.c.l.s4 1966171168
      %v385 = vunpack.c.0.s8 %v384
      %v386 = vlaneseq
      %v387 = vshrl.u32 %v386, 7
      %v388 = vsub.s32 %v385, %v387
      %v389 = vrot.slane %v340, %v388
      %v391 = vunpack.c.l.s4 1966171168
      %v392 = vunpack.c.0.s8 %v391
      %v393 = vlaneseq
      %v394 = vshrl.u32 %v393, 7
      %v395 = vsub.s32 %v392, %v394
      %v396 = vrot.slane %v382, %v395
      %v397 = vcombine.high %v389, %v389
      %v399 = vunpack.c.l.s4 1966171168
      %v400 = vunpack.c.0.s8 %v399
      %v401 = vlaneseq
      %v402 = vshrl.u32 %v401, 7
      %v403 = vsub.s32 %v400, %v402
      %v404 = vrot.slane %v389, %v403
      %v406 = vunpack.c.l.s4 1966171168
      %v407 = vunpack.c.0.s8 %v406
      %v408 = vlaneseq
      %v409 = vshrl.u32 %v408, 7
      %v410 = vsub.s32 %v407, %v409
      %v411 = vrot.slane %v396, %v410
      %v413 = vunpack.c.l.s4 1966171168
      %v414 = vunpack.c.0.s8 %v413
      %v415 = vlaneseq
      %v416 = vshrl.u32 %v415, 7
      %v417 = vsub.s32 %v414, %v416
      %v418 = vrot.slane %v397, %v417
      %v419 = vcombine.high %v404, %v404
      %v420 = vcombine.high %v418, %v418
      %v421 = vcombine.low %v365, %v379
      %v422 = vcombine.low %v380, %v381
      %v423 = vcombine.low %v372, %v404
      %v424 = vcombine.low %v418, %v419
      %v426 = vunpack.c.l.s4 1966171168
      %v427 = vunpack.c.0.s8 %v426
      %v428 = vlaneseq
      %v429 = vshrl.u32 %v428, 7
      %v430 = vsub.s32 %v427, %v429
      %v431 = vrot.slane %v421, %v430
      %v433 = vunpack.c.l.s4 1966171168
      %v434 = vunpack.c.0.s8 %v433
      %v435 = vlaneseq
      %v436 = vshrl.u32 %v435, 7
      %v437 = vsub.s32 %v434, %v436
      %v438 = vrot.slane %v422, %v437
      %v440 = vunpack.c.l.s4 1966171168
      %v441 = vunpack.c.0.s8 %v440
      %v442 = vlaneseq
      %v443 = vshrl.u32 %v442, 7
      %v444 = vsub.s32 %v441, %v443
      %v445 = vrot.slane %v423, %v444
      %v447 = vunpack.c.l.s4 1966171168
      %v448 = vunpack.c.0.s8 %v447
      %v449 = vlaneseq
      %v450 = vshrl.u32 %v449, 7
      %v451 = vsub.s32 %v448, %v450
      %v452 = vrot.slane %v424, %v451
      %v453 = vcombine.low %v431, %v438
      %v454 = vcombine.low %v445, %v452
      %v456 = vunpack.c.l.s4 1966171168
      %v457 = vunpack.c.0.s8 %v456
      %v458 = vlaneseq
      %v459 = vshrl.u32 %v458, 7
      %v460 = vsub.s32 %v457, %v459
      %v461 = vrot.slane %v453, %v460
      %v463 = vunpack.c.l.s4 1966171168
      %v464 = vunpack.c.0.s8 %v463
      %v465 = vlaneseq
      %v466 = vshrl.u32 %v465, 7
      %v467 = vsub.s32 %v464, %v466
      %v468 = vrot.slane %v454, %v467
      %v469 = vcombine.low %v461, %v468
      %v470 = vcombine.low %v420, %v411
      %v472 = vunpack.c.l.s4 1966171168
      %v473 = vunpack.c.0.s8 %v472
      %v474 = vlaneseq
      %v475 = vshrl.u32 %v474, 7
      %v476 = vsub.s32 %v473, %v475
      %v477 = vrot.slane %v470, %v476
      %v479 = vunpack.c.l.s4 1966171168
      %v480 = vunpack.c.0.s8 %v479
      %v481 = vlaneseq
      %v482 = vshrl.u32 %v481, 7
      %v483 = vsub.s32 %v480, %v482
      %v484 = vrot.slane %v477, %v483
      %v487 = vpack.c.bf16 %v484, %v469
      %v489 = vlaneseq
      %v490 = vshrl.u32 %v489, 7
      %v491 = vsub.s32 0, %v490
      %v492 = vrot.slane %v291, %v491
      %v498 = vunpack.c.l.b16 %v287
      %v499 = vunpack.c.l.b16 %v288
      %v500 = vunpack.c.l.b16 %v289
      %v501 = vunpack.c.l.b16 %v290
      %v502 = vpack.c.b16 %v499, %v498
      %v503 = vpack.c.b16 %v501, %v500
      %vm506 = vcmask 261120
      %v508 = vsel %vm506, %v487, 0
      %510 = vmatprep.subr.bf16.mxu0 0
      %511 = vmatpush1.bf16.msra.mxu0 %v502
      %512 = vmatprep.subr.bf16.mxu0 0
      %513 = vmatpush1.bf16.msra.mxu0 %v503
      %514 = vmatprep.subr.bf16.mxu0 0
      %515 = vmatpush1.bf16.msra.mxu0 0
      %516 = vmatprep.subr.bf16.mxu0 0
      %517 = vmatpush1.bf16.msra.mxu0 0
      %518 = vmatprep.subr.bf16.mxu0 0
      %519 = vmatpush1.bf16.msra.mxu0 0
      %520 = vmatprep.subr.bf16.mxu0 0
      %521 = vmatpush1.bf16.msra.mxu0 0
      %522 = vmatprep.subr.bf16.mxu0 0
      %523 = vmatpush1.bf16.msra.mxu0 0
      %524 = vmatprep.subr.bf16.mxu0 0
      %525 = vmatpush1.bf16.msra.mxu0 0
      %526 = vmatprep.subr.bf16.mxu0 0
      %527 = vmatpush1.bf16.msra.mxu0 0
      %528 = vmatprep.subr.bf16.mxu0 0
      %529 = vmatpush1.bf16.msra.mxu0 0
      %530 = vmatprep.subr.bf16.mxu0 0
      %531 = vmatpush1.bf16.msra.mxu0 0
      %532 = vmatprep.subr.bf16.mxu0 0
      %533 = vmatpush1.bf16.msra.mxu0 0
      %534 = vmatprep.subr.bf16.mxu0 0
      %535 = vmatpush1.bf16.msra.mxu0 0
      %536 = vmatprep.subr.bf16.mxu0 0
      %537 = vmatpush1.bf16.msra.mxu0 0
      %538 = vmatprep.subr.bf16.mxu0 0
      %539 = vmatpush1.bf16.msra.mxu0 0
      %540 = vmatprep.subr.bf16.mxu0 0
      %541 = vmatpush1.bf16.msra.mxu0 0
      %542 = vmatprep.mubr.bf16.mxu0 0
      %543 = vmatmul.mubr.bf16.gmra.mrb[0].mxu0 %v508
      %v544 = vpop.f32.mrb[0].mxu0
      %v545 = vadd.f32 %v492, %v544
      %v546 = vpop.f32.mrb[0].mxu0
      %v547 = vpop.f32.mrb[0].mxu0
      %v548 = vadd.f32 %v492, %v547
      %v549 = vpop.f32.mrb[0].mxu0
      %550 = vdwg.mxu0
      %v551 = vpack.c.bf16 %v548, %v545
      %v553 = vcombine.high %v551, %v551
      %v555 = vunpack.c.l.s4 1966171168
      %v556 = vunpack.c.0.s8 %v555
      %v557 = vlaneseq
      %v558 = vshrl.u32 %v557, 7
      %v559 = vsub.s32 %v556, %v558
      %v560 = vrot.slane %v551, %v559
      %v562 = vunpack.c.l.s4 1966171168
      %v563 = vunpack.c.0.s8 %v562
      %v564 = vlaneseq
      %v565 = vshrl.u32 %v564, 7
      %v566 = vsub.s32 %v563, %v565
      %v567 = vrot.slane %v553, %v566
      %v568 = vcombine.high %v560, %v560
      %v570 = vunpack.c.l.s4 1966171168
      %v571 = vunpack.c.0.s8 %v570
      %v572 = vlaneseq
      %v573 = vshrl.u32 %v572, 7
      %v574 = vsub.s32 %v571, %v573
      %v575 = vrot.slane %v560, %v574
      %v577 = vunpack.c.l.s4 1966171168
      %v578 = vunpack.c.0.s8 %v577
      %v579 = vlaneseq
      %v580 = vshrl.u32 %v579, 7
      %v581 = vsub.s32 %v578, %v580
      %v582 = vrot.slane %v567, %v581
      %v584 = vunpack.c.l.s4 1966171168
      %v585 = vunpack.c.0.s8 %v584
      %v586 = vlaneseq
      %v587 = vshrl.u32 %v586, 7
      %v588 = vsub.s32 %v585, %v587
      %v589 = vrot.slane %v568, %v588
      %v590 = vcombine.high %v575, %v575
      %v591 = vcombine.high %v589, %v589
      %v592 = vunpack.i.l.s16 %v575
      %v593 = vunpack.i.h.s16 %v575
      %v594 = vunpack.i.l.s16 %v589
      %v595 = vunpack.i.h.s16 %v589
      %v596 = vunpack.i.l.s16 %v590
      %v597 = vunpack.i.h.s16 %v590
      %v598 = vunpack.i.l.s16 %v591
      %v599 = vunpack.i.h.s16 %v591
      %v600 = vunpack.i.l.s16 %v582
      %v601 = vunpack.i.h.s16 %v582
      %v602 = vpack.i.b16 %v593, %v592
      %v603 = vpack.i.b16 %v595, %v594
      %v605 = vcombine.low %v602, %v603
      %v607 = vunpack.c.l.s4 1966171168
      %v608 = vunpack.c.0.s8 %v607
      %v609 = vlaneseq
      %v610 = vshrl.u32 %v609, 7
      %v611 = vsub.s32 %v608, %v610
      %v612 = vrot.slane %v605, %v611
      %v614 = vunpack.c.l.s4 1966171168
      %v615 = vunpack.c.0.s8 %v614
      %v616 = vlaneseq
      %v617 = vshrl.u32 %v616, 7
      %v618 = vsub.s32 %v615, %v617
      %v619 = vrot.slane %v596, %v618
      %v620 = vcombine.low %v612, %v619
      %v622 = vunpack.c.l.s4 1966171168
      %v623 = vunpack.c.0.s8 %v622
      %v624 = vlaneseq
      %v625 = vshrl.u32 %v624, 7
      %v626 = vsub.s32 %v623, %v625
      %v627 = vrot.slane %v620, %v626
      %628 = vrot.lane.b32.xlu0 %v627, 96
      %v629 = vpop.permute.xlu0 %628
      %vm630 = vcmask 64512
      %v632 = vsel %vm630, %v627, 0
      %v635 = vsel %vm630, %v629, 0
      %637 = vmatprep.subr.bf16.mxu0 0
      %638 = vmatpush1.bf16.xpose.msra.mxu0 %v635
      %639 = vmatprep.subr.bf16.mxu0 0
      %640 = vmatpush1.bf16.xpose.msra.mxu0 0
      %641 = vmatprep.subr.bf16.mxu0 0
      %642 = vmatpush1.bf16.xpose.msra.mxu0 0
      %643 = vmatprep.subr.bf16.mxu0 0
      %644 = vmatpush1.bf16.xpose.msra.mxu0 0
      %645 = vmatprep.subr.bf16.mxu0 0
      %646 = vmatpush1.bf16.xpose.msra.mxu0 0
      %647 = vmatprep.subr.bf16.mxu0 0
      %648 = vmatpush1.bf16.xpose.msra.mxu0 0
      %649 = vmatprep.subr.bf16.mxu0 0
      %650 = vmatpush1.bf16.xpose.msra.mxu0 0
      %651 = vmatprep.subr.bf16.mxu0 0
      %652 = vmatpush1.bf16.xpose.msra.mxu0 0
      %653 = vmatprep.subr.bf16.mxu0 0
      %654 = vmatpush1.bf16.xpose.msra.mxu0 0
      %655 = vmatprep.subr.bf16.mxu0 0
      %656 = vmatpush1.bf16.xpose.msra.mxu0 0
      %657 = vmatprep.subr.bf16.mxu0 0
      %658 = vmatpush1.bf16.xpose.msra.mxu0 0
      %659 = vmatprep.subr.bf16.mxu0 0
      %660 = vmatpush1.bf16.xpose.msra.mxu0 0
      %661 = vmatprep.subr.bf16.mxu0 0
      %662 = vmatpush1.bf16.xpose.msra.mxu0 0
      %663 = vmatprep.subr.bf16.mxu0 0
      %664 = vmatpush1.bf16.xpose.msra.mxu0 0
      %665 = vmatprep.subr.bf16.mxu0 0
      %666 = vmatpush1.bf16.xpose.msra.mxu0 0
      %667 = vmatprep.subr.bf16.mxu0 0
      %668 = vmatpush1.bf16.xpose.msra.mxu0 0
      %669 = vmatprep.mubr.bf16.mxu0 0
      %670 = vmatmul.mubr.bf16.gmra.mrb[0].mxu0 %v632
      %v671 = vpop.f32.mrb[0].mxu0
      %v672 = vadd.f32 0.0, %v671
      %v673 = vpop.f32.mrb[0].mxu0
      %v674 = vpop.f32.mrb[0].mxu0
      %v675 = vpop.f32.mrb[0].mxu0
      %676 = vdwg.mxu0
      %v677 = vpack.i.b16 %v598, %v597
      %v678 = vpack.i.b16 %v600, %v599
      %v680 = vcombine.low %v677, %v678
      %v682 = vunpack.c.l.s4 1966171168
      %v683 = vunpack.c.0.s8 %v682
      %v684 = vlaneseq
      %v685 = vshrl.u32 %v684, 7
      %v686 = vsub.s32 %v683, %v685
      %v687 = vrot.slane %v680, %v686
      %v689 = vunpack.c.l.s4 1966171168
      %v690 = vunpack.c.0.s8 %v689
      %v691 = vlaneseq
      %v692 = vshrl.u32 %v691, 7
      %v693 = vsub.s32 %v690, %v692
      %v694 = vrot.slane %v601, %v693
      %v695 = vcombine.low %v687, %v694
      %v697 = vunpack.c.l.s4 1966171168
      %v698 = vunpack.c.0.s8 %v697
      %v699 = vlaneseq
      %v700 = vshrl.u32 %v699, 7
      %v701 = vsub.s32 %v698, %v700
      %v702 = vrot.slane %v695, %v701
      %703 = vrot.lane.b32.xlu0 %v702, 96
      %v704 = vpop.permute.xlu0 %703
      %v706 = vsel %vm630, %v702, 0
      %v709 = vsel %vm630, %v704, 0
      %711 = vmatprep.subr.bf16.mxu0 0
      %712 = vmatpush1.bf16.xpose.msra.mxu0 %v709
      %713 = vmatprep.subr.bf16.mxu0 0
      %714 = vmatpush1.bf16.xpose.msra.mxu0 0
      %715 = vmatprep.subr.bf16.mxu0 0
      %716 = vmatpush1.bf16.xpose.msra.mxu0 0
      %717 = vmatprep.subr.bf16.mxu0 0
      %718 = vmatpush1.bf16.xpose.msra.mxu0 0
      %719 = vmatprep.subr.bf16.mxu0 0
      %720 = vmatpush1.bf16.xpose.msra.mxu0 0
      %721 = vmatprep.subr.bf16.mxu0 0
      %722 = vmatpush1.bf16.xpose.msra.mxu0 0
      %723 = vmatprep.subr.bf16.mxu0 0
      %724 = vmatpush1.bf16.xpose.msra.mxu0 0
      %725 = vmatprep.subr.bf16.mxu0 0
      %726 = vmatpush1.bf16.xpose.msra.mxu0 0
      %727 = vmatprep.subr.bf16.mxu0 0
      %728 = vmatpush1.bf16.xpose.msra.mxu0 0
      %729 = vmatprep.subr.bf16.mxu0 0
      %730 = vmatpush1.bf16.xpose.msra.mxu0 0
      %731 = vmatprep.subr.bf16.mxu0 0
      %732 = vmatpush1.bf16.xpose.msra.mxu0 0
      %733 = vmatprep.subr.bf16.mxu0 0
      %734 = vmatpush1.bf16.xpose.msra.mxu0 0
      %735 = vmatprep.subr.bf16.mxu0 0
      %736 = vmatpush1.bf16.xpose.msra.mxu0 0
      %737 = vmatprep.subr.bf16.mxu0 0
      %738 = vmatpush1.bf16.xpose.msra.mxu0 0
      %739 = vmatprep.subr.bf16.mxu0 0
      %740 = vmatpush1.bf16.xpose.msra.mxu0 0
      %741 = vmatprep.subr.bf16.mxu0 0
      %742 = vmatpush1.bf16.xpose.msra.mxu0 0
      %743 = vmatprep.mubr.bf16.mxu0 0
      %744 = vmatmul.mubr.bf16.gmra.mrb[0].mxu0 %v706
      %v745 = vpop.f32.mrb[0].mxu0
      %v746 = vadd.f32 0.0, %v745
      %v747 = vpop.f32.mrb[0].mxu0
      %v748 = vpop.f32.mrb[0].mxu0
      %v749 = vpop.f32.mrb[0].mxu0
      %750 = vdwg.mxu0
      %v751 = vmul.f32 %v672, 0.35355338
      %v752 = vmul.f32 %v746, 0.35355338
      %vm753 = vcmask 36864
      %v754 = vsel %vm753, %v751, -inf
      %755 = vmax.xlane.f32.xlu0 %v754
      %v756 = vpop.xlane.xlu0 %755
      %v757 = vsel %vm753, %v752, -inf
      %758 = vmax.xlane.f32.xlu0 %v757
      %v759 = vpop.xlane.xlu0 %758
      %v760 = vsub.f32 %v751, %v756
      %v761 = vsub.f32 %v752, %v759
      %v762 = vmul.f32 %v760, 1.442695
      %v763 = vpow.pop %v762
      %v764 = vmul.f32 %v761, 1.442695
      %v765 = vpow.pop %v764
      %v766 = vsel %vm753, %v763, 0.0
      %767 = vadd.xlane.f32.xlu0 %v766
      %v768 = vpop.xlane.xlu0 %767
      %v769 = vsel %vm753, %v765, 0.0
      %770 = vadd.xlane.f32.xlu0 %v769
      %v771 = vpop.xlane.xlu0 %770
      %v772 = vrcp.pop %v768
      %v773 = vrcp.pop %v771
      %v774 = vmul.f32 %v763, %v772
      %v775 = vmul.f32 %v765, %v773
      %v776 = vpack.c.bf16 %v774, %v774
      %v777 = vpack.c.bf16 %v775, %v775
      %778 = vrot.lane.b32.xlu0 %v627, 64
      %v779 = vpop.permute.xlu0 %778
      %vm780 = vcmask 39936
      %v782 = vsel %vm780, %v776, 0
      %vm784 = vcmask 1041408
      %vm785 = vcmask 1042432
      %v786 = vsel %vm784, 4294967295, 65535
      %v787 = vsel %vm785, %v786, 0
      %v789 = vand.u32 %v779, %v787
      %791 = vmatprep.subr.bf16.mxu0 0
      %792 = vmatpush1.bf16.msra.mxu0 %v789
      %793 = vmatprep.subr.bf16.mxu0 0
      %794 = vmatpush1.bf16.msra.mxu0 0
      %795 = vmatprep.subr.bf16.mxu0 0
      %796 = vmatpush1.bf16.msra.mxu0 0
      %797 = vmatprep.subr.bf16.mxu0 0
      %798 = vmatpush1.bf16.msra.mxu0 0
      %799 = vmatprep.subr.bf16.mxu0 0
      %800 = vmatpush1.bf16.msra.mxu0 0
      %801 = vmatprep.subr.bf16.mxu0 0
      %802 = vmatpush1.bf16.msra.mxu0 0
      %803 = vmatprep.subr.bf16.mxu0 0
      %804 = vmatpush1.bf16.msra.mxu0 0
      %805 = vmatprep.subr.bf16.mxu0 0
      %806 = vmatpush1.bf16.msra.mxu0 0
      %807 = vmatprep.subr.bf16.mxu0 0
      %808 = vmatpush1.bf16.msra.mxu0 0
      %809 = vmatprep.subr.bf16.mxu0 0
      %810 = vmatpush1.bf16.msra.mxu0 0
      %811 = vmatprep.subr.bf16.mxu0 0
      %812 = vmatpush1.bf16.msra.mxu0 0
      %813 = vmatprep.subr.bf16.mxu0 0
      %814 = vmatpush1.bf16.msra.mxu0 0
      %815 = vmatprep.subr.bf16.mxu0 0
      %816 = vmatpush1.bf16.msra.mxu0 0
      %817 = vmatprep.subr.bf16.mxu0 0
      %818 = vmatpush1.bf16.msra.mxu0 0
      %819 = vmatprep.subr.bf16.mxu0 0
      %820 = vmatpush1.bf16.msra.mxu0 0
      %821 = vmatprep.subr.bf16.mxu0 0
      %822 = vmatpush1.bf16.msra.mxu0 0
      %823 = vmatprep.mubr.bf16.mxu0 0
      %824 = vmatmul.mubr.bf16.gmra.mrb[0].mxu0 %v782
      %v825 = vpop.f32.mrb[0].mxu0
      %v826 = vadd.f32 0.0, %v825
      %v827 = vpop.f32.mrb[0].mxu0
      %v828 = vpop.f32.mrb[0].mxu0
      %v829 = vpop.f32.mrb[0].mxu0
      %830 = vdwg.mxu0
      %831 = vrot.lane.b32.xlu0 %v702, 64
      %v832 = vpop.permute.xlu0 %831
      %v834 = vsel %vm780, %v777, 0
      %v837 = vand.u32 %v832, %v787
      %839 = vmatprep.subr.bf16.mxu0 0
      %840 = vmatpush1.bf16.msra.mxu0 %v837
      %841 = vmatprep.subr.bf16.mxu0 0
      %842 = vmatpush1.bf16.msra.mxu0 0
      %843 = vmatprep.subr.bf16.mxu0 0
      %844 = vmatpush1.bf16.msra.mxu0 0
      %845 = vmatprep.subr.bf16.mxu0 0
      %846 = vmatpush1.bf16.msra.mxu0 0
      %847 = vmatprep.subr.bf16.mxu0 0
      %848 = vmatpush1.bf16.msra.mxu0 0
      %849 = vmatprep.subr.bf16.mxu0 0
      %850 = vmatpush1.bf16.msra.mxu0 0
      %851 = vmatprep.subr.bf16.mxu0 0
      %852 = vmatpush1.bf16.msra.mxu0 0
      %853 = vmatprep.subr.bf16.mxu0 0
      %854 = vmatpush1.bf16.msra.mxu0 0
      %855 = vmatprep.subr.bf16.mxu0 0
      %856 = vmatpush1.bf16.msra.mxu0 0
      %857 = vmatprep.subr.bf16.mxu0 0
      %858 = vmatpush1.bf16.msra.mxu0 0
      %859 = vmatprep.subr.bf16.mxu0 0
      %860 = vmatpush1.bf16.msra.mxu0 0
      %861 = vmatprep.subr.bf16.mxu0 0
      %862 = vmatpush1.bf16.msra.mxu0 0
      %863 = vmatprep.subr.bf16.mxu0 0
      %864 = vmatpush1.bf16.msra.mxu0 0
      %865 = vmatprep.subr.bf16.mxu0 0
      %866 = vmatpush1.bf16.msra.mxu0 0
      %867 = vmatprep.subr.bf16.mxu0 0
      %868 = vmatpush1.bf16.msra.mxu0 0
      %869 = vmatprep.subr.bf16.mxu0 0
      %870 = vmatpush1.bf16.msra.mxu0 0
      %871 = vmatprep.mubr.bf16.mxu0 0
      %872 = vmatmul.mubr.bf16.gmra.mrb[0].mxu0 %v834
      %v873 = vpop.f32.mrb[0].mxu0
      %v874 = vadd.f32 0.0, %v873
      %v875 = vpop.f32.mrb[0].mxu0
      %v876 = vpop.f32.mrb[0].mxu0
      %v877 = vpop.f32.mrb[0].mxu0
      %878 = vdwg.mxu0
      %v881 = vcombine.high %v826, %v826
      %v883 = vunpack.c.l.s4 1966171168
      %v884 = vunpack.c.0.s8 %v883
      %v885 = vlaneseq
      %v886 = vshrl.u32 %v885, 7
      %v887 = vsub.s32 %v884, %v886
      %v888 = vrot.slane %v826, %v887
      %v890 = vunpack.c.l.s4 1966171168
      %v891 = vunpack.c.0.s8 %v890
      %v892 = vlaneseq
      %v893 = vshrl.u32 %v892, 7
      %v894 = vsub.s32 %v891, %v893
      %v895 = vrot.slane %v881, %v894
      %v896 = vcombine.high %v888, %v888
      %v898 = vunpack.c.l.s4 1966171168
      %v899 = vunpack.c.0.s8 %v898
      %v900 = vlaneseq
      %v901 = vshrl.u32 %v900, 7
      %v902 = vsub.s32 %v899, %v901
      %v903 = vrot.slane %v888, %v902
      %v905 = vunpack.c.l.s4 1966171168
      %v906 = vunpack.c.0.s8 %v905
      %v907 = vlaneseq
      %v908 = vshrl.u32 %v907, 7
      %v909 = vsub.s32 %v906, %v908
      %v910 = vrot.slane %v895, %v909
      %v912 = vunpack.c.l.s4 1966171168
      %v913 = vunpack.c.0.s8 %v912
      %v914 = vlaneseq
      %v915 = vshrl.u32 %v914, 7
      %v916 = vsub.s32 %v913, %v915
      %v917 = vrot.slane %v896, %v916
      %v918 = vcombine.high %v903, %v903
      %v919 = vcombine.high %v917, %v917
      %v920 = vcombine.high %v874, %v874
      %v922 = vunpack.c.l.s4 1966171168
      %v923 = vunpack.c.0.s8 %v922
      %v924 = vlaneseq
      %v925 = vshrl.u32 %v924, 7
      %v926 = vsub.s32 %v923, %v925
      %v927 = vrot.slane %v874, %v926
      %v929 = vunpack.c.l.s4 1966171168
      %v930 = vunpack.c.0.s8 %v929
      %v931 = vlaneseq
      %v932 = vshrl.u32 %v931, 7
      %v933 = vsub.s32 %v930, %v932
      %v934 = vrot.slane %v920, %v933
      %v935 = vcombine.high %v927, %v927
      %v937 = vunpack.c.l.s4 1966171168
      %v938 = vunpack.c.0.s8 %v937
      %v939 = vlaneseq
      %v940 = vshrl.u32 %v939, 7
      %v941 = vsub.s32 %v938, %v940
      %v942 = vrot.slane %v927, %v941
      %v944 = vunpack.c.l.s4 1966171168
      %v945 = vunpack.c.0.s8 %v944
      %v946 = vlaneseq
      %v947 = vshrl.u32 %v946, 7
      %v948 = vsub.s32 %v945, %v947
      %v949 = vrot.slane %v934, %v948
      %v951 = vunpack.c.l.s4 1966171168
      %v952 = vunpack.c.0.s8 %v951
      %v953 = vlaneseq
      %v954 = vshrl.u32 %v953, 7
      %v955 = vsub.s32 %v952, %v954
      %v956 = vrot.slane %v935, %v955
      %v957 = vcombine.high %v942, %v942
      %v958 = vcombine.high %v956, %v956
      %v959 = vcombine.low %v903, %v917
      %v960 = vcombine.low %v918, %v919
      %v961 = vcombine.low %v910, %v942
      %v962 = vcombine.low %v956, %v957
      %v964 = vunpack.c.l.s4 1966171168
      %v965 = vunpack.c.0.s8 %v964
      %v966 = vlaneseq
      %v967 = vshrl.u32 %v966, 7
      %v968 = vsub.s32 %v965, %v967
      %v969 = vrot.slane %v959, %v968
      %v971 = vunpack.c.l.s4 1966171168
      %v972 = vunpack.c.0.s8 %v971
      %v973 = vlaneseq
      %v974 = vshrl.u32 %v973, 7
      %v975 = vsub.s32 %v972, %v974
      %v976 = vrot.slane %v960, %v975
      %v978 = vunpack.c.l.s4 1966171168
      %v979 = vunpack.c.0.s8 %v978
      %v980 = vlaneseq
      %v981 = vshrl.u32 %v980, 7
      %v982 = vsub.s32 %v979, %v981
      %v983 = vrot.slane %v961, %v982
      %v985 = vunpack.c.l.s4 1966171168
      %v986 = vunpack.c.0.s8 %v985
      %v987 = vlaneseq
      %v988 = vshrl.u32 %v987, 7
      %v989 = vsub.s32 %v986, %v988
      %v990 = vrot.slane %v962, %v989
      %v991 = vcombine.low %v969, %v976
      %v992 = vcombine.low %v983, %v990
      %v994 = vunpack.c.l.s4 1966171168
      %v995 = vunpack.c.0.s8 %v994
      %v996 = vlaneseq
      %v997 = vshrl.u32 %v996, 7
      %v998 = vsub.s32 %v995, %v997
      %v999 = vrot.slane %v991, %v998
      %v1001 = vunpack.c.l.s4 1966171168
      %v1002 = vunpack.c.0.s8 %v1001
      %v1003 = vlaneseq
      %v1004 = vshrl.u32 %v1003, 7
      %v1005 = vsub.s32 %v1002, %v1004
      %v1006 = vrot.slane %v992, %v1005
      %v1007 = vcombine.low %v999, %v1006
      %v1008 = vcombine.low %v958, %v949
      %v1010 = vunpack.c.l.s4 1966171168
      %v1011 = vunpack.c.0.s8 %v1010
      %v1012 = vlaneseq
      %v1013 = vshrl.u32 %v1012, 7
      %v1014 = vsub.s32 %v1011, %v1013
      %v1015 = vrot.slane %v1008, %v1014
      %v1017 = vunpack.c.l.s4 1966171168
      %v1018 = vunpack.c.0.s8 %v1017
      %v1019 = vlaneseq
      %v1020 = vshrl.u32 %v1019, 7
      %v1021 = vsub.s32 %v1018, %v1020
      %v1022 = vrot.slane %v1015, %v1021
      %1025 = vst.msk [vmem:[#allocation2] sm:$0xff] %vm630, %v1007
      %vm1026 = vcmask 58368
      %1027 = vst.msk [vmem:[#allocation2 + $0x8] sm:$0x3] %vm1026, %v1022
      %1028 = vrot.lane.b32.xlu0 %v627, 120
      %v1029 = vpop.permute.xlu0 %1028
      %1030 = vrot.lane.b32.xlu0 %v627, 88
      %v1031 = vpop.permute.xlu0 %1030
      %v1033 = vsel %vm630, %v1029, 0
      %v1036 = vsel %vm630, %v1031, 0
      %1038 = vmatprep.subr.bf16.mxu0 0
      %1039 = vmatpush1.bf16.xpose.msra.mxu0 %v1036
      %1040 = vmatprep.subr.bf16.mxu0 0
      %1041 = vmatpush1.bf16.xpose.msra.mxu0 0
      %1042 = vmatprep.subr.bf16.mxu0 0
      %1043 = vmatpush1.bf16.xpose.msra.mxu0 0
      %1044 = vmatprep.subr.bf16.mxu0 0
      %1045 = vmatpush1.bf16.xpose.msra.mxu0 0
      %1046 = vmatprep.subr.bf16.mxu0 0
      %1047 = vmatpush1.bf16.xpose.msra.mxu0 0
      %1048 = vmatprep.subr.bf16.mxu0 0
      %1049 = vmatpush1.bf16.xpose.msra.mxu0 0
      %1050 = vmatprep.subr.bf16.mxu0 0
      %1051 = vmatpush1.bf16.xpose.msra.mxu0 0
      %1052 = vmatprep.subr.bf16.mxu0 0
      %1053 = vmatpush1.bf16.xpose.msra.mxu0 0
      %1054 = vmatprep.subr.bf16.mxu0 0
      %1055 = vmatpush1.bf16.xpose.msra.mxu0 0
      %1056 = vmatprep.subr.bf16.mxu0 0
      %1057 = vmatpush1.bf16.xpose.msra.mxu0 0
      %1058 = vmatprep.subr.bf16.mxu0 0
      %1059 = vmatpush1.bf16.xpose.msra.mxu0 0
      %1060 = vmatprep.subr.bf16.mxu0 0
      %1061 = vmatpush1.bf16.xpose.msra.mxu0 0
      %1062 = vmatprep.subr.bf16.mxu0 0
      %1063 = vmatpush1.bf16.xpose.msra.mxu0 0
      %1064 = vmatprep.subr.bf16.mxu0 0
      %1065 = vmatpush1.bf16.xpose.msra.mxu0 0
      %1066 = vmatprep.subr.bf16.mxu0 0
      %1067 = vmatpush1.bf16.xpose.msra.mxu0 0
      %1068 = vmatprep.subr.bf16.mxu0 0
      %1069 = vmatpush1.bf16.xpose.msra.mxu0 0
      %1070 = vmatprep.mubr.bf16.mxu0 0
      %1071 = vmatmul.mubr.bf16.gmra.mrb[0].mxu0 %v1033
      %v1072 = vpop.f32.mrb[0].mxu0
      %v1073 = vadd.f32 0.0, %v1072
      %v1074 = vpop.f32.mrb[0].mxu0
      %v1075 = vpop.f32.mrb[0].mxu0
      %v1076 = vpop.f32.mrb[0].mxu0
      %1077 = vdwg.mxu0
      %1078 = vrot.lane.b32.xlu0 %v702, 120
      %v1079 = vpop.permute.xlu0 %1078
      %1080 = vrot.lane.b32.xlu0 %v702, 88
      %v1081 = vpop.permute.xlu0 %1080
      %v1083 = vsel %vm630, %v1079, 0
      %v1086 = vsel %vm630, %v1081, 0
      %1088 = vmatprep.subr.bf16.mxu0 0
      %1089 = vmatpush1.bf16.xpose.msra.mxu0 %v1086
      %1090 = vmatprep.subr.bf16.mxu0 0
      %1091 = vmatpush1.bf16.xpose.msra.mxu0 0
      %1092 = vmatprep.subr.bf16.mxu0 0
      %1093 = vmatpush1.bf16.xpose.msra.mxu0 0
      %1094 = vmatprep.subr.bf16.mxu0 0
      %1095 = vmatpush1.bf16.xpose.msra.mxu0 0
      %1096 = vmatprep.subr.bf16.mxu0 0
      %1097 = vmatpush1.bf16.xpose.msra.mxu0 0
      %1098 = vmatprep.subr.bf16.mxu0 0
      %1099 = vmatpush1.bf16.xpose.msra.mxu0 0
      %1100 = vmatprep.subr.bf16.mxu0 0
      %1101 = vmatpush1.bf16.xpose.msra.mxu0 0
      %1102 = vmatprep.subr.bf16.mxu0 0
      %1103 = vmatpush1.bf16.xpose.msra.mxu0 0
      %1104 = vmatprep.subr.bf16.mxu0 0
      %1105 = vmatpush1.bf16.xpose.msra.mxu0 0
      %1106 = vmatprep.subr.bf16.mxu0 0
      %1107 = vmatpush1.bf16.xpose.msra.mxu0 0
      %1108 = vmatprep.subr.bf16.mxu0 0
      %1109 = vmatpush1.bf16.xpose.msra.mxu0 0
      %1110 = vmatprep.subr.bf16.mxu0 0
      %1111 = vmatpush1.bf16.xpose.msra.mxu0 0
      %1112 = vmatprep.subr.bf16.mxu0 0
      %1113 = vmatpush1.bf16.xpose.msra.mxu0 0
      %1114 = vmatprep.subr.bf16.mxu0 0
      %1115 = vmatpush1.bf16.xpose.msra.mxu0 0
      %1116 = vmatprep.subr.bf16.mxu0 0
      %1117 = vmatpush1.bf16.xpose.msra.mxu0 0
      %1118 = vmatprep.subr.bf16.mxu0 0
      %1119 = vmatpush1.bf16.xpose.msra.mxu0 0
      %1120 = vmatprep.mubr.bf16.mxu0 0
      %1121 = vmatmul.mubr.bf16.gmra.mrb[0].mxu0 %v1083
      %v1122 = vpop.f32.mrb[0].mxu0
      %v1123 = vadd.f32 0.0, %v1122
      %v1124 = vpop.f32.mrb[0].mxu0
      %v1125 = vpop.f32.mrb[0].mxu0
      %v1126 = vpop.f32.mrb[0].mxu0
      %1127 = vdwg.mxu0
      %v1128 = vmul.f32 %v1073, 0.35355338
      %v1129 = vmul.f32 %v1123, 0.35355338
      %v1130 = vsel %vm753, %v1128, -inf
      %1131 = vmax.xlane.f32.xlu0 %v1130
      %v1132 = vpop.xlane.xlu0 %1131
      %v1133 = vsel %vm753, %v1129, -inf
      %1134 = vmax.xlane.f32.xlu0 %v1133
      %v1135 = vpop.xlane.xlu0 %1134
      %v1136 = vsub.f32 %v1128, %v1132
      %v1137 = vsub.f32 %v1129, %v1135
      %v1138 = vmul.f32 %v1136, 1.442695
      %v1139 = vpow.pop %v1138
      %v1140 = vmul.f32 %v1137, 1.442695
      %v1141 = vpow.pop %v1140
      %v1142 = vsel %vm753, %v1139, 0.0
      %1143 = vadd.xlane.f32.xlu0 %v1142
      %v1144 = vpop.xlane.xlu0 %1143
      %v1145 = vsel %vm753, %v1141, 0.0
      %1146 = vadd.xlane.f32.xlu0 %v1145
      %v1147 = vpop.xlane.xlu0 %1146
      %v1148 = vrcp.pop %v1144
      %v1149 = vrcp.pop %v1147
      %v1150 = vmul.f32 %v1139, %v1148
      %v1151 = vmul.f32 %v1141, %v1149
      %v1152 = vpack.c.bf16 %v1150, %v1150
      %v1153 = vpack.c.bf16 %v1151, %v1151
      %1154 = vrot.lane.b32.xlu0 %v627, 56
      %v1155 = vpop.permute.xlu0 %1154
      %v1157 = vsel %vm780, %v1152, 0
      %v1160 = vand.u32 %v1155, %v787
      %1162 = vmatprep.subr.bf16.mxu0 0
      %1163 = vmatpush1.bf16.msra.mxu0 %v1160
      %1164 = vmatprep.subr.bf16.mxu0 0
      %1165 = vmatpush1.bf16.msra.mxu0 0
      %1166 = vmatprep.subr.bf16.mxu0 0
      %1167 = vmatpush1.bf16.msra.mxu0 0
      %1168 = vmatprep.subr.bf16.mxu0 0
      %1169 = vmatpush1.bf16.msra.mxu0 0
      %1170 = vmatprep.subr.bf16.mxu0 0
      %1171 = vmatpush1.bf16.msra.mxu0 0
      %1172 = vmatprep.subr.bf16.mxu0 0
      %1173 = vmatpush1.bf16.msra.mxu0 0
      %1174 = vmatprep.subr.bf16.mxu0 0
      %1175 = vmatpush1.bf16.msra.mxu0 0
      %1176 = vmatprep.subr.bf16.mxu0 0
      %1177 = vmatpush1.bf16.msra.mxu0 0
      %1178 = vmatprep.subr.bf16.mxu0 0
      %1179 = vmatpush1.bf16.msra.mxu0 0
      %1180 = vmatprep.subr.bf16.mxu0 0
      %1181 = vmatpush1.bf16.msra.mxu0 0
      %1182 = vmatprep.subr.bf16.mxu0 0
      %1183 = vmatpush1.bf16.msra.mxu0 0
      %1184 = vmatprep.subr.bf16.mxu0 0
      %1185 = vmatpush1.bf16.msra.mxu0 0
      %1186 = vmatprep.subr.bf16.mxu0 0
      %1187 = vmatpush1.bf16.msra.mxu0 0
      %1188 = vmatprep.subr.bf16.mxu0 0
      %1189 = vmatpush1.bf16.msra.mxu0 0
      %1190 = vmatprep.subr.bf16.mxu0 0
      %1191 = vmatpush1.bf16.msra.mxu0 0
      %1192 = vmatprep.subr.bf16.mxu0 0
      %1193 = vmatpush1.bf16.msra.mxu0 0
      %1194 = vmatprep.mubr.bf16.mxu0 0
      %1195 = vmatmul.mubr.bf16.gmra.mrb[0].mxu0 %v1157
      %v1196 = vpop.f32.mrb[0].mxu0
      %v1197 = vadd.f32 0.0, %v1196
      %v1198 = vpop.f32.mrb[0].mxu0
      %v1199 = vpop.f32.mrb[0].mxu0
      %v1200 = vpop.f32.mrb[0].mxu0
      %1201 = vdwg.mxu0
      %1202 = vrot.lane.b32.xlu0 %v702, 56
      %v1203 = vpop.permute.xlu0 %1202
      %v1205 = vsel %vm780, %v1153, 0
      %v1208 = vand.u32 %v1203, %v787
      %1210 = vmatprep.subr.bf16.mxu0 0
      %1211 = vmatpush1.bf16.msra.mxu0 %v1208
      %1212 = vmatprep.subr.bf16.mxu0 0
      %1213 = vmatpush1.bf16.msra.mxu0 0
      %1214 = vmatprep.subr.bf16.mxu0 0
      %1215 = vmatpush1.bf16.msra.mxu0 0
      %1216 = vmatprep.subr.bf16.mxu0 0
      %1217 = vmatpush1.bf16.msra.mxu0 0
      %1218 = vmatprep.subr.bf16.mxu0 0
      %1219 = vmatpush1.bf16.msra.mxu0 0
      %1220 = vmatprep.subr.bf16.mxu0 0
      %1221 = vmatpush1.bf16.msra.mxu0 0
      %1222 = vmatprep.subr.bf16.mxu0 0
      %1223 = vmatpush1.bf16.msra.mxu0 0
      %1224 = vmatprep.subr.bf16.mxu0 0
      %1225 = vmatpush1.bf16.msra.mxu0 0
      %1226 = vmatprep.subr.bf16.mxu0 0
      %1227 = vmatpush1.bf16.msra.mxu0 0
      %1228 = vmatprep.subr.bf16.mxu0 0
      %1229 = vmatpush1.bf16.msra.mxu0 0
      %1230 = vmatprep.subr.bf16.mxu0 0
      %1231 = vmatpush1.bf16.msra.mxu0 0
      %1232 = vmatprep.subr.bf16.mxu0 0
      %1233 = vmatpush1.bf16.msra.mxu0 0
      %1234 = vmatprep.subr.bf16.mxu0 0
      %1235 = vmatpush1.bf16.msra.mxu0 0
      %1236 = vmatprep.subr.bf16.mxu0 0
      %1237 = vmatpush1.bf16.msra.mxu0 0
      %1238 = vmatprep.subr.bf16.mxu0 0
      %1239 = vmatpush1.bf16.msra.mxu0 0
      %1240 = vmatprep.subr.bf16.mxu0 0
      %1241 = vmatpush1.bf16.msra.mxu0 0
      %1242 = vmatprep.mubr.bf16.mxu0 0
      %1243 = vmatmul.mubr.bf16.gmra.mrb[0].mxu0 %v1205
      %v1244 = vpop.f32.mrb[0].mxu0
      %v1245 = vadd.f32 0.0, %v1244
      %v1246 = vpop.f32.mrb[0].mxu0
      %v1247 = vpop.f32.mrb[0].mxu0
      %v1248 = vpop.f32.mrb[0].mxu0
      %1249 = vdwg.mxu0
      %v1252 = vcombine.high %v1197, %v1197
      %v1254 = vunpack.c.l.s4 1966171168
      %v1255 = vunpack.c.0.s8 %v1254
      %v1256 = vlaneseq
      %v1257 = vshrl.u32 %v1256, 7
      %v1258 = vsub.s32 %v1255, %v1257
      %v1259 = vrot.slane %v1197, %v1258
      %v1261 = vunpack.c.l.s4 1966171168
      %v1262 = vunpack.c.0.s8 %v1261
      %v1263 = vlaneseq
      %v1264 = vshrl.u32 %v1263, 7
      %v1265 = vsub.s32 %v1262, %v1264
      %v1266 = vrot.slane %v1252, %v1265
      %v1267 = vcombine.high %v1259, %v1259
      %v1269 = vunpack.c.l.s4 1966171168
      %v1270 = vunpack.c.0.s8 %v1269
      %v1271 = vlaneseq
      %v1272 = vshrl.u32 %v1271, 7
      %v1273 = vsub.s32 %v1270, %v1272
      %v1274 = vrot.slane %v1259, %v1273
      %v1276 = vunpack.c.l.s4 1966171168
      %v1277 = vunpack.c.0.s8 %v1276
      %v1278 = vlaneseq
      %v1279 = vshrl.u32 %v1278, 7
      %v1280 = vsub.s32 %v1277, %v1279
      %v1281 = vrot.slane %v1266, %v1280
      %v1283 = vunpack.c.l.s4 1966171168
      %v1284 = vunpack.c.0.s8 %v1283
      %v1285 = vlaneseq
      %v1286 = vshrl.u32 %v1285, 7
      %v1287 = vsub.s32 %v1284, %v1286
      %v1288 = vrot.slane %v1267, %v1287
      %v1289 = vcombine.high %v1274, %v1274
      %v1290 = vcombine.high %v1288, %v1288
      %v1291 = vcombine.high %v1245, %v1245
      %v1293 = vunpack.c.l.s4 1966171168
      %v1294 = vunpack.c.0.s8 %v1293
      %v1295 = vlaneseq
      %v1296 = vshrl.u32 %v1295, 7
      %v1297 = vsub.s32 %v1294, %v1296
      %v1298 = vrot.slane %v1245, %v1297
      %v1300 = vunpack.c.l.s4 1966171168
      %v1301 = vunpack.c.0.s8 %v1300
      %v1302 = vlaneseq
      %v1303 = vshrl.u32 %v1302, 7
      %v1304 = vsub.s32 %v1301, %v1303
      %v1305 = vrot.slane %v1291, %v1304
      %v1306 = vcombine.high %v1298, %v1298
      %v1308 = vunpack.c.l.s4 1966171168
      %v1309 = vunpack.c.0.s8 %v1308
      %v1310 = vlaneseq
      %v1311 = vshrl.u32 %v1310, 7
      %v1312 = vsub.s32 %v1309, %v1311
      %v1313 = vrot.slane %v1298, %v1312
      %v1315 = vunpack.c.l.s4 1966171168
      %v1316 = vunpack.c.0.s8 %v1315
      %v1317 = vlaneseq
      %v1318 = vshrl.u32 %v1317, 7
      %v1319 = vsub.s32 %v1316, %v1318
      %v1320 = vrot.slane %v1305, %v1319
      %v1322 = vunpack.c.l.s4 1966171168
      %v1323 = vunpack.c.0.s8 %v1322
      %v1324 = vlaneseq
      %v1325 = vshrl.u32 %v1324, 7
      %v1326 = vsub.s32 %v1323, %v1325
      %v1327 = vrot.slane %v1306, %v1326
      %v1328 = vcombine.high %v1313, %v1313
      %v1329 = vcombine.high %v1327, %v1327
      %v1330 = vcombine.low %v1274, %v1288
      %v1331 = vcombine.low %v1289, %v1290
      %v1332 = vcombine.low %v1281, %v1313
      %v1333 = vcombine.low %v1327, %v1328
      %v1335 = vunpack.c.l.s4 1966171168
      %v1336 = vunpack.c.0.s8 %v1335
      %v1337 = vlaneseq
      %v1338 = vshrl.u32 %v1337, 7
      %v1339 = vsub.s32 %v1336, %v1338
      %v1340 = vrot.slane %v1330, %v1339
      %v1342 = vunpack.c.l.s4 1966171168
      %v1343 = vunpack.c.0.s8 %v1342
      %v1344 = vlaneseq
      %v1345 = vshrl.u32 %v1344, 7
      %v1346 = vsub.s32 %v1343, %v1345
      %v1347 = vrot.slane %v1331, %v1346
      %v1349 = vunpack.c.l.s4 1966171168
      %v1350 = vunpack.c.0.s8 %v1349
      %v1351 = vlaneseq
      %v1352 = vshrl.u32 %v1351, 7
      %v1353 = vsub.s32 %v1350, %v1352
      %v1354 = vrot.slane %v1332, %v1353
      %v1356 = vunpack.c.l.s4 1966171168
      %v1357 = vunpack.c.0.s8 %v1356
      %v1358 = vlaneseq
      %v1359 = vshrl.u32 %v1358, 7
      %v1360 = vsub.s32 %v1357, %v1359
      %v1361 = vrot.slane %v1333, %v1360
      %v1362 = vcombine.low %v1340, %v1347
      %v1363 = vcombine.low %v1354, %v1361
      %v1365 = vunpack.c.l.s4 1966171168
      %v1366 = vunpack.c.0.s8 %v1365
      %v1367 = vlaneseq
      %v1368 = vshrl.u32 %v1367, 7
      %v1369 = vsub.s32 %v1366, %v1368
      %v1370 = vrot.slane %v1362, %v1369
      %v1372 = vunpack.c.l.s4 1966171168
      %v1373 = vunpack.c.0.s8 %v1372
      %v1374 = vlaneseq
      %v1375 = vshrl.u32 %v1374, 7
      %v1376 = vsub.s32 %v1373, %v1375
      %v1377 = vrot.slane %v1363, %v1376
      %v1378 = vcombine.low %v1370, %v1377
      %v1379 = vcombine.low %v1329, %v1320
      %v1381 = vunpack.c.l.s4 1966171168
      %v1382 = vunpack.c.0.s8 %v1381
      %v1383 = vlaneseq
      %v1384 = vshrl.u32 %v1383, 7
      %v1385 = vsub.s32 %v1382, %v1384
      %v1386 = vrot.slane %v1379, %v1385
      %v1388 = vunpack.c.l.s4 1966171168
      %v1389 = vunpack.c.0.s8 %v1388
      %v1390 = vlaneseq
      %v1391 = vshrl.u32 %v1390, 7
      %v1392 = vsub.s32 %v1389, %v1391
      %v1393 = vrot.slane %v1386, %v1392
      %1394 = vrot.lane.b32.xlu0 %v1378, 8
      %v1395 = vpop.permute.xlu0 %1394
      %1396 = vrot.lane.b32.xlu0 %v1393, 8
      %v1397 = vpop.permute.xlu0 %1396
      %vm1400 = vcmask 130112
      %1401 = vst.msk [vmem:[#allocation2] sm:$0xff] %vm1400, %v1395
      %vm1402 = vcmask 123968
      %1403 = vst.msk [vmem:[#allocation2 + $0x8] sm:$0x3] %vm1402, %v1397
      %1404 = vrot.lane.b32.xlu0 %v627, 112
      %v1405 = vpop.permute.xlu0 %1404
      %1406 = vrot.lane.b32.xlu0 %v627, 80
      %v1407 = vpop.permute.xlu0 %1406
      %v1409 = vsel %vm630, %v1405, 0
      %v1412 = vsel %vm630, %v1407, 0
      %1414 = vmatprep.subr.bf16.mxu0 0
      %1415 = vmatpush1.bf16.xpose.msra.mxu0 %v1412
      %1416 = vmatprep.subr.bf16.mxu0 0
      %1417 = vmatpush1.bf16.xpose.msra.mxu0 0
      %1418 = vmatprep.subr.bf16.mxu0 0
      %1419 = vmatpush1.bf16.xpose.msra.mxu0 0
      %1420 = vmatprep.subr.bf16.mxu0 0
      %1421 = vmatpush1.bf16.xpose.msra.mxu0 0
      %1422 = vmatprep.subr.bf16.mxu0 0
      %1423 = vmatpush1.bf16.xpose.msra.mxu0 0
      %1424 = vmatprep.subr.bf16.mxu0 0
      %1425 = vmatpush1.bf16.xpose.msra.mxu0 0
      %1426 = vmatprep.subr.bf16.mxu0 0
      %1427 = vmatpush1.bf16.xpose.msra.mxu0 0
      %1428 = vmatprep.subr.bf16.mxu0 0
      %1429 = vmatpush1.bf16.xpose.msra.mxu0 0
      %1430 = vmatprep.subr.bf16.mxu0 0
      %1431 = vmatpush1.bf16.xpose.msra.mxu0 0
      %1432 = vmatprep.subr.bf16.mxu0 0
      %1433 = vmatpush1.bf16.xpose.msra.mxu0 0
      %1434 = vmatprep.subr.bf16.mxu0 0
      %1435 = vmatpush1.bf16.xpose.msra.mxu0 0
      %1436 = vmatprep.subr.bf16.mxu0 0
      %1437 = vmatpush1.bf16.xpose.msra.mxu0 0
      %1438 = vmatprep.subr.bf16.mxu0 0
      %1439 = vmatpush1.bf16.xpose.msra.mxu0 0
      %1440 = vmatprep.subr.bf16.mxu0 0
      %1441 = vmatpush1.bf16.xpose.msra.mxu0 0
      %1442 = vmatprep.subr.bf16.mxu0 0
      %1443 = vmatpush1.bf16.xpose.msra.mxu0 0
      %1444 = vmatprep.subr.bf16.mxu0 0
      %1445 = vmatpush1.bf16.xpose.msra.mxu0 0
      %1446 = vmatprep.mubr.bf16.mxu0 0
      %1447 = vmatmul.mubr.bf16.gmra.mrb[0].mxu0 %v1409
      %v1448 = vpop.f32.mrb[0].mxu0
      %v1449 = vadd.f32 0.0, %v1448
      %v1450 = vpop.f32.mrb[0].mxu0
      %v1451 = vpop.f32.mrb[0].mxu0
      %v1452 = vpop.f32.mrb[0].mxu0
      %1453 = vdwg.mxu0
      %1454 = vrot.lane.b32.xlu0 %v702, 112
      %v1455 = vpop.permute.xlu0 %1454
      %1456 = vrot.lane.b32.xlu0 %v702, 80
      %v1457 = vpop.permute.xlu0 %1456
      %v1459 = vsel %vm630, %v1455, 0
      %v1462 = vsel %vm630, %v1457, 0
      %1464 = vmatprep.subr.bf16.mxu0 0
      %1465 = vmatpush1.bf16.xpose.msra.mxu0 %v1462
      %1466 = vmatprep.subr.bf16.mxu0 0
      %1467 = vmatpush1.bf16.xpose.msra.mxu0 0
      %1468 = vmatprep.subr.bf16.mxu0 0
      %1469 = vmatpush1.bf16.xpose.msra.mxu0 0
      %1470 = vmatprep.subr.bf16.mxu0 0
      %1471 = vmatpush1.bf16.xpose.msra.mxu0 0
      %1472 = vmatprep.subr.bf16.mxu0 0
      %1473 = vmatpush1.bf16.xpose.msra.mxu0 0
      %1474 = vmatprep.subr.bf16.mxu0 0
      %1475 = vmatpush1.bf16.xpose.msra.mxu0 0
      %1476 = vmatprep.subr.bf16.mxu0 0
      %1477 = vmatpush1.bf16.xpose.msra.mxu0 0
      %1478 = vmatprep.subr.bf16.mxu0 0
      %1479 = vmatpush1.bf16.xpose.msra.mxu0 0
      %1480 = vmatprep.subr.bf16.mxu0 0
      %1481 = vmatpush1.bf16.xpose.msra.mxu0 0
      %1482 = vmatprep.subr.bf16.mxu0 0
      %1483 = vmatpush1.bf16.xpose.msra.mxu0 0
      %1484 = vmatprep.subr.bf16.mxu0 0
      %1485 = vmatpush1.bf16.xpose.msra.mxu0 0
      %1486 = vmatprep.subr.bf16.mxu0 0
      %1487 = vmatpush1.bf16.xpose.msra.mxu0 0
      %1488 = vmatprep.subr.bf16.mxu0 0
      %1489 = vmatpush1.bf16.xpose.msra.mxu0 0
      %1490 = vmatprep.subr.bf16.mxu0 0
      %1491 = vmatpush1.bf16.xpose.msra.mxu0 0
      %1492 = vmatprep.subr.bf16.mxu0 0
      %1493 = vmatpush1.bf16.xpose.msra.mxu0 0
      %1494 = vmatprep.subr.bf16.mxu0 0
      %1495 = vmatpush1.bf16.xpose.msra.mxu0 0
      %1496 = vmatprep.mubr.bf16.mxu0 0
      %1497 = vmatmul.mubr.bf16.gmra.mrb[0].mxu0 %v1459
      %v1498 = vpop.f32.mrb[0].mxu0
      %v1499 = vadd.f32 0.0, %v1498
      %v1500 = vpop.f32.mrb[0].mxu0
      %v1501 = vpop.f32.mrb[0].mxu0
      %v1502 = vpop.f32.mrb[0].mxu0
      %1503 = vdwg.mxu0
      %v1504 = vmul.f32 %v1449, 0.35355338
      %v1505 = vmul.f32 %v1499, 0.35355338
      %v1506 = vsel %vm753, %v1504, -inf
      %1507 = vmax.xlane.f32.xlu0 %v1506
      %v1508 = vpop.xlane.xlu0 %1507
      %v1509 = vsel %vm753, %v1505, -inf
      %1510 = vmax.xlane.f32.xlu0 %v1509
      %v1511 = vpop.xlane.xlu0 %1510
      %v1512 = vsub.f32 %v1504, %v1508
      %v1513 = vsub.f32 %v1505, %v1511
      %v1514 = vmul.f32 %v1512, 1.442695
      %v1515 = vpow.pop %v1514
      %v1516 = vmul.f32 %v1513, 1.442695
      %v1517 = vpow.pop %v1516
      %v1518 = vsel %vm753, %v1515, 0.0
      %1519 = vadd.xlane.f32.xlu0 %v1518
      %v1520 = vpop.xlane.xlu0 %1519
      %v1521 = vsel %vm753, %v1517, 0.0
      %1522 = vadd.xlane.f32.xlu0 %v1521
      %v1523 = vpop.xlane.xlu0 %1522
      %v1524 = vrcp.pop %v1520
      %v1525 = vrcp.pop %v1523
      %v1526 = vmul.f32 %v1515, %v1524
      %v1527 = vmul.f32 %v1517, %v1525
      %v1528 = vpack.c.bf16 %v1526, %v1526
      %v1529 = vpack.c.bf16 %v1527, %v1527
      %1530 = vrot.lane.b32.xlu0 %v627, 48
      %v1531 = vpop.permute.xlu0 %1530
      %v1533 = vsel %vm780, %v1528, 0
      %v1536 = vand.u32 %v1531, %v787
      %1538 = vmatprep.subr.bf16.mxu0 0
      %1539 = vmatpush1.bf16.msra.mxu0 %v1536
      %1540 = vmatprep.subr.bf16.mxu0 0
      %1541 = vmatpush1.bf16.msra.mxu0 0
      %1542 = vmatprep.subr.bf16.mxu0 0
      %1543 = vmatpush1.bf16.msra.mxu0 0
      %1544 = vmatprep.subr.bf16.mxu0 0
      %1545 = vmatpush1.bf16.msra.mxu0 0
      %1546 = vmatprep.subr.bf16.mxu0 0
      %1547 = vmatpush1.bf16.msra.mxu0 0
      %1548 = vmatprep.subr.bf16.mxu0 0
      %1549 = vmatpush1.bf16.msra.mxu0 0
      %1550 = vmatprep.subr.bf16.mxu0 0
      %1551 = vmatpush1.bf16.msra.mxu0 0
      %1552 = vmatprep.subr.bf16.mxu0 0
      %1553 = vmatpush1.bf16.msra.mxu0 0
      %1554 = vmatprep.subr.bf16.mxu0 0
      %1555 = vmatpush1.bf16.msra.mxu0 0
      %1556 = vmatprep.subr.bf16.mxu0 0
      %1557 = vmatpush1.bf16.msra.mxu0 0
      %1558 = vmatprep.subr.bf16.mxu0 0
      %1559 = vmatpush1.bf16.msra.mxu0 0
      %1560 = vmatprep.subr.bf16.mxu0 0
      %1561 = vmatpush1.bf16.msra.mxu0 0
      %1562 = vmatprep.subr.bf16.mxu0 0
      %1563 = vmatpush1.bf16.msra.mxu0 0
      %1564 = vmatprep.subr.bf16.mxu0 0
      %1565 = vmatpush1.bf16.msra.mxu0 0
      %1566 = vmatprep.subr.bf16.mxu0 0
      %1567 = vmatpush1.bf16.msra.mxu0 0
      %1568 = vmatprep.subr.bf16.mxu0 0
      %1569 = vmatpush1.bf16.msra.mxu0 0
      %1570 = vmatprep.mubr.bf16.mxu0 0
      %1571 = vmatmul.mubr.bf16.gmra.mrb[0].mxu0 %v1533
      %v1572 = vpop.f32.mrb[0].mxu0
      %v1573 = vadd.f32 0.0, %v1572
      %v1574 = vpop.f32.mrb[0].mxu0
      %v1575 = vpop.f32.mrb[0].mxu0
      %v1576 = vpop.f32.mrb[0].mxu0
      %1577 = vdwg.mxu0
      %1578 = vrot.lane.b32.xlu0 %v702, 48
      %v1579 = vpop.permute.xlu0 %1578
      %v1581 = vsel %vm780, %v1529, 0
      %v1584 = vand.u32 %v1579, %v787
      %1586 = vmatprep.subr.bf16.mxu0 0
      %1587 = vmatpush1.bf16.msra.mxu0 %v1584
      %1588 = vmatprep.subr.bf16.mxu0 0
      %1589 = vmatpush1.bf16.msra.mxu0 0
      %1590 = vmatprep.subr.bf16.mxu0 0
      %1591 = vmatpush1.bf16.msra.mxu0 0
      %1592 = vmatprep.subr.bf16.mxu0 0
      %1593 = vmatpush1.bf16.msra.mxu0 0
      %1594 = vmatprep.subr.bf16.mxu0 0
      %1595 = vmatpush1.bf16.msra.mxu0 0
      %1596 = vmatprep.subr.bf16.mxu0 0
      %1597 = vmatpush1.bf16.msra.mxu0 0
      %1598 = vmatprep.subr.bf16.mxu0 0
      %1599 = vmatpush1.bf16.msra.mxu0 0
      %1600 = vmatprep.subr.bf16.mxu0 0
      %1601 = vmatpush1.bf16.msra.mxu0 0
      %1602 = vmatprep.subr.bf16.mxu0 0
      %1603 = vmatpush1.bf16.msra.mxu0 0
      %1604 = vmatprep.subr.bf16.mxu0 0
      %1605 = vmatpush1.bf16.msra.mxu0 0
      %1606 = vmatprep.subr.bf16.mxu0 0
      %1607 = vmatpush1.bf16.msra.mxu0 0
      %1608 = vmatprep.subr.bf16.mxu0 0
      %1609 = vmatpush1.bf16.msra.mxu0 0
      %1610 = vmatprep.subr.bf16.mxu0 0
      %1611 = vmatpush1.bf16.msra.mxu0 0
      %1612 = vmatprep.subr.bf16.mxu0 0
      %1613 = vmatpush1.bf16.msra.mxu0 0
      %1614 = vmatprep.subr.bf16.mxu0 0
      %1615 = vmatpush1.bf16.msra.mxu0 0
      %1616 = vmatprep.subr.bf16.mxu0 0
      %1617 = vmatpush1.bf16.msra.mxu0 0
      %1618 = vmatprep.mubr.bf16.mxu0 0
      %1619 = vmatmul.mubr.bf16.gmra.mrb[0].mxu0 %v1581
      %v1620 = vpop.f32.mrb[0].mxu0
      %v1621 = vadd.f32 0.0, %v1620
      %v1622 = vpop.f32.mrb[0].mxu0
      %v1623 = vpop.f32.mrb[0].mxu0
      %v1624 = vpop.f32.mrb[0].mxu0
      %1625 = vdwg.mxu0
      %v1628 = vcombine.high %v1573, %v1573
      %v1630 = vunpack.c.l.s4 1966171168
      %v1631 = vunpack.c.0.s8 %v1630
      %v1632 = vlaneseq
      %v1633 = vshrl.u32 %v1632, 7
      %v1634 = vsub.s32 %v1631, %v1633
      %v1635 = vrot.slane %v1573, %v1634
      %v1637 = vunpack.c.l.s4 1966171168
      %v1638 = vunpack.c.0.s8 %v1637
      %v1639 = vlaneseq
      %v1640 = vshrl.u32 %v1639, 7
      %v1641 = vsub.s32 %v1638, %v1640
      %v1642 = vrot.slane %v1628, %v1641
      %v1643 = vcombine.high %v1635, %v1635
      %v1645 = vunpack.c.l.s4 1966171168
      %v1646 = vunpack.c.0.s8 %v1645
      %v1647 = vlaneseq
      %v1648 = vshrl.u32 %v1647, 7
      %v1649 = vsub.s32 %v1646, %v1648
      %v1650 = vrot.slane %v1635, %v1649
      %v1652 = vunpack.c.l.s4 1966171168
      %v1653 = vunpack.c.0.s8 %v1652
      %v1654 = vlaneseq
      %v1655 = vshrl.u32 %v1654, 7
      %v1656 = vsub.s32 %v1653, %v1655
      %v1657 = vrot.slane %v1642, %v1656
      %v1659 = vunpack.c.l.s4 1966171168
      %v1660 = vunpack.c.0.s8 %v1659
      %v1661 = vlaneseq
      %v1662 = vshrl.u32 %v1661, 7
      %v1663 = vsub.s32 %v1660, %v1662
      %v1664 = vrot.slane %v1643, %v1663
      %v1665 = vcombine.high %v1650, %v1650
      %v1666 = vcombine.high %v1664, %v1664
      %v1667 = vcombine.high %v1621, %v1621
      %v1669 = vunpack.c.l.s4 1966171168
      %v1670 = vunpack.c.0.s8 %v1669
      %v1671 = vlaneseq
      %v1672 = vshrl.u32 %v1671, 7
      %v1673 = vsub.s32 %v1670, %v1672
      %v1674 = vrot.slane %v1621, %v1673
      %v1676 = vunpack.c.l.s4 1966171168
      %v1677 = vunpack.c.0.s8 %v1676
      %v1678 = vlaneseq
      %v1679 = vshrl.u32 %v1678, 7
      %v1680 = vsub.s32 %v1677, %v1679
      %v1681 = vrot.slane %v1667, %v1680
      %v1682 = vcombine.high %v1674, %v1674
      %v1684 = vunpack.c.l.s4 1966171168
      %v1685 = vunpack.c.0.s8 %v1684
      %v1686 = vlaneseq
      %v1687 = vshrl.u32 %v1686, 7
      %v1688 = vsub.s32 %v1685, %v1687
      %v1689 = vrot.slane %v1674, %v1688
      %v1691 = vunpack.c.l.s4 1966171168
      %v1692 = vunpack.c.0.s8 %v1691
      %v1693 = vlaneseq
      %v1694 = vshrl.u32 %v1693, 7
      %v1695 = vsub.s32 %v1692, %v1694
      %v1696 = vrot.slane %v1681, %v1695
      %v1698 = vunpack.c.l.s4 1966171168
      %v1699 = vunpack.c.0.s8 %v1698
      %v1700 = vlaneseq
      %v1701 = vshrl.u32 %v1700, 7
      %v1702 = vsub.s32 %v1699, %v1701
      %v1703 = vrot.slane %v1682, %v1702
      %v1704 = vcombine.high %v1689, %v1689
      %v1705 = vcombine.high %v1703, %v1703
      %v1706 = vcombine.low %v1650, %v1664
      %v1707 = vcombine.low %v1665, %v1666
      %v1708 = vcombine.low %v1657, %v1689
      %v1709 = vcombine.low %v1703, %v1704
      %v1711 = vunpack.c.l.s4 1966171168
      %v1712 = vunpack.c.0.s8 %v1711
      %v1713 = vlaneseq
      %v1714 = vshrl.u32 %v1713, 7
      %v1715 = vsub.s32 %v1712, %v1714
      %v1716 = vrot.slane %v1706, %v1715
      %v1718 = vunpack.c.l.s4 1966171168
      %v1719 = vunpack.c.0.s8 %v1718
      %v1720 = vlaneseq
      %v1721 = vshrl.u32 %v1720, 7
      %v1722 = vsub.s32 %v1719, %v1721
      %v1723 = vrot.slane %v1707, %v1722
      %v1725 = vunpack.c.l.s4 1966171168
      %v1726 = vunpack.c.0.s8 %v1725
      %v1727 = vlaneseq
      %v1728 = vshrl.u32 %v1727, 7
      %v1729 = vsub.s32 %v1726, %v1728
      %v1730 = vrot.slane %v1708, %v1729
      %v1732 = vunpack.c.l.s4 1966171168
      %v1733 = vunpack.c.0.s8 %v1732
      %v1734 = vlaneseq
      %v1735 = vshrl.u32 %v1734, 7
      %v1736 = vsub.s32 %v1733, %v1735
      %v1737 = vrot.slane %v1709, %v1736
      %v1738 = vcombine.low %v1716, %v1723
      %v1739 = vcombine.low %v1730, %v1737
      %v1741 = vunpack.c.l.s4 1966171168
      %v1742 = vunpack.c.0.s8 %v1741
      %v1743 = vlaneseq
      %v1744 = vshrl.u32 %v1743, 7
      %v1745 = vsub.s32 %v1742, %v1744
      %v1746 = vrot.slane %v1738, %v1745
      %v1748 = vunpack.c.l.s4 1966171168
      %v1749 = vunpack.c.0.s8 %v1748
      %v1750 = vlaneseq
      %v1751 = vshrl.u32 %v1750, 7
      %v1752 = vsub.s32 %v1749, %v1751
      %v1753 = vrot.slane %v1739, %v1752
      %v1754 = vcombine.low %v1746, %v1753
      %v1755 = vcombine.low %v1705, %v1696
      %v1757 = vunpack.c.l.s4 1966171168
      %v1758 = vunpack.c.0.s8 %v1757
      %v1759 = vlaneseq
      %v1760 = vshrl.u32 %v1759, 7
      %v1761 = vsub.s32 %v1758, %v1760
      %v1762 = vrot.slane %v1755, %v1761
      %v1764 = vunpack.c.l.s4 1966171168
      %v1765 = vunpack.c.0.s8 %v1764
      %v1766 = vlaneseq
      %v1767 = vshrl.u32 %v1766, 7
      %v1768 = vsub.s32 %v1765, %v1767
      %v1769 = vrot.slane %v1762, %v1768
      %1770 = vrot.lane.b32.xlu0 %v1754, 16
      %v1771 = vpop.permute.xlu0 %1770
      %1772 = vrot.lane.b32.xlu0 %v1769, 16
      %v1773 = vpop.permute.xlu0 %1772
      %vm1776 = vcmask 195712
      %1777 = vst.msk [vmem:[#allocation2] sm:$0xff] %vm1776, %v1771
      %vm1778 = vcmask 189568
      %1779 = vst.msk [vmem:[#allocation2 + $0x8] sm:$0x3] %vm1778, %v1773
      %1780 = vrot.lane.b32.xlu0 %v627, 104
      %v1781 = vpop.permute.xlu0 %1780
      %1782 = vrot.lane.b32.xlu0 %v627, 72
      %v1783 = vpop.permute.xlu0 %1782
      %v1785 = vsel %vm630, %v1781, 0
      %v1788 = vsel %vm630, %v1783, 0
      %1790 = vmatprep.subr.bf16.mxu0 0
      %1791 = vmatpush1.bf16.xpose.msra.mxu0 %v1788
      %1792 = vmatprep.subr.bf16.mxu0 0
      %1793 = vmatpush1.bf16.xpose.msra.mxu0 0
      %1794 = vmatprep.subr.bf16.mxu0 0
      %1795 = vmatpush1.bf16.xpose.msra.mxu0 0
      %1796 = vmatprep.subr.bf16.mxu0 0
      %1797 = vmatpush1.bf16.xpose.msra.mxu0 0
      %1798 = vmatprep.subr.bf16.mxu0 0
      %1799 = vmatpush1.bf16.xpose.msra.mxu0 0
      %1800 = vmatprep.subr.bf16.mxu0 0
      %1801 = vmatpush1.bf16.xpose.msra.mxu0 0
      %1802 = vmatprep.subr.bf16.mxu0 0
      %1803 = vmatpush1.bf16.xpose.msra.mxu0 0
      %1804 = vmatprep.subr.bf16.mxu0 0
      %1805 = vmatpush1.bf16.xpose.msra.mxu0 0
      %1806 = vmatprep.subr.bf16.mxu0 0
      %1807 = vmatpush1.bf16.xpose.msra.mxu0 0
      %1808 = vmatprep.subr.bf16.mxu0 0
      %1809 = vmatpush1.bf16.xpose.msra.mxu0 0
      %1810 = vmatprep.subr.bf16.mxu0 0
      %1811 = vmatpush1.bf16.xpose.msra.mxu0 0
      %1812 = vmatprep.subr.bf16.mxu0 0
      %1813 = vmatpush1.bf16.xpose.msra.mxu0 0
      %1814 = vmatprep.subr.bf16.mxu0 0
      %1815 = vmatpush1.bf16.xpose.msra.mxu0 0
      %1816 = vmatprep.subr.bf16.mxu0 0
      %1817 = vmatpush1.bf16.xpose.msra.mxu0 0
      %1818 = vmatprep.subr.bf16.mxu0 0
      %1819 = vmatpush1.bf16.xpose.msra.mxu0 0
      %1820 = vmatprep.subr.bf16.mxu0 0
      %1821 = vmatpush1.bf16.xpose.msra.mxu0 0
      %1822 = vmatprep.mubr.bf16.mxu0 0
      %1823 = vmatmul.mubr.bf16.gmra.mrb[0].mxu0 %v1785
      %v1824 = vpop.f32.mrb[0].mxu0
      %v1825 = vadd.f32 0.0, %v1824
      %v1826 = vpop.f32.mrb[0].mxu0
      %v1827 = vpop.f32.mrb[0].mxu0
      %v1828 = vpop.f32.mrb[0].mxu0
      %1829 = vdwg.mxu0
      %1830 = vrot.lane.b32.xlu0 %v702, 104
      %v1831 = vpop.permute.xlu0 %1830
      %1832 = vrot.lane.b32.xlu0 %v702, 72
      %v1833 = vpop.permute.xlu0 %1832
      %v1835 = vsel %vm630, %v1831, 0
      %v1838 = vsel %vm630, %v1833, 0
      %1840 = vmatprep.subr.bf16.mxu0 0
      %1841 = vmatpush1.bf16.xpose.msra.mxu0 %v1838
      %1842 = vmatprep.subr.bf16.mxu0 0
      %1843 = vmatpush1.bf16.xpose.msra.mxu0 0
      %1844 = vmatprep.subr.bf16.mxu0 0
      %1845 = vmatpush1.bf16.xpose.msra.mxu0 0
      %1846 = vmatprep.subr.bf16.mxu0 0
      %1847 = vmatpush1.bf16.xpose.msra.mxu0 0
      %1848 = vmatprep.subr.bf16.mxu0 0
      %1849 = vmatpush1.bf16.xpose.msra.mxu0 0
      %1850 = vmatprep.subr.bf16.mxu0 0
      %1851 = vmatpush1.bf16.xpose.msra.mxu0 0
      %1852 = vmatprep.subr.bf16.mxu0 0
      %1853 = vmatpush1.bf16.xpose.msra.mxu0 0
      %1854 = vmatprep.subr.bf16.mxu0 0
      %1855 = vmatpush1.bf16.xpose.msra.mxu0 0
      %1856 = vmatprep.subr.bf16.mxu0 0
      %1857 = vmatpush1.bf16.xpose.msra.mxu0 0
      %1858 = vmatprep.subr.bf16.mxu0 0
      %1859 = vmatpush1.bf16.xpose.msra.mxu0 0
      %1860 = vmatprep.subr.bf16.mxu0 0
      %1861 = vmatpush1.bf16.xpose.msra.mxu0 0
      %1862 = vmatprep.subr.bf16.mxu0 0
      %1863 = vmatpush1.bf16.xpose.msra.mxu0 0
      %1864 = vmatprep.subr.bf16.mxu0 0
      %1865 = vmatpush1.bf16.xpose.msra.mxu0 0
      %1866 = vmatprep.subr.bf16.mxu0 0
      %1867 = vmatpush1.bf16.xpose.msra.mxu0 0
      %1868 = vmatprep.subr.bf16.mxu0 0
      %1869 = vmatpush1.bf16.xpose.msra.mxu0 0
      %1870 = vmatprep.subr.bf16.mxu0 0
      %1871 = vmatpush1.bf16.xpose.msra.mxu0 0
      %1872 = vmatprep.mubr.bf16.mxu0 0
      %1873 = vmatmul.mubr.bf16.gmra.mrb[0].mxu0 %v1835
      %v1874 = vpop.f32.mrb[0].mxu0
      %v1875 = vadd.f32 0.0, %v1874
      %v1876 = vpop.f32.mrb[0].mxu0
      %v1877 = vpop.f32.mrb[0].mxu0
      %v1878 = vpop.f32.mrb[0].mxu0
      %1879 = vdwg.mxu0
      %v1880 = vmul.f32 %v1825, 0.35355338
      %v1881 = vmul.f32 %v1875, 0.35355338
      %v1882 = vsel %vm753, %v1880, -inf
      %1883 = vmax.xlane.f32.xlu0 %v1882
      %v1884 = vpop.xlane.xlu0 %1883
      %v1885 = vsel %vm753, %v1881, -inf
      %1886 = vmax.xlane.f32.xlu0 %v1885
      %v1887 = vpop.xlane.xlu0 %1886
      %v1888 = vsub.f32 %v1880, %v1884
      %v1889 = vsub.f32 %v1881, %v1887
      %v1890 = vmul.f32 %v1888, 1.442695
      %v1891 = vpow.pop %v1890
      %v1892 = vmul.f32 %v1889, 1.442695
      %v1893 = vpow.pop %v1892
      %v1894 = vsel %vm753, %v1891, 0.0
      %1895 = vadd.xlane.f32.xlu0 %v1894
      %v1896 = vpop.xlane.xlu0 %1895
      %v1897 = vsel %vm753, %v1893, 0.0
      %1898 = vadd.xlane.f32.xlu0 %v1897
      %v1899 = vpop.xlane.xlu0 %1898
      %v1900 = vrcp.pop %v1896
      %v1901 = vrcp.pop %v1899
      %v1902 = vmul.f32 %v1891, %v1900
      %v1903 = vmul.f32 %v1893, %v1901
      %v1904 = vpack.c.bf16 %v1902, %v1902
      %v1905 = vpack.c.bf16 %v1903, %v1903
      %1906 = vrot.lane.b32.xlu0 %v627, 40
      %v1907 = vpop.permute.xlu0 %1906
      %v1909 = vsel %vm780, %v1904, 0
      %v1912 = vand.u32 %v1907, %v787
      %1914 = vmatprep.subr.bf16.mxu0 0
      %1915 = vmatpush1.bf16.msra.mxu0 %v1912
      %1916 = vmatprep.subr.bf16.mxu0 0
      %1917 = vmatpush1.bf16.msra.mxu0 0
      %1918 = vmatprep.subr.bf16.mxu0 0
      %1919 = vmatpush1.bf16.msra.mxu0 0
      %1920 = vmatprep.subr.bf16.mxu0 0
      %1921 = vmatpush1.bf16.msra.mxu0 0
      %1922 = vmatprep.subr.bf16.mxu0 0
      %1923 = vmatpush1.bf16.msra.mxu0 0
      %1924 = vmatprep.subr.bf16.mxu0 0
      %1925 = vmatpush1.bf16.msra.mxu0 0
      %1926 = vmatprep.subr.bf16.mxu0 0
      %1927 = vmatpush1.bf16.msra.mxu0 0
      %1928 = vmatprep.subr.bf16.mxu0 0
      %1929 = vmatpush1.bf16.msra.mxu0 0
      %1930 = vmatprep.subr.bf16.mxu0 0
      %1931 = vmatpush1.bf16.msra.mxu0 0
      %1932 = vmatprep.subr.bf16.mxu0 0
      %1933 = vmatpush1.bf16.msra.mxu0 0
      %1934 = vmatprep.subr.bf16.mxu0 0
      %1935 = vmatpush1.bf16.msra.mxu0 0
      %1936 = vmatprep.subr.bf16.mxu0 0
      %1937 = vmatpush1.bf16.msra.mxu0 0
      %1938 = vmatprep.subr.bf16.mxu0 0
      %1939 = vmatpush1.bf16.msra.mxu0 0
      %1940 = vmatprep.subr.bf16.mxu0 0
      %1941 = vmatpush1.bf16.msra.mxu0 0
      %1942 = vmatprep.subr.bf16.mxu0 0
      %1943 = vmatpush1.bf16.msra.mxu0 0
      %1944 = vmatprep.subr.bf16.mxu0 0
      %1945 = vmatpush1.bf16.msra.mxu0 0
      %1946 = vmatprep.mubr.bf16.mxu0 0
      %1947 = vmatmul.mubr.bf16.gmra.mrb[0].mxu0 %v1909
      %v1948 = vpop.f32.mrb[0].mxu0
      %v1949 = vadd.f32 0.0, %v1948
      %v1950 = vpop.f32.mrb[0].mxu0
      %v1951 = vpop.f32.mrb[0].mxu0
      %v1952 = vpop.f32.mrb[0].mxu0
      %1953 = vdwg.mxu0
      %1954 = vrot.lane.b32.xlu0 %v702, 40
      %v1955 = vpop.permute.xlu0 %1954
      %v1957 = vsel %vm780, %v1905, 0
      %v1960 = vand.u32 %v1955, %v787
      %1962 = vmatprep.subr.bf16.mxu0 0
      %1963 = vmatpush1.bf16.msra.mxu0 %v1960
      %1964 = vmatprep.subr.bf16.mxu0 0
      %1965 = vmatpush1.bf16.msra.mxu0 0
      %1966 = vmatprep.subr.bf16.mxu0 0
      %1967 = vmatpush1.bf16.msra.mxu0 0
      %1968 = vmatprep.subr.bf16.mxu0 0
      %1969 = vmatpush1.bf16.msra.mxu0 0
      %1970 = vmatprep.subr.bf16.mxu0 0
      %1971 = vmatpush1.bf16.msra.mxu0 0
      %1972 = vmatprep.subr.bf16.mxu0 0
      %1973 = vmatpush1.bf16.msra.mxu0 0
      %1974 = vmatprep.subr.bf16.mxu0 0
      %1975 = vmatpush1.bf16.msra.mxu0 0
      %1976 = vmatprep.subr.bf16.mxu0 0
      %1977 = vmatpush1.bf16.msra.mxu0 0
      %1978 = vmatprep.subr.bf16.mxu0 0
      %1979 = vmatpush1.bf16.msra.mxu0 0
      %1980 = vmatprep.subr.bf16.mxu0 0
      %1981 = vmatpush1.bf16.msra.mxu0 0
      %1982 = vmatprep.subr.bf16.mxu0 0
      %1983 = vmatpush1.bf16.msra.mxu0 0
      %1984 = vmatprep.subr.bf16.mxu0 0
      %1985 = vmatpush1.bf16.msra.mxu0 0
      %1986 = vmatprep.subr.bf16.mxu0 0
      %1987 = vmatpush1.bf16.msra.mxu0 0
      %1988 = vmatprep.subr.bf16.mxu0 0
      %1989 = vmatpush1.bf16.msra.mxu0 0
      %1990 = vmatprep.subr.bf16.mxu0 0
      %1991 = vmatpush1.bf16.msra.mxu0 0
      %1992 = vmatprep.subr.bf16.mxu0 0
      %1993 = vmatpush1.bf16.msra.mxu0 0
      %1994 = vmatprep.mubr.bf16.mxu0 0
      %1995 = vmatmul.mubr.bf16.gmra.mrb[0].mxu0 %v1957
      %v1996 = vpop.f32.mrb[0].mxu0
      %v1997 = vadd.f32 0.0, %v1996
      %v1998 = vpop.f32.mrb[0].mxu0
      %v1999 = vpop.f32.mrb[0].mxu0
      %v2000 = vpop.f32.mrb[0].mxu0
      %2001 = vdwg.mxu0
      %v2004 = vcombine.high %v1949, %v1949
      %v2006 = vunpack.c.l.s4 1966171168
      %v2007 = vunpack.c.0.s8 %v2006
      %v2008 = vlaneseq
      %v2009 = vshrl.u32 %v2008, 7
      %v2010 = vsub.s32 %v2007, %v2009
      %v2011 = vrot.slane %v1949, %v2010
      %v2013 = vunpack.c.l.s4 1966171168
      %v2014 = vunpack.c.0.s8 %v2013
      %v2015 = vlaneseq
      %v2016 = vshrl.u32 %v2015, 7
      %v2017 = vsub.s32 %v2014, %v2016
      %v2018 = vrot.slane %v2004, %v2017
      %v2019 = vcombine.high %v2011, %v2011
      %v2021 = vunpack.c.l.s4 1966171168
      %v2022 = vunpack.c.0.s8 %v2021
      %v2023 = vlaneseq
      %v2024 = vshrl.u32 %v2023, 7
      %v2025 = vsub.s32 %v2022, %v2024
      %v2026 = vrot.slane %v2011, %v2025
      %v2028 = vunpack.c.l.s4 1966171168
      %v2029 = vunpack.c.0.s8 %v2028
      %v2030 = vlaneseq
      %v2031 = vshrl.u32 %v2030, 7
      %v2032 = vsub.s32 %v2029, %v2031
      %v2033 = vrot.slane %v2018, %v2032
      %v2035 = vunpack.c.l.s4 1966171168
      %v2036 = vunpack.c.0.s8 %v2035
      %v2037 = vlaneseq
      %v2038 = vshrl.u32 %v2037, 7
      %v2039 = vsub.s32 %v2036, %v2038
      %v2040 = vrot.slane %v2019, %v2039
      %v2041 = vcombine.high %v2026, %v2026
      %v2042 = vcombine.high %v2040, %v2040
      %v2043 = vcombine.high %v1997, %v1997
      %v2045 = vunpack.c.l.s4 1966171168
      %v2046 = vunpack.c.0.s8 %v2045
      %v2047 = vlaneseq
      %v2048 = vshrl.u32 %v2047, 7
      %v2049 = vsub.s32 %v2046, %v2048
      %v2050 = vrot.slane %v1997, %v2049
      %v2052 = vunpack.c.l.s4 1966171168
      %v2053 = vunpack.c.0.s8 %v2052
      %v2054 = vlaneseq
      %v2055 = vshrl.u32 %v2054, 7
      %v2056 = vsub.s32 %v2053, %v2055
      %v2057 = vrot.slane %v2043, %v2056
      %v2058 = vcombine.high %v2050, %v2050
      %v2060 = vunpack.c.l.s4 1966171168
      %v2061 = vunpack.c.0.s8 %v2060
      %v2062 = vlaneseq
      %v2063 = vshrl.u32 %v2062, 7
      %v2064 = vsub.s32 %v2061, %v2063
      %v2065 = vrot.slane %v2050, %v2064
      %v2067 = vunpack.c.l.s4 1966171168
      %v2068 = vunpack.c.0.s8 %v2067
      %v2069 = vlaneseq
      %v2070 = vshrl.u32 %v2069, 7
      %v2071 = vsub.s32 %v2068, %v2070
      %v2072 = vrot.slane %v2057, %v2071
      %v2074 = vunpack.c.l.s4 1966171168
      %v2075 = vunpack.c.0.s8 %v2074
      %v2076 = vlaneseq
      %v2077 = vshrl.u32 %v2076, 7
      %v2078 = vsub.s32 %v2075, %v2077
      %v2079 = vrot.slane %v2058, %v2078
      %v2080 = vcombine.high %v2065, %v2065
      %v2081 = vcombine.high %v2079, %v2079
      %v2082 = vcombine.low %v2026, %v2040
      %v2083 = vcombine.low %v2041, %v2042
      %v2084 = vcombine.low %v2033, %v2065
      %v2085 = vcombine.low %v2079, %v2080
      %v2087 = vunpack.c.l.s4 1966171168
      %v2088 = vunpack.c.0.s8 %v2087
      %v2089 = vlaneseq
      %v2090 = vshrl.u32 %v2089, 7
      %v2091 = vsub.s32 %v2088, %v2090
      %v2092 = vrot.slane %v2082, %v2091
      %v2094 = vunpack.c.l.s4 1966171168
      %v2095 = vunpack.c.0.s8 %v2094
      %v2096 = vlaneseq
      %v2097 = vshrl.u32 %v2096, 7
      %v2098 = vsub.s32 %v2095, %v2097
      %v2099 = vrot.slane %v2083, %v2098
      %v2101 = vunpack.c.l.s4 1966171168
      %v2102 = vunpack.c.0.s8 %v2101
      %v2103 = vlaneseq
      %v2104 = vshrl.u32 %v2103, 7
      %v2105 = vsub.s32 %v2102, %v2104
      %v2106 = vrot.slane %v2084, %v2105
      %v2108 = vunpack.c.l.s4 1966171168
      %v2109 = vunpack.c.0.s8 %v2108
      %v2110 = vlaneseq
      %v2111 = vshrl.u32 %v2110, 7
      %v2112 = vsub.s32 %v2109, %v2111
      %v2113 = vrot.slane %v2085, %v2112
      %v2114 = vcombine.low %v2092, %v2099
      %v2115 = vcombine.low %v2106, %v2113
      %v2117 = vunpack.c.l.s4 1966171168
      %v2118 = vunpack.c.0.s8 %v2117
      %v2119 = vlaneseq
      %v2120 = vshrl.u32 %v2119, 7
      %v2121 = vsub.s32 %v2118, %v2120
      %v2122 = vrot.slane %v2114, %v2121
      %v2124 = vunpack.c.l.s4 1966171168
      %v2125 = vunpack.c.0.s8 %v2124
      %v2126 = vlaneseq
      %v2127 = vshrl.u32 %v2126, 7
      %v2128 = vsub.s32 %v2125, %v2127
      %v2129 = vrot.slane %v2115, %v2128
      %v2130 = vcombine.low %v2122, %v2129
      %v2131 = vcombine.low %v2081, %v2072
      %v2133 = vunpack.c.l.s4 1966171168
      %v2134 = vunpack.c.0.s8 %v2133
      %v2135 = vlaneseq
      %v2136 = vshrl.u32 %v2135, 7
      %v2137 = vsub.s32 %v2134, %v2136
      %v2138 = vrot.slane %v2131, %v2137
      %v2140 = vunpack.c.l.s4 1966171168
      %v2141 = vunpack.c.0.s8 %v2140
      %v2142 = vlaneseq
      %v2143 = vshrl.u32 %v2142, 7
      %v2144 = vsub.s32 %v2141, %v2143
      %v2145 = vrot.slane %v2138, %v2144
      %2146 = vrot.lane.b32.xlu0 %v2130, 24
      %v2147 = vpop.permute.xlu0 %2146
      %2148 = vrot.lane.b32.xlu0 %v2145, 24
      %v2149 = vpop.permute.xlu0 %2148
      %vm2152 = vcmask 261312
      %2153 = vst.msk [vmem:[#allocation2] sm:$0xff] %vm2152, %v2147
      %vm2154 = vcmask 255168
      %2155 = vst.msk [vmem:[#allocation2 + $0x8] sm:$0x3] %vm2154, %v2149
      %v2156 = vld [vmem:[#allocation2] sm:$0xff]
      %v2157 = vld [vmem:[#allocation2 + $0x8] sm:$0x3]
      %v2158 = vpack.c.bf16 %v2157, %v2156
      %v2160 = vlaneseq
      %v2161 = vshrl.u32 %v2160, 7
      %v2162 = vsub.s32 0, %v2161
      %v2163 = vrot.slane %v296, %v2162
      %v2169 = vunpack.c.l.b16 %v292
      %v2170 = vunpack.c.l.b16 %v293
      %v2171 = vunpack.c.l.b16 %v294
      %v2172 = vunpack.c.l.b16 %v295
      %v2173 = vpack.c.b16 %v2170, %v2169
      %v2174 = vpack.c.b16 %v2172, %v2171
      %v2178 = vsel %vm506, %v2158, 0
      %2180 = vmatprep.subr.bf16.mxu0 0
      %2181 = vmatpush1.bf16.msra.mxu0 %v2173
      %2182 = vmatprep.subr.bf16.mxu0 0
      %2183 = vmatpush1.bf16.msra.mxu0 %v2174
      %2184 = vmatprep.subr.bf16.mxu0 0
      %2185 = vmatpush1.bf16.msra.mxu0 0
      %2186 = vmatprep.subr.bf16.mxu0 0
      %2187 = vmatpush1.bf16.msra.mxu0 0
      %2188 = vmatprep.subr.bf16.mxu0 0
      %2189 = vmatpush1.bf16.msra.mxu0 0
      %2190 = vmatprep.subr.bf16.mxu0 0
      %2191 = vmatpush1.bf16.msra.mxu0 0
      %2192 = vmatprep.subr.bf16.mxu0 0
      %2193 = vmatpush1.bf16.msra.mxu0 0
      %2194 = vmatprep.subr.bf16.mxu0 0
      %2195 = vmatpush1.bf16.msra.mxu0 0
      %2196 = vmatprep.subr.bf16.mxu0 0
      %2197 = vmatpush1.bf16.msra.mxu0 0
      %2198 = vmatprep.subr.bf16.mxu0 0
      %2199 = vmatpush1.bf16.msra.mxu0 0
      %2200 = vmatprep.subr.bf16.mxu0 0
      %2201 = vmatpush1.bf16.msra.mxu0 0
      %2202 = vmatprep.subr.bf16.mxu0 0
      %2203 = vmatpush1.bf16.msra.mxu0 0
      %2204 = vmatprep.subr.bf16.mxu0 0
      %2205 = vmatpush1.bf16.msra.mxu0 0
      %2206 = vmatprep.subr.bf16.mxu0 0
      %2207 = vmatpush1.bf16.msra.mxu0 0
      %2208 = vmatprep.subr.bf16.mxu0 0
      %2209 = vmatpush1.bf16.msra.mxu0 0
      %2210 = vmatprep.subr.bf16.mxu0 0
      %2211 = vmatpush1.bf16.msra.mxu0 0
      %2212 = vmatprep.mubr.bf16.mxu0 0
      %2213 = vmatmul.mubr.bf16.gmra.mrb[0].mxu0 %v2178
      %v2214 = vpop.f32.mrb[0].mxu0
      %v2215 = vadd.f32 %v2163, %v2214
      %v2216 = vpop.f32.mrb[0].mxu0
      %v2217 = vpop.f32.mrb[0].mxu0
      %v2218 = vadd.f32 %v2163, %v2217
      %v2219 = vpop.f32.mrb[0].mxu0
      %2220 = vdwg.mxu0
      %v2223 = vcombine.high %v2215, %v2215
      %v2225 = vunpack.c.l.s4 1966171168
      %v2226 = vunpack.c.0.s8 %v2225
      %v2227 = vlaneseq
      %v2228 = vshrl.u32 %v2227, 7
      %v2229 = vsub.s32 %v2226, %v2228
      %v2230 = vrot.slane %v2215, %v2229
      %v2232 = vunpack.c.l.s4 1966171168
      %v2233 = vunpack.c.0.s8 %v2232
      %v2234 = vlaneseq
      %v2235 = vshrl.u32 %v2234, 7
      %v2236 = vsub.s32 %v2233, %v2235
      %v2237 = vrot.slane %v2223, %v2236
      %v2238 = vcombine.high %v2230, %v2230
      %v2239 = vcombine.high %v2237, %v2237
      %v2241 = vunpack.c.l.s4 1966171168
      %v2242 = vunpack.c.0.s8 %v2241
      %v2243 = vlaneseq
      %v2244 = vshrl.u32 %v2243, 7
      %v2245 = vsub.s32 %v2242, %v2244
      %v2246 = vrot.slane %v2230, %v2245
      %v2248 = vunpack.c.l.s4 1966171168
      %v2249 = vunpack.c.0.s8 %v2248
      %v2250 = vlaneseq
      %v2251 = vshrl.u32 %v2250, 7
      %v2252 = vsub.s32 %v2249, %v2251
      %v2253 = vrot.slane %v2237, %v2252
      %v2255 = vunpack.c.l.s4 1966171168
      %v2256 = vunpack.c.0.s8 %v2255
      %v2257 = vlaneseq
      %v2258 = vshrl.u32 %v2257, 7
      %v2259 = vsub.s32 %v2256, %v2258
      %v2260 = vrot.slane %v2238, %v2259
      %v2262 = vunpack.c.l.s4 1966171168
      %v2263 = vunpack.c.0.s8 %v2262
      %v2264 = vlaneseq
      %v2265 = vshrl.u32 %v2264, 7
      %v2266 = vsub.s32 %v2263, %v2265
      %v2267 = vrot.slane %v2239, %v2266
      %v2268 = vcombine.high %v2246, %v2246
      %v2269 = vcombine.high %v2253, %v2253
      %v2270 = vcombine.high %v2260, %v2260
      %v2271 = vcombine.high %v2267, %v2267
      %v2273 = vunpack.c.l.s4 1966171168
      %v2274 = vunpack.c.0.s8 %v2273
      %v2275 = vlaneseq
      %v2276 = vshrl.u32 %v2275, 7
      %v2277 = vsub.s32 %v2274, %v2276
      %v2278 = vrot.slane %v2218, %v2277
      %v2279 = vcombine.high %v2278, %v2278
      %v2281 = vunpack.c.l.s4 1966171168
      %v2282 = vunpack.c.0.s8 %v2281
      %v2283 = vlaneseq
      %v2284 = vshrl.u32 %v2283, 7
      %v2285 = vsub.s32 %v2282, %v2284
      %v2286 = vrot.slane %v2278, %v2285
      %v2288 = vunpack.c.l.s4 1966171168
      %v2289 = vunpack.c.0.s8 %v2288
      %v2290 = vlaneseq
      %v2291 = vshrl.u32 %v2290, 7
      %v2292 = vsub.s32 %v2289, %v2291
      %v2293 = vrot.slane %v2279, %v2292
      %v2294 = vcombine.low %v2246, %v2260
      %v2295 = vcombine.low %v2268, %v2270
      %v2297 = vunpack.c.l.s4 1966171168
      %v2298 = vunpack.c.0.s8 %v2297
      %v2299 = vlaneseq
      %v2300 = vshrl.u32 %v2299, 7
      %v2301 = vsub.s32 %v2298, %v2300
      %v2302 = vrot.slane %v2294, %v2301
      %v2304 = vunpack.c.l.s4 1966171168
      %v2305 = vunpack.c.0.s8 %v2304
      %v2306 = vlaneseq
      %v2307 = vshrl.u32 %v2306, 7
      %v2308 = vsub.s32 %v2305, %v2307
      %v2309 = vrot.slane %v2295, %v2308
      %v2311 = vunpack.c.l.s4 1966171168
      %v2312 = vunpack.c.0.s8 %v2311
      %v2313 = vlaneseq
      %v2314 = vshrl.u32 %v2313, 7
      %v2315 = vsub.s32 %v2312, %v2314
      %v2316 = vrot.slane %v2253, %v2315
      %v2317 = vcombine.low %v2302, %v2309
      %v2319 = vunpack.c.l.s4 1966171168
      %v2320 = vunpack.c.0.s8 %v2319
      %v2321 = vlaneseq
      %v2322 = vshrl.u32 %v2321, 7
      %v2323 = vsub.s32 %v2320, %v2322
      %v2324 = vrot.slane %v2317, %v2323
      %v2326 = vunpack.c.l.s4 1966171168
      %v2327 = vunpack.c.0.s8 %v2326
      %v2328 = vlaneseq
      %v2329 = vshrl.u32 %v2328, 7
      %v2330 = vsub.s32 %v2327, %v2329
      %v2331 = vrot.slane %v2316, %v2330
      %v2332 = vcombine.low %v2324, %v2331
      %v2333 = vcombine.low %v2267, %v2269
      %v2334 = vcombine.low %v2271, %v2286
      %v2336 = vunpack.c.l.s4 1966171168
      %v2337 = vunpack.c.0.s8 %v2336
      %v2338 = vlaneseq
      %v2339 = vshrl.u32 %v2338, 7
      %v2340 = vsub.s32 %v2337, %v2339
      %v2341 = vrot.slane %v2333, %v2340
      %v2343 = vunpack.c.l.s4 1966171168
      %v2344 = vunpack.c.0.s8 %v2343
      %v2345 = vlaneseq
      %v2346 = vshrl.u32 %v2345, 7
      %v2347 = vsub.s32 %v2344, %v2346
      %v2348 = vrot.slane %v2334, %v2347
      %v2350 = vunpack.c.l.s4 1966171168
      %v2351 = vunpack.c.0.s8 %v2350
      %v2352 = vlaneseq
      %v2353 = vshrl.u32 %v2352, 7
      %v2354 = vsub.s32 %v2351, %v2353
      %v2355 = vrot.slane %v2293, %v2354
      %v2356 = vcombine.low %v2341, %v2348
      %v2358 = vunpack.c.l.s4 1966171168
      %v2359 = vunpack.c.0.s8 %v2358
      %v2360 = vlaneseq
      %v2361 = vshrl.u32 %v2360, 7
      %v2362 = vsub.s32 %v2359, %v2361
      %v2363 = vrot.slane %v2356, %v2362
      %v2365 = vunpack.c.l.s4 1966171168
      %v2366 = vunpack.c.0.s8 %v2365
      %v2367 = vlaneseq
      %v2368 = vshrl.u32 %v2367, 7
      %v2369 = vsub.s32 %v2366, %v2368
      %v2370 = vrot.slane %v2355, %v2369
      %v2371 = vcombine.low %v2363, %v2370
      %v2374 = vadd.f32 %v283, %v2332
      %v2375 = vadd.f32 %v284, %v2371
      %2376 = vst.msk [vmem:[%s280] sm:$0x1f] %vm297, %v2374
      %2377 = vst.msk [vmem:[%s280 + $0x8] sm:$0x1f] %vm297, %v2375
      %s2378 = smul.u32 2, %s18
      %p2379 = scmp.lt.s32.totalorder %s2378, 3
      %s2380 = scalar_select %p2379, %s2378, 3
      %s2381 = smul.addr %s2380, 8
      %s2382 = scalar_lea.vmem %s7, %s2381
      // Predicated region
      $region49: #{timesformer_forward.12} parent=47 // pred_check
        %p2383 = pneg %p188
      $region50: #{timesformer_forward.12} parent=47 // pred_check_branch
        %2385 = sbr.rel (%p2383) target = $region52
      $region51: #{timesformer_forward.12} parent=47 // pred_region
        %s2386 = smul.u32 2, %s18
      $region52: #{timesformer_forward.12} parent=47 // pred_fallthru
        _
    $region48: #{timesformer_forward.12} parent=5 // pred_fallthru
      _
    %p2387 = scmp.le.s32.totalorder 2, %s13
    // Predicated region
    $region53: #{timesformer_forward.12} parent=5 // pred_check
      %p2388 = pneg %p2387
    $region54: #{timesformer_forward.12} parent=5 // pred_check_branch
      %2390 = sbr.rel (%p2388) target = $region56
    $region55: #{timesformer_forward.12} parent=5 // pred_region
      %s2391 = ssub.s32 %s13, 2
      // Predicated region
      $region57: #{timesformer_forward.12} parent=55 // pred_check
        %p2392 = pneg %p194
      $region58: #{timesformer_forward.12} parent=55 // pred_check_branch
        %2394 = sbr.rel (%p2392) target = $region60
      $region59: #{timesformer_forward.12} parent=55 // pred_region
        %s2395 = smul.u32 2, %s19
        %p2396 = scmp.lt.s32.totalorder %s2395, 3
        %s2397 = scalar_select %p2396, %s2395, 3
        %s2398 = smul.addr %s2397, 8
        %s2399 = scalar_lea.vmem %s7, %s2398
      $region60: #{timesformer_forward.12} parent=55 // pred_fallthru
        _
    $region56: #{timesformer_forward.12} parent=5 // pred_fallthru
      _
  $region6: #{timesformer_forward.12} parent=0 // loop_footer
    %s17 = sadd.s32 1, %s13
  $region7: #{timesformer_forward.12} parent=0 // loop_footer_branch
    %12 = sbr.rel target = $region3
  $region8: #{timesformer_forward.12} parent=0 // loop_exit
    _

// kernel: timesformer_forward.11
$region0: #{timesformer_forward.11}
  #allocation0 [shape = 'u32[]', space=smem, size = 0x4, offset = 0x4, fixed_abs, tag = 'smem constant byte address 0x4 - core index']
  #allocation1 [shape = 'u32[144,128]{1,0:T(1,128)}', space=vmem, size = 0x12000, scoped, tag = 'internal scratch']
  #allocation2 [shape = 'f32[5,2,32]{2,1,0:T(2,128)}', space=vmem, size = 0x1400, scoped, tag = 'scratch operand']
  #allocation3 [shape = 'f32[10,32]{1,0:T(8,128)}', space=vmem, size = 0x2000, scoped, tag = 'scratch operand']
  %s0 = inlined_call_operand.vmem [shape: f32[2,2,5,32], index: 0, kind: input, shape index: {}]
  %s1 = inlined_call_operand.vmem [shape: f32[1,1,32], index: 1, kind: input, shape index: {}]
  %s2 = inlined_call_operand.vmem [shape: f32[1,1,32], index: 2, kind: input, shape index: {}]
  %s3 = inlined_call_operand.vmem [shape: bf16[32,96], index: 3, kind: input, shape index: {}]
  %s4 = inlined_call_operand.vmem [shape: f32[1,96], index: 4, kind: input, shape index: {}]
  %s5 = inlined_call_operand.vmem [shape: bf16[32,32], index: 5, kind: input, shape index: {}]
  %s6 = inlined_call_operand.vmem [shape: f32[1,32], index: 6, kind: input, shape index: {}]
  %s7 = inlined_call_operand.vmem [shape: f32[2,2,5,32], index: 7, kind: output, shape index: {}]
  %s8 = sld [smem:[#allocation0]]
  $region61: #{timesformer_forward.11} parent=0
    _
  %s10 = ssub.s32 1, %s8
  %s11 = scalar_select 0, %s10, %s8
  loop: start=0, step=1, limit=4
  $region2: #{timesformer_forward.11} parent=0 // loop_pre_header
    _
  $region3: #{timesformer_forward.11} parent=0 // loop_header
    %s13 = sphi 0, %s17
    %p14 = scmp.ge.s32.totalorder %s13, 4
    %s20 = sphi 0, %s32
    %s21 = sphi 0, %s28
    %s22 = sphi 0, %s20
    %s23 = sphi 0, %s21
    %s24 = sphi 0, %s22
    %s25 = sphi 0, %s23
    %s37 = sphi 0, %s39
    %s40 = sphi 0, %s37
    %s41 = sphi 0, %s40
    %s57 = sphi 0, %s41
    %s61 = sphi 0, %s61
    %s63 = sphi 0, %s61
    %s64 = sphi 0, %s63
    %s78 = sphi 0, %s64
    %s82 = sphi 0, %s82
    %s84 = sphi 0, %s82
    %s85 = sphi 0, %s84
    %s99 = sphi 0, %s85
    %s103 = sphi 0, %s103
    %s105 = sphi 0, %s103
    %s106 = sphi 0, %s105
    %s120 = sphi 0, %s106
    %s124 = sphi 0, %s124
    %s126 = sphi 0, %s124
    %s127 = sphi 0, %s126
    %s141 = sphi 0, %s127
    %s145 = sphi 0, %s145
    %s147 = sphi 0, %s145
    %s148 = sphi 0, %s147
    %s162 = sphi 0, %s148
    %s166 = sphi 0, %s166
    %s168 = sphi 0, %s166
    %s169 = sphi 0, %s168
    %s183 = sphi 0, %s169
    %s191 = sphi 0, %s193
    %s194 = sphi 0, %s191
    %s195 = sphi 0, %s194
    %s211 = sphi 0, %s195
  $region4: #{timesformer_forward.11} parent=0 // loop_header_branch
    %16 = sbr.rel (%p14) target = $region8
  $region5: #{timesformer_forward.11} parent=0 // loop_body
    %s18 = ssub.s32 %s13, 1
    %s19 = ssub.s32 %s13, 2
    %s26 = sadd.s32 1, %s21
    %p27 = scmp.ge.s32.totalorder %s26, 1
    %s28 = scalar_select %p27, 0, %s26
    %s29 = sadd.s32 1, %s20
    %s30 = scalar_select %p27, %s29, %s20
    %p31 = scmp.ge.s32.totalorder %s30, 2
    %s32 = scalar_select %p31, 0, %s30
    %s33 = ssub.s32 %s20, %s32
    %s34 = ssub.s32 %s21, %s28
    %s35 = sor.u32 %s33, %s34
    %p36 = scmp.eq.s32.totalorder %s35, 0
    %s38 = sadd.s32 %s37, 1
    %s39 = scalar_select %p36, %s37, %s38
    %p42 = pneg %p36
    %p43 = scmp.eq.s32.totalorder %s13, 1
    %p44 = por %p42, %p43
    %p45 = scmp.ne.s32.totalorder %s37, %s40
    %p46 = scmp.eq.s32.totalorder %s13, 0
    %p47 = por %p45, %p46
    %p48 = scmp.ne.s32.totalorder %s37, %s40
    %p49 = scmp.eq.s32.totalorder %s18, 1
    %p50 = por %p48, %p49
    %p51 = scmp.ne.s32.totalorder %s40, %s41
    %p52 = scmp.eq.s32.totalorder %s18, 0
    %p53 = por %p51, %p52
    %p54 = scmp.ne.s32.totalorder %s40, %s41
    %p55 = scmp.eq.s32.totalorder %s19, 1
    %p56 = por %p54, %p55
    %p58 = scmp.ne.s32.totalorder %s41, %s57
    %p59 = scmp.eq.s32.totalorder %s19, 0
    %p60 = por %p58, %p59
    %s62 = sadd.s32 %s61, 1
    %p65 = scmp.eq.s32.totalorder %s13, 1
    %p66 = scmp.ne.s32.totalorder %s61, %s63
    %p67 = scmp.eq.s32.totalorder %s13, 0
    %p68 = por %p66, %p67
    %p69 = scmp.ne.s32.totalorder %s61, %s63
    %p70 = scmp.eq.s32.totalorder %s18, 1
    %p71 = por %p69, %p70
    %p72 = scmp.ne.s32.totalorder %s63, %s64
    %p73 = scmp.eq.s32.totalorder %s18, 0
    %p74 = por %p72, %p73
    %p75 = scmp.ne.s32.totalorder %s63, %s64
    %p76 = scmp.eq.s32.totalorder %s19, 1
    %p77 = por %p75, %p76
    %p79 = scmp.ne.s32.totalorder %s64, %s78
    %p80 = scmp.eq.s32.totalorder %s19, 0
    %p81 = por %p79, %p80
    %s83 = sadd.s32 %s82, 1
    %p86 = scmp.eq.s32.totalorder %s13, 1
    %p87 = scmp.ne.s32.totalorder %s82, %s84
    %p88 = scmp.eq.s32.totalorder %s13, 0
    %p89 = por %p87, %p88
    %p90 = scmp.ne.s32.totalorder %s82, %s84
    %p91 = scmp.eq.s32.totalorder %s18, 1
    %p92 = por %p90, %p91
    %p93 = scmp.ne.s32.totalorder %s84, %s85
    %p94 = scmp.eq.s32.totalorder %s18, 0
    %p95 = por %p93, %p94
    %p96 = scmp.ne.s32.totalorder %s84, %s85
    %p97 = scmp.eq.s32.totalorder %s19, 1
    %p98 = por %p96, %p97
    %p100 = scmp.ne.s32.totalorder %s85, %s99
    %p101 = scmp.eq.s32.totalorder %s19, 0
    %p102 = por %p100, %p101
    %s104 = sadd.s32 %s103, 1
    %p107 = scmp.eq.s32.totalorder %s13, 1
    %p108 = scmp.ne.s32.totalorder %s103, %s105
    %p109 = scmp.eq.s32.totalorder %s13, 0
    %p110 = por %p108, %p109
    %p111 = scmp.ne.s32.totalorder %s103, %s105
    %p112 = scmp.eq.s32.totalorder %s18, 1
    %p113 = por %p111, %p112
    %p114 = scmp.ne.s32.totalorder %s105, %s106
    %p115 = scmp.eq.s32.totalorder %s18, 0
    %p116 = por %p114, %p115
    %p117 = scmp.ne.s32.totalorder %s105, %s106
    %p118 = scmp.eq.s32.totalorder %s19, 1
    %p119 = por %p117, %p118
    %p121 = scmp.ne.s32.totalorder %s106, %s120
    %p122 = scmp.eq.s32.totalorder %s19, 0
    %p123 = por %p121, %p122
    %s125 = sadd.s32 %s124, 1
    %p128 = scmp.eq.s32.totalorder %s13, 1
    %p129 = scmp.ne.s32.totalorder %s124, %s126
    %p130 = scmp.eq.s32.totalorder %s13, 0
    %p131 = por %p129, %p130
    %p132 = scmp.ne.s32.totalorder %s124, %s126
    %p133 = scmp.eq.s32.totalorder %s18, 1
    %p134 = por %p132, %p133
    %p135 = scmp.ne.s32.totalorder %s126, %s127
    %p136 = scmp.eq.s32.totalorder %s18, 0
    %p137 = por %p135, %p136
    %p138 = scmp.ne.s32.totalorder %s126, %s127
    %p139 = scmp.eq.s32.totalorder %s19, 1
    %p140 = por %p138, %p139
    %p142 = scmp.ne.s32.totalorder %s127, %s141
    %p143 = scmp.eq.s32.totalorder %s19, 0
    %p144 = por %p142, %p143
    %s146 = sadd.s32 %s145, 1
    %p149 = scmp.eq.s32.totalorder %s13, 1
    %p150 = scmp.ne.s32.totalorder %s145, %s147
    %p151 = scmp.eq.s32.totalorder %s13, 0
    %p152 = por %p150, %p151
    %p153 = scmp.ne.s32.totalorder %s145, %s147
    %p154 = scmp.eq.s32.totalorder %s18, 1
    %p155 = por %p153, %p154
    %p156 = scmp.ne.s32.totalorder %s147, %s148
    %p157 = scmp.eq.s32.totalorder %s18, 0
    %p158 = por %p156, %p157
    %p159 = scmp.ne.s32.totalorder %s147, %s148
    %p160 = scmp.eq.s32.totalorder %s19, 1
    %p161 = por %p159, %p160
    %p163 = scmp.ne.s32.totalorder %s148, %s162
    %p164 = scmp.eq.s32.totalorder %s19, 0
    %p165 = por %p163, %p164
    %s167 = sadd.s32 %s166, 1
    %p170 = scmp.eq.s32.totalorder %s13, 1
    %p171 = scmp.ne.s32.totalorder %s166, %s168
    %p172 = scmp.eq.s32.totalorder %s13, 0
    %p173 = por %p171, %p172
    %p174 = scmp.ne.s32.totalorder %s166, %s168
    %p175 = scmp.eq.s32.totalorder %s18, 1
    %p176 = por %p174, %p175
    %p177 = scmp.ne.s32.totalorder %s168, %s169
    %p178 = scmp.eq.s32.totalorder %s18, 0
    %p179 = por %p177, %p178
    %p180 = scmp.ne.s32.totalorder %s168, %s169
    %p181 = scmp.eq.s32.totalorder %s19, 1
    %p182 = por %p180, %p181
    %p184 = scmp.ne.s32.totalorder %s169, %s183
    %p185 = scmp.eq.s32.totalorder %s19, 0
    %p186 = por %p184, %p185
    %s187 = ssub.s32 %s20, %s32
    %s188 = ssub.s32 %s21, %s28
    %s189 = sor.u32 %s187, %s188
    %p190 = scmp.eq.s32.totalorder %s189, 0
    %s192 = sadd.s32 %s191, 1
    %s193 = scalar_select %p190, %s191, %s192
    %p196 = pneg %p190
    %p197 = scmp.eq.s32.totalorder %s13, 1
    %p198 = por %p196, %p197
    %p199 = scmp.ne.s32.totalorder %s191, %s194
    %p200 = scmp.eq.s32.totalorder %s13, 0
    %p201 = por %p199, %p200
    %p202 = scmp.ne.s32.totalorder %s191, %s194
    %p203 = scmp.eq.s32.totalorder %s18, 1
    %p204 = por %p202, %p203
    %p205 = scmp.ne.s32.totalorder %s194, %s195
    %p206 = scmp.eq.s32.totalorder %s18, 0
    %p207 = por %p205, %p206
    %p208 = scmp.ne.s32.totalorder %s194, %s195
    %p209 = scmp.eq.s32.totalorder %s19, 1
    %p210 = por %p208, %p209
    %p212 = scmp.ne.s32.totalorder %s195, %s211
    %p213 = scmp.eq.s32.totalorder %s19, 0
    %p214 = por %p212, %p213
    %p215 = scmp.le.s32.totalorder 1, %s13
    %p216 = scmp.lt.s32.totalorder %s13, 3
    %p217 = pnand %p215, %p216
    %p218 = pneg %p217
    // Predicated region
    $region9: #{timesformer_forward.11} parent=5 // pred_check
      _
    $region10: #{timesformer_forward.11} parent=5 // pred_check_branch
      %220 = sbr.rel (%p217) target = $region12
    $region11: #{timesformer_forward.11} parent=5 // pred_region
      %s221 = ssub.s32 %s13, 1
      // Predicated region
      $region13: #{timesformer_forward.11} parent=11 // pred_check
        %p222 = pneg %p74
      $region14: #{timesformer_forward.11} parent=11 // pred_check_branch
        %224 = sbr.rel (%p222) target = $region16
      $region15: #{timesformer_forward.11} parent=11 // pred_region
        _
      $region16: #{timesformer_forward.11} parent=11 // pred_fallthru
        _
      // Predicated region
      $region17: #{timesformer_forward.11} parent=11 // pred_check
        %p225 = pneg %p95
      $region18: #{timesformer_forward.11} parent=11 // pred_check_branch
        %227 = sbr.rel (%p225) target = $region20
      $region19: #{timesformer_forward.11} parent=11 // pred_region
        _
      $region20: #{timesformer_forward.11} parent=11 // pred_fallthru
        _
      // Predicated region
      $region21: #{timesformer_forward.11} parent=11 // pred_check
        %p228 = pneg %p116
      $region22: #{timesformer_forward.11} parent=11 // pred_check_branch
        %230 = sbr.rel (%p228) target = $region24
      $region23: #{timesformer_forward.11} parent=11 // pred_region
        _
      $region24: #{timesformer_forward.11} parent=11 // pred_fallthru
        _
      // Predicated region
      $region25: #{timesformer_forward.11} parent=11 // pred_check
        %p231 = pneg %p137
      $region26: #{timesformer_forward.11} parent=11 // pred_check_branch
        %233 = sbr.rel (%p231) target = $region28
      $region27: #{timesformer_forward.11} parent=11 // pred_region
        _
      $region28: #{timesformer_forward.11} parent=11 // pred_fallthru
        _
      // Predicated region
      $region29: #{timesformer_forward.11} parent=11 // pred_check
        %p234 = pneg %p158
      $region30: #{timesformer_forward.11} parent=11 // pred_check_branch
        %236 = sbr.rel (%p234) target = $region32
      $region31: #{timesformer_forward.11} parent=11 // pred_region
        _
      $region32: #{timesformer_forward.11} parent=11 // pred_fallthru
        _
      // Predicated region
      $region33: #{timesformer_forward.11} parent=11 // pred_check
        %p237 = pneg %p179
      $region34: #{timesformer_forward.11} parent=11 // pred_check_branch
        %239 = sbr.rel (%p237) target = $region36
      $region35: #{timesformer_forward.11} parent=11 // pred_region
        _
      $region36: #{timesformer_forward.11} parent=11 // pred_fallthru
        _
    $region12: #{timesformer_forward.11} parent=5 // pred_fallthru
      _
    %p240 = scmp.lt.s32.totalorder %s13, 2
    // Predicated region
    $region37: #{timesformer_forward.11} parent=5 // pred_check
      %p241 = pneg %p240
    $region38: #{timesformer_forward.11} parent=5 // pred_check_branch
      %243 = sbr.rel (%p241) target = $region40
    $region39: #{timesformer_forward.11} parent=5 // pred_region
      // Predicated region
      $region41: #{timesformer_forward.11} parent=39 // pred_check
        %p244 = pneg %p47
      $region42: #{timesformer_forward.11} parent=39 // pred_check_branch
        %246 = sbr.rel (%p244) target = $region44
      $region43: #{timesformer_forward.11} parent=39 // pred_region
        %p247 = scmp.lt.s32.totalorder %s20, 1
        %s248 = scalar_select %p247, %s20, 1
        %p249 = scmp.lt.s32.totalorder %s21, 0
        %s250 = scalar_select %p249, %s21, 0
        %s251 = smul.addr %s248, 2
        %s252 = sadd.s32 %s250, %s251
        %s253 = smul.addr %s252, 8
        %s254 = scalar_lea.vmem %s0, %s253
      $region44: #{timesformer_forward.11} parent=39 // pred_fallthru
        _
    $region40: #{timesformer_forward.11} parent=5 // pred_fallthru
      _
    %p255 = scmp.le.s32.totalorder 1, %s13
    %p256 = scmp.lt.s32.totalorder %s13, 3
    %p257 = pnand %p255, %p256
    %p258 = pneg %p257
    // Predicated region
    $region45: #{timesformer_forward.11} parent=5 // pred_check
      _
    $region46: #{timesformer_forward.11} parent=5 // pred_check_branch
      %260 = sbr.rel (%p257) target = $region48
    $region47: #{timesformer_forward.11} parent=5 // pred_region
      %s261 = ssub.s32 %s13, 1
      %p262 = scmp.lt.s32.totalorder %s22, 1
      %s263 = scalar_select %p262, %s22, 1
      %p264 = scmp.lt.s32.totalorder %s23, 0
      %s265 = scalar_select %p264, %s23, 0
      %s266 = smul.addr %s263, 2
      %s267 = sadd.s32 %s265, %s266
      %s268 = smul.addr %s267, 8
      %s269 = scalar_lea.vmem %s0, %s268
      %p270 = pneg %p53
      %p271 = pneg %p50
      %p272 = pneg %p74
      %p273 = pneg %p71
      %p274 = pneg %p95
      %p275 = pneg %p92
      %p276 = pneg %p116
      %p277 = pneg %p113
      %p278 = pneg %p137
      %p279 = pneg %p134
      %p280 = pneg %p158
      %p281 = pneg %p155
      %p282 = pneg %p179
      %p283 = pneg %p176
      %p284 = pneg %p207
      %p285 = pneg %p204
      %p286 = scmp.lt.s32.totalorder %s22, 1
      %s287 = scalar_select %p286, %s22, 1
      %p288 = scmp.lt.s32.totalorder %s23, 0
      %s289 = scalar_select %p288, %s23, 0
      %s290 = smul.addr %s287, 2
      %s291 = sadd.s32 %s289, %s290
      %s292 = smul.addr %s291, 8
      %s293 = scalar_lea.vmem %s7, %s292
      %p294 = scmp.lt.s32.totalorder %s22, 1
      %s295 = scalar_select %p294, %s22, 1
      %p296 = scmp.lt.s32.totalorder %s23, 0
      %s297 = scalar_select %p296, %s23, 0
      %s298 = smul.addr %s295, 2
      %s299 = sadd.s32 %s297, %s298
      %s300 = smul.addr %s299, 8
      %s301 = scalar_lea.vmem %s0, %s300
      %p302 = scmp.lt.s32.totalorder %s22, 1
      %s303 = scalar_select %p302, %s22, 1
      %p304 = scmp.lt.s32.totalorder %s23, 0
      %s305 = scalar_select %p304, %s23, 0
      %s306 = smul.addr %s303, 2
      %s307 = sadd.s32 %s305, %s306
      %s308 = smul.addr %s307, 8
      %s309 = scalar_lea.vmem %s7, %s308
      %v311 = vld [vmem:[%s301] sm:$0x1f]
      %v313 = vcombine.high %v311, %v311
      %v315 = vunpack.c.l.s4 1966171168
      %v316 = vunpack.c.0.s8 %v315
      %v317 = vlaneseq
      %v318 = vshrl.u32 %v317, 7
      %v319 = vsub.s32 %v316, %v318
      %v320 = vrot.slane %v311, %v319
      %v322 = vunpack.c.l.s4 1966171168
      %v323 = vunpack.c.0.s8 %v322
      %v324 = vlaneseq
      %v325 = vshrl.u32 %v324, 7
      %v326 = vsub.s32 %v323, %v325
      %v327 = vrot.slane %v313, %v326
      %v328 = vcombine.high %v320, %v320
      %v330 = vunpack.c.l.s4 1966171168
      %v331 = vunpack.c.0.s8 %v330
      %v332 = vlaneseq
      %v333 = vshrl.u32 %v332, 7
      %v334 = vsub.s32 %v331, %v333
      %v335 = vrot.slane %v320, %v334
      %v337 = vunpack.c.l.s4 1966171168
      %v338 = vunpack.c.0.s8 %v337
      %v339 = vlaneseq
      %v340 = vshrl.u32 %v339, 7
      %v341 = vsub.s32 %v338, %v340
      %v342 = vrot.slane %v327, %v341
      %v344 = vunpack.c.l.s4 1966171168
      %v345 = vunpack.c.0.s8 %v344
      %v346 = vlaneseq
      %v347 = vshrl.u32 %v346, 7
      %v348 = vsub.s32 %v345, %v347
      %v349 = vrot.slane %v328, %v348
      %v350 = vcombine.high %v335, %v335
      %v351 = vcombine.high %v349, %v349
      %vm357 = vcmask 253952
      %358 = vst.msk [vmem:[#allocation2] sm:$0x1] %vm357, %v335
      %359 = vst.msk [vmem:[#allocation2 + $0x2] sm:$0x1] %vm357, %v349
      %360 = vst.msk [vmem:[#allocation2 + $0x4] sm:$0x1] %vm357, %v350
      %361 = vst.msk [vmem:[#allocation2 + $0x6] sm:$0x1] %vm357, %v351
      %362 = vst.msk [vmem:[#allocation2 + $0x8] sm:$0x1] %vm357, %v342
      %s363 = scalar_lea.vmem %s301, 8
      %v364 = vld [vmem:[%s363] sm:$0x1f]
      %v366 = vcombine.high %v364, %v364
      %v368 = vunpack.c.l.s4 1966171168
      %v369 = vunpack.c.0.s8 %v368
      %v370 = vlaneseq
      %v371 = vshrl.u32 %v370, 7
      %v372 = vsub.s32 %v369, %v371
      %v373 = vrot.slane %v364, %v372
      %v375 = vunpack.c.l.s4 1966171168
      %v376 = vunpack.c.0.s8 %v375
      %v377 = vlaneseq
      %v378 = vshrl.u32 %v377, 7
      %v379 = vsub.s32 %v376, %v378
      %v380 = vrot.slane %v366, %v379
      %v381 = vcombine.high %v373, %v373
      %v383 = vunpack.c.l.s4 1966171168
      %v384 = vunpack.c.0.s8 %v383
      %v385 = vlaneseq
      %v386 = vshrl.u32 %v385, 7
      %v387 = vsub.s32 %v384, %v386
      %v388 = vrot.slane %v373, %v387
      %v390 = vunpack.c.l.s4 1966171168
      %v391 = vunpack.c.0.s8 %v390
      %v392 = vlaneseq
      %v393 = vshrl.u32 %v392, 7
      %v394 = vsub.s32 %v391, %v393
      %v395 = vrot.slane %v380, %v394
      %v397 = vunpack.c.l.s4 1966171168
      %v398 = vunpack.c.0.s8 %v397
      %v399 = vlaneseq
      %v400 = vshrl.u32 %v399, 7
      %v401 = vsub.s32 %v398, %v400
      %v402 = vrot.slane %v381, %v401
      %v403 = vcombine.high %v388, %v388
      %v404 = vcombine.high %v402, %v402
      %410 = vst.msk [vmem:[#allocation2 + $0x1] sm:$0x1] %vm357, %v388
      %411 = vst.msk [vmem:[#allocation2 + $0x3] sm:$0x1] %vm357, %v402
      %412 = vst.msk [vmem:[#allocation2 + $0x5] sm:$0x1] %vm357, %v403
      %413 = vst.msk [vmem:[#allocation2 + $0x7] sm:$0x1] %vm357, %v404
      %414 = vst.msk [vmem:[#allocation2 + $0x9] sm:$0x1] %vm357, %v395
      %v415 = vld [vmem:[#allocation2] sm:$0x3]
      %v416 = vld [vmem:[#allocation2 + $0x2] sm:$0x3]
      %v417 = vld [vmem:[#allocation2 + $0x4] sm:$0x3]
      %v418 = vld [vmem:[#allocation2 + $0x6] sm:$0x3]
      %v419 = vld [vmem:[#allocation2 + $0x8] sm:$0x3]
      %v420 = vld [vmem:[%s1] sm:$0x1]
      %v421 = vld [vmem:[%s2] sm:$0x1]
      %v422 = vld [vmem:[%s3] sm:$0xf]
      %v423 = vld [vmem:[%s3 + $0x4] sm:$0xf]
      %v424 = vld [vmem:[%s3 + $0x8] sm:$0xf]
      %v425 = vld [vmem:[%s3 + $0xc] sm:$0xf]
      %v426 = vld [vmem:[%s4] sm:$0x1]
      %v427 = vld [vmem:[%s5] sm:$0xf]
      %v428 = vld [vmem:[%s5 + $0x4] sm:$0xf]
      %v429 = vld [vmem:[%s5 + $0x8] sm:$0xf]
      %v430 = vld [vmem:[%s5 + $0xc] sm:$0xf]
      %v431 = vld [vmem:[%s6] sm:$0x1]
      %vm432 = vcmask 254976
      %v433 = vsel %vm432, %v415, 0.0
      %434 = vadd.xlane.f32.xlu0 %v433
      %v435 = vpop.xlane.xlu0 %434
      %v436 = vsel %vm432, %v416, 0.0
      %437 = vadd.xlane.f32.xlu0 %v436
      %v438 = vpop.xlane.xlu0 %437
      %v439 = vsel %vm432, %v417, 0.0
      %440 = vadd.xlane.f32.xlu0 %v439
      %v441 = vpop.xlane.xlu0 %440
      %v442 = vsel %vm432, %v418, 0.0
      %443 = vadd.xlane.f32.xlu0 %v442
      %v444 = vpop.xlane.xlu0 %443
      %v445 = vsel %vm432, %v419, 0.0
      %446 = vadd.xlane.f32.xlu0 %v445
      %v447 = vpop.xlane.xlu0 %446
      %v448 = vrcp.pop 32.0
      %v449 = vmul.f32 %v435, %v448
      %v450 = vmul.f32 %v438, %v448
      %v451 = vmul.f32 %v441, %v448
      %v452 = vmul.f32 %v444, %v448
      %v453 = vmul.f32 %v447, %v448
      %v454 = vsub.f32 %v415, %v449
      %v455 = vsub.f32 %v416, %v450
      %v456 = vsub.f32 %v417, %v451
      %v457 = vsub.f32 %v418, %v452
      %v458 = vsub.f32 %v419, %v453
      %v459 = vmul.f32 %v454, %v454
      %v460 = vmul.f32 %v455, %v455
      %v461 = vmul.f32 %v456, %v456
      %v462 = vmul.f32 %v457, %v457
      %v463 = vmul.f32 %v458, %v458
      %v464 = vsel %vm432, %v459, 0.0
      %465 = vadd.xlane.f32.xlu0 %v464
      %v466 = vpop.xlane.xlu0 %465
      %v467 = vsel %vm432, %v460, 0.0
      %468 = vadd.xlane.f32.xlu0 %v467
      %v469 = vpop.xlane.xlu0 %468
      %v470 = vsel %vm432, %v461, 0.0
      %471 = vadd.xlane.f32.xlu0 %v470
      %v472 = vpop.xlane.xlu0 %471
      %v473 = vsel %vm432, %v462, 0.0
      %474 = vadd.xlane.f32.xlu0 %v473
      %v475 = vpop.xlane.xlu0 %474
      %v476 = vsel %vm432, %v463, 0.0
      %477 = vadd.xlane.f32.xlu0 %v476
      %v478 = vpop.xlane.xlu0 %477
      %v479 = vmul.f32 %v466, %v448
      %v480 = vmul.f32 %v469, %v448
      %v481 = vmul.f32 %v472, %v448
      %v482 = vmul.f32 %v475, %v448
      %v483 = vmul.f32 %v478, %v448
      %v484 = vadd.f32 %v479, 1e-05
      %v485 = vadd.f32 %v480, 1e-05
      %v486 = vadd.f32 %v481, 1e-05
      %v487 = vadd.f32 %v482, 1e-05
      %v488 = vadd.f32 %v483, 1e-05
      %v489 = vrsqrt.pop %v484
      %v490 = vrsqrt.pop %v485
      %v491 = vrsqrt.pop %v486
      %v492 = vrsqrt.pop %v487
      %v493 = vrsqrt.pop %v488
      %v494 = vmul.f32 %v454, %v489
      %v495 = vmul.f32 %v455, %v490
      %v496 = vmul.f32 %v456, %v491
      %v497 = vmul.f32 %v457, %v492
      %v498 = vmul.f32 %v458, %v493
      %v500 = vlaneseq
      %v501 = vshrl.u32 %v500, 7
      %v502 = vsub.s32 0, %v501
      %v503 = vrot.slane %v420, %v502
      %v505 = vmul.f32 %v494, %v503
      %v506 = vmul.f32 %v495, %v503
      %v507 = vmul.f32 %v496, %v503
      %v508 = vmul.f32 %v497, %v503
      %v509 = vmul.f32 %v498, %v503
      %v511 = vlaneseq
      %v512 = vshrl.u32 %v511, 7
      %v513 = vsub.s32 0, %v512
      %v514 = vrot.slane %v421, %v513
      %v516 = vadd.f32 %v505, %v514
      %v517 = vadd.f32 %v506, %v514
      %v518 = vadd.f32 %v507, %v514
      %v519 = vadd.f32 %v508, %v514
      %v520 = vadd.f32 %v509, %v514
      %v526 = vcombine.low %v516, %v517
      %v527 = vcombine.low %v518, %v519
      %v529 = vunpack.c.l.s4 1983009808
      %v530 = vunpack.c.0.s8 %v529
      %v531 = vlaneseq
      %v532 = vshrl.u32 %v531, 7
      %v533 = vsub.s32 %v530, %v532
      %v534 = vrot.slane %v526, %v533
      %v536 = vunpack.c.l.s4 1983009808
      %v537 = vunpack.c.0.s8 %v536
      %v538 = vlaneseq
      %v539 = vshrl.u32 %v538, 7
      %v540 = vsub.s32 %v537, %v539
      %v541 = vrot.slane %v527, %v540
      %v542 = vcombine.low %v534, %v541
      %v544 = vunpack.c.l.s4 1983009808
      %v545 = vunpack.c.0.s8 %v544
      %v546 = vlaneseq
      %v547 = vshrl.u32 %v546, 7
      %v548 = vsub.s32 %v545, %v547
      %v549 = vrot.slane %v520, %v548
      %v552 = vpack.c.bf16 %v549, %v542
      %v554 = vlaneseq
      %v555 = vshrl.u32 %v554, 7
      %v556 = vsub.s32 0, %v555
      %v557 = vrot.slane %v426, %v556
      %v563 = vunpack.c.l.b16 %v422
      %v564 = vunpack.c.l.b16 %v423
      %v565 = vunpack.c.l.b16 %v424
      %v566 = vunpack.c.l.b16 %v425
      %v567 = vpack.c.b16 %v564, %v563
      %v568 = vpack.c.b16 %v566, %v565
      %vm571 = vcmask 261120
      %v573 = vsel %vm571, %v552, 0
      %575 = vmatprep.subr.bf16.mxu0 0
      %576 = vmatpush1.bf16.msra.mxu0 %v567
      %577 = vmatprep.subr.bf16.mxu0 0
      %578 = vmatpush1.bf16.msra.mxu0 %v568
      %579 = vmatprep.subr.bf16.mxu0 0
      %580 = vmatpush1.bf16.msra.mxu0 0
      %581 = vmatprep.subr.bf16.mxu0 0
      %582 = vmatpush1.bf16.msra.mxu0 0
      %583 = vmatprep.subr.bf16.mxu0 0
      %584 = vmatpush1.bf16.msra.mxu0 0
      %585 = vmatprep.subr.bf16.mxu0 0
      %586 = vmatpush1.bf16.msra.mxu0 0
      %587 = vmatprep.subr.bf16.mxu0 0
      %588 = vmatpush1.bf16.msra.mxu0 0
      %589 = vmatprep.subr.bf16.mxu0 0
      %590 = vmatpush1.bf16.msra.mxu0 0
      %591 = vmatprep.subr.bf16.mxu0 0
      %592 = vmatpush1.bf16.msra.mxu0 0
      %593 = vmatprep.subr.bf16.mxu0 0
      %594 = vmatpush1.bf16.msra.mxu0 0
      %595 = vmatprep.subr.bf16.mxu0 0
      %596 = vmatpush1.bf16.msra.mxu0 0
      %597 = vmatprep.subr.bf16.mxu0 0
      %598 = vmatpush1.bf16.msra.mxu0 0
      %599 = vmatprep.subr.bf16.mxu0 0
      %600 = vmatpush1.bf16.msra.mxu0 0
      %601 = vmatprep.subr.bf16.mxu0 0
      %602 = vmatpush1.bf16.msra.mxu0 0
      %603 = vmatprep.subr.bf16.mxu0 0
      %604 = vmatpush1.bf16.msra.mxu0 0
      %605 = vmatprep.subr.bf16.mxu0 0
      %606 = vmatpush1.bf16.msra.mxu0 0
      %607 = vmatprep.mubr.bf16.mxu0 0
      %608 = vmatmul.mubr.bf16.gmra.mrb[0].mxu0 %v573
      %v609 = vpop.f32.mrb[0].mxu0
      %v610 = vadd.f32 %v557, %v609
      %v611 = vpop.f32.mrb[0].mxu0
      %v612 = vpop.f32.mrb[0].mxu0
      %v613 = vadd.f32 %v557, %v612
      %v614 = vpop.f32.mrb[0].mxu0
      %615 = vdwg.mxu0
      %v616 = vpack.c.bf16 %v613, %v610
      %v618 = vcombine.high %v616, %v616
      %v620 = vunpack.c.l.s4 1966171168
      %v621 = vunpack.c.0.s8 %v620
      %v622 = vlaneseq
      %v623 = vshrl.u32 %v622, 7
      %v624 = vsub.s32 %v621, %v623
      %v625 = vrot.slane %v616, %v624
      %v627 = vunpack.c.l.s4 1966171168
      %v628 = vunpack.c.0.s8 %v627
      %v629 = vlaneseq
      %v630 = vshrl.u32 %v629, 7
      %v631 = vsub.s32 %v628, %v630
      %v632 = vrot.slane %v618, %v631
      %v633 = vcombine.high %v625, %v625
      %v635 = vunpack.c.l.s4 1966171168
      %v636 = vunpack.c.0.s8 %v635
      %v637 = vlaneseq
      %v638 = vshrl.u32 %v637, 7
      %v639 = vsub.s32 %v636, %v638
      %v640 = vrot.slane %v625, %v639
      %v642 = vunpack.c.l.s4 1966171168
      %v643 = vunpack.c.0.s8 %v642
      %v644 = vlaneseq
      %v645 = vshrl.u32 %v644, 7
      %v646 = vsub.s32 %v643, %v645
      %v647 = vrot.slane %v632, %v646
      %v649 = vunpack.c.l.s4 1966171168
      %v650 = vunpack.c.0.s8 %v649
      %v651 = vlaneseq
      %v652 = vshrl.u32 %v651, 7
      %v653 = vsub.s32 %v650, %v652
      %v654 = vrot.slane %v633, %v653
      %v655 = vcombine.high %v640, %v640
      %v656 = vcombine.high %v654, %v654
      %v658 = vunpack.c.l.s4 1966171168
      %v659 = vunpack.c.0.s8 %v658
      %v660 = vlaneseq
      %v661 = vshrl.u32 %v660, 7
      %v662 = vsub.s32 %v659, %v661
      %v663 = vrot.slane %v640, %v662
      %v665 = vunpack.c.l.s4 1966171168
      %v666 = vunpack.c.0.s8 %v665
      %v667 = vlaneseq
      %v668 = vshrl.u32 %v667, 7
      %v669 = vsub.s32 %v666, %v668
      %v670 = vrot.slane %v663, %v669
      %671 = vrot.lane.b32.xlu0 %v670, 96
      %v672 = vpop.permute.xlu0 %671
      %vm673 = vcmask 64512
      %v675 = vsel %vm673, %v640, 0
      %v678 = vsel %vm673, %v672, 0
      %680 = vmatprep.subr.bf16.mxu0 0
      %681 = vmatpush1.bf16.xpose.msra.mxu0 %v678
      %682 = vmatprep.subr.bf16.mxu0 0
      %683 = vmatpush1.bf16.xpose.msra.mxu0 0
      %684 = vmatprep.subr.bf16.mxu0 0
      %685 = vmatpush1.bf16.xpose.msra.mxu0 0
      %686 = vmatprep.subr.bf16.mxu0 0
      %687 = vmatpush1.bf16.xpose.msra.mxu0 0
      %688 = vmatprep.subr.bf16.mxu0 0
      %689 = vmatpush1.bf16.xpose.msra.mxu0 0
      %690 = vmatprep.subr.bf16.mxu0 0
      %691 = vmatpush1.bf16.xpose.msra.mxu0 0
      %692 = vmatprep.subr.bf16.mxu0 0
      %693 = vmatpush1.bf16.xpose.msra.mxu0 0
      %694 = vmatprep.subr.bf16.mxu0 0
      %695 = vmatpush1.bf16.xpose.msra.mxu0 0
      %696 = vmatprep.subr.bf16.mxu0 0
      %697 = vmatpush1.bf16.xpose.msra.mxu0 0
      %698 = vmatprep.subr.bf16.mxu0 0
      %699 = vmatpush1.bf16.xpose.msra.mxu0 0
      %700 = vmatprep.subr.bf16.mxu0 0
      %701 = vmatpush1.bf16.xpose.msra.mxu0 0
      %702 = vmatprep.subr.bf16.mxu0 0
      %703 = vmatpush1.bf16.xpose.msra.mxu0 0
      %704 = vmatprep.subr.bf16.mxu0 0
      %705 = vmatpush1.bf16.xpose.msra.mxu0 0
      %706 = vmatprep.subr.bf16.mxu0 0
      %707 = vmatpush1.bf16.xpose.msra.mxu0 0
      %708 = vmatprep.subr.bf16.mxu0 0
      %709 = vmatpush1.bf16.xpose.msra.mxu0 0
      %710 = vmatprep.subr.bf16.mxu0 0
      %711 = vmatpush1.bf16.xpose.msra.mxu0 0
      %712 = vmatprep.mubr.bf16.mxu0 0
      %713 = vmatmul.mubr.bf16.gmra.mrb[0].mxu0 %v675
      %v714 = vpop.f32.mrb[0].mxu0
      %v715 = vadd.f32 0.0, %v714
      %v716 = vpop.f32.mrb[0].mxu0
      %v717 = vpop.f32.mrb[0].mxu0
      %v718 = vpop.f32.mrb[0].mxu0
      %719 = vdwg.mxu0
      %v721 = vunpack.c.l.s4 1966171168
      %v722 = vunpack.c.0.s8 %v721
      %v723 = vlaneseq
      %v724 = vshrl.u32 %v723, 7
      %v725 = vsub.s32 %v722, %v724
      %v726 = vrot.slane %v654, %v725
      %v728 = vunpack.c.l.s4 1966171168
      %v729 = vunpack.c.0.s8 %v728
      %v730 = vlaneseq
      %v731 = vshrl.u32 %v730, 7
      %v732 = vsub.s32 %v729, %v731
      %v733 = vrot.slane %v726, %v732
      %734 = vrot.lane.b32.xlu0 %v733, 96
      %v735 = vpop.permute.xlu0 %734
      %v737 = vsel %vm673, %v654, 0
      %v740 = vsel %vm673, %v735, 0
      %742 = vmatprep.subr.bf16.mxu0 0
      %743 = vmatpush1.bf16.xpose.msra.mxu0 %v740
      %744 = vmatprep.subr.bf16.mxu0 0
      %745 = vmatpush1.bf16.xpose.msra.mxu0 0
      %746 = vmatprep.subr.bf16.mxu0 0
      %747 = vmatpush1.bf16.xpose.msra.mxu0 0
      %748 = vmatprep.subr.bf16.mxu0 0
      %749 = vmatpush1.bf16.xpose.msra.mxu0 0
      %750 = vmatprep.subr.bf16.mxu0 0
      %751 = vmatpush1.bf16.xpose.msra.mxu0 0
      %752 = vmatprep.subr.bf16.mxu0 0
      %753 = vmatpush1.bf16.xpose.msra.mxu0 0
      %754 = vmatprep.subr.bf16.mxu0 0
      %755 = vmatpush1.bf16.xpose.msra.mxu0 0
      %756 = vmatprep.subr.bf16.mxu0 0
      %757 = vmatpush1.bf16.xpose.msra.mxu0 0
      %758 = vmatprep.subr.bf16.mxu0 0
      %759 = vmatpush1.bf16.xpose.msra.mxu0 0
      %760 = vmatprep.subr.bf16.mxu0 0
      %761 = vmatpush1.bf16.xpose.msra.mxu0 0
      %762 = vmatprep.subr.bf16.mxu0 0
      %763 = vmatpush1.bf16.xpose.msra.mxu0 0
      %764 = vmatprep.subr.bf16.mxu0 0
      %765 = vmatpush1.bf16.xpose.msra.mxu0 0
      %766 = vmatprep.subr.bf16.mxu0 0
      %767 = vmatpush1.bf16.xpose.msra.mxu0 0
      %768 = vmatprep.subr.bf16.mxu0 0
      %769 = vmatpush1.bf16.xpose.msra.mxu0 0
      %770 = vmatprep.subr.bf16.mxu0 0
      %771 = vmatpush1.bf16.xpose.msra.mxu0 0
      %772 = vmatprep.subr.bf16.mxu0 0
      %773 = vmatpush1.bf16.xpose.msra.mxu0 0
      %774 = vmatprep.mubr.bf16.mxu0 0
      %775 = vmatmul.mubr.bf16.gmra.mrb[0].mxu0 %v737
      %v776 = vpop.f32.mrb[0].mxu0
      %v777 = vadd.f32 0.0, %v776
      %v778 = vpop.f32.mrb[0].mxu0
      %v779 = vpop.f32.mrb[0].mxu0
      %v780 = vpop.f32.mrb[0].mxu0
      %781 = vdwg.mxu0
      %v783 = vunpack.c.l.s4 1966171168
      %v784 = vunpack.c.0.s8 %v783
      %v785 = vlaneseq
      %v786 = vshrl.u32 %v785, 7
      %v787 = vsub.s32 %v784, %v786
      %v788 = vrot.slane %v655, %v787
      %v790 = vunpack.c.l.s4 1966171168
      %v791 = vunpack.c.0.s8 %v790
      %v792 = vlaneseq
      %v793 = vshrl.u32 %v792, 7
      %v794 = vsub.s32 %v791, %v793
      %v795 = vrot.slane %v788, %v794
      %796 = vrot.lane.b32.xlu0 %v795, 96
      %v797 = vpop.permute.xlu0 %796
      %v799 = vsel %vm673, %v655, 0
      %v802 = vsel %vm673, %v797, 0
      %804 = vmatprep.subr.bf16.mxu0 0
      %805 = vmatpush1.bf16.xpose.msra.mxu0 %v802
      %806 = vmatprep.subr.bf16.mxu0 0
      %807 = vmatpush1.bf16.xpose.msra.mxu0 0
      %808 = vmatprep.subr.bf16.mxu0 0
      %809 = vmatpush1.bf16.xpose.msra.mxu0 0
      %810 = vmatprep.subr.bf16.mxu0 0
      %811 = vmatpush1.bf16.xpose.msra.mxu0 0
      %812 = vmatprep.subr.bf16.mxu0 0
      %813 = vmatpush1.bf16.xpose.msra.mxu0 0
      %814 = vmatprep.subr.bf16.mxu0 0
      %815 = vmatpush1.bf16.xpose.msra.mxu0 0
      %816 = vmatprep.subr.bf16.mxu0 0
      %817 = vmatpush1.bf16.xpose.msra.mxu0 0
      %818 = vmatprep.subr.bf16.mxu0 0
      %819 = vmatpush1.bf16.xpose.msra.mxu0 0
      %820 = vmatprep.subr.bf16.mxu0 0
      %821 = vmatpush1.bf16.xpose.msra.mxu0 0
      %822 = vmatprep.subr.bf16.mxu0 0
      %823 = vmatpush1.bf16.xpose.msra.mxu0 0
      %824 = vmatprep.subr.bf16.mxu0 0
      %825 = vmatpush1.bf16.xpose.msra.mxu0 0
      %826 = vmatprep.subr.bf16.mxu0 0
      %827 = vmatpush1.bf16.xpose.msra.mxu0 0
      %828 = vmatprep.subr.bf16.mxu0 0
      %829 = vmatpush1.bf16.xpose.msra.mxu0 0
      %830 = vmatprep.subr.bf16.mxu0 0
      %831 = vmatpush1.bf16.xpose.msra.mxu0 0
      %832 = vmatprep.subr.bf16.mxu0 0
      %833 = vmatpush1.bf16.xpose.msra.mxu0 0
      %834 = vmatprep.subr.bf16.mxu0 0
      %835 = vmatpush1.bf16.xpose.msra.mxu0 0
      %836 = vmatprep.mubr.bf16.mxu0 0
      %837 = vmatmul.mubr.bf16.gmra.mrb[0].mxu0 %v799
      %v838 = vpop.f32.mrb[0].mxu0
      %v839 = vadd.f32 0.0, %v838
      %v840 = vpop.f32.mrb[0].mxu0
      %v841 = vpop.f32.mrb[0].mxu0
      %v842 = vpop.f32.mrb[0].mxu0
      %843 = vdwg.mxu0
      %v845 = vunpack.c.l.s4 1966171168
      %v846 = vunpack.c.0.s8 %v845
      %v847 = vlaneseq
      %v848 = vshrl.u32 %v847, 7
      %v849 = vsub.s32 %v846, %v848
      %v850 = vrot.slane %v656, %v849
      %v852 = vunpack.c.l.s4 1966171168
      %v853 = vunpack.c.0.s8 %v852
      %v854 = vlaneseq
      %v855 = vshrl.u32 %v854, 7
      %v856 = vsub.s32 %v853, %v855
      %v857 = vrot.slane %v850, %v856
      %858 = vrot.lane.b32.xlu0 %v857, 96
      %v859 = vpop.permute.xlu0 %858
      %v861 = vsel %vm673, %v656, 0
      %v864 = vsel %vm673, %v859, 0
      %866 = vmatprep.subr.bf16.mxu0 0
      %867 = vmatpush1.bf16.xpose.msra.mxu0 %v864
      %868 = vmatprep.subr.bf16.mxu0 0
      %869 = vmatpush1.bf16.xpose.msra.mxu0 0
      %870 = vmatprep.subr.bf16.mxu0 0
      %871 = vmatpush1.bf16.xpose.msra.mxu0 0
      %872 = vmatprep.subr.bf16.mxu0 0
      %873 = vmatpush1.bf16.xpose.msra.mxu0 0
      %874 = vmatprep.subr.bf16.mxu0 0
      %875 = vmatpush1.bf16.xpose.msra.mxu0 0
      %876 = vmatprep.subr.bf16.mxu0 0
      %877 = vmatpush1.bf16.xpose.msra.mxu0 0
      %878 = vmatprep.subr.bf16.mxu0 0
      %879 = vmatpush1.bf16.xpose.msra.mxu0 0
      %880 = vmatprep.subr.bf16.mxu0 0
      %881 = vmatpush1.bf16.xpose.msra.mxu0 0
      %882 = vmatprep.subr.bf16.mxu0 0
      %883 = vmatpush1.bf16.xpose.msra.mxu0 0
      %884 = vmatprep.subr.bf16.mxu0 0
      %885 = vmatpush1.bf16.xpose.msra.mxu0 0
      %886 = vmatprep.subr.bf16.mxu0 0
      %887 = vmatpush1.bf16.xpose.msra.mxu0 0
      %888 = vmatprep.subr.bf16.mxu0 0
      %889 = vmatpush1.bf16.xpose.msra.mxu0 0
      %890 = vmatprep.subr.bf16.mxu0 0
      %891 = vmatpush1.bf16.xpose.msra.mxu0 0
      %892 = vmatprep.subr.bf16.mxu0 0
      %893 = vmatpush1.bf16.xpose.msra.mxu0 0
      %894 = vmatprep.subr.bf16.mxu0 0
      %895 = vmatpush1.bf16.xpose.msra.mxu0 0
      %896 = vmatprep.subr.bf16.mxu0 0
      %897 = vmatpush1.bf16.xpose.msra.mxu0 0
      %898 = vmatprep.mubr.bf16.mxu0 0
      %899 = vmatmul.mubr.bf16.gmra.mrb[0].mxu0 %v861
      %v900 = vpop.f32.mrb[0].mxu0
      %v901 = vadd.f32 0.0, %v900
      %v902 = vpop.f32.mrb[0].mxu0
      %v903 = vpop.f32.mrb[0].mxu0
      %v904 = vpop.f32.mrb[0].mxu0
      %905 = vdwg.mxu0
      %v907 = vunpack.c.l.s4 1966171168
      %v908 = vunpack.c.0.s8 %v907
      %v909 = vlaneseq
      %v910 = vshrl.u32 %v909, 7
      %v911 = vsub.s32 %v908, %v910
      %v912 = vrot.slane %v647, %v911
      %v914 = vunpack.c.l.s4 1966171168
      %v915 = vunpack.c.0.s8 %v914
      %v916 = vlaneseq
      %v917 = vshrl.u32 %v916, 7
      %v918 = vsub.s32 %v915, %v917
      %v919 = vrot.slane %v912, %v918
      %920 = vrot.lane.b32.xlu0 %v919, 96
      %v921 = vpop.permute.xlu0 %920
      %v923 = vsel %vm673, %v647, 0
      %v926 = vsel %vm673, %v921, 0
      %928 = vmatprep.subr.bf16.mxu0 0
      %929 = vmatpush1.bf16.xpose.msra.mxu0 %v926
      %930 = vmatprep.subr.bf16.mxu0 0
      %931 = vmatpush1.bf16.xpose.msra.mxu0 0
      %932 = vmatprep.subr.bf16.mxu0 0
      %933 = vmatpush1.bf16.xpose.msra.mxu0 0
      %934 = vmatprep.subr.bf16.mxu0 0
      %935 = vmatpush1.bf16.xpose.msra.mxu0 0
      %936 = vmatprep.subr.bf16.mxu0 0
      %937 = vmatpush1.bf16.xpose.msra.mxu0 0
      %938 = vmatprep.subr.bf16.mxu0 0
      %939 = vmatpush1.bf16.xpose.msra.mxu0 0
      %940 = vmatprep.subr.bf16.mxu0 0
      %941 = vmatpush1.bf16.xpose.msra.mxu0 0
      %942 = vmatprep.subr.bf16.mxu0 0
      %943 = vmatpush1.bf16.xpose.msra.mxu0 0
      %944 = vmatprep.subr.bf16.mxu0 0
      %945 = vmatpush1.bf16.xpose.msra.mxu0 0
      %946 = vmatprep.subr.bf16.mxu0 0
      %947 = vmatpush1.bf16.xpose.msra.mxu0 0
      %948 = vmatprep.subr.bf16.mxu0 0
      %949 = vmatpush1.bf16.xpose.msra.mxu0 0
      %950 = vmatprep.subr.bf16.mxu0 0
      %951 = vmatpush1.bf16.xpose.msra.mxu0 0
      %952 = vmatprep.subr.bf16.mxu0 0
      %953 = vmatpush1.bf16.xpose.msra.mxu0 0
      %954 = vmatprep.subr.bf16.mxu0 0
      %955 = vmatpush1.bf16.xpose.msra.mxu0 0
      %956 = vmatprep.subr.bf16.mxu0 0
      %957 = vmatpush1.bf16.xpose.msra.mxu0 0
      %958 = vmatprep.subr.bf16.mxu0 0
      %959 = vmatpush1.bf16.xpose.msra.mxu0 0
      %960 = vmatprep.mubr.bf16.mxu0 0
      %961 = vmatmul.mubr.bf16.gmra.mrb[0].mxu0 %v923
      %v962 = vpop.f32.mrb[0].mxu0
      %v963 = vadd.f32 0.0, %v962
      %v964 = vpop.f32.mrb[0].mxu0
      %v965 = vpop.f32.mrb[0].mxu0
      %v966 = vpop.f32.mrb[0].mxu0
      %967 = vdwg.mxu0
      %v968 = vmul.f32 %v715, 0.35355338
      %v969 = vmul.f32 %v777, 0.35355338
      %v970 = vmul.f32 %v839, 0.35355338
      %v971 = vmul.f32 %v901, 0.35355338
      %v972 = vmul.f32 %v963, 0.35355338
      %vm973 = vcmask 9216
      %v974 = vsel %vm973, %v968, -inf
      %975 = vmax.xlane.f32.xlu0 %v974
      %v976 = vpop.xlane.xlu0 %975
      %v977 = vsel %vm973, %v969, -inf
      %978 = vmax.xlane.f32.xlu0 %v977
      %v979 = vpop.xlane.xlu0 %978
      %v980 = vsel %vm973, %v970, -inf
      %981 = vmax.xlane.f32.xlu0 %v980
      %v982 = vpop.xlane.xlu0 %981
      %v983 = vsel %vm973, %v971, -inf
      %984 = vmax.xlane.f32.xlu0 %v983
      %v985 = vpop.xlane.xlu0 %984
      %v986 = vsel %vm973, %v972, -inf
      %987 = vmax.xlane.f32.xlu0 %v986
      %v988 = vpop.xlane.xlu0 %987
      %v989 = vsub.f32 %v968, %v976
      %v990 = vsub.f32 %v969, %v979
      %v991 = vsub.f32 %v970, %v982
      %v992 = vsub.f32 %v971, %v985
      %v993 = vsub.f32 %v972, %v988
      %v994 = vmul.f32 %v989, 1.442695
      %v995 = vpow.pop %v994
      %v996 = vmul.f32 %v990, 1.442695
      %v997 = vpow.pop %v996
      %v998 = vmul.f32 %v991, 1.442695
      %v999 = vpow.pop %v998
      %v1000 = vmul.f32 %v992, 1.442695
      %v1001 = vpow.pop %v1000
      %v1002 = vmul.f32 %v993, 1.442695
      %v1003 = vpow.pop %v1002
      %v1004 = vsel %vm973, %v995, 0.0
      %1005 = vadd.xlane.f32.xlu0 %v1004
      %v1006 = vpop.xlane.xlu0 %1005
      %v1007 = vsel %vm973, %v997, 0.0
      %1008 = vadd.xlane.f32.xlu0 %v1007
      %v1009 = vpop.xlane.xlu0 %1008
      %v1010 = vsel %vm973, %v999, 0.0
      %1011 = vadd.xlane.f32.xlu0 %v1010
      %v1012 = vpop.xlane.xlu0 %1011
      %v1013 = vsel %vm973, %v1001, 0.0
      %1014 = vadd.xlane.f32.xlu0 %v1013
      %v1015 = vpop.xlane.xlu0 %1014
      %v1016 = vsel %vm973, %v1003, 0.0
      %1017 = vadd.xlane.f32.xlu0 %v1016
      %v1018 = vpop.xlane.xlu0 %1017
      %v1019 = vrcp.pop %v1006
      %v1020 = vrcp.pop %v1009
      %v1021 = vrcp.pop %v1012
      %v1022 = vrcp.pop %v1015
      %v1023 = vrcp.pop %v1018
      %v1024 = vmul.f32 %v995, %v1019
      %v1025 = vmul.f32 %v997, %v1020
      %v1026 = vmul.f32 %v999, %v1021
      %v1027 = vmul.f32 %v1001, %v1022
      %v1028 = vmul.f32 %v1003, %v1023
      %v1029 = vpack.c.bf16 %v1024, %v1024
      %v1030 = vpack.c.bf16 %v1025, %v1025
      %v1031 = vpack.c.bf16 %v1026, %v1026
      %v1032 = vpack.c.bf16 %v1027, %v1027
      %v1033 = vpack.c.bf16 %v1028, %v1028
      %1034 = vrot.lane.b32.xlu0 %v670, 64
      %v1035 = vpop.permute.xlu0 %1034
      %vm1036 = vcmask 15360
      %v1038 = vsel %vm1036, %v1029, 0
      %vm1040 = vcmask 1040384
      %v1042 = vsel %vm1040, %v1035, 0
      %1044 = vmatprep.subr.bf16.mxu0 0
      %1045 = vmatpush1.bf16.msra.mxu0 %v1042
      %1046 = vmatprep.subr.bf16.mxu0 0
      %1047 = vmatpush1.bf16.msra.mxu0 0
      %1048 = vmatprep.subr.bf16.mxu0 0
      %1049 = vmatpush1.bf16.msra.mxu0 0
      %1050 = vmatprep.subr.bf16.mxu0 0
      %1051 = vmatpush1.bf16.msra.mxu0 0
      %1052 = vmatprep.subr.bf16.mxu0 0
      %1053 = vmatpush1.bf16.msra.mxu0 0
      %1054 = vmatprep.subr.bf16.mxu0 0
      %1055 = vmatpush1.bf16.msra.mxu0 0
      %1056 = vmatprep.subr.bf16.mxu0 0
      %1057 = vmatpush1.bf16.msra.mxu0 0
      %1058 = vmatprep.subr.bf16.mxu0 0
      %1059 = vmatpush1.bf16.msra.mxu0 0
      %1060 = vmatprep.subr.bf16.mxu0 0
      %1061 = vmatpush1.bf16.msra.mxu0 0
      %1062 = vmatprep.subr.bf16.mxu0 0
      %1063 = vmatpush1.bf16.msra.mxu0 0
      %1064 = vmatprep.subr.bf16.mxu0 0
      %1065 = vmatpush1.bf16.msra.mxu0 0
      %1066 = vmatprep.subr.bf16.mxu0 0
      %1067 = vmatpush1.bf16.msra.mxu0 0
      %1068 = vmatprep.subr.bf16.mxu0 0
      %1069 = vmatpush1.bf16.msra.mxu0 0
      %1070 = vmatprep.subr.bf16.mxu0 0
      %1071 = vmatpush1.bf16.msra.mxu0 0
      %1072 = vmatprep.subr.bf16.mxu0 0
      %1073 = vmatpush1.bf16.msra.mxu0 0
      %1074 = vmatprep.subr.bf16.mxu0 0
      %1075 = vmatpush1.bf16.msra.mxu0 0
      %1076 = vmatprep.mubr.bf16.mxu0 0
      %1077 = vmatmul.mubr.bf16.gmra.mrb[0].mxu0 %v1038
      %v1078 = vpop.f32.mrb[0].mxu0
      %v1079 = vadd.f32 0.0, %v1078
      %v1080 = vpop.f32.mrb[0].mxu0
      %v1081 = vpop.f32.mrb[0].mxu0
      %v1082 = vpop.f32.mrb[0].mxu0
      %1083 = vdwg.mxu0
      %1084 = vrot.lane.b32.xlu0 %v733, 64
      %v1085 = vpop.permute.xlu0 %1084
      %v1087 = vsel %vm1036, %v1030, 0
      %v1090 = vsel %vm1040, %v1085, 0
      %1092 = vmatprep.subr.bf16.mxu0 0
      %1093 = vmatpush1.bf16.msra.mxu0 %v1090
      %1094 = vmatprep.subr.bf16.mxu0 0
      %1095 = vmatpush1.bf16.msra.mxu0 0
      %1096 = vmatprep.subr.bf16.mxu0 0
      %1097 = vmatpush1.bf16.msra.mxu0 0
      %1098 = vmatprep.subr.bf16.mxu0 0
      %1099 = vmatpush1.bf16.msra.mxu0 0
      %1100 = vmatprep.subr.bf16.mxu0 0
      %1101 = vmatpush1.bf16.msra.mxu0 0
      %1102 = vmatprep.subr.bf16.mxu0 0
      %1103 = vmatpush1.bf16.msra.mxu0 0
      %1104 = vmatprep.subr.bf16.mxu0 0
      %1105 = vmatpush1.bf16.msra.mxu0 0
      %1106 = vmatprep.subr.bf16.mxu0 0
      %1107 = vmatpush1.bf16.msra.mxu0 0
      %1108 = vmatprep.subr.bf16.mxu0 0
      %1109 = vmatpush1.bf16.msra.mxu0 0
      %1110 = vmatprep.subr.bf16.mxu0 0
      %1111 = vmatpush1.bf16.msra.mxu0 0
      %1112 = vmatprep.subr.bf16.mxu0 0
      %1113 = vmatpush1.bf16.msra.mxu0 0
      %1114 = vmatprep.subr.bf16.mxu0 0
      %1115 = vmatpush1.bf16.msra.mxu0 0
      %1116 = vmatprep.subr.bf16.mxu0 0
      %1117 = vmatpush1.bf16.msra.mxu0 0
      %1118 = vmatprep.subr.bf16.mxu0 0
      %1119 = vmatpush1.bf16.msra.mxu0 0
      %1120 = vmatprep.subr.bf16.mxu0 0
      %1121 = vmatpush1.bf16.msra.mxu0 0
      %1122 = vmatprep.subr.bf16.mxu0 0
      %1123 = vmatpush1.bf16.msra.mxu0 0
      %1124 = vmatprep.mubr.bf16.mxu0 0
      %1125 = vmatmul.mubr.bf16.gmra.mrb[0].mxu0 %v1087
      %v1126 = vpop.f32.mrb[0].mxu0
      %v1127 = vadd.f32 0.0, %v1126
      %v1128 = vpop.f32.mrb[0].mxu0
      %v1129 = vpop.f32.mrb[0].mxu0
      %v1130 = vpop.f32.mrb[0].mxu0
      %1131 = vdwg.mxu0
      %1132 = vrot.lane.b32.xlu0 %v795, 64
      %v1133 = vpop.permute.xlu0 %1132
      %v1135 = vsel %vm1036, %v1031, 0
      %v1138 = vsel %vm1040, %v1133, 0
      %1140 = vmatprep.subr.bf16.mxu0 0
      %1141 = vmatpush1.bf16.msra.mxu0 %v1138
      %1142 = vmatprep.subr.bf16.mxu0 0
      %1143 = vmatpush1.bf16.msra.mxu0 0
      %1144 = vmatprep.subr.bf16.mxu0 0
      %1145 = vmatpush1.bf16.msra.mxu0 0
      %1146 = vmatprep.subr.bf16.mxu0 0
      %1147 = vmatpush1.bf16.msra.mxu0 0
      %1148 = vmatprep.subr.bf16.mxu0 0
      %1149 = vmatpush1.bf16.msra.mxu0 0
      %1150 = vmatprep.subr.bf16.mxu0 0
      %1151 = vmatpush1.bf16.msra.mxu0 0
      %1152 = vmatprep.subr.bf16.mxu0 0
      %1153 = vmatpush1.bf16.msra.mxu0 0
      %1154 = vmatprep.subr.bf16.mxu0 0
      %1155 = vmatpush1.bf16.msra.mxu0 0
      %1156 = vmatprep.subr.bf16.mxu0 0
      %1157 = vmatpush1.bf16.msra.mxu0 0
      %1158 = vmatprep.subr.bf16.mxu0 0
      %1159 = vmatpush1.bf16.msra.mxu0 0
      %1160 = vmatprep.subr.bf16.mxu0 0
      %1161 = vmatpush1.bf16.msra.mxu0 0
      %1162 = vmatprep.subr.bf16.mxu0 0
      %1163 = vmatpush1.bf16.msra.mxu0 0
      %1164 = vmatprep.subr.bf16.mxu0 0
      %1165 = vmatpush1.bf16.msra.mxu0 0
      %1166 = vmatprep.subr.bf16.mxu0 0
      %1167 = vmatpush1.bf16.msra.mxu0 0
      %1168 = vmatprep.subr.bf16.mxu0 0
      %1169 = vmatpush1.bf16.msra.mxu0 0
      %1170 = vmatprep.subr.bf16.mxu0 0
      %1171 = vmatpush1.bf16.msra.mxu0 0
      %1172 = vmatprep.mubr.bf16.mxu0 0
      %1173 = vmatmul.mubr.bf16.gmra.mrb[0].mxu0 %v1135
      %v1174 = vpop.f32.mrb[0].mxu0
      %v1175 = vadd.f32 0.0, %v1174
      %v1176 = vpop.f32.mrb[0].mxu0
      %v1177 = vpop.f32.mrb[0].mxu0
      %v1178 = vpop.f32.mrb[0].mxu0
      %1179 = vdwg.mxu0
      %1180 = vrot.lane.b32.xlu0 %v857, 64
      %v1181 = vpop.permute.xlu0 %1180
      %v1183 = vsel %vm1036, %v1032, 0
      %v1186 = vsel %vm1040, %v1181, 0
      %1188 = vmatprep.subr.bf16.mxu0 0
      %1189 = vmatpush1.bf16.msra.mxu0 %v1186
      %1190 = vmatprep.subr.bf16.mxu0 0
      %1191 = vmatpush1.bf16.msra.mxu0 0
      %1192 = vmatprep.subr.bf16.mxu0 0
      %1193 = vmatpush1.bf16.msra.mxu0 0
      %1194 = vmatprep.subr.bf16.mxu0 0
      %1195 = vmatpush1.bf16.msra.mxu0 0
      %1196 = vmatprep.subr.bf16.mxu0 0
      %1197 = vmatpush1.bf16.msra.mxu0 0
      %1198 = vmatprep.subr.bf16.mxu0 0
      %1199 = vmatpush1.bf16.msra.mxu0 0
      %1200 = vmatprep.subr.bf16.mxu0 0
      %1201 = vmatpush1.bf16.msra.mxu0 0
      %1202 = vmatprep.subr.bf16.mxu0 0
      %1203 = vmatpush1.bf16.msra.mxu0 0
      %1204 = vmatprep.subr.bf16.mxu0 0
      %1205 = vmatpush1.bf16.msra.mxu0 0
      %1206 = vmatprep.subr.bf16.mxu0 0
      %1207 = vmatpush1.bf16.msra.mxu0 0
      %1208 = vmatprep.subr.bf16.mxu0 0
      %1209 = vmatpush1.bf16.msra.mxu0 0
      %1210 = vmatprep.subr.bf16.mxu0 0
      %1211 = vmatpush1.bf16.msra.mxu0 0
      %1212 = vmatprep.subr.bf16.mxu0 0
      %1213 = vmatpush1.bf16.msra.mxu0 0
      %1214 = vmatprep.subr.bf16.mxu0 0
      %1215 = vmatpush1.bf16.msra.mxu0 0
      %1216 = vmatprep.subr.bf16.mxu0 0
      %1217 = vmatpush1.bf16.msra.mxu0 0
      %1218 = vmatprep.subr.bf16.mxu0 0
      %1219 = vmatpush1.bf16.msra.mxu0 0
      %1220 = vmatprep.mubr.bf16.mxu0 0
      %1221 = vmatmul.mubr.bf16.gmra.mrb[0].mxu0 %v1183
      %v1222 = vpop.f32.mrb[0].mxu0
      %v1223 = vadd.f32 0.0, %v1222
      %v1224 = vpop.f32.mrb[0].mxu0
      %v1225 = vpop.f32.mrb[0].mxu0
      %v1226 = vpop.f32.mrb[0].mxu0
      %1227 = vdwg.mxu0
      %1228 = vrot.lane.b32.xlu0 %v919, 64
      %v1229 = vpop.permute.xlu0 %1228
      %v1231 = vsel %vm1036, %v1033, 0
      %v1234 = vsel %vm1040, %v1229, 0
      %1236 = vmatprep.subr.bf16.mxu0 0
      %1237 = vmatpush1.bf16.msra.mxu0 %v1234
      %1238 = vmatprep.subr.bf16.mxu0 0
      %1239 = vmatpush1.bf16.msra.mxu0 0
      %1240 = vmatprep.subr.bf16.mxu0 0
      %1241 = vmatpush1.bf16.msra.mxu0 0
      %1242 = vmatprep.subr.bf16.mxu0 0
      %1243 = vmatpush1.bf16.msra.mxu0 0
      %1244 = vmatprep.subr.bf16.mxu0 0
      %1245 = vmatpush1.bf16.msra.mxu0 0
      %1246 = vmatprep.subr.bf16.mxu0 0
      %1247 = vmatpush1.bf16.msra.mxu0 0
      %1248 = vmatprep.subr.bf16.mxu0 0
      %1249 = vmatpush1.bf16.msra.mxu0 0
      %1250 = vmatprep.subr.bf16.mxu0 0
      %1251 = vmatpush1.bf16.msra.mxu0 0
      %1252 = vmatprep.subr.bf16.mxu0 0
      %1253 = vmatpush1.bf16.msra.mxu0 0
      %1254 = vmatprep.subr.bf16.mxu0 0
      %1255 = vmatpush1.bf16.msra.mxu0 0
      %1256 = vmatprep.subr.bf16.mxu0 0
      %1257 = vmatpush1.bf16.msra.mxu0 0
      %1258 = vmatprep.subr.bf16.mxu0 0
      %1259 = vmatpush1.bf16.msra.mxu0 0
      %1260 = vmatprep.subr.bf16.mxu0 0
      %1261 = vmatpush1.bf16.msra.mxu0 0
      %1262 = vmatprep.subr.bf16.mxu0 0
      %1263 = vmatpush1.bf16.msra.mxu0 0
      %1264 = vmatprep.subr.bf16.mxu0 0
      %1265 = vmatpush1.bf16.msra.mxu0 0
      %1266 = vmatprep.subr.bf16.mxu0 0
      %1267 = vmatpush1.bf16.msra.mxu0 0
      %1268 = vmatprep.mubr.bf16.mxu0 0
      %1269 = vmatmul.mubr.bf16.gmra.mrb[0].mxu0 %v1231
      %v1270 = vpop.f32.mrb[0].mxu0
      %v1271 = vadd.f32 0.0, %v1270
      %v1272 = vpop.f32.mrb[0].mxu0
      %v1273 = vpop.f32.mrb[0].mxu0
      %v1274 = vpop.f32.mrb[0].mxu0
      %1275 = vdwg.mxu0
      %v1281 = vcombine.low %v1079, %v1127
      %v1282 = vcombine.low %v1175, %v1223
      %v1284 = vunpack.c.l.s4 1983009808
      %v1285 = vunpack.c.0.s8 %v1284
      %v1286 = vlaneseq
      %v1287 = vshrl.u32 %v1286, 7
      %v1288 = vsub.s32 %v1285, %v1287
      %v1289 = vrot.slane %v1281, %v1288
      %v1291 = vunpack.c.l.s4 1983009808
      %v1292 = vunpack.c.0.s8 %v1291
      %v1293 = vlaneseq
      %v1294 = vshrl.u32 %v1293, 7
      %v1295 = vsub.s32 %v1292, %v1294
      %v1296 = vrot.slane %v1282, %v1295
      %v1297 = vcombine.low %v1289, %v1296
      %v1299 = vunpack.c.l.s4 1983009808
      %v1300 = vunpack.c.0.s8 %v1299
      %v1301 = vlaneseq
      %v1302 = vshrl.u32 %v1301, 7
      %v1303 = vsub.s32 %v1300, %v1302
      %v1304 = vrot.slane %v1271, %v1303
      %1307 = vst.msk [vmem:[#allocation3] sm:$0xff] %vm673, %v1297
      %vm1308 = vcmask 58368
      %1309 = vst.msk [vmem:[#allocation3 + $0x8] sm:$0x3] %vm1308, %v1304
      %1310 = vrot.lane.b32.xlu0 %v670, 120
      %v1311 = vpop.permute.xlu0 %1310
      %1312 = vrot.lane.b32.xlu0 %v670, 88
      %v1313 = vpop.permute.xlu0 %1312
      %v1315 = vsel %vm673, %v1311, 0
      %v1318 = vsel %vm673, %v1313, 0
      %1320 = vmatprep.subr.bf16.mxu0 0
      %1321 = vmatpush1.bf16.xpose.msra.mxu0 %v1318
      %1322 = vmatprep.subr.bf16.mxu0 0
      %1323 = vmatpush1.bf16.xpose.msra.mxu0 0
      %1324 = vmatprep.subr.bf16.mxu0 0
      %1325 = vmatpush1.bf16.xpose.msra.mxu0 0
      %1326 = vmatprep.subr.bf16.mxu0 0
      %1327 = vmatpush1.bf16.xpose.msra.mxu0 0
      %1328 = vmatprep.subr.bf16.mxu0 0
      %1329 = vmatpush1.bf16.xpose.msra.mxu0 0
      %1330 = vmatprep.subr.bf16.mxu0 0
      %1331 = vmatpush1.bf16.xpose.msra.mxu0 0
      %1332 = vmatprep.subr.bf16.mxu0 0
      %1333 = vmatpush1.bf16.xpose.msra.mxu0 0
      %1334 = vmatprep.subr.bf16.mxu0 0
      %1335 = vmatpush1.bf16.xpose.msra.mxu0 0
      %1336 = vmatprep.subr.bf16.mxu0 0
      %1337 = vmatpush1.bf16.xpose.msra.mxu0 0
      %1338 = vmatprep.subr.bf16.mxu0 0
      %1339 = vmatpush1.bf16.xpose.msra.mxu0 0
      %1340 = vmatprep.subr.bf16.mxu0 0
      %1341 = vmatpush1.bf16.xpose.msra.mxu0 0
      %1342 = vmatprep.subr.bf16.mxu0 0
      %1343 = vmatpush1.bf16.xpose.msra.mxu0 0
      %1344 = vmatprep.subr.bf16.mxu0 0
      %1345 = vmatpush1.bf16.xpose.msra.mxu0 0
      %1346 = vmatprep.subr.bf16.mxu0 0
      %1347 = vmatpush1.bf16.xpose.msra.mxu0 0
      %1348 = vmatprep.subr.bf16.mxu0 0
      %1349 = vmatpush1.bf16.xpose.msra.mxu0 0
      %1350 = vmatprep.subr.bf16.mxu0 0
      %1351 = vmatpush1.bf16.xpose.msra.mxu0 0
      %1352 = vmatprep.mubr.bf16.mxu0 0
      %1353 = vmatmul.mubr.bf16.gmra.mrb[0].mxu0 %v1315
      %v1354 = vpop.f32.mrb[0].mxu0
      %v1355 = vadd.f32 0.0, %v1354
      %v1356 = vpop.f32.mrb[0].mxu0
      %v1357 = vpop.f32.mrb[0].mxu0
      %v1358 = vpop.f32.mrb[0].mxu0
      %1359 = vdwg.mxu0
      %1360 = vrot.lane.b32.xlu0 %v733, 120
      %v1361 = vpop.permute.xlu0 %1360
      %1362 = vrot.lane.b32.xlu0 %v733, 88
      %v1363 = vpop.permute.xlu0 %1362
      %v1365 = vsel %vm673, %v1361, 0
      %v1368 = vsel %vm673, %v1363, 0
      %1370 = vmatprep.subr.bf16.mxu0 0
      %1371 = vmatpush1.bf16.xpose.msra.mxu0 %v1368
      %1372 = vmatprep.subr.bf16.mxu0 0
      %1373 = vmatpush1.bf16.xpose.msra.mxu0 0
      %1374 = vmatprep.subr.bf16.mxu0 0
      %1375 = vmatpush1.bf16.xpose.msra.mxu0 0
      %1376 = vmatprep.subr.bf16.mxu0 0
      %1377 = vmatpush1.bf16.xpose.msra.mxu0 0
      %1378 = vmatprep.subr.bf16.mxu0 0
      %1379 = vmatpush1.bf16.xpose.msra.mxu0 0
      %1380 = vmatprep.subr.bf16.mxu0 0
      %1381 = vmatpush1.bf16.xpose.msra.mxu0 0
      %1382 = vmatprep.subr.bf16.mxu0 0
      %1383 = vmatpush1.bf16.xpose.msra.mxu0 0
      %1384 = vmatprep.subr.bf16.mxu0 0
      %1385 = vmatpush1.bf16.xpose.msra.mxu0 0
      %1386 = vmatprep.subr.bf16.mxu0 0
      %1387 = vmatpush1.bf16.xpose.msra.mxu0 0
      %1388 = vmatprep.subr.bf16.mxu0 0
      %1389 = vmatpush1.bf16.xpose.msra.mxu0 0
      %1390 = vmatprep.subr.bf16.mxu0 0
      %1391 = vmatpush1.bf16.xpose.msra.mxu0 0
      %1392 = vmatprep.subr.bf16.mxu0 0
      %1393 = vmatpush1.bf16.xpose.msra.mxu0 0
      %1394 = vmatprep.subr.bf16.mxu0 0
      %1395 = vmatpush1.bf16.xpose.msra.mxu0 0
      %1396 = vmatprep.subr.bf16.mxu0 0
      %1397 = vmatpush1.bf16.xpose.msra.mxu0 0
      %1398 = vmatprep.subr.bf16.mxu0 0
      %1399 = vmatpush1.bf16.xpose.msra.mxu0 0
      %1400 = vmatprep.subr.bf16.mxu0 0
      %1401 = vmatpush1.bf16.xpose.msra.mxu0 0
      %1402 = vmatprep.mubr.bf16.mxu0 0
      %1403 = vmatmul.mubr.bf16.gmra.mrb[0].mxu0 %v1365
      %v1404 = vpop.f32.mrb[0].mxu0
      %v1405 = vadd.f32 0.0, %v1404
      %v1406 = vpop.f32.mrb[0].mxu0
      %v1407 = vpop.f32.mrb[0].mxu0
      %v1408 = vpop.f32.mrb[0].mxu0
      %1409 = vdwg.mxu0
      %1410 = vrot.lane.b32.xlu0 %v795, 120
      %v1411 = vpop.permute.xlu0 %1410
      %1412 = vrot.lane.b32.xlu0 %v795, 88
      %v1413 = vpop.permute.xlu0 %1412
      %v1415 = vsel %vm673, %v1411, 0
      %v1418 = vsel %vm673, %v1413, 0
      %1420 = vmatprep.subr.bf16.mxu0 0
      %1421 = vmatpush1.bf16.xpose.msra.mxu0 %v1418
      %1422 = vmatprep.subr.bf16.mxu0 0
      %1423 = vmatpush1.bf16.xpose.msra.mxu0 0
      %1424 = vmatprep.subr.bf16.mxu0 0
      %1425 = vmatpush1.bf16.xpose.msra.mxu0 0
      %1426 = vmatprep.subr.bf16.mxu0 0
      %1427 = vmatpush1.bf16.xpose.msra.mxu0 0
      %1428 = vmatprep.subr.bf16.mxu0 0
      %1429 = vmatpush1.bf16.xpose.msra.mxu0 0
      %1430 = vmatprep.subr.bf16.mxu0 0
      %1431 = vmatpush1.bf16.xpose.msra.mxu0 0
      %1432 = vmatprep.subr.bf16.mxu0 0
      %1433 = vmatpush1.bf16.xpose.msra.mxu0 0
      %1434 = vmatprep.subr.bf16.mxu0 0
      %1435 = vmatpush1.bf16.xpose.msra.mxu0 0
      %1436 = vmatprep.subr.bf16.mxu0 0
      %1437 = vmatpush1.bf16.xpose.msra.mxu0 0
      %1438 = vmatprep.subr.bf16.mxu0 0
      %1439 = vmatpush1.bf16.xpose.msra.mxu0 0
      %1440 = vmatprep.subr.bf16.mxu0 0
      %1441 = vmatpush1.bf16.xpose.msra.mxu0 0
      %1442 = vmatprep.subr.bf16.mxu0 0
      %1443 = vmatpush1.bf16.xpose.msra.mxu0 0
      %1444 = vmatprep.subr.bf16.mxu0 0
      %1445 = vmatpush1.bf16.xpose.msra.mxu0 0
      %1446 = vmatprep.subr.bf16.mxu0 0
      %1447 = vmatpush1.bf16.xpose.msra.mxu0 0
      %1448 = vmatprep.subr.bf16.mxu0 0
      %1449 = vmatpush1.bf16.xpose.msra.mxu0 0
      %1450 = vmatprep.subr.bf16.mxu0 0
      %1451 = vmatpush1.bf16.xpose.msra.mxu0 0
      %1452 = vmatprep.mubr.bf16.mxu0 0
      %1453 = vmatmul.mubr.bf16.gmra.mrb[0].mxu0 %v1415
      %v1454 = vpop.f32.mrb[0].mxu0
      %v1455 = vadd.f32 0.0, %v1454
      %v1456 = vpop.f32.mrb[0].mxu0
      %v1457 = vpop.f32.mrb[0].mxu0
      %v1458 = vpop.f32.mrb[0].mxu0
      %1459 = vdwg.mxu0
      %1460 = vrot.lane.b32.xlu0 %v857, 120
      %v1461 = vpop.permute.xlu0 %1460
      %1462 = vrot.lane.b32.xlu0 %v857, 88
      %v1463 = vpop.permute.xlu0 %1462
      %v1465 = vsel %vm673, %v1461, 0
      %v1468 = vsel %vm673, %v1463, 0
      %1470 = vmatprep.subr.bf16.mxu0 0
      %1471 = vmatpush1.bf16.xpose.msra.mxu0 %v1468
      %1472 = vmatprep.subr.bf16.mxu0 0
      %1473 = vmatpush1.bf16.xpose.msra.mxu0 0
      %1474 = vmatprep.subr.bf16.mxu0 0
      %1475 = vmatpush1.bf16.xpose.msra.mxu0 0
      %1476 = vmatprep.subr.bf16.mxu0 0
      %1477 = vmatpush1.bf16.xpose.msra.mxu0 0
      %1478 = vmatprep.subr.bf16.mxu0 0
      %1479 = vmatpush1.bf16.xpose.msra.mxu0 0
      %1480 = vmatprep.subr.bf16.mxu0 0
      %1481 = vmatpush1.bf16.xpose.msra.mxu0 0
      %1482 = vmatprep.subr.bf16.mxu0 0
      %1483 = vmatpush1.bf16.xpose.msra.mxu0 0
      %1484 = vmatprep.subr.bf16.mxu0 0
      %1485 = vmatpush1.bf16.xpose.msra.mxu0 0
      %1486 = vmatprep.subr.bf16.mxu0 0
      %1487 = vmatpush1.bf16.xpose.msra.mxu0 0
      %1488 = vmatprep.subr.bf16.mxu0 0
      %1489 = vmatpush1.bf16.xpose.msra.mxu0 0
      %1490 = vmatprep.subr.bf16.mxu0 0
      %1491 = vmatpush1.bf16.xpose.msra.mxu0 0
      %1492 = vmatprep.subr.bf16.mxu0 0
      %1493 = vmatpush1.bf16.xpose.msra.mxu0 0
      %1494 = vmatprep.subr.bf16.mxu0 0
      %1495 = vmatpush1.bf16.xpose.msra.mxu0 0
      %1496 = vmatprep.subr.bf16.mxu0 0
      %1497 = vmatpush1.bf16.xpose.msra.mxu0 0
      %1498 = vmatprep.subr.bf16.mxu0 0
      %1499 = vmatpush1.bf16.xpose.msra.mxu0 0
      %1500 = vmatprep.subr.bf16.mxu0 0
      %1501 = vmatpush1.bf16.xpose.msra.mxu0 0
      %1502 = vmatprep.mubr.bf16.mxu0 0
      %1503 = vmatmul.mubr.bf16.gmra.mrb[0].mxu0 %v1465
      %v1504 = vpop.f32.mrb[0].mxu0
      %v1505 = vadd.f32 0.0, %v1504
      %v1506 = vpop.f32.mrb[0].mxu0
      %v1507 = vpop.f32.mrb[0].mxu0
      %v1508 = vpop.f32.mrb[0].mxu0
      %1509 = vdwg.mxu0
      %1510 = vrot.lane.b32.xlu0 %v919, 120
      %v1511 = vpop.permute.xlu0 %1510
      %1512 = vrot.lane.b32.xlu0 %v919, 88
      %v1513 = vpop.permute.xlu0 %1512
      %v1515 = vsel %vm673, %v1511, 0
      %v1518 = vsel %vm673, %v1513, 0
      %1520 = vmatprep.subr.bf16.mxu0 0
      %1521 = vmatpush1.bf16.xpose.msra.mxu0 %v1518
      %1522 = vmatprep.subr.bf16.mxu0 0
      %1523 = vmatpush1.bf16.xpose.msra.mxu0 0
      %1524 = vmatprep.subr.bf16.mxu0 0
      %1525 = vmatpush1.bf16.xpose.msra.mxu0 0
      %1526 = vmatprep.subr.bf16.mxu0 0
      %1527 = vmatpush1.bf16.xpose.msra.mxu0 0
      %1528 = vmatprep.subr.bf16.mxu0 0
      %1529 = vmatpush1.bf16.xpose.msra.mxu0 0
      %1530 = vmatprep.subr.bf16.mxu0 0
      %1531 = vmatpush1.bf16.xpose.msra.mxu0 0
      %1532 = vmatprep.subr.bf16.mxu0 0
      %1533 = vmatpush1.bf16.xpose.msra.mxu0 0
      %1534 = vmatprep.subr.bf16.mxu0 0
      %1535 = vmatpush1.bf16.xpose.msra.mxu0 0
      %1536 = vmatprep.subr.bf16.mxu0 0
      %1537 = vmatpush1.bf16.xpose.msra.mxu0 0
      %1538 = vmatprep.subr.bf16.mxu0 0
      %1539 = vmatpush1.bf16.xpose.msra.mxu0 0
      %1540 = vmatprep.subr.bf16.mxu0 0
      %1541 = vmatpush1.bf16.xpose.msra.mxu0 0
      %1542 = vmatprep.subr.bf16.mxu0 0
      %1543 = vmatpush1.bf16.xpose.msra.mxu0 0
      %1544 = vmatprep.subr.bf16.mxu0 0
      %1545 = vmatpush1.bf16.xpose.msra.mxu0 0
      %1546 = vmatprep.subr.bf16.mxu0 0
      %1547 = vmatpush1.bf16.xpose.msra.mxu0 0
      %1548 = vmatprep.subr.bf16.mxu0 0
      %1549 = vmatpush1.bf16.xpose.msra.mxu0 0
      %1550 = vmatprep.subr.bf16.mxu0 0
      %1551 = vmatpush1.bf16.xpose.msra.mxu0 0
      %1552 = vmatprep.mubr.bf16.mxu0 0
      %1553 = vmatmul.mubr.bf16.gmra.mrb[0].mxu0 %v1515
      %v1554 = vpop.f32.mrb[0].mxu0
      %v1555 = vadd.f32 0.0, %v1554
      %v1556 = vpop.f32.mrb[0].mxu0
      %v1557 = vpop.f32.mrb[0].mxu0
      %v1558 = vpop.f32.mrb[0].mxu0
      %1559 = vdwg.mxu0
      %v1560 = vmul.f32 %v1355, 0.35355338
      %v1561 = vmul.f32 %v1405, 0.35355338
      %v1562 = vmul.f32 %v1455, 0.35355338
      %v1563 = vmul.f32 %v1505, 0.35355338
      %v1564 = vmul.f32 %v1555, 0.35355338
      %v1565 = vsel %vm973, %v1560, -inf
      %1566 = vmax.xlane.f32.xlu0 %v1565
      %v1567 = vpop.xlane.xlu0 %1566
      %v1568 = vsel %vm973, %v1561, -inf
      %1569 = vmax.xlane.f32.xlu0 %v1568
      %v1570 = vpop.xlane.xlu0 %1569
      %v1571 = vsel %vm973, %v1562, -inf
      %1572 = vmax.xlane.f32.xlu0 %v1571
      %v1573 = vpop.xlane.xlu0 %1572
      %v1574 = vsel %vm973, %v1563, -inf
      %1575 = vmax.xlane.f32.xlu0 %v1574
      %v1576 = vpop.xlane.xlu0 %1575
      %v1577 = vsel %vm973, %v1564, -inf
      %1578 = vmax.xlane.f32.xlu0 %v1577
      %v1579 = vpop.xlane.xlu0 %1578
      %v1580 = vsub.f32 %v1560, %v1567
      %v1581 = vsub.f32 %v1561, %v1570
      %v1582 = vsub.f32 %v1562, %v1573
      %v1583 = vsub.f32 %v1563, %v1576
      %v1584 = vsub.f32 %v1564, %v1579
      %v1585 = vmul.f32 %v1580, 1.442695
      %v1586 = vpow.pop %v1585
      %v1587 = vmul.f32 %v1581, 1.442695
      %v1588 = vpow.pop %v1587
      %v1589 = vmul.f32 %v1582, 1.442695
      %v1590 = vpow.pop %v1589
      %v1591 = vmul.f32 %v1583, 1.442695
      %v1592 = vpow.pop %v1591
      %v1593 = vmul.f32 %v1584, 1.442695
      %v1594 = vpow.pop %v1593
      %v1595 = vsel %vm973, %v1586, 0.0
      %1596 = vadd.xlane.f32.xlu0 %v1595
      %v1597 = vpop.xlane.xlu0 %1596
      %v1598 = vsel %vm973, %v1588, 0.0
      %1599 = vadd.xlane.f32.xlu0 %v1598
      %v1600 = vpop.xlane.xlu0 %1599
      %v1601 = vsel %vm973, %v1590, 0.0
      %1602 = vadd.xlane.f32.xlu0 %v1601
      %v1603 = vpop.xlane.xlu0 %1602
      %v1604 = vsel %vm973, %v1592, 0.0
      %1605 = vadd.xlane.f32.xlu0 %v1604
      %v1606 = vpop.xlane.xlu0 %1605
      %v1607 = vsel %vm973, %v1594, 0.0
      %1608 = vadd.xlane.f32.xlu0 %v1607
      %v1609 = vpop.xlane.xlu0 %1608
      %v1610 = vrcp.pop %v1597
      %v1611 = vrcp.pop %v1600
      %v1612 = vrcp.pop %v1603
      %v1613 = vrcp.pop %v1606
      %v1614 = vrcp.pop %v1609
      %v1615 = vmul.f32 %v1586, %v1610
      %v1616 = vmul.f32 %v1588, %v1611
      %v1617 = vmul.f32 %v1590, %v1612
      %v1618 = vmul.f32 %v1592, %v1613
      %v1619 = vmul.f32 %v1594, %v1614
      %v1620 = vpack.c.bf16 %v1615, %v1615
      %v1621 = vpack.c.bf16 %v1616, %v1616
      %v1622 = vpack.c.bf16 %v1617, %v1617
      %v1623 = vpack.c.bf16 %v1618, %v1618
      %v1624 = vpack.c.bf16 %v1619, %v1619
      %1625 = vrot.lane.b32.xlu0 %v670, 56
      %v1626 = vpop.permute.xlu0 %1625
      %v1628 = vsel %vm1036, %v1620, 0
      %v1631 = vsel %vm1040, %v1626, 0
      %1633 = vmatprep.subr.bf16.mxu0 0
      %1634 = vmatpush1.bf16.msra.mxu0 %v1631
      %1635 = vmatprep.subr.bf16.mxu0 0
      %1636 = vmatpush1.bf16.msra.mxu0 0
      %1637 = vmatprep.subr.bf16.mxu0 0
      %1638 = vmatpush1.bf16.msra.mxu0 0
      %1639 = vmatprep.subr.bf16.mxu0 0
      %1640 = vmatpush1.bf16.msra.mxu0 0
      %1641 = vmatprep.subr.bf16.mxu0 0
      %1642 = vmatpush1.bf16.msra.mxu0 0
      %1643 = vmatprep.subr.bf16.mxu0 0
      %1644 = vmatpush1.bf16.msra.mxu0 0
      %1645 = vmatprep.subr.bf16.mxu0 0
      %1646 = vmatpush1.bf16.msra.mxu0 0
      %1647 = vmatprep.subr.bf16.mxu0 0
      %1648 = vmatpush1.bf16.msra.mxu0 0
      %1649 = vmatprep.subr.bf16.mxu0 0
      %1650 = vmatpush1.bf16.msra.mxu0 0
      %1651 = vmatprep.subr.bf16.mxu0 0
      %1652 = vmatpush1.bf16.msra.mxu0 0
      %1653 = vmatprep.subr.bf16.mxu0 0
      %1654 = vmatpush1.bf16.msra.mxu0 0
      %1655 = vmatprep.subr.bf16.mxu0 0
      %1656 = vmatpush1.bf16.msra.mxu0 0
      %1657 = vmatprep.subr.bf16.mxu0 0
      %1658 = vmatpush1.bf16.msra.mxu0 0
      %1659 = vmatprep.subr.bf16.mxu0 0
      %1660 = vmatpush1.bf16.msra.mxu0 0
      %1661 = vmatprep.subr.bf16.mxu0 0
      %1662 = vmatpush1.bf16.msra.mxu0 0
      %1663 = vmatprep.subr.bf16.mxu0 0
      %1664 = vmatpush1.bf16.msra.mxu0 0
      %1665 = vmatprep.mubr.bf16.mxu0 0
      %1666 = vmatmul.mubr.bf16.gmra.mrb[0].mxu0 %v1628
      %v1667 = vpop.f32.mrb[0].mxu0
      %v1668 = vadd.f32 0.0, %v1667
      %v1669 = vpop.f32.mrb[0].mxu0
      %v1670 = vpop.f32.mrb[0].mxu0
      %v1671 = vpop.f32.mrb[0].mxu0
      %1672 = vdwg.mxu0
      %1673 = vrot.lane.b32.xlu0 %v733, 56
      %v1674 = vpop.permute.xlu0 %1673
      %v1676 = vsel %vm1036, %v1621, 0
      %v1679 = vsel %vm1040, %v1674, 0
      %1681 = vmatprep.subr.bf16.mxu0 0
      %1682 = vmatpush1.bf16.msra.mxu0 %v1679
      %1683 = vmatprep.subr.bf16.mxu0 0
      %1684 = vmatpush1.bf16.msra.mxu0 0
      %1685 = vmatprep.subr.bf16.mxu0 0
      %1686 = vmatpush1.bf16.msra.mxu0 0
      %1687 = vmatprep.subr.bf16.mxu0 0
      %1688 = vmatpush1.bf16.msra.mxu0 0
      %1689 = vmatprep.subr.bf16.mxu0 0
      %1690 = vmatpush1.bf16.msra.mxu0 0
      %1691 = vmatprep.subr.bf16.mxu0 0
      %1692 = vmatpush1.bf16.msra.mxu0 0
      %1693 = vmatprep.subr.bf16.mxu0 0
      %1694 = vmatpush1.bf16.msra.mxu0 0
      %1695 = vmatprep.subr.bf16.mxu0 0
      %1696 = vmatpush1.bf16.msra.mxu0 0
      %1697 = vmatprep.subr.bf16.mxu0 0
      %1698 = vmatpush1.bf16.msra.mxu0 0
      %1699 = vmatprep.subr.bf16.mxu0 0
      %1700 = vmatpush1.bf16.msra.mxu0 0
      %1701 = vmatprep.subr.bf16.mxu0 0
      %1702 = vmatpush1.bf16.msra.mxu0 0
      %1703 = vmatprep.subr.bf16.mxu0 0
      %1704 = vmatpush1.bf16.msra.mxu0 0
      %1705 = vmatprep.subr.bf16.mxu0 0
      %1706 = vmatpush1.bf16.msra.mxu0 0
      %1707 = vmatprep.subr.bf16.mxu0 0
      %1708 = vmatpush1.bf16.msra.mxu0 0
      %1709 = vmatprep.subr.bf16.mxu0 0
      %1710 = vmatpush1.bf16.msra.mxu0 0
      %1711 = vmatprep.subr.bf16.mxu0 0
      %1712 = vmatpush1.bf16.msra.mxu0 0
      %1713 = vmatprep.mubr.bf16.mxu0 0
      %1714 = vmatmul.mubr.bf16.gmra.mrb[0].mxu0 %v1676
      %v1715 = vpop.f32.mrb[0].mxu0
      %v1716 = vadd.f32 0.0, %v1715
      %v1717 = vpop.f32.mrb[0].mxu0
      %v1718 = vpop.f32.mrb[0].mxu0
      %v1719 = vpop.f32.mrb[0].mxu0
      %1720 = vdwg.mxu0
      %1721 = vrot.lane.b32.xlu0 %v795, 56
      %v1722 = vpop.permute.xlu0 %1721
      %v1724 = vsel %vm1036, %v1622, 0
      %v1727 = vsel %vm1040, %v1722, 0
      %1729 = vmatprep.subr.bf16.mxu0 0
      %1730 = vmatpush1.bf16.msra.mxu0 %v1727
      %1731 = vmatprep.subr.bf16.mxu0 0
      %1732 = vmatpush1.bf16.msra.mxu0 0
      %1733 = vmatprep.subr.bf16.mxu0 0
      %1734 = vmatpush1.bf16.msra.mxu0 0
      %1735 = vmatprep.subr.bf16.mxu0 0
      %1736 = vmatpush1.bf16.msra.mxu0 0
      %1737 = vmatprep.subr.bf16.mxu0 0
      %1738 = vmatpush1.bf16.msra.mxu0 0
      %1739 = vmatprep.subr.bf16.mxu0 0
      %1740 = vmatpush1.bf16.msra.mxu0 0
      %1741 = vmatprep.subr.bf16.mxu0 0
      %1742 = vmatpush1.bf16.msra.mxu0 0
      %1743 = vmatprep.subr.bf16.mxu0 0
      %1744 = vmatpush1.bf16.msra.mxu0 0
      %1745 = vmatprep.subr.bf16.mxu0 0
      %1746 = vmatpush1.bf16.msra.mxu0 0
      %1747 = vmatprep.subr.bf16.mxu0 0
      %1748 = vmatpush1.bf16.msra.mxu0 0
      %1749 = vmatprep.subr.bf16.mxu0 0
      %1750 = vmatpush1.bf16.msra.mxu0 0
      %1751 = vmatprep.subr.bf16.mxu0 0
      %1752 = vmatpush1.bf16.msra.mxu0 0
      %1753 = vmatprep.subr.bf16.mxu0 0
      %1754 = vmatpush1.bf16.msra.mxu0 0
      %1755 = vmatprep.subr.bf16.mxu0 0
      %1756 = vmatpush1.bf16.msra.mxu0 0
      %1757 = vmatprep.subr.bf16.mxu0 0
      %1758 = vmatpush1.bf16.msra.mxu0 0
      %1759 = vmatprep.subr.bf16.mxu0 0
      %1760 = vmatpush1.bf16.msra.mxu0 0
      %1761 = vmatprep.mubr.bf16.mxu0 0
      %1762 = vmatmul.mubr.bf16.gmra.mrb[0].mxu0 %v1724
      %v1763 = vpop.f32.mrb[0].mxu0
      %v1764 = vadd.f32 0.0, %v1763
      %v1765 = vpop.f32.mrb[0].mxu0
      %v1766 = vpop.f32.mrb[0].mxu0
      %v1767 = vpop.f32.mrb[0].mxu0
      %1768 = vdwg.mxu0
      %1769 = vrot.lane.b32.xlu0 %v857, 56
      %v1770 = vpop.permute.xlu0 %1769
      %v1772 = vsel %vm1036, %v1623, 0
      %v1775 = vsel %vm1040, %v1770, 0
      %1777 = vmatprep.subr.bf16.mxu0 0
      %1778 = vmatpush1.bf16.msra.mxu0 %v1775
      %1779 = vmatprep.subr.bf16.mxu0 0
      %1780 = vmatpush1.bf16.msra.mxu0 0
      %1781 = vmatprep.subr.bf16.mxu0 0
      %1782 = vmatpush1.bf16.msra.mxu0 0
      %1783 = vmatprep.subr.bf16.mxu0 0
      %1784 = vmatpush1.bf16.msra.mxu0 0
      %1785 = vmatprep.subr.bf16.mxu0 0
      %1786 = vmatpush1.bf16.msra.mxu0 0
      %1787 = vmatprep.subr.bf16.mxu0 0
      %1788 = vmatpush1.bf16.msra.mxu0 0
      %1789 = vmatprep.subr.bf16.mxu0 0
      %1790 = vmatpush1.bf16.msra.mxu0 0
      %1791 = vmatprep.subr.bf16.mxu0 0
      %1792 = vmatpush1.bf16.msra.mxu0 0
      %1793 = vmatprep.subr.bf16.mxu0 0
      %1794 = vmatpush1.bf16.msra.mxu0 0
      %1795 = vmatprep.subr.bf16.mxu0 0
      %1796 = vmatpush1.bf16.msra.mxu0 0
      %1797 = vmatprep.subr.bf16.mxu0 0
      %1798 = vmatpush1.bf16.msra.mxu0 0
      %1799 = vmatprep.subr.bf16.mxu0 0
      %1800 = vmatpush1.bf16.msra.mxu0 0
      %1801 = vmatprep.subr.bf16.mxu0 0
      %1802 = vmatpush1.bf16.msra.mxu0 0
      %1803 = vmatprep.subr.bf16.mxu0 0
      %1804 = vmatpush1.bf16.msra.mxu0 0
      %1805 = vmatprep.subr.bf16.mxu0 0
      %1806 = vmatpush1.bf16.msra.mxu0 0
      %1807 = vmatprep.subr.bf16.mxu0 0
      %1808 = vmatpush1.bf16.msra.mxu0 0
      %1809 = vmatprep.mubr.bf16.mxu0 0
      %1810 = vmatmul.mubr.bf16.gmra.mrb[0].mxu0 %v1772
      %v1811 = vpop.f32.mrb[0].mxu0
      %v1812 = vadd.f32 0.0, %v1811
      %v1813 = vpop.f32.mrb[0].mxu0
      %v1814 = vpop.f32.mrb[0].mxu0
      %v1815 = vpop.f32.mrb[0].mxu0
      %1816 = vdwg.mxu0
      %1817 = vrot.lane.b32.xlu0 %v919, 56
      %v1818 = vpop.permute.xlu0 %1817
      %v1820 = vsel %vm1036, %v1624, 0
      %v1823 = vsel %vm1040, %v1818, 0
      %1825 = vmatprep.subr.bf16.mxu0 0
      %1826 = vmatpush1.bf16.msra.mxu0 %v1823
      %1827 = vmatprep.subr.bf16.mxu0 0
      %1828 = vmatpush1.bf16.msra.mxu0 0
      %1829 = vmatprep.subr.bf16.mxu0 0
      %1830 = vmatpush1.bf16.msra.mxu0 0
      %1831 = vmatprep.subr.bf16.mxu0 0
      %1832 = vmatpush1.bf16.msra.mxu0 0
      %1833 = vmatprep.subr.bf16.mxu0 0
      %1834 = vmatpush1.bf16.msra.mxu0 0
      %1835 = vmatprep.subr.bf16.mxu0 0
      %1836 = vmatpush1.bf16.msra.mxu0 0
      %1837 = vmatprep.subr.bf16.mxu0 0
      %1838 = vmatpush1.bf16.msra.mxu0 0
      %1839 = vmatprep.subr.bf16.mxu0 0
      %1840 = vmatpush1.bf16.msra.mxu0 0
      %1841 = vmatprep.subr.bf16.mxu0 0
      %1842 = vmatpush1.bf16.msra.mxu0 0
      %1843 = vmatprep.subr.bf16.mxu0 0
      %1844 = vmatpush1.bf16.msra.mxu0 0
      %1845 = vmatprep.subr.bf16.mxu0 0
      %1846 = vmatpush1.bf16.msra.mxu0 0
      %1847 = vmatprep.subr.bf16.mxu0 0
      %1848 = vmatpush1.bf16.msra.mxu0 0
      %1849 = vmatprep.subr.bf16.mxu0 0
      %1850 = vmatpush1.bf16.msra.mxu0 0
      %1851 = vmatprep.subr.bf16.mxu0 0
      %1852 = vmatpush1.bf16.msra.mxu0 0
      %1853 = vmatprep.subr.bf16.mxu0 0
      %1854 = vmatpush1.bf16.msra.mxu0 0
      %1855 = vmatprep.subr.bf16.mxu0 0
      %1856 = vmatpush1.bf16.msra.mxu0 0
      %1857 = vmatprep.mubr.bf16.mxu0 0
      %1858 = vmatmul.mubr.bf16.gmra.mrb[0].mxu0 %v1820
      %v1859 = vpop.f32.mrb[0].mxu0
      %v1860 = vadd.f32 0.0, %v1859
      %v1861 = vpop.f32.mrb[0].mxu0
      %v1862 = vpop.f32.mrb[0].mxu0
      %v1863 = vpop.f32.mrb[0].mxu0
      %1864 = vdwg.mxu0
      %v1870 = vcombine.low %v1668, %v1716
      %v1871 = vcombine.low %v1764, %v1812
      %v1873 = vunpack.c.l.s4 1983009808
      %v1874 = vunpack.c.0.s8 %v1873
      %v1875 = vlaneseq
      %v1876 = vshrl.u32 %v1875, 7
      %v1877 = vsub.s32 %v1874, %v1876
      %v1878 = vrot.slane %v1870, %v1877
      %v1880 = vunpack.c.l.s4 1983009808
      %v1881 = vunpack.c.0.s8 %v1880
      %v1882 = vlaneseq
      %v1883 = vshrl.u32 %v1882, 7
      %v1884 = vsub.s32 %v1881, %v1883
      %v1885 = vrot.slane %v1871, %v1884
      %v1886 = vcombine.low %v1878, %v1885
      %v1888 = vunpack.c.l.s4 1983009808
      %v1889 = vunpack.c.0.s8 %v1888
      %v1890 = vlaneseq
      %v1891 = vshrl.u32 %v1890, 7
      %v1892 = vsub.s32 %v1889, %v1891
      %v1893 = vrot.slane %v1860, %v1892
      %1894 = vrot.lane.b32.xlu0 %v1886, 8
      %v1895 = vpop.permute.xlu0 %1894
      %1896 = vrot.lane.b32.xlu0 %v1893, 8
      %v1897 = vpop.permute.xlu0 %1896
      %vm1900 = vcmask 130112
      %1901 = vst.msk [vmem:[#allocation3] sm:$0xff] %vm1900, %v1895
      %vm1902 = vcmask 123968
      %1903 = vst.msk [vmem:[#allocation3 + $0x8] sm:$0x3] %vm1902, %v1897
      %1904 = vrot.lane.b32.xlu0 %v670, 112
      %v1905 = vpop.permute.xlu0 %1904
      %1906 = vrot.lane.b32.xlu0 %v670, 80
      %v1907 = vpop.permute.xlu0 %1906
      %v1909 = vsel %vm673, %v1905, 0
      %v1912 = vsel %vm673, %v1907, 0
      %1914 = vmatprep.subr.bf16.mxu0 0
      %1915 = vmatpush1.bf16.xpose.msra.mxu0 %v1912
      %1916 = vmatprep.subr.bf16.mxu0 0
      %1917 = vmatpush1.bf16.xpose.msra.mxu0 0
      %1918 = vmatprep.subr.bf16.mxu0 0
      %1919 = vmatpush1.bf16.xpose.msra.mxu0 0
      %1920 = vmatprep.subr.bf16.mxu0 0
      %1921 = vmatpush1.bf16.xpose.msra.mxu0 0
      %1922 = vmatprep.subr.bf16.mxu0 0
      %1923 = vmatpush1.bf16.xpose.msra.mxu0 0
      %1924 = vmatprep.subr.bf16.mxu0 0
      %1925 = vmatpush1.bf16.xpose.msra.mxu0 0
      %1926 = vmatprep.subr.bf16.mxu0 0
      %1927 = vmatpush1.bf16.xpose.msra.mxu0 0
      %1928 = vmatprep.subr.bf16.mxu0 0
      %1929 = vmatpush1.bf16.xpose.msra.mxu0 0
      %1930 = vmatprep.subr.bf16.mxu0 0
      %1931 = vmatpush1.bf16.xpose.msra.mxu0 0
      %1932 = vmatprep.subr.bf16.mxu0 0
      %1933 = vmatpush1.bf16.xpose.msra.mxu0 0
      %1934 = vmatprep.subr.bf16.mxu0 0
      %1935 = vmatpush1.bf16.xpose.msra.mxu0 0
      %1936 = vmatprep.subr.bf16.mxu0 0
      %1937 = vmatpush1.bf16.xpose.msra.mxu0 0
      %1938 = vmatprep.subr.bf16.mxu0 0
      %1939 = vmatpush1.bf16.xpose.msra.mxu0 0
      %1940 = vmatprep.subr.bf16.mxu0 0
      %1941 = vmatpush1.bf16.xpose.msra.mxu0 0
      %1942 = vmatprep.subr.bf16.mxu0 0
      %1943 = vmatpush1.bf16.xpose.msra.mxu0 0
      %1944 = vmatprep.subr.bf16.mxu0 0
      %1945 = vmatpush1.bf16.xpose.msra.mxu0 0
      %1946 = vmatprep.mubr.bf16.mxu0 0
      %1947 = vmatmul.mubr.bf16.gmra.mrb[0].mxu0 %v1909
      %v1948 = vpop.f32.mrb[0].mxu0
      %v1949 = vadd.f32 0.0, %v1948
      %v1950 = vpop.f32.mrb[0].mxu0
      %v1951 = vpop.f32.mrb[0].mxu0
      %v1952 = vpop.f32.mrb[0].mxu0
      %1953 = vdwg.mxu0
      %1954 = vrot.lane.b32.xlu0 %v733, 112
      %v1955 = vpop.permute.xlu0 %1954
      %1956 = vrot.lane.b32.xlu0 %v733, 80
      %v1957 = vpop.permute.xlu0 %1956
      %v1959 = vsel %vm673, %v1955, 0
      %v1962 = vsel %vm673, %v1957, 0
      %1964 = vmatprep.subr.bf16.mxu0 0
      %1965 = vmatpush1.bf16.xpose.msra.mxu0 %v1962
      %1966 = vmatprep.subr.bf16.mxu0 0
      %1967 = vmatpush1.bf16.xpose.msra.mxu0 0
      %1968 = vmatprep.subr.bf16.mxu0 0
      %1969 = vmatpush1.bf16.xpose.msra.mxu0 0
      %1970 = vmatprep.subr.bf16.mxu0 0
      %1971 = vmatpush1.bf16.xpose.msra.mxu0 0
      %1972 = vmatprep.subr.bf16.mxu0 0
      %1973 = vmatpush1.bf16.xpose.msra.mxu0 0
      %1974 = vmatprep.subr.bf16.mxu0 0
      %1975 = vmatpush1.bf16.xpose.msra.mxu0 0
      %1976 = vmatprep.subr.bf16.mxu0 0
      %1977 = vmatpush1.bf16.xpose.msra.mxu0 0
      %1978 = vmatprep.subr.bf16.mxu0 0
      %1979 = vmatpush1.bf16.xpose.msra.mxu0 0
      %1980 = vmatprep.subr.bf16.mxu0 0
      %1981 = vmatpush1.bf16.xpose.msra.mxu0 0
      %1982 = vmatprep.subr.bf16.mxu0 0
      %1983 = vmatpush1.bf16.xpose.msra.mxu0 0
      %1984 = vmatprep.subr.bf16.mxu0 0
      %1985 = vmatpush1.bf16.xpose.msra.mxu0 0
      %1986 = vmatprep.subr.bf16.mxu0 0
      %1987 = vmatpush1.bf16.xpose.msra.mxu0 0
      %1988 = vmatprep.subr.bf16.mxu0 0
      %1989 = vmatpush1.bf16.xpose.msra.mxu0 0
      %1990 = vmatprep.subr.bf16.mxu0 0
      %1991 = vmatpush1.bf16.xpose.msra.mxu0 0
      %1992 = vmatprep.subr.bf16.mxu0 0
      %1993 = vmatpush1.bf16.xpose.msra.mxu0 0
      %1994 = vmatprep.subr.bf16.mxu0 0
      %1995 = vmatpush1.bf16.xpose.msra.mxu0 0
      %1996 = vmatprep.mubr.bf16.mxu0 0
      %1997 = vmatmul.mubr.bf16.gmra.mrb[0].mxu0 %v1959
      %v1998 = vpop.f32.mrb[0].mxu0
      %v1999 = vadd.f32 0.0, %v1998
      %v2000 = vpop.f32.mrb[0].mxu0
      %v2001 = vpop.f32.mrb[0].mxu0
      %v2002 = vpop.f32.mrb[0].mxu0
      %2003 = vdwg.mxu0
      %2004 = vrot.lane.b32.xlu0 %v795, 112
      %v2005 = vpop.permute.xlu0 %2004
      %2006 = vrot.lane.b32.xlu0 %v795, 80
      %v2007 = vpop.permute.xlu0 %2006
      %v2009 = vsel %vm673, %v2005, 0
      %v2012 = vsel %vm673, %v2007, 0
      %2014 = vmatprep.subr.bf16.mxu0 0
      %2015 = vmatpush1.bf16.xpose.msra.mxu0 %v2012
      %2016 = vmatprep.subr.bf16.mxu0 0
      %2017 = vmatpush1.bf16.xpose.msra.mxu0 0
      %2018 = vmatprep.subr.bf16.mxu0 0
      %2019 = vmatpush1.bf16.xpose.msra.mxu0 0
      %2020 = vmatprep.subr.bf16.mxu0 0
      %2021 = vmatpush1.bf16.xpose.msra.mxu0 0
      %2022 = vmatprep.subr.bf16.mxu0 0
      %2023 = vmatpush1.bf16.xpose.msra.mxu0 0
      %2024 = vmatprep.subr.bf16.mxu0 0
      %2025 = vmatpush1.bf16.xpose.msra.mxu0 0
      %2026 = vmatprep.subr.bf16.mxu0 0
      %2027 = vmatpush1.bf16.xpose.msra.mxu0 0
      %2028 = vmatprep.subr.bf16.mxu0 0
      %2029 = vmatpush1.bf16.xpose.msra.mxu0 0
      %2030 = vmatprep.subr.bf16.mxu0 0
      %2031 = vmatpush1.bf16.xpose.msra.mxu0 0
      %2032 = vmatprep.subr.bf16.mxu0 0
      %2033 = vmatpush1.bf16.xpose.msra.mxu0 0
      %2034 = vmatprep.subr.bf16.mxu0 0
      %2035 = vmatpush1.bf16.xpose.msra.mxu0 0
      %2036 = vmatprep.subr.bf16.mxu0 0
      %2037 = vmatpush1.bf16.xpose.msra.mxu0 0
      %2038 = vmatprep.subr.bf16.mxu0 0
      %2039 = vmatpush1.bf16.xpose.msra.mxu0 0
      %2040 = vmatprep.subr.bf16.mxu0 0
      %2041 = vmatpush1.bf16.xpose.msra.mxu0 0
      %2042 = vmatprep.subr.bf16.mxu0 0
      %2043 = vmatpush1.bf16.xpose.msra.mxu0 0
      %2044 = vmatprep.subr.bf16.mxu0 0
      %2045 = vmatpush1.bf16.xpose.msra.mxu0 0
      %2046 = vmatprep.mubr.bf16.mxu0 0
      %2047 = vmatmul.mubr.bf16.gmra.mrb[0].mxu0 %v2009
      %v2048 = vpop.f32.mrb[0].mxu0
      %v2049 = vadd.f32 0.0, %v2048
      %v2050 = vpop.f32.mrb[0].mxu0
      %v2051 = vpop.f32.mrb[0].mxu0
      %v2052 = vpop.f32.mrb[0].mxu0
      %2053 = vdwg.mxu0
      %2054 = vrot.lane.b32.xlu0 %v857, 112
      %v2055 = vpop.permute.xlu0 %2054
      %2056 = vrot.lane.b32.xlu0 %v857, 80
      %v2057 = vpop.permute.xlu0 %2056
      %v2059 = vsel %vm673, %v2055, 0
      %v2062 = vsel %vm673, %v2057, 0
      %2064 = vmatprep.subr.bf16.mxu0 0
      %2065 = vmatpush1.bf16.xpose.msra.mxu0 %v2062
      %2066 = vmatprep.subr.bf16.mxu0 0
      %2067 = vmatpush1.bf16.xpose.msra.mxu0 0
      %2068 = vmatprep.subr.bf16.mxu0 0
      %2069 = vmatpush1.bf16.xpose.msra.mxu0 0
      %2070 = vmatprep.subr.bf16.mxu0 0
      %2071 = vmatpush1.bf16.xpose.msra.mxu0 0
      %2072 = vmatprep.subr.bf16.mxu0 0
      %2073 = vmatpush1.bf16.xpose.msra.mxu0 0
      %2074 = vmatprep.subr.bf16.mxu0 0
      %2075 = vmatpush1.bf16.xpose.msra.mxu0 0
      %2076 = vmatprep.subr.bf16.mxu0 0
      %2077 = vmatpush1.bf16.xpose.msra.mxu0 0
      %2078 = vmatprep.subr.bf16.mxu0 0
      %2079 = vmatpush1.bf16.xpose.msra.mxu0 0
      %2080 = vmatprep.subr.bf16.mxu0 0
      %2081 = vmatpush1.bf16.xpose.msra.mxu0 0
      %2082 = vmatprep.subr.bf16.mxu0 0
      %2083 = vmatpush1.bf16.xpose.msra.mxu0 0
      %2084 = vmatprep.subr.bf16.mxu0 0
      %2085 = vmatpush1.bf16.xpose.msra.mxu0 0
      %2086 = vmatprep.subr.bf16.mxu0 0
      %2087 = vmatpush1.bf16.xpose.msra.mxu0 0
      %2088 = vmatprep.subr.bf16.mxu0 0
      %2089 = vmatpush1.bf16.xpose.msra.mxu0 0
      %2090 = vmatprep.subr.bf16.mxu0 0
      %2091 = vmatpush1.bf16.xpose.msra.mxu0 0
      %2092 = vmatprep.subr.bf16.mxu0 0
      %2093 = vmatpush1.bf16.xpose.msra.mxu0 0
      %2094 = vmatprep.subr.bf16.mxu0 0
      %2095 = vmatpush1.bf16.xpose.msra.mxu0 0
      %2096 = vmatprep.mubr.bf16.mxu0 0
      %2097 = vmatmul.mubr.bf16.gmra.mrb[0].mxu0 %v2059
      %v2098 = vpop.f32.mrb[0].mxu0
      %v2099 = vadd.f32 0.0, %v2098
      %v2100 = vpop.f32.mrb[0].mxu0
      %v2101 = vpop.f32.mrb[0].mxu0
      %v2102 = vpop.f32.mrb[0].mxu0
      %2103 = vdwg.mxu0
      %2104 = vrot.lane.b32.xlu0 %v919, 112
      %v2105 = vpop.permute.xlu0 %2104
      %2106 = vrot.lane.b32.xlu0 %v919, 80
      %v2107 = vpop.permute.xlu0 %2106
      %v2109 = vsel %vm673, %v2105, 0
      %v2112 = vsel %vm673, %v2107, 0
      %2114 = vmatprep.subr.bf16.mxu0 0
      %2115 = vmatpush1.bf16.xpose.msra.mxu0 %v2112
      %2116 = vmatprep.subr.bf16.mxu0 0
      %2117 = vmatpush1.bf16.xpose.msra.mxu0 0
      %2118 = vmatprep.subr.bf16.mxu0 0
      %2119 = vmatpush1.bf16.xpose.msra.mxu0 0
      %2120 = vmatprep.subr.bf16.mxu0 0
      %2121 = vmatpush1.bf16.xpose.msra.mxu0 0
      %2122 = vmatprep.subr.bf16.mxu0 0
      %2123 = vmatpush1.bf16.xpose.msra.mxu0 0
      %2124 = vmatprep.subr.bf16.mxu0 0
      %2125 = vmatpush1.bf16.xpose.msra.mxu0 0
      %2126 = vmatprep.subr.bf16.mxu0 0
      %2127 = vmatpush1.bf16.xpose.msra.mxu0 0
      %2128 = vmatprep.subr.bf16.mxu0 0
      %2129 = vmatpush1.bf16.xpose.msra.mxu0 0
      %2130 = vmatprep.subr.bf16.mxu0 0
      %2131 = vmatpush1.bf16.xpose.msra.mxu0 0
      %2132 = vmatprep.subr.bf16.mxu0 0
      %2133 = vmatpush1.bf16.xpose.msra.mxu0 0
      %2134 = vmatprep.subr.bf16.mxu0 0
      %2135 = vmatpush1.bf16.xpose.msra.mxu0 0
      %2136 = vmatprep.subr.bf16.mxu0 0
      %2137 = vmatpush1.bf16.xpose.msra.mxu0 0
      %2138 = vmatprep.subr.bf16.mxu0 0
      %2139 = vmatpush1.bf16.xpose.msra.mxu0 0
      %2140 = vmatprep.subr.bf16.mxu0 0
      %2141 = vmatpush1.bf16.xpose.msra.mxu0 0
      %2142 = vmatprep.subr.bf16.mxu0 0
      %2143 = vmatpush1.bf16.xpose.msra.mxu0 0
      %2144 = vmatprep.subr.bf16.mxu0 0
      %2145 = vmatpush1.bf16.xpose.msra.mxu0 0
      %2146 = vmatprep.mubr.bf16.mxu0 0
      %2147 = vmatmul.mubr.bf16.gmra.mrb[0].mxu0 %v2109
      %v2148 = vpop.f32.mrb[0].mxu0
      %v2149 = vadd.f32 0.0, %v2148
      %v2150 = vpop.f32.mrb[0].mxu0
      %v2151 = vpop.f32.mrb[0].mxu0
      %v2152 = vpop.f32.mrb[0].mxu0
      %2153 = vdwg.mxu0
      %v2154 = vmul.f32 %v1949, 0.35355338
      %v2155 = vmul.f32 %v1999, 0.35355338
      %v2156 = vmul.f32 %v2049, 0.35355338
      %v2157 = vmul.f32 %v2099, 0.35355338
      %v2158 = vmul.f32 %v2149, 0.35355338
      %v2159 = vsel %vm973, %v2154, -inf
      %2160 = vmax.xlane.f32.xlu0 %v2159
      %v2161 = vpop.xlane.xlu0 %2160
      %v2162 = vsel %vm973, %v2155, -inf
      %2163 = vmax.xlane.f32.xlu0 %v2162
      %v2164 = vpop.xlane.xlu0 %2163
      %v2165 = vsel %vm973, %v2156, -inf
      %2166 = vmax.xlane.f32.xlu0 %v2165
      %v2167 = vpop.xlane.xlu0 %2166
      %v2168 = vsel %vm973, %v2157, -inf
      %2169 = vmax.xlane.f32.xlu0 %v2168
      %v2170 = vpop.xlane.xlu0 %2169
      %v2171 = vsel %vm973, %v2158, -inf
      %2172 = vmax.xlane.f32.xlu0 %v2171
      %v2173 = vpop.xlane.xlu0 %2172
      %v2174 = vsub.f32 %v2154, %v2161
      %v2175 = vsub.f32 %v2155, %v2164
      %v2176 = vsub.f32 %v2156, %v2167
      %v2177 = vsub.f32 %v2157, %v2170
      %v2178 = vsub.f32 %v2158, %v2173
      %v2179 = vmul.f32 %v2174, 1.442695
      %v2180 = vpow.pop %v2179
      %v2181 = vmul.f32 %v2175, 1.442695
      %v2182 = vpow.pop %v2181
      %v2183 = vmul.f32 %v2176, 1.442695
      %v2184 = vpow.pop %v2183
      %v2185 = vmul.f32 %v2177, 1.442695
      %v2186 = vpow.pop %v2185
      %v2187 = vmul.f32 %v2178, 1.442695
      %v2188 = vpow.pop %v2187
      %v2189 = vsel %vm973, %v2180, 0.0
      %2190 = vadd.xlane.f32.xlu0 %v2189
      %v2191 = vpop.xlane.xlu0 %2190
      %v2192 = vsel %vm973, %v2182, 0.0
      %2193 = vadd.xlane.f32.xlu0 %v2192
      %v2194 = vpop.xlane.xlu0 %2193
      %v2195 = vsel %vm973, %v2184, 0.0
      %2196 = vadd.xlane.f32.xlu0 %v2195
      %v2197 = vpop.xlane.xlu0 %2196
      %v2198 = vsel %vm973, %v2186, 0.0
      %2199 = vadd.xlane.f32.xlu0 %v2198
      %v2200 = vpop.xlane.xlu0 %2199
      %v2201 = vsel %vm973, %v2188, 0.0
      %2202 = vadd.xlane.f32.xlu0 %v2201
      %v2203 = vpop.xlane.xlu0 %2202
      %v2204 = vrcp.pop %v2191
      %v2205 = vrcp.pop %v2194
      %v2206 = vrcp.pop %v2197
      %v2207 = vrcp.pop %v2200
      %v2208 = vrcp.pop %v2203
      %v2209 = vmul.f32 %v2180, %v2204
      %v2210 = vmul.f32 %v2182, %v2205
      %v2211 = vmul.f32 %v2184, %v2206
      %v2212 = vmul.f32 %v2186, %v2207
      %v2213 = vmul.f32 %v2188, %v2208
      %v2214 = vpack.c.bf16 %v2209, %v2209
      %v2215 = vpack.c.bf16 %v2210, %v2210
      %v2216 = vpack.c.bf16 %v2211, %v2211
      %v2217 = vpack.c.bf16 %v2212, %v2212
      %v2218 = vpack.c.bf16 %v2213, %v2213
      %2219 = vrot.lane.b32.xlu0 %v670, 48
      %v2220 = vpop.permute.xlu0 %2219
      %v2222 = vsel %vm1036, %v2214, 0
      %v2225 = vsel %vm1040, %v2220, 0
      %2227 = vmatprep.subr.bf16.mxu0 0
      %2228 = vmatpush1.bf16.msra.mxu0 %v2225
      %2229 = vmatprep.subr.bf16.mxu0 0
      %2230 = vmatpush1.bf16.msra.mxu0 0
      %2231 = vmatprep.subr.bf16.mxu0 0
      %2232 = vmatpush1.bf16.msra.mxu0 0
      %2233 = vmatprep.subr.bf16.mxu0 0
      %2234 = vmatpush1.bf16.msra.mxu0 0
      %2235 = vmatprep.subr.bf16.mxu0 0
      %2236 = vmatpush1.bf16.msra.mxu0 0
      %2237 = vmatprep.subr.bf16.mxu0 0
      %2238 = vmatpush1.bf16.msra.mxu0 0
      %2239 = vmatprep.subr.bf16.mxu0 0
      %2240 = vmatpush1.bf16.msra.mxu0 0
      %2241 = vmatprep.subr.bf16.mxu0 0
      %2242 = vmatpush1.bf16.msra.mxu0 0
      %2243 = vmatprep.subr.bf16.mxu0 0
      %2244 = vmatpush1.bf16.msra.mxu0 0
      %2245 = vmatprep.subr.bf16.mxu0 0
      %2246 = vmatpush1.bf16.msra.mxu0 0
      %2247 = vmatprep.subr.bf16.mxu0 0
      %2248 = vmatpush1.bf16.msra.mxu0 0
      %2249 = vmatprep.subr.bf16.mxu0 0
      %2250 = vmatpush1.bf16.msra.mxu0 0
      %2251 = vmatprep.subr.bf16.mxu0 0
      %2252 = vmatpush1.bf16.msra.mxu0 0
      %2253 = vmatprep.subr.bf16.mxu0 0
      %2254 = vmatpush1.bf16.msra.mxu0 0
      %2255 = vmatprep.subr.bf16.mxu0 0
      %2256 = vmatpush1.bf16.msra.mxu0 0
      %2257 = vmatprep.subr.bf16.mxu0 0
      %2258 = vmatpush1.bf16.msra.mxu0 0
      %2259 = vmatprep.mubr.bf16.mxu0 0
      %2260 = vmatmul.mubr.bf16.gmra.mrb[0].mxu0 %v2222
      %v2261 = vpop.f32.mrb[0].mxu0
      %v2262 = vadd.f32 0.0, %v2261
      %v2263 = vpop.f32.mrb[0].mxu0
      %v2264 = vpop.f32.mrb[0].mxu0
      %v2265 = vpop.f32.mrb[0].mxu0
      %2266 = vdwg.mxu0
      %2267 = vrot.lane.b32.xlu0 %v733, 48
      %v2268 = vpop.permute.xlu0 %2267
      %v2270 = vsel %vm1036, %v2215, 0
      %v2273 = vsel %vm1040, %v2268, 0
      %2275 = vmatprep.subr.bf16.mxu0 0
      %2276 = vmatpush1.bf16.msra.mxu0 %v2273
      %2277 = vmatprep.subr.bf16.mxu0 0
      %2278 = vmatpush1.bf16.msra.mxu0 0
      %2279 = vmatprep.subr.bf16.mxu0 0
      %2280 = vmatpush1.bf16.msra.mxu0 0
      %2281 = vmatprep.subr.bf16.mxu0 0
      %2282 = vmatpush1.bf16.msra.mxu0 0
      %2283 = vmatprep.subr.bf16.mxu0 0
      %2284 = vmatpush1.bf16.msra.mxu0 0
      %2285 = vmatprep.subr.bf16.mxu0 0
      %2286 = vmatpush1.bf16.msra.mxu0 0
      %2287 = vmatprep.subr.bf16.mxu0 0
      %2288 = vmatpush1.bf16.msra.mxu0 0
      %2289 = vmatprep.subr.bf16.mxu0 0
      %2290 = vmatpush1.bf16.msra.mxu0 0
      %2291 = vmatprep.subr.bf16.mxu0 0
      %2292 = vmatpush1.bf16.msra.mxu0 0
      %2293 = vmatprep.subr.bf16.mxu0 0
      %2294 = vmatpush1.bf16.msra.mxu0 0
      %2295 = vmatprep.subr.bf16.mxu0 0
      %2296 = vmatpush1.bf16.msra.mxu0 0
      %2297 = vmatprep.subr.bf16.mxu0 0
      %2298 = vmatpush1.bf16.msra.mxu0 0
      %2299 = vmatprep.subr.bf16.mxu0 0
      %2300 = vmatpush1.bf16.msra.mxu0 0
      %2301 = vmatprep.subr.bf16.mxu0 0
      %2302 = vmatpush1.bf16.msra.mxu0 0
      %2303 = vmatprep.subr.bf16.mxu0 0
      %2304 = vmatpush1.bf16.msra.mxu0 0
      %2305 = vmatprep.subr.bf16.mxu0 0
      %2306 = vmatpush1.bf16.msra.mxu0 0
      %2307 = vmatprep.mubr.bf16.mxu0 0
      %2308 = vmatmul.mubr.bf16.gmra.mrb[0].mxu0 %v2270
      %v2309 = vpop.f32.mrb[0].mxu0
      %v2310 = vadd.f32 0.0, %v2309
      %v2311 = vpop.f32.mrb[0].mxu0
      %v2312 = vpop.f32.mrb[0].mxu0
      %v2313 = vpop.f32.mrb[0].mxu0
      %2314 = vdwg.mxu0
      %2315 = vrot.lane.b32.xlu0 %v795, 48
      %v2316 = vpop.permute.xlu0 %2315
      %v2318 = vsel %vm1036, %v2216, 0
      %v2321 = vsel %vm1040, %v2316, 0
      %2323 = vmatprep.subr.bf16.mxu0 0
      %2324 = vmatpush1.bf16.msra.mxu0 %v2321
      %2325 = vmatprep.subr.bf16.mxu0 0
      %2326 = vmatpush1.bf16.msra.mxu0 0
      %2327 = vmatprep.subr.bf16.mxu0 0
      %2328 = vmatpush1.bf16.msra.mxu0 0
      %2329 = vmatprep.subr.bf16.mxu0 0
      %2330 = vmatpush1.bf16.msra.mxu0 0
      %2331 = vmatprep.subr.bf16.mxu0 0
      %2332 = vmatpush1.bf16.msra.mxu0 0
      %2333 = vmatprep.subr.bf16.mxu0 0
      %2334 = vmatpush1.bf16.msra.mxu0 0
      %2335 = vmatprep.subr.bf16.mxu0 0
      %2336 = vmatpush1.bf16.msra.mxu0 0
      %2337 = vmatprep.subr.bf16.mxu0 0
      %2338 = vmatpush1.bf16.msra.mxu0 0
      %2339 = vmatprep.subr.bf16.mxu0 0
      %2340 = vmatpush1.bf16.msra.mxu0 0
      %2341 = vmatprep.subr.bf16.mxu0 0
      %2342 = vmatpush1.bf16.msra.mxu0 0
      %2343 = vmatprep.subr.bf16.mxu0 0
      %2344 = vmatpush1.bf16.msra.mxu0 0
      %2345 = vmatprep.subr.bf16.mxu0 0
      %2346 = vmatpush1.bf16.msra.mxu0 0
      %2347 = vmatprep.subr.bf16.mxu0 0
      %2348 = vmatpush1.bf16.msra.mxu0 0
      %2349 = vmatprep.subr.bf16.mxu0 0
      %2350 = vmatpush1.bf16.msra.mxu0 0
      %2351 = vmatprep.subr.bf16.mxu0 0
      %2352 = vmatpush1.bf16.msra.mxu0 0
      %2353 = vmatprep.subr.bf16.mxu0 0
      %2354 = vmatpush1.bf16.msra.mxu0 0
      %2355 = vmatprep.mubr.bf16.mxu0 0
      %2356 = vmatmul.mubr.bf16.gmra.mrb[0].mxu0 %v2318
      %v2357 = vpop.f32.mrb[0].mxu0
      %v2358 = vadd.f32 0.0, %v2357
      %v2359 = vpop.f32.mrb[0].mxu0
      %v2360 = vpop.f32.mrb[0].mxu0
      %v2361 = vpop.f32.mrb[0].mxu0
      %2362 = vdwg.mxu0
      %2363 = vrot.lane.b32.xlu0 %v857, 48
      %v2364 = vpop.permute.xlu0 %2363
      %v2366 = vsel %vm1036, %v2217, 0
      %v2369 = vsel %vm1040, %v2364, 0
      %2371 = vmatprep.subr.bf16.mxu0 0
      %2372 = vmatpush1.bf16.msra.mxu0 %v2369
      %2373 = vmatprep.subr.bf16.mxu0 0
      %2374 = vmatpush1.bf16.msra.mxu0 0
      %2375 = vmatprep.subr.bf16.mxu0 0
      %2376 = vmatpush1.bf16.msra.mxu0 0
      %2377 = vmatprep.subr.bf16.mxu0 0
      %2378 = vmatpush1.bf16.msra.mxu0 0
      %2379 = vmatprep.subr.bf16.mxu0 0
      %2380 = vmatpush1.bf16.msra.mxu0 0
      %2381 = vmatprep.subr.bf16.mxu0 0
      %2382 = vmatpush1.bf16.msra.mxu0 0
      %2383 = vmatprep.subr.bf16.mxu0 0
      %2384 = vmatpush1.bf16.msra.mxu0 0
      %2385 = vmatprep.subr.bf16.mxu0 0
      %2386 = vmatpush1.bf16.msra.mxu0 0
      %2387 = vmatprep.subr.bf16.mxu0 0
      %2388 = vmatpush1.bf16.msra.mxu0 0
      %2389 = vmatprep.subr.bf16.mxu0 0
      %2390 = vmatpush1.bf16.msra.mxu0 0
      %2391 = vmatprep.subr.bf16.mxu0 0
      %2392 = vmatpush1.bf16.msra.mxu0 0
      %2393 = vmatprep.subr.bf16.mxu0 0
      %2394 = vmatpush1.bf16.msra.mxu0 0
      %2395 = vmatprep.subr.bf16.mxu0 0
      %2396 = vmatpush1.bf16.msra.mxu0 0
      %2397 = vmatprep.subr.bf16.mxu0 0
      %2398 = vmatpush1.bf16.msra.mxu0 0
      %2399 = vmatprep.subr.bf16.mxu0 0
      %2400 = vmatpush1.bf16.msra.mxu0 0
      %2401 = vmatprep.subr.bf16.mxu0 0
      %2402 = vmatpush1.bf16.msra.mxu0 0
      %2403 = vmatprep.mubr.bf16.mxu0 0
      %2404 = vmatmul.mubr.bf16.gmra.mrb[0].mxu0 %v2366
      %v2405 = vpop.f32.mrb[0].mxu0
      %v2406 = vadd.f32 0.0, %v2405
      %v2407 = vpop.f32.mrb[0].mxu0
      %v2408 = vpop.f32.mrb[0].mxu0
      %v2409 = vpop.f32.mrb[0].mxu0
      %2410 = vdwg.mxu0
      %2411 = vrot.lane.b32.xlu0 %v919, 48
      %v2412 = vpop.permute.xlu0 %2411
      %v2414 = vsel %vm1036, %v2218, 0
      %v2417 = vsel %vm1040, %v2412, 0
      %2419 = vmatprep.subr.bf16.mxu0 0
      %2420 = vmatpush1.bf16.msra.mxu0 %v2417
      %2421 = vmatprep.subr.bf16.mxu0 0
      %2422 = vmatpush1.bf16.msra.mxu0 0
      %2423 = vmatprep.subr.bf16.mxu0 0
      %2424 = vmatpush1.bf16.msra.mxu0 0
      %2425 = vmatprep.subr.bf16.mxu0 0
      %2426 = vmatpush1.bf16.msra.mxu0 0
      %2427 = vmatprep.subr.bf16.mxu0 0
      %2428 = vmatpush1.bf16.msra.mxu0 0
      %2429 = vmatprep.subr.bf16.mxu0 0
      %2430 = vmatpush1.bf16.msra.mxu0 0
      %2431 = vmatprep.subr.bf16.mxu0 0
      %2432 = vmatpush1.bf16.msra.mxu0 0
      %2433 = vmatprep.subr.bf16.mxu0 0
      %2434 = vmatpush1.bf16.msra.mxu0 0
      %2435 = vmatprep.subr.bf16.mxu0 0
      %2436 = vmatpush1.bf16.msra.mxu0 0
      %2437 = vmatprep.subr.bf16.mxu0 0
      %2438 = vmatpush1.bf16.msra.mxu0 0
      %2439 = vmatprep.subr.bf16.mxu0 0
      %2440 = vmatpush1.bf16.msra.mxu0 0
      %2441 = vmatprep.subr.bf16.mxu0 0
      %2442 = vmatpush1.bf16.msra.mxu0 0
      %2443 = vmatprep.subr.bf16.mxu0 0
      %2444 = vmatpush1.bf16.msra.mxu0 0
      %2445 = vmatprep.subr.bf16.mxu0 0
      %2446 = vmatpush1.bf16.msra.mxu0 0
      %2447 = vmatprep.subr.bf16.mxu0 0
      %2448 = vmatpush1.bf16.msra.mxu0 0
      %2449 = vmatprep.subr.bf16.mxu0 0
      %2450 = vmatpush1.bf16.msra.mxu0 0
      %2451 = vmatprep.mubr.bf16.mxu0 0
      %2452 = vmatmul.mubr.bf16.gmra.mrb[0].mxu0 %v2414
      %v2453 = vpop.f32.mrb[0].mxu0
      %v2454 = vadd.f32 0.0, %v2453
      %v2455 = vpop.f32.mrb[0].mxu0
      %v2456 = vpop.f32.mrb[0].mxu0
      %v2457 = vpop.f32.mrb[0].mxu0
      %2458 = vdwg.mxu0
      %v2464 = vcombine.low %v2262, %v2310
      %v2465 = vcombine.low %v2358, %v2406
      %v2467 = vunpack.c.l.s4 1983009808
      %v2468 = vunpack.c.0.s8 %v2467
      %v2469 = vlaneseq
      %v2470 = vshrl.u32 %v2469, 7
      %v2471 = vsub.s32 %v2468, %v2470
      %v2472 = vrot.slane %v2464, %v2471
      %v2474 = vunpack.c.l.s4 1983009808
      %v2475 = vunpack.c.0.s8 %v2474
      %v2476 = vlaneseq
      %v2477 = vshrl.u32 %v2476, 7
      %v2478 = vsub.s32 %v2475, %v2477
      %v2479 = vrot.slane %v2465, %v2478
      %v2480 = vcombine.low %v2472, %v2479
      %v2482 = vunpack.c.l.s4 1983009808
      %v2483 = vunpack.c.0.s8 %v2482
      %v2484 = vlaneseq
      %v2485 = vshrl.u32 %v2484, 7
      %v2486 = vsub.s32 %v2483, %v2485
      %v2487 = vrot.slane %v2454, %v2486
      %2488 = vrot.lane.b32.xlu0 %v2480, 16
      %v2489 = vpop.permute.xlu0 %2488
      %2490 = vrot.lane.b32.xlu0 %v2487, 16
      %v2491 = vpop.permute.xlu0 %2490
      %vm2494 = vcmask 195712
      %2495 = vst.msk [vmem:[#allocation3] sm:$0xff] %vm2494, %v2489
      %vm2496 = vcmask 189568
      %2497 = vst.msk [vmem:[#allocation3 + $0x8] sm:$0x3] %vm2496, %v2491
      %2498 = vrot.lane.b32.xlu0 %v670, 104
      %v2499 = vpop.permute.xlu0 %2498
      %2500 = vrot.lane.b32.xlu0 %v670, 72
      %v2501 = vpop.permute.xlu0 %2500
      %v2503 = vsel %vm673, %v2499, 0
      %v2506 = vsel %vm673, %v2501, 0
      %2508 = vmatprep.subr.bf16.mxu0 0
      %2509 = vmatpush1.bf16.xpose.msra.mxu0 %v2506
      %2510 = vmatprep.subr.bf16.mxu0 0
      %2511 = vmatpush1.bf16.xpose.msra.mxu0 0
      %2512 = vmatprep.subr.bf16.mxu0 0
      %2513 = vmatpush1.bf16.xpose.msra.mxu0 0
      %2514 = vmatprep.subr.bf16.mxu0 0
      %2515 = vmatpush1.bf16.xpose.msra.mxu0 0
      %2516 = vmatprep.subr.bf16.mxu0 0
      %2517 = vmatpush1.bf16.xpose.msra.mxu0 0
      %2518 = vmatprep.subr.bf16.mxu0 0
      %2519 = vmatpush1.bf16.xpose.msra.mxu0 0
      %2520 = vmatprep.subr.bf16.mxu0 0
      %2521 = vmatpush1.bf16.xpose.msra.mxu0 0
      %2522 = vmatprep.subr.bf16.mxu0 0
      %2523 = vmatpush1.bf16.xpose.msra.mxu0 0
      %2524 = vmatprep.subr.bf16.mxu0 0
      %2525 = vmatpush1.bf16.xpose.msra.mxu0 0
      %2526 = vmatprep.subr.bf16.mxu0 0
      %2527 = vmatpush1.bf16.xpose.msra.mxu0 0
      %2528 = vmatprep.subr.bf16.mxu0 0
      %2529 = vmatpush1.bf16.xpose.msra.mxu0 0
      %2530 = vmatprep.subr.bf16.mxu0 0
      %2531 = vmatpush1.bf16.xpose.msra.mxu0 0
      %2532 = vmatprep.subr.bf16.mxu0 0
      %2533 = vmatpush1.bf16.xpose.msra.mxu0 0
      %2534 = vmatprep.subr.bf16.mxu0 0
      %2535 = vmatpush1.bf16.xpose.msra.mxu0 0
      %2536 = vmatprep.subr.bf16.mxu0 0
      %2537 = vmatpush1.bf16.xpose.msra.mxu0 0
      %2538 = vmatprep.subr.bf16.mxu0 0
      %2539 = vmatpush1.bf16.xpose.msra.mxu0 0
      %2540 = vmatprep.mubr.bf16.mxu0 0
      %2541 = vmatmul.mubr.bf16.gmra.mrb[0].mxu0 %v2503
      %v2542 = vpop.f32.mrb[0].mxu0
      %v2543 = vadd.f32 0.0, %v2542
      %v2544 = vpop.f32.mrb[0].mxu0
      %v2545 = vpop.f32.mrb[0].mxu0
      %v2546 = vpop.f32.mrb[0].mxu0
      %2547 = vdwg.mxu0
      %2548 = vrot.lane.b32.xlu0 %v733, 104
      %v2549 = vpop.permute.xlu0 %2548
      %2550 = vrot.lane.b32.xlu0 %v733, 72
      %v2551 = vpop.permute.xlu0 %2550
      %v2553 = vsel %vm673, %v2549, 0
      %v2556 = vsel %vm673, %v2551, 0
      %2558 = vmatprep.subr.bf16.mxu0 0
      %2559 = vmatpush1.bf16.xpose.msra.mxu0 %v2556
      %2560 = vmatprep.subr.bf16.mxu0 0
      %2561 = vmatpush1.bf16.xpose.msra.mxu0 0
      %2562 = vmatprep.subr.bf16.mxu0 0
      %2563 = vmatpush1.bf16.xpose.msra.mxu0 0
      %2564 = vmatprep.subr.bf16.mxu0 0
      %2565 = vmatpush1.bf16.xpose.msra.mxu0 0
      %2566 = vmatprep.subr.bf16.mxu0 0
      %2567 = vmatpush1.bf16.xpose.msra.mxu0 0
      %2568 = vmatprep.subr.bf16.mxu0 0
      %2569 = vmatpush1.bf16.xpose.msra.mxu0 0
      %2570 = vmatprep.subr.bf16.mxu0 0
      %2571 = vmatpush1.bf16.xpose.msra.mxu0 0
      %2572 = vmatprep.subr.bf16.mxu0 0
      %2573 = vmatpush1.bf16.xpose.msra.mxu0 0
      %2574 = vmatprep.subr.bf16.mxu0 0
      %2575 = vmatpush1.bf16.xpose.msra.mxu0 0
      %2576 = vmatprep.subr.bf16.mxu0 0
      %2577 = vmatpush1.bf16.xpose.msra.mxu0 0
      %2578 = vmatprep.subr.bf16.mxu0 0
      %2579 = vmatpush1.bf16.xpose.msra.mxu0 0
      %2580 = vmatprep.subr.bf16.mxu0 0
      %2581 = vmatpush1.bf16.xpose.msra.mxu0 0
      %2582 = vmatprep.subr.bf16.mxu0 0
      %2583 = vmatpush1.bf16.xpose.msra.mxu0 0
      %2584 = vmatprep.subr.bf16.mxu0 0
      %2585 = vmatpush1.bf16.xpose.msra.mxu0 0
      %2586 = vmatprep.subr.bf16.mxu0 0
      %2587 = vmatpush1.bf16.xpose.msra.mxu0 0
      %2588 = vmatprep.subr.bf16.mxu0 0
      %2589 = vmatpush1.bf16.xpose.msra.mxu0 0
      %2590 = vmatprep.mubr.bf16.mxu0 0
      %2591 = vmatmul.mubr.bf16.gmra.mrb[0].mxu0 %v2553
      %v2592 = vpop.f32.mrb[0].mxu0
      %v2593 = vadd.f32 0.0, %v2592
      %v2594 = vpop.f32.mrb[0].mxu0
      %v2595 = vpop.f32.mrb[0].mxu0
      %v2596 = vpop.f32.mrb[0].mxu0
      %2597 = vdwg.mxu0
      %2598 = vrot.lane.b32.xlu0 %v795, 104
      %v2599 = vpop.permute.xlu0 %2598
      %2600 = vrot.lane.b32.xlu0 %v795, 72
      %v2601 = vpop.permute.xlu0 %2600
      %v2603 = vsel %vm673, %v2599, 0
      %v2606 = vsel %vm673, %v2601, 0
      %2608 = vmatprep.subr.bf16.mxu0 0
      %2609 = vmatpush1.bf16.xpose.msra.mxu0 %v2606
      %2610 = vmatprep.subr.bf16.mxu0 0
      %2611 = vmatpush1.bf16.xpose.msra.mxu0 0
      %2612 = vmatprep.subr.bf16.mxu0 0
      %2613 = vmatpush1.bf16.xpose.msra.mxu0 0
      %2614 = vmatprep.subr.bf16.mxu0 0
      %2615 = vmatpush1.bf16.xpose.msra.mxu0 0
      %2616 = vmatprep.subr.bf16.mxu0 0
      %2617 = vmatpush1.bf16.xpose.msra.mxu0 0
      %2618 = vmatprep.subr.bf16.mxu0 0
      %2619 = vmatpush1.bf16.xpose.msra.mxu0 0
      %2620 = vmatprep.subr.bf16.mxu0 0
      %2621 = vmatpush1.bf16.xpose.msra.mxu0 0
      %2622 = vmatprep.subr.bf16.mxu0 0
      %2623 = vmatpush1.bf16.xpose.msra.mxu0 0
      %2624 = vmatprep.subr.bf16.mxu0 0
      %2625 = vmatpush1.bf16.xpose.msra.mxu0 0
      %2626 = vmatprep.subr.bf16.mxu0 0
      %2627 = vmatpush1.bf16.xpose.msra.mxu0 0
      %2628 = vmatprep.subr.bf16.mxu0 0
      %2629 = vmatpush1.bf16.xpose.msra.mxu0 0
      %2630 = vmatprep.subr.bf16.mxu0 0
      %2631 = vmatpush1.bf16.xpose.msra.mxu0 0
      %2632 = vmatprep.subr.bf16.mxu0 0
      %2633 = vmatpush1.bf16.xpose.msra.mxu0 0
      %2634 = vmatprep.subr.bf16.mxu0 0
      %2635 = vmatpush1.bf16.xpose.msra.mxu0 0
      %2636 = vmatprep.subr.bf16.mxu0 0
      %2637 = vmatpush1.bf16.xpose.msra.mxu0 0
      %2638 = vmatprep.subr.bf16.mxu0 0
      %2639 = vmatpush1.bf16.xpose.msra.mxu0 0
      %2640 = vmatprep.mubr.bf16.mxu0 0
      %2641 = vmatmul.mubr.bf16.gmra.mrb[0].mxu0 %v2603
      %v2642 = vpop.f32.mrb[0].mxu0
      %v2643 = vadd.f32 0.0, %v2642
      %v2644 = vpop.f32.mrb[0].mxu0
      %v2645 = vpop.f32.mrb[0].mxu0
      %v2646 = vpop.f32.mrb[0].mxu0
      %2647 = vdwg.mxu0
      %2648 = vrot.lane.b32.xlu0 %v857, 104
      %v2649 = vpop.permute.xlu0 %2648
      %2650 = vrot.lane.b32.xlu0 %v857, 72
      %v2651 = vpop.permute.xlu0 %2650
      %v2653 = vsel %vm673, %v2649, 0
      %v2656 = vsel %vm673, %v2651, 0
      %2658 = vmatprep.subr.bf16.mxu0 0
      %2659 = vmatpush1.bf16.xpose.msra.mxu0 %v2656
      %2660 = vmatprep.subr.bf16.mxu0 0
      %2661 = vmatpush1.bf16.xpose.msra.mxu0 0
      %2662 = vmatprep.subr.bf16.mxu0 0
      %2663 = vmatpush1.bf16.xpose.msra.mxu0 0
      %2664 = vmatprep.subr.bf16.mxu0 0
      %2665 = vmatpush1.bf16.xpose.msra.mxu0 0
      %2666 = vmatprep.subr.bf16.mxu0 0
      %2667 = vmatpush1.bf16.xpose.msra.mxu0 0
      %2668 = vmatprep.subr.bf16.mxu0 0
      %2669 = vmatpush1.bf16.xpose.msra.mxu0 0
      %2670 = vmatprep.subr.bf16.mxu0 0
      %2671 = vmatpush1.bf16.xpose.msra.mxu0 0
      %2672 = vmatprep.subr.bf16.mxu0 0
      %2673 = vmatpush1.bf16.xpose.msra.mxu0 0
      %2674 = vmatprep.subr.bf16.mxu0 0
      %2675 = vmatpush1.bf16.xpose.msra.mxu0 0
      %2676 = vmatprep.subr.bf16.mxu0 0
      %2677 = vmatpush1.bf16.xpose.msra.mxu0 0
      %2678 = vmatprep.subr.bf16.mxu0 0
      %2679 = vmatpush1.bf16.xpose.msra.mxu0 0
      %2680 = vmatprep.subr.bf16.mxu0 0
      %2681 = vmatpush1.bf16.xpose.msra.mxu0 0
      %2682 = vmatprep.subr.bf16.mxu0 0
      %2683 = vmatpush1.bf16.xpose.msra.mxu0 0
      %2684 = vmatprep.subr.bf16.mxu0 0
      %2685 = vmatpush1.bf16.xpose.msra.mxu0 0
      %2686 = vmatprep.subr.bf16.mxu0 0
      %2687 = vmatpush1.bf16.xpose.msra.mxu0 0
      %2688 = vmatprep.subr.bf16.mxu0 0
      %2689 = vmatpush1.bf16.xpose.msra.mxu0 0
      %2690 = vmatprep.mubr.bf16.mxu0 0
      %2691 = vmatmul.mubr.bf16.gmra.mrb[0].mxu0 %v2653
      %v2692 = vpop.f32.mrb[0].mxu0
      %v2693 = vadd.f32 0.0, %v2692
      %v2694 = vpop.f32.mrb[0].mxu0
      %v2695 = vpop.f32.mrb[0].mxu0
      %v2696 = vpop.f32.mrb[0].mxu0
      %2697 = vdwg.mxu0
      %2698 = vrot.lane.b32.xlu0 %v919, 104
      %v2699 = vpop.permute.xlu0 %2698
      %2700 = vrot.lane.b32.xlu0 %v919, 72
      %v2701 = vpop.permute.xlu0 %2700
      %v2703 = vsel %vm673, %v2699, 0
      %v2706 = vsel %vm673, %v2701, 0
      %2708 = vmatprep.subr.bf16.mxu0 0
      %2709 = vmatpush1.bf16.xpose.msra.mxu0 %v2706
      %2710 = vmatprep.subr.bf16.mxu0 0
      %2711 = vmatpush1.bf16.xpose.msra.mxu0 0
      %2712 = vmatprep.subr.bf16.mxu0 0
      %2713 = vmatpush1.bf16.xpose.msra.mxu0 0
      %2714 = vmatprep.subr.bf16.mxu0 0
      %2715 = vmatpush1.bf16.xpose.msra.mxu0 0
      %2716 = vmatprep.subr.bf16.mxu0 0
      %2717 = vmatpush1.bf16.xpose.msra.mxu0 0
      %2718 = vmatprep.subr.bf16.mxu0 0
      %2719 = vmatpush1.bf16.xpose.msra.mxu0 0
      %2720 = vmatprep.subr.bf16.mxu0 0
      %2721 = vmatpush1.bf16.xpose.msra.mxu0 0
      %2722 = vmatprep.subr.bf16.mxu0 0
      %2723 = vmatpush1.bf16.xpose.msra.mxu0 0
      %2724 = vmatprep.subr.bf16.mxu0 0
      %2725 = vmatpush1.bf16.xpose.msra.mxu0 0
      %2726 = vmatprep.subr.bf16.mxu0 0
      %2727 = vmatpush1.bf16.xpose.msra.mxu0 0
      %2728 = vmatprep.subr.bf16.mxu0 0
      %2729 = vmatpush1.bf16.xpose.msra.mxu0 0
      %2730 = vmatprep.subr.bf16.mxu0 0
      %2731 = vmatpush1.bf16.xpose.msra.mxu0 0
      %2732 = vmatprep.subr.bf16.mxu0 0
      %2733 = vmatpush1.bf16.xpose.msra.mxu0 0
      %2734 = vmatprep.subr.bf16.mxu0 0
      %2735 = vmatpush1.bf16.xpose.msra.mxu0 0
      %2736 = vmatprep.subr.bf16.mxu0 0
      %2737 = vmatpush1.bf16.xpose.msra.mxu0 0
      %2738 = vmatprep.subr.bf16.mxu0 0
      %2739 = vmatpush1.bf16.xpose.msra.mxu0 0
      %2740 = vmatprep.mubr.bf16.mxu0 0
      %2741 = vmatmul.mubr.bf16.gmra.mrb[0].mxu0 %v2703
      %v2742 = vpop.f32.mrb[0].mxu0
      %v2743 = vadd.f32 0.0, %v2742
      %v2744 = vpop.f32.mrb[0].mxu0
      %v2745 = vpop.f32.mrb[0].mxu0
      %v2746 = vpop.f32.mrb[0].mxu0
      %2747 = vdwg.mxu0
      %v2748 = vmul.f32 %v2543, 0.35355338
      %v2749 = vmul.f32 %v2593, 0.35355338
      %v2750 = vmul.f32 %v2643, 0.35355338
      %v2751 = vmul.f32 %v2693, 0.35355338
      %v2752 = vmul.f32 %v2743, 0.35355338
      %v2753 = vsel %vm973, %v2748, -inf
      %2754 = vmax.xlane.f32.xlu0 %v2753
      %v2755 = vpop.xlane.xlu0 %2754
      %v2756 = vsel %vm973, %v2749, -inf
      %2757 = vmax.xlane.f32.xlu0 %v2756
      %v2758 = vpop.xlane.xlu0 %2757
      %v2759 = vsel %vm973, %v2750, -inf
      %2760 = vmax.xlane.f32.xlu0 %v2759
      %v2761 = vpop.xlane.xlu0 %2760
      %v2762 = vsel %vm973, %v2751, -inf
      %2763 = vmax.xlane.f32.xlu0 %v2762
      %v2764 = vpop.xlane.xlu0 %2763
      %v2765 = vsel %vm973, %v2752, -inf
      %2766 = vmax.xlane.f32.xlu0 %v2765
      %v2767 = vpop.xlane.xlu0 %2766
      %v2768 = vsub.f32 %v2748, %v2755
      %v2769 = vsub.f32 %v2749, %v2758
      %v2770 = vsub.f32 %v2750, %v2761
      %v2771 = vsub.f32 %v2751, %v2764
      %v2772 = vsub.f32 %v2752, %v2767
      %v2773 = vmul.f32 %v2768, 1.442695
      %v2774 = vpow.pop %v2773
      %v2775 = vmul.f32 %v2769, 1.442695
      %v2776 = vpow.pop %v2775
      %v2777 = vmul.f32 %v2770, 1.442695
      %v2778 = vpow.pop %v2777
      %v2779 = vmul.f32 %v2771, 1.442695
      %v2780 = vpow.pop %v2779
      %v2781 = vmul.f32 %v2772, 1.442695
      %v2782 = vpow.pop %v2781
      %v2783 = vsel %vm973, %v2774, 0.0
      %2784 = vadd.xlane.f32.xlu0 %v2783
      %v2785 = vpop.xlane.xlu0 %2784
      %v2786 = vsel %vm973, %v2776, 0.0
      %2787 = vadd.xlane.f32.xlu0 %v2786
      %v2788 = vpop.xlane.xlu0 %2787
      %v2789 = vsel %vm973, %v2778, 0.0
      %2790 = vadd.xlane.f32.xlu0 %v2789
      %v2791 = vpop.xlane.xlu0 %2790
      %v2792 = vsel %vm973, %v2780, 0.0
      %2793 = vadd.xlane.f32.xlu0 %v2792
      %v2794 = vpop.xlane.xlu0 %2793
      %v2795 = vsel %vm973, %v2782, 0.0
      %2796 = vadd.xlane.f32.xlu0 %v2795
      %v2797 = vpop.xlane.xlu0 %2796
      %v2798 = vrcp.pop %v2785
      %v2799 = vrcp.pop %v2788
      %v2800 = vrcp.pop %v2791
      %v2801 = vrcp.pop %v2794
      %v2802 = vrcp.pop %v2797
      %v2803 = vmul.f32 %v2774, %v2798
      %v2804 = vmul.f32 %v2776, %v2799
      %v2805 = vmul.f32 %v2778, %v2800
      %v2806 = vmul.f32 %v2780, %v2801
      %v2807 = vmul.f32 %v2782, %v2802
      %v2808 = vpack.c.bf16 %v2803, %v2803
      %v2809 = vpack.c.bf16 %v2804, %v2804
      %v2810 = vpack.c.bf16 %v2805, %v2805
      %v2811 = vpack.c.bf16 %v2806, %v2806
      %v2812 = vpack.c.bf16 %v2807, %v2807
      %2813 = vrot.lane.b32.xlu0 %v670, 40
      %v2814 = vpop.permute.xlu0 %2813
      %v2816 = vsel %vm1036, %v2808, 0
      %v2819 = vsel %vm1040, %v2814, 0
      %2821 = vmatprep.subr.bf16.mxu0 0
      %2822 = vmatpush1.bf16.msra.mxu0 %v2819
      %2823 = vmatprep.subr.bf16.mxu0 0
      %2824 = vmatpush1.bf16.msra.mxu0 0
      %2825 = vmatprep.subr.bf16.mxu0 0
      %2826 = vmatpush1.bf16.msra.mxu0 0
      %2827 = vmatprep.subr.bf16.mxu0 0
      %2828 = vmatpush1.bf16.msra.mxu0 0
      %2829 = vmatprep.subr.bf16.mxu0 0
      %2830 = vmatpush1.bf16.msra.mxu0 0
      %2831 = vmatprep.subr.bf16.mxu0 0
      %2832 = vmatpush1.bf16.msra.mxu0 0
      %2833 = vmatprep.subr.bf16.mxu0 0
      %2834 = vmatpush1.bf16.msra.mxu0 0
      %2835 = vmatprep.subr.bf16.mxu0 0
      %2836 = vmatpush1.bf16.msra.mxu0 0
      %2837 = vmatprep.subr.bf16.mxu0 0
      %2838 = vmatpush1.bf16.msra.mxu0 0
      %2839 = vmatprep.subr.bf16.mxu0 0
      %2840 = vmatpush1.bf16.msra.mxu0 0
      %2841 = vmatprep.subr.bf16.mxu0 0
      %2842 = vmatpush1.bf16.msra.mxu0 0
      %2843 = vmatprep.subr.bf16.mxu0 0
      %2844 = vmatpush1.bf16.msra.mxu0 0
      %2845 = vmatprep.subr.bf16.mxu0 0
      %2846 = vmatpush1.bf16.msra.mxu0 0
      %2847 = vmatprep.subr.bf16.mxu0 0
      %2848 = vmatpush1.bf16.msra.mxu0 0
      %2849 = vmatprep.subr.bf16.mxu0 0
      %2850 = vmatpush1.bf16.msra.mxu0 0
      %2851 = vmatprep.subr.bf16.mxu0 0
      %2852 = vmatpush1.bf16.msra.mxu0 0
      %2853 = vmatprep.mubr.bf16.mxu0 0
      %2854 = vmatmul.mubr.bf16.gmra.mrb[0].mxu0 %v2816
      %v2855 = vpop.f32.mrb[0].mxu0
      %v2856 = vadd.f32 0.0, %v2855
      %v2857 = vpop.f32.mrb[0].mxu0
      %v2858 = vpop.f32.mrb[0].mxu0
      %v2859 = vpop.f32.mrb[0].mxu0
      %2860 = vdwg.mxu0
      %2861 = vrot.lane.b32.xlu0 %v733, 40
      %v2862 = vpop.permute.xlu0 %2861
      %v2864 = vsel %vm1036, %v2809, 0
      %v2867 = vsel %vm1040, %v2862, 0
      %2869 = vmatprep.subr.bf16.mxu0 0
      %2870 = vmatpush1.bf16.msra.mxu0 %v2867
      %2871 = vmatprep.subr.bf16.mxu0 0
      %2872 = vmatpush1.bf16.msra.mxu0 0
      %2873 = vmatprep.subr.bf16.mxu0 0
      %2874 = vmatpush1.bf16.msra.mxu0 0
      %2875 = vmatprep.subr.bf16.mxu0 0
      %2876 = vmatpush1.bf16.msra.mxu0 0
      %2877 = vmatprep.subr.bf16.mxu0 0
      %2878 = vmatpush1.bf16.msra.mxu0 0
      %2879 = vmatprep.subr.bf16.mxu0 0
      %2880 = vmatpush1.bf16.msra.mxu0 0
      %2881 = vmatprep.subr.bf16.mxu0 0
      %2882 = vmatpush1.bf16.msra.mxu0 0
      %2883 = vmatprep.subr.bf16.mxu0 0
      %2884 = vmatpush1.bf16.msra.mxu0 0
      %2885 = vmatprep.subr.bf16.mxu0 0
      %2886 = vmatpush1.bf16.msra.mxu0 0
      %2887 = vmatprep.subr.bf16.mxu0 0
      %2888 = vmatpush1.bf16.msra.mxu0 0
      %2889 = vmatprep.subr.bf16.mxu0 0
      %2890 = vmatpush1.bf16.msra.mxu0 0
      %2891 = vmatprep.subr.bf16.mxu0 0
      %2892 = vmatpush1.bf16.msra.mxu0 0
      %2893 = vmatprep.subr.bf16.mxu0 0
      %2894 = vmatpush1.bf16.msra.mxu0 0
      %2895 = vmatprep.subr.bf16.mxu0 0
      %2896 = vmatpush1.bf16.msra.mxu0 0
      %2897 = vmatprep.subr.bf16.mxu0 0
      %2898 = vmatpush1.bf16.msra.mxu0 0
      %2899 = vmatprep.subr.bf16.mxu0 0
      %2900 = vmatpush1.bf16.msra.mxu0 0
      %2901 = vmatprep.mubr.bf16.mxu0 0
      %2902 = vmatmul.mubr.bf16.gmra.mrb[0].mxu0 %v2864
      %v2903 = vpop.f32.mrb[0].mxu0
      %v2904 = vadd.f32 0.0, %v2903
      %v2905 = vpop.f32.mrb[0].mxu0
      %v2906 = vpop.f32.mrb[0].mxu0
      %v2907 = vpop.f32.mrb[0].mxu0
      %2908 = vdwg.mxu0
      %2909 = vrot.lane.b32.xlu0 %v795, 40
      %v2910 = vpop.permute.xlu0 %2909
      %v2912 = vsel %vm1036, %v2810, 0
      %v2915 = vsel %vm1040, %v2910, 0
      %2917 = vmatprep.subr.bf16.mxu0 0
      %2918 = vmatpush1.bf16.msra.mxu0 %v2915
      %2919 = vmatprep.subr.bf16.mxu0 0
      %2920 = vmatpush1.bf16.msra.mxu0 0
      %2921 = vmatprep.subr.bf16.mxu0 0
      %2922 = vmatpush1.bf16.msra.mxu0 0
      %2923 = vmatprep.subr.bf16.mxu0 0
      %2924 = vmatpush1.bf16.msra.mxu0 0
      %2925 = vmatprep.subr.bf16.mxu0 0
      %2926 = vmatpush1.bf16.msra.mxu0 0
      %2927 = vmatprep.subr.bf16.mxu0 0
      %2928 = vmatpush1.bf16.msra.mxu0 0
      %2929 = vmatprep.subr.bf16.mxu0 0
      %2930 = vmatpush1.bf16.msra.mxu0 0
      %2931 = vmatprep.subr.bf16.mxu0 0
      %2932 = vmatpush1.bf16.msra.mxu0 0
      %2933 = vmatprep.subr.bf16.mxu0 0
      %2934 = vmatpush1.bf16.msra.mxu0 0
      %2935 = vmatprep.subr.bf16.mxu0 0
      %2936 = vmatpush1.bf16.msra.mxu0 0
      %2937 = vmatprep.subr.bf16.mxu0 0
      %2938 = vmatpush1.bf16.msra.mxu0 0
      %2939 = vmatprep.subr.bf16.mxu0 0
      %2940 = vmatpush1.bf16.msra.mxu0 0
      %2941 = vmatprep.subr.bf16.mxu0 0
      %2942 = vmatpush1.bf16.msra.mxu0 0
      %2943 = vmatprep.subr.bf16.mxu0 0
      %2944 = vmatpush1.bf16.msra.mxu0 0
      %2945 = vmatprep.subr.bf16.mxu0 0
      %2946 = vmatpush1.bf16.msra.mxu0 0
      %2947 = vmatprep.subr.bf16.mxu0 0
      %2948 = vmatpush1.bf16.msra.mxu0 0
      %2949 = vmatprep.mubr.bf16.mxu0 0
      %2950 = vmatmul.mubr.bf16.gmra.mrb[0].mxu0 %v2912
      %v2951 = vpop.f32.mrb[0].mxu0
      %v2952 = vadd.f32 0.0, %v2951
      %v2953 = vpop.f32.mrb[0].mxu0
      %v2954 = vpop.f32.mrb[0].mxu0
      %v2955 = vpop.f32.mrb[0].mxu0
      %2956 = vdwg.mxu0
      %2957 = vrot.lane.b32.xlu0 %v857, 40
      %v2958 = vpop.permute.xlu0 %2957
      %v2960 = vsel %vm1036, %v2811, 0
      %v2963 = vsel %vm1040, %v2958, 0
      %2965 = vmatprep.subr.bf16.mxu0 0
      %2966 = vmatpush1.bf16.msra.mxu0 %v2963
      %2967 = vmatprep.subr.bf16.mxu0 0
      %2968 = vmatpush1.bf16.msra.mxu0 0
      %2969 = vmatprep.subr.bf16.mxu0 0
      %2970 = vmatpush1.bf16.msra.mxu0 0
      %2971 = vmatprep.subr.bf16.mxu0 0
      %2972 = vmatpush1.bf16.msra.mxu0 0
      %2973 = vmatprep.subr.bf16.mxu0 0
      %2974 = vmatpush1.bf16.msra.mxu0 0
      %2975 = vmatprep.subr.bf16.mxu0 0
      %2976 = vmatpush1.bf16.msra.mxu0 0
      %2977 = vmatprep.subr.bf16.mxu0 0
      %2978 = vmatpush1.bf16.msra.mxu0 0
      %2979 = vmatprep.subr.bf16.mxu0 0
      %2980 = vmatpush1.bf16.msra.mxu0 0
      %2981 = vmatprep.subr.bf16.mxu0 0
      %2982 = vmatpush1.bf16.msra.mxu0 0
      %2983 = vmatprep.subr.bf16.mxu0 0
      %2984 = vmatpush1.bf16.msra.mxu0 0
      %2985 = vmatprep.subr.bf16.mxu0 0
      %2986 = vmatpush1.bf16.msra.mxu0 0
      %2987 = vmatprep.subr.bf16.mxu0 0
      %2988 = vmatpush1.bf16.msra.mxu0 0
      %2989 = vmatprep.subr.bf16.mxu0 0
      %2990 = vmatpush1.bf16.msra.mxu0 0
      %2991 = vmatprep.subr.bf16.mxu0 0
      %2992 = vmatpush1.bf16.msra.mxu0 0
      %2993 = vmatprep.subr.bf16.mxu0 0
      %2994 = vmatpush1.bf16.msra.mxu0 0
      %2995 = vmatprep.subr.bf16.mxu0 0
      %2996 = vmatpush1.bf16.msra.mxu0 0
      %2997 = vmatprep.mubr.bf16.mxu0 0
      %2998 = vmatmul.mubr.bf16.gmra.mrb[0].mxu0 %v2960
      %v2999 = vpop.f32.mrb[0].mxu0
      %v3000 = vadd.f32 0.0, %v2999
      %v3001 = vpop.f32.mrb[0].mxu0
      %v3002 = vpop.f32.mrb[0].mxu0
      %v3003 = vpop.f32.mrb[0].mxu0
      %3004 = vdwg.mxu0
      %3005 = vrot.lane.b32.xlu0 %v919, 40
      %v3006 = vpop.permute.xlu0 %3005
      %v3008 = vsel %vm1036, %v2812, 0
      %v3011 = vsel %vm1040, %v3006, 0
      %3013 = vmatprep.subr.bf16.mxu0 0
      %3014 = vmatpush1.bf16.msra.mxu0 %v3011
      %3015 = vmatprep.subr.bf16.mxu0 0
      %3016 = vmatpush1.bf16.msra.mxu0 0
      %3017 = vmatprep.subr.bf16.mxu0 0
      %3018 = vmatpush1.bf16.msra.mxu0 0
      %3019 = vmatprep.subr.bf16.mxu0 0
      %3020 = vmatpush1.bf16.msra.mxu0 0
      %3021 = vmatprep.subr.bf16.mxu0 0
      %3022 = vmatpush1.bf16.msra.mxu0 0
      %3023 = vmatprep.subr.bf16.mxu0 0
      %3024 = vmatpush1.bf16.msra.mxu0 0
      %3025 = vmatprep.subr.bf16.mxu0 0
      %3026 = vmatpush1.bf16.msra.mxu0 0
      %3027 = vmatprep.subr.bf16.mxu0 0
      %3028 = vmatpush1.bf16.msra.mxu0 0
      %3029 = vmatprep.subr.bf16.mxu0 0
      %3030 = vmatpush1.bf16.msra.mxu0 0
      %3031 = vmatprep.subr.bf16.mxu0 0
      %3032 = vmatpush1.bf16.msra.mxu0 0
      %3033 = vmatprep.subr.bf16.mxu0 0
      %3034 = vmatpush1.bf16.msra.mxu0 0
      %3035 = vmatprep.subr.bf16.mxu0 0
      %3036 = vmatpush1.bf16.msra.mxu0 0
      %3037 = vmatprep.subr.bf16.mxu0 0
      %3038 = vmatpush1.bf16.msra.mxu0 0
      %3039 = vmatprep.subr.bf16.mxu0 0
      %3040 = vmatpush1.bf16.msra.mxu0 0
      %3041 = vmatprep.subr.bf16.mxu0 0
      %3042 = vmatpush1.bf16.msra.mxu0 0
      %3043 = vmatprep.subr.bf16.mxu0 0
      %3044 = vmatpush1.bf16.msra.mxu0 0
      %3045 = vmatprep.mubr.bf16.mxu0 0
      %3046 = vmatmul.mubr.bf16.gmra.mrb[0].mxu0 %v3008
      %v3047 = vpop.f32.mrb[0].mxu0
      %v3048 = vadd.f32 0.0, %v3047
      %v3049 = vpop.f32.mrb[0].mxu0
      %v3050 = vpop.f32.mrb[0].mxu0
      %v3051 = vpop.f32.mrb[0].mxu0
      %3052 = vdwg.mxu0
      %v3058 = vcombine.low %v2856, %v2904
      %v3059 = vcombine.low %v2952, %v3000
      %v3061 = vunpack.c.l.s4 1983009808
      %v3062 = vunpack.c.0.s8 %v3061
      %v3063 = vlaneseq
      %v3064 = vshrl.u32 %v3063, 7
      %v3065 = vsub.s32 %v3062, %v3064
      %v3066 = vrot.slane %v3058, %v3065
      %v3068 = vunpack.c.l.s4 1983009808
      %v3069 = vunpack.c.0.s8 %v3068
      %v3070 = vlaneseq
      %v3071 = vshrl.u32 %v3070, 7
      %v3072 = vsub.s32 %v3069, %v3071
      %v3073 = vrot.slane %v3059, %v3072
      %v3074 = vcombine.low %v3066, %v3073
      %v3076 = vunpack.c.l.s4 1983009808
      %v3077 = vunpack.c.0.s8 %v3076
      %v3078 = vlaneseq
      %v3079 = vshrl.u32 %v3078, 7
      %v3080 = vsub.s32 %v3077, %v3079
      %v3081 = vrot.slane %v3048, %v3080
      %3082 = vrot.lane.b32.xlu0 %v3074, 24
      %v3083 = vpop.permute.xlu0 %3082
      %3084 = vrot.lane.b32.xlu0 %v3081, 24
      %v3085 = vpop.permute.xlu0 %3084
      %vm3088 = vcmask 261312
      %3089 = vst.msk [vmem:[#allocation3] sm:$0xff] %vm3088, %v3083
      %vm3090 = vcmask 255168
      %3091 = vst.msk [vmem:[#allocation3 + $0x8] sm:$0x3] %vm3090, %v3085
      %v3092 = vld [vmem:[#allocation3] sm:$0xff]
      %v3093 = vld [vmem:[#allocation3 + $0x8] sm:$0x3]
      %v3094 = vpack.c.bf16 %v3093, %v3092
      %v3096 = vlaneseq
      %v3097 = vshrl.u32 %v3096, 7
      %v3098 = vsub.s32 0, %v3097
      %v3099 = vrot.slane %v431, %v3098
      %v3105 = vunpack.c.l.b16 %v427
      %v3106 = vunpack.c.l.b16 %v428
      %v3107 = vunpack.c.l.b16 %v429
      %v3108 = vunpack.c.l.b16 %v430
      %v3109 = vpack.c.b16 %v3106, %v3105
      %v3110 = vpack.c.b16 %v3108, %v3107
      %v3114 = vsel %vm571, %v3094, 0
      %3116 = vmatprep.subr.bf16.mxu0 0
      %3117 = vmatpush1.bf16.msra.mxu0 %v3109
      %3118 = vmatprep.subr.bf16.mxu0 0
      %3119 = vmatpush1.bf16.msra.mxu0 %v3110
      %3120 = vmatprep.subr.bf16.mxu0 0
      %3121 = vmatpush1.bf16.msra.mxu0 0
      %3122 = vmatprep.subr.bf16.mxu0 0
      %3123 = vmatpush1.bf16.msra.mxu0 0
      %3124 = vmatprep.subr.bf16.mxu0 0
      %3125 = vmatpush1.bf16.msra.mxu0 0
      %3126 = vmatprep.subr.bf16.mxu0 0
      %3127 = vmatpush1.bf16.msra.mxu0 0
      %3128 = vmatprep.subr.bf16.mxu0 0
      %3129 = vmatpush1.bf16.msra.mxu0 0
      %3130 = vmatprep.subr.bf16.mxu0 0
      %3131 = vmatpush1.bf16.msra.mxu0 0
      %3132 = vmatprep.subr.bf16.mxu0 0
      %3133 = vmatpush1.bf16.msra.mxu0 0
      %3134 = vmatprep.subr.bf16.mxu0 0
      %3135 = vmatpush1.bf16.msra.mxu0 0
      %3136 = vmatprep.subr.bf16.mxu0 0
      %3137 = vmatpush1.bf16.msra.mxu0 0
      %3138 = vmatprep.subr.bf16.mxu0 0
      %3139 = vmatpush1.bf16.msra.mxu0 0
      %3140 = vmatprep.subr.bf16.mxu0 0
      %3141 = vmatpush1.bf16.msra.mxu0 0
      %3142 = vmatprep.subr.bf16.mxu0 0
      %3143 = vmatpush1.bf16.msra.mxu0 0
      %3144 = vmatprep.subr.bf16.mxu0 0
      %3145 = vmatpush1.bf16.msra.mxu0 0
      %3146 = vmatprep.subr.bf16.mxu0 0
      %3147 = vmatpush1.bf16.msra.mxu0 0
      %3148 = vmatprep.mubr.bf16.mxu0 0
      %3149 = vmatmul.mubr.bf16.gmra.mrb[0].mxu0 %v3114
      %v3150 = vpop.f32.mrb[0].mxu0
      %v3151 = vadd.f32 %v3099, %v3150
      %v3152 = vpop.f32.mrb[0].mxu0
      %v3153 = vpop.f32.mrb[0].mxu0
      %v3154 = vadd.f32 %v3099, %v3153
      %v3155 = vpop.f32.mrb[0].mxu0
      %3156 = vdwg.mxu0
      %v3159 = vcombine.high %v3151, %v3151
      %v3161 = vunpack.c.l.s4 1983009808
      %v3162 = vunpack.c.0.s8 %v3161
      %v3163 = vlaneseq
      %v3164 = vshrl.u32 %v3163, 7
      %v3165 = vsub.s32 %v3162, %v3164
      %v3166 = vrot.slane %v3151, %v3165
      %v3168 = vunpack.c.l.s4 1983009808
      %v3169 = vunpack.c.0.s8 %v3168
      %v3170 = vlaneseq
      %v3171 = vshrl.u32 %v3170, 7
      %v3172 = vsub.s32 %v3169, %v3171
      %v3173 = vrot.slane %v3159, %v3172
      %v3174 = vcombine.high %v3166, %v3166
      %v3175 = vcombine.high %v3173, %v3173
      %v3177 = vunpack.c.l.s4 1983009808
      %v3178 = vunpack.c.0.s8 %v3177
      %v3179 = vlaneseq
      %v3180 = vshrl.u32 %v3179, 7
      %v3181 = vsub.s32 %v3178, %v3180
      %v3182 = vrot.slane %v3154, %v3181
      %v3188 = vadd.f32 %v415, %v3166
      %v3189 = vadd.f32 %v416, %v3174
      %v3190 = vadd.f32 %v417, %v3173
      %v3191 = vadd.f32 %v418, %v3175
      %v3192 = vadd.f32 %v419, %v3182
      %v3198 = vrot.slane %v3189, 7
      %vm3199 = vcmask 1041409
      %v3200 = vsel %vm3199, %v3198, %v3188
      %v3201 = vrot.slane %v3190, 6
      %vm3202 = vcmask 1042434
      %v3203 = vsel %vm3202, %v3201, %v3200
      %v3204 = vrot.slane %v3191, 5
      %vm3205 = vcmask 1043459
      %v3206 = vsel %vm3205, %v3204, %v3203
      %v3207 = vrot.slane %v3192, 4
      %vm3208 = vcmask 1044484
      %v3209 = vsel %vm3208, %v3207, %v3206
      %vm3211 = vcmask 258048
      %3212 = vst.msk [vmem:[%s309] sm:$0x1f] %vm3211, %v3209
      %v3213 = vsel %vm3202, %v3198, %v3188
      %v3214 = vsel %vm3205, %v3201, %v3213
      %v3215 = vsel %vm3208, %v3204, %v3214
      %vm3216 = vcmask 1045509
      %v3217 = vsel %vm3216, %v3207, %v3215
      %s3219 = scalar_lea.vmem %s309, 8
      %vm3220 = vcmask 259073
      %3221 = vst.msk [vmem:[%s3219 - $0x1] sm:$0x3e] %vm3220, %v3217
      %p3222 = scmp.lt.s32.totalorder %s22, 1
      %s3223 = scalar_select %p3222, %s22, 1
      %p3224 = scmp.lt.s32.totalorder %s23, 0
      %s3225 = scalar_select %p3224, %s23, 0
      %s3226 = smul.addr %s3223, 2
      %s3227 = sadd.s32 %s3225, %s3226
      %s3228 = smul.addr %s3227, 8
      %s3229 = scalar_lea.vmem %s7, %s3228
      // Predicated region
      $region49: #{timesformer_forward.11} parent=47 // pred_check
        %p3230 = pneg %p204
      $region50: #{timesformer_forward.11} parent=47 // pred_check_branch
        %3232 = sbr.rel (%p3230) target = $region52
      $region51: #{timesformer_forward.11} parent=47 // pred_region
        _
      $region52: #{timesformer_forward.11} parent=47 // pred_fallthru
        _
    $region48: #{timesformer_forward.11} parent=5 // pred_fallthru
      _
    %p3233 = scmp.le.s32.totalorder 2, %s13
    // Predicated region
    $region53: #{timesformer_forward.11} parent=5 // pred_check
      %p3234 = pneg %p3233
    $region54: #{timesformer_forward.11} parent=5 // pred_check_branch
      %3236 = sbr.rel (%p3234) target = $region56
    $region55: #{timesformer_forward.11} parent=5 // pred_region
      %s3237 = ssub.s32 %s13, 2
      // Predicated region
      $region57: #{timesformer_forward.11} parent=55 // pred_check
        %p3238 = pneg %p210
      $region58: #{timesformer_forward.11} parent=55 // pred_check_branch
        %3240 = sbr.rel (%p3238) target = $region60
      $region59: #{timesformer_forward.11} parent=55 // pred_region
        %p3241 = scmp.lt.s32.totalorder %s24, 1
        %s3242 = scalar_select %p3241, %s24, 1
        %p3243 = scmp.lt.s32.totalorder %s25, 0
        %s3244 = scalar_select %p3243, %s25, 0
        %s3245 = smul.addr %s3242, 2
        %s3246 = sadd.s32 %s3244, %s3245
        %s3247 = smul.addr %s3246, 8
        %s3248 = scalar_lea.vmem %s7, %s3247
      $region60: #{timesformer_forward.11} parent=55 // pred_fallthru
        _
    $region56: #{timesformer_forward.11} parent=5 // pred_fallthru
      _
  $region6: #{timesformer_forward.11} parent=0 // loop_footer
    %s17 = sadd.s32 1, %s13
  $region7: #{timesformer_forward.11} parent=0 // loop_footer_branch
    %12 = sbr.rel target = $region3
  $region8: #{timesformer_forward.11} parent=0 // loop_exit
    _

</llo_original>
